<compile_context>
chip_gen: v6e
topology: v6e:2x2x1
jax: 0.10.0
libtpu: 0.0.40
codegen_flags: <defaults>
</compile_context>

<pallas_src>
import jax
import jax.numpy as jnp
import numpy as np
from jax.experimental import pallas as pl
from jax.experimental.pallas import tpu as pltpu

# ---------------- model config (small, consistent with the module) ----------
LATENT_DIM = 16
SEQ_LEN = 8
HIDDEN_DIM = 32
N_LAYERS = 2
N_FEATS = 3
BATCH = 2
LANE = 128          # lane-dense padding for input-feature / output-feature dims

VMEM = pl.BlockSpec(memory_space=pltpu.MemorySpace.VMEM)


# ---------------------------- fused Pallas kernel ----------------------------
def vae_lstm_fused_kernel(
        x_ref, eps_ref,
        e_wih0_ref, e_whh0_ref, e_b0_ref,
        e_wih1_ref, e_whh1_ref, e_b1_ref,
        enc_w12_ref, enc_b12_ref,
        d_wih0_ref, d_whh0_ref, d_b0_ref,
        d_wih1_ref, d_whh1_ref, d_b1_ref,
        dec_w_ref, dec_b_ref,
        xhat_ref, lat_ref):
    """Whole VAE_LSTM forward in one kernel.

    x_ref:    (T, B, 128)  time-major input, first N_FEATS lanes valid
    eps_ref:  (B, L)       reparameterization noise
    xhat_ref: (T, B, 128)  sigmoid(dec_linear(dh)), first N_FEATS lanes valid
    lat_ref:  (B, 128)     [mu | logvar | z | 0...] packed along lanes
    """
    T, B, _ = x_ref.shape
    L = eps_ref.shape[1]
    H = e_whh0_ref.shape[0]
    H4 = 4 * H

    # ---- hoist all weight loads and bias broadcasts out of the loops -------
    e_wih0 = e_wih0_ref[...]
    e_whh0 = e_whh0_ref[...]
    e_wih1 = e_wih1_ref[...]
    e_whh1 = e_whh1_ref[...]
    d_whh0 = d_whh0_ref[...]
    d_wih1 = d_wih1_ref[...]
    d_whh1 = d_whh1_ref[...]
    dec_w = dec_w_ref[...]
    e_b0 = jnp.broadcast_to(e_b0_ref[...], (B, H4))
    e_b1 = jnp.broadcast_to(e_b1_ref[...], (B, H4))
    d_b1 = jnp.broadcast_to(d_b1_ref[...], (B, H4))
    dec_b = jnp.broadcast_to(dec_b_ref[...], (B, dec_w.shape[1]))

    def cell(gates, c):
        # g-gate columns of W_ih/W_hh and the g bias were pre-scaled by 2, so a
        # single full-width sigmoid covers all four gates; tanh(g_raw) is
        # recovered as 2*sigmoid(2*g_raw) - 1 (one VPU fma on the g lanes).
        sig = jax.nn.sigmoid(gates)
        i = sig[:, 0 * H:1 * H]
        f = sig[:, 1 * H:2 * H]
        g = 2.0 * sig[:, 2 * H:3 * H] - 1.0
        o = sig[:, 3 * H:4 * H]
        c_new = f * c + i * g
        h_new = o * jnp.tanh(c_new)
        return h_new, c_new

    zero_h = jnp.zeros((B, H), jnp.float32)

    # ---------------- encoder: wavefronted 2-layer LSTM ---------------------
    # Layer-1 step t is issued right after layer-0 step t; the mu/logvar head
    # contribution of step t is accumulated immediately so it hides under the
    # recurrence instead of forming a serial tail.
    h0, c0 = zero_h, zero_h
    h1, c1 = zero_h, zero_h
    ml = jnp.broadcast_to(enc_b12_ref[...], (B, 2 * L))
    for t in range(T):
        xp0 = jnp.dot(x_ref[t], e_wih0, preferred_element_type=jnp.float32) + e_b0
        h0, c0 = cell(xp0 + jnp.dot(h0, e_whh0, preferred_element_type=jnp.float32), c0)
        xp1 = jnp.dot(h0, e_wih1, preferred_element_type=jnp.float32) + e_b1
        h1, c1 = cell(xp1 + jnp.dot(h1, e_whh1, preferred_element_type=jnp.float32), c1)
        ml = ml + jnp.dot(h1, enc_w12_ref[t], preferred_element_type=jnp.float32)

    # ------------- heads + reparameterize; lane-dense latent store ----------
    mu = ml[:, 0:L]
    logvar = ml[:, L:2 * L]
    z = mu + eps_ref[...] * jnp.exp(0.5 * logvar)
    lat_ref[...] = jnp.concatenate(
        [mu, logvar, z,
         jnp.zeros((B, lat_ref.shape[1] - 3 * L), jnp.float32)], axis=1)

    # ---------------- decoder: wavefronted 2-layer LSTM ---------------------
    # latent_mode='repeat': layer-0 input projection of z computed once and
    # reused every step. dec_linear + sigmoid fused per step, stored lane-dense.
    zp = (jnp.dot(z, d_wih0_ref[...], preferred_element_type=jnp.float32)
          + jnp.broadcast_to(d_b0_ref[...], (B, H4)))
    h0, c0 = zero_h, zero_h
    h1, c1 = zero_h, zero_h
    for t in range(T):
        h0, c0 = cell(zp + jnp.dot(h0, d_whh0, preferred_element_type=jnp.float32), c0)
        dp1 = jnp.dot(h0, d_wih1, preferred_element_type=jnp.float32) + d_b1
        h1, c1 = cell(dp1 + jnp.dot(h1, d_whh1, preferred_element_type=jnp.float32), c1)
        y = jnp.dot(h1, dec_w, preferred_element_type=jnp.float32) + dec_b
        xhat_ref[t] = jax.nn.sigmoid(y)


# ------------------------------ wrappers -------------------------------------
def prepare_params(p):
    """One-time weight prep: transposes, bias sums, g-gate 2x pre-scale (tanh
    via 2*sigmoid(2x)-1), head fusion/reshape, lane padding."""
    def lstm_prep(layer):
        w_ih_t = layer['w_ih'].T                        # (Din, 4H)
        w_hh_t = layer['w_hh'].T                        # (H, 4H)
        b = (layer['b_ih'] + layer['b_hh'])[None, :]    # (1, 4H)
        H = w_hh_t.shape[0]
        scale = jnp.ones((4 * H,), jnp.float32).at[2 * H:3 * H].set(2.0)
        return w_ih_t * scale, w_hh_t * scale, b * scale

    e0w, e0r, e0b = lstm_prep(p['enc_lstm'][0])
    e1w, e1r, e1b = lstm_prep(p['enc_lstm'][1])
    d0w, d0r, d0b = lstm_prep(p['dec_lstm'][0])
    d1w, d1r, d1b = lstm_prep(p['dec_lstm'][1])

    # encoder layer-0 input weights padded to 128 input lanes (x is lane-padded)
    e0w_pad = jnp.zeros((LANE, 4 * HIDDEN_DIM), jnp.float32).at[:N_FEATS, :].set(e0w)

    # fused mu/logvar head, reshaped to per-timestep (T, H, 2L) blocks
    enc_w12 = jnp.concatenate([p['enc_linear1_w'].T, p['enc_linear2_w'].T], axis=1)
    enc_w12 = enc_w12.reshape(SEQ_LEN, HIDDEN_DIM, 2 * LATENT_DIM)
    enc_b12 = jnp.concatenate([p['enc_linear1_b'], p['enc_linear2_b']])[None, :]

    # decoder output head lane-padded to 128 output features
    dec_w = jnp.zeros((HIDDEN_DIM, LANE), jnp.float32).at[:, :N_FEATS].set(
        p['dec_linear_w'].T)
    dec_b = jnp.zeros((1, LANE), jnp.float32).at[0, :N_FEATS].set(p['dec_linear_b'])

    return dict(e_wih0=e0w_pad, e_whh0=e0r, e_b0=e0b,
                e_wih1=e1w, e_whh1=e1r, e_b1=e1b,
                enc_w12=enc_w12, enc_b12=enc_b12,
                d_wih0=d0w, d_whh0=d0r, d_b0=d0b,
                d_wih1=d1w, d_whh1=d1r, d_b1=d1b,
                dec_w=dec_w, dec_b=dec_b)


@jax.jit
def vae_lstm_forward(prep, x, eps):
    """x: (B, T, n_feats) batch_first (PyTorch convention).
    Returns (xhat, mu, logvar, z)."""
    B, T, F = x.shape
    L = LATENT_DIM
    x_tbf = jnp.transpose(x, (1, 0, 2))                                  # (T, B, F)
    x_pad = jnp.zeros((T, B, LANE), jnp.float32).at[:, :, :F].set(x_tbf)  # lane-dense

    xhat_pad, lat_pad = pl.pallas_call(
        vae_lstm_fused_kernel,
        out_shape=(jax.ShapeDtypeStruct((T, B, LANE), jnp.float32),
                   jax.ShapeDtypeStruct((B, LANE), jnp.float32)),
        in_specs=[VMEM] * 18,
        out_specs=(VMEM, VMEM),
    )(x_pad, eps,
      prep['e_wih0'], prep['e_whh0'], prep['e_b0'],
      prep['e_wih1'], prep['e_whh1'], prep['e_b1'],
      prep['enc_w12'], prep['enc_b12'],
      prep['d_wih0'], prep['d_whh0'], prep['d_b0'],
      prep['d_wih1'], prep['d_whh1'], prep['d_b1'],
      prep['dec_w'], prep['dec_b'])

    xhat = jnp.transpose(xhat_pad, (1, 0, 2))[:, :, :F]
    mu = lat_pad[:, 0:L]
    logvar = lat_pad[:, L:2 * L]
    z = lat_pad[:, 2 * L:3 * L]
    return xhat, mu, logvar, z


# ------------------------ deterministic parameters ---------------------------
def init_params(key):
    keys = iter(jax.random.split(key, 128))

    def xavier(shape):  # nn.init.xavier_normal_
        fan_out, fan_in = shape
        std = (2.0 / (fan_in + fan_out)) ** 0.5
        return std * jax.random.normal(next(keys), shape, jnp.float32)

    def normal_bias(shape):  # nn.init.normal_(param, 0.0) -> mean 0, std 1
        return jax.random.normal(next(keys), shape, jnp.float32)

    def dense_w(shape):  # nn.Linear default-ish (synthetic, deterministic)
        bound = 1.0 / (shape[1] ** 0.5)
        return jax.random.uniform(next(keys), shape, jnp.float32, -bound, bound)

    def dense_b(n, fan_in):
        bound = 1.0 / (fan_in ** 0.5)
        return jax.random.uniform(next(keys), (n,), jnp.float32, -bound, bound)

    def make_lstm(din):
        layers = []
        d = din
        for _ in range(N_LAYERS):
            layers.append(dict(
                w_ih=xavier((4 * HIDDEN_DIM, d)),
                w_hh=xavier((4 * HIDDEN_DIM, HIDDEN_DIM)),
                b_ih=normal_bias((4 * HIDDEN_DIM,)),
                b_hh=normal_bias((4 * HIDDEN_DIM,)),
            ))
            d = HIDDEN_DIM
        return layers

    return dict(
        enc_lstm=make_lstm(N_FEATS),
        dec_lstm=make_lstm(LATENT_DIM),
        enc_linear1_w=dense_w((LATENT_DIM, SEQ_LEN * HIDDEN_DIM)),
        enc_linear1_b=dense_b(LATENT_DIM, SEQ_LEN * HIDDEN_DIM),
        enc_linear2_w=dense_w((LATENT_DIM, SEQ_LEN * HIDDEN_DIM)),
        enc_linear2_b=dense_b(LATENT_DIM, SEQ_LEN * HIDDEN_DIM),
        dec_linear_w=dense_w((N_FEATS, HIDDEN_DIM)),
        dec_linear_b=dense_b(N_FEATS, HIDDEN_DIM),
    )


# --------------------------- pure-JAX reference -------------------------------
def _lstm_ref(x_bt, layers):
    B, T, _ = x_bt.shape
    seq = x_bt
    for p in layers:
        H = p['w_hh'].shape[1]
        h = jnp.zeros((B, H), jnp.float32)
        c = jnp.zeros((B, H), jnp.float32)
        outs = []
        for t in range(T):
            g = seq[:, t, :] @ p['w_ih'].T + h @ p['w_hh'].T + p['b_ih'] + p['b_hh']
            i = jax.nn.sigmoid(g[:, :H])
            f = jax.nn.sigmoid(g[:, H:2 * H])
            gg = jnp.tanh(g[:, 2 * H:3 * H])
            o = jax.nn.sigmoid(g[:, 3 * H:])
            c = f * c + i * gg
            h = o * jnp.tanh(c)
            outs.append(h)
        seq = jnp.stack(outs, axis=1)
    return seq


def vae_lstm_ref(params, x, eps):
    B = x.shape[0]
    eh = _lstm_ref(x, params['enc_lstm']).reshape(B, -1)
    mu = eh @ params['enc_linear1_w'].T + params['enc_linear1_b']
    logvar = eh @ params['enc_linear2_w'].T + params['enc_linear2_b']
    z = mu + eps * jnp.exp(0.5 * logvar)
    z_rep = jnp.repeat(z[:, None, :], SEQ_LEN, axis=1)
    dh = _lstm_ref(z_rep, params['dec_lstm'])
    xhat = jax.nn.sigmoid(dh @ params['dec_linear_w'].T + params['dec_linear_b'])
    return xhat, mu, logvar, z


# ------------------------------------ main ------------------------------------
if __name__ == "__main__":
    key = jax.random.PRNGKey(0)
    pkey, xkey, ekey = jax.random.split(key, 3)
    params = init_params(pkey)
    prep = prepare_params(params)   # one-time weight prep (transposes, fusions, 2x g-scale)

    x = jax.random.normal(xkey, (BATCH, SEQ_LEN, N_FEATS), jnp.float32)
    # eps plays the role of torch.randn_like in reparameterize (passed in for determinism)
    eps = jax.random.normal(ekey, (BATCH, LATENT_DIM), jnp.float32)

    xhat, mu, logvar, z = vae_lstm_forward(prep, x, eps)
    jax.block_until_ready((xhat, mu, logvar, z))

    xr, mr, lr, zr = vae_lstm_ref(params, x, eps)
    assert np.allclose(np.asarray(mu), np.asarray(mr), atol=1e-4, rtol=1e-4)
    assert np.allclose(np.asarray(logvar), np.asarray(lr), atol=1e-4, rtol=1e-4)
    assert np.allclose(np.asarray(z), np.asarray(zr), atol=1e-4, rtol=1e-4)
    assert np.allclose(np.asarray(xhat), np.asarray(xr), atol=1e-4, rtol=1e-4)

    print("KERNEL_OK")
</pallas_src>

<mosaic_0001>
module attributes {stable_mosaic.version = 11 : i64} {
  func.func @vae_lstm_fused_kernel(%arg0: memref<8x2x128xf32, #tpu.memory_space<vmem>>, %arg1: memref<2x16xf32, #tpu.memory_space<vmem>>, %arg2: memref<128x128xf32, #tpu.memory_space<vmem>>, %arg3: memref<32x128xf32, #tpu.memory_space<vmem>>, %arg4: memref<1x128xf32, #tpu.memory_space<vmem>>, %arg5: memref<32x128xf32, #tpu.memory_space<vmem>>, %arg6: memref<32x128xf32, #tpu.memory_space<vmem>>, %arg7: memref<1x128xf32, #tpu.memory_space<vmem>>, %arg8: memref<8x32x32xf32, #tpu.memory_space<vmem>>, %arg9: memref<1x32xf32, #tpu.memory_space<vmem>>, %arg10: memref<16x128xf32, #tpu.memory_space<vmem>>, %arg11: memref<32x128xf32, #tpu.memory_space<vmem>>, %arg12: memref<1x128xf32, #tpu.memory_space<vmem>>, %arg13: memref<32x128xf32, #tpu.memory_space<vmem>>, %arg14: memref<32x128xf32, #tpu.memory_space<vmem>>, %arg15: memref<1x128xf32, #tpu.memory_space<vmem>>, %arg16: memref<32x128xf32, #tpu.memory_space<vmem>>, %arg17: memref<1x128xf32, #tpu.memory_space<vmem>>, %arg18: memref<8x2x128xf32, #tpu.memory_space<vmem>>, %arg19: memref<2x128xf32, #tpu.memory_space<vmem>>) attributes {dimension_semantics = [], scalar_prefetch = 0 : i64, scratch_operands = 0 : i64, tpu.core_type = #tpu.core_type<tc>} {
    %c0 = arith.constant 0 : index
    %c0_0 = arith.constant 0 : index
    %0 = vector.load %arg2[%c0, %c0_0] : memref<128x128xf32, #tpu.memory_space<vmem>>, vector<128x128xf32>
    %c0_1 = arith.constant 0 : index
    %c0_2 = arith.constant 0 : index
    %1 = vector.load %arg3[%c0_1, %c0_2] : memref<32x128xf32, #tpu.memory_space<vmem>>, vector<32x128xf32>
    %c0_3 = arith.constant 0 : index
    %c0_4 = arith.constant 0 : index
    %2 = vector.load %arg5[%c0_3, %c0_4] : memref<32x128xf32, #tpu.memory_space<vmem>>, vector<32x128xf32>
    %c0_5 = arith.constant 0 : index
    %c0_6 = arith.constant 0 : index
    %3 = vector.load %arg6[%c0_5, %c0_6] : memref<32x128xf32, #tpu.memory_space<vmem>>, vector<32x128xf32>
    %c0_7 = arith.constant 0 : index
    %c0_8 = arith.constant 0 : index
    %4 = vector.load %arg11[%c0_7, %c0_8] : memref<32x128xf32, #tpu.memory_space<vmem>>, vector<32x128xf32>
    %c0_9 = arith.constant 0 : index
    %c0_10 = arith.constant 0 : index
    %5 = vector.load %arg13[%c0_9, %c0_10] : memref<32x128xf32, #tpu.memory_space<vmem>>, vector<32x128xf32>
    %c0_11 = arith.constant 0 : index
    %c0_12 = arith.constant 0 : index
    %6 = vector.load %arg14[%c0_11, %c0_12] : memref<32x128xf32, #tpu.memory_space<vmem>>, vector<32x128xf32>
    %c0_13 = arith.constant 0 : index
    %c0_14 = arith.constant 0 : index
    %7 = vector.load %arg16[%c0_13, %c0_14] : memref<32x128xf32, #tpu.memory_space<vmem>>, vector<32x128xf32>
    %c0_15 = arith.constant 0 : index
    %c0_16 = arith.constant 0 : index
    %8 = vector.load %arg4[%c0_15, %c0_16] : memref<1x128xf32, #tpu.memory_space<vmem>>, vector<1x128xf32>
    %9 = vector.shape_cast %8 : vector<1x128xf32> to vector<1x128xf32>
    %10 = vector.broadcast %9 : vector<1x128xf32> to vector<2x128xf32>
    %c0_17 = arith.constant 0 : index
    %c0_18 = arith.constant 0 : index
    %11 = vector.load %arg7[%c0_17, %c0_18] : memref<1x128xf32, #tpu.memory_space<vmem>>, vector<1x128xf32>
    %12 = vector.shape_cast %11 : vector<1x128xf32> to vector<1x128xf32>
    %13 = vector.broadcast %12 : vector<1x128xf32> to vector<2x128xf32>
    %c0_19 = arith.constant 0 : index
    %c0_20 = arith.constant 0 : index
    %14 = vector.load %arg15[%c0_19, %c0_20] : memref<1x128xf32, #tpu.memory_space<vmem>>, vector<1x128xf32>
    %15 = vector.shape_cast %14 : vector<1x128xf32> to vector<1x128xf32>
    %16 = vector.broadcast %15 : vector<1x128xf32> to vector<2x128xf32>
    %c0_21 = arith.constant 0 : index
    %c0_22 = arith.constant 0 : index
    %17 = vector.load %arg17[%c0_21, %c0_22] : memref<1x128xf32, #tpu.memory_space<vmem>>, vector<1x128xf32>
    %18 = vector.shape_cast %17 : vector<1x128xf32> to vector<1x128xf32>
    %19 = vector.broadcast %18 : vector<1x128xf32> to vector<2x128xf32>
    %cst = arith.constant 0.000000e+00 : f32
    %20 = vector.broadcast %cst : f32 to vector<2x32xf32>
    %c0_23 = arith.constant 0 : index
    %c0_24 = arith.constant 0 : index
    %21 = vector.load %arg9[%c0_23, %c0_24] : memref<1x32xf32, #tpu.memory_space<vmem>>, vector<1x32xf32>
    %22 = vector.shape_cast %21 : vector<1x32xf32> to vector<1x32xf32>
    %23 = vector.broadcast %22 : vector<1x32xf32> to vector<2x32xf32>
    %c0_25 = arith.constant 0 : index
    %c0_26 = arith.constant 0 : index
    %c0_27 = arith.constant 0 : index
    %24 = vector.load %arg0[%c0_25, %c0_26, %c0_27] : memref<8x2x128xf32, #tpu.memory_space<vmem>>, vector<1x2x128xf32>
    %25 = vector.shape_cast %24 : vector<1x2x128xf32> to vector<2x128xf32>
    %cst_28 = arith.constant dense<0.000000e+00> : vector<2x128xf32>
    %26 = tpu.matmul %25, %0, %cst_28 {dimension_numbers = #tpu.dot_dimension_numbers<[1], [0], [0], [1], [0, 0, 1, 1], [], []>} : vector<2x128xf32>, vector<128x128xf32>, vector<2x128xf32> -> vector<2x128xf32>
    %27 = arith.addf %26, %10 : vector<2x128xf32>
    %cst_29 = arith.constant dense<0.000000e+00> : vector<2x128xf32>
    %28 = tpu.matmul %20, %1, %cst_29 {dimension_numbers = #tpu.dot_dimension_numbers<[1], [0], [0], [1], [0, 0, 1, 1], [], []>} : vector<2x32xf32>, vector<32x128xf32>, vector<2x128xf32> -> vector<2x128xf32>
    %29 = arith.addf %27, %28 : vector<2x128xf32>
    %30 = arith.negf %29 : vector<2x128xf32>
    %31 = math.exp %30 : vector<2x128xf32>
    %cst_30 = arith.constant 1.000000e+00 : f32
    %32 = vector.broadcast %cst_30 : f32 to vector<2x128xf32>
    %33 = arith.addf %32, %31 : vector<2x128xf32>
    %34 = arith.divf %32, %33 : vector<2x128xf32>
    %35 = vector.extract_strided_slice %34 {offsets = [0, 0], sizes = [2, 32], strides = [1, 1]} : vector<2x128xf32> to vector<2x32xf32>
    %36 = vector.extract_strided_slice %34 {offsets = [0, 32], sizes = [2, 32], strides = [1, 1]} : vector<2x128xf32> to vector<2x32xf32>
    %37 = vector.extract_strided_slice %34 {offsets = [0, 64], sizes = [2, 32], strides = [1, 1]} : vector<2x128xf32> to vector<2x32xf32>
    %cst_31 = arith.constant 2.000000e+00 : f32
    %38 = vector.broadcast %cst_31 : f32 to vector<2x32xf32>
    %39 = arith.mulf %38, %37 : vector<2x32xf32>
    %cst_32 = arith.constant 1.000000e+00 : f32
    %40 = vector.broadcast %cst_32 : f32 to vector<2x32xf32>
    %41 = arith.subf %39, %40 : vector<2x32xf32>
    %42 = vector.extract_strided_slice %34 {offsets = [0, 96], sizes = [2, 32], strides = [1, 1]} : vector<2x128xf32> to vector<2x32xf32>
    %43 = arith.mulf %36, %20 : vector<2x32xf32>
    %44 = arith.mulf %35, %41 : vector<2x32xf32>
    %45 = arith.addf %43, %44 : vector<2x32xf32>
    %46 = math.tanh %45 : vector<2x32xf32>
    %47 = arith.mulf %42, %46 : vector<2x32xf32>
    %cst_33 = arith.constant dense<0.000000e+00> : vector<2x128xf32>
    %48 = tpu.matmul %47, %2, %cst_33 {dimension_numbers = #tpu.dot_dimension_numbers<[1], [0], [0], [1], [0, 0, 1, 1], [], []>} : vector<2x32xf32>, vector<32x128xf32>, vector<2x128xf32> -> vector<2x128xf32>
    %49 = arith.addf %48, %13 : vector<2x128xf32>
    %cst_34 = arith.constant dense<0.000000e+00> : vector<2x128xf32>
    %50 = tpu.matmul %20, %3, %cst_34 {dimension_numbers = #tpu.dot_dimension_numbers<[1], [0], [0], [1], [0, 0, 1, 1], [], []>} : vector<2x32xf32>, vector<32x128xf32>, vector<2x128xf32> -> vector<2x128xf32>
    %51 = arith.addf %49, %50 : vector<2x128xf32>
    %52 = arith.negf %51 : vector<2x128xf32>
    %53 = math.exp %52 : vector<2x128xf32>
    %cst_35 = arith.constant 1.000000e+00 : f32
    %54 = vector.broadcast %cst_35 : f32 to vector<2x128xf32>
    %55 = arith.addf %54, %53 : vector<2x128xf32>
    %56 = arith.divf %54, %55 : vector<2x128xf32>
    %57 = vector.extract_strided_slice %56 {offsets = [0, 0], sizes = [2, 32], strides = [1, 1]} : vector<2x128xf32> to vector<2x32xf32>
    %58 = vector.extract_strided_slice %56 {offsets = [0, 32], sizes = [2, 32], strides = [1, 1]} : vector<2x128xf32> to vector<2x32xf32>
    %59 = vector.extract_strided_slice %56 {offsets = [0, 64], sizes = [2, 32], strides = [1, 1]} : vector<2x128xf32> to vector<2x32xf32>
    %cst_36 = arith.constant 2.000000e+00 : f32
    %60 = vector.broadcast %cst_36 : f32 to vector<2x32xf32>
    %61 = arith.mulf %60, %59 : vector<2x32xf32>
    %cst_37 = arith.constant 1.000000e+00 : f32
    %62 = vector.broadcast %cst_37 : f32 to vector<2x32xf32>
    %63 = arith.subf %61, %62 : vector<2x32xf32>
    %64 = vector.extract_strided_slice %56 {offsets = [0, 96], sizes = [2, 32], strides = [1, 1]} : vector<2x128xf32> to vector<2x32xf32>
    %65 = arith.mulf %58, %20 : vector<2x32xf32>
    %66 = arith.mulf %57, %63 : vector<2x32xf32>
    %67 = arith.addf %65, %66 : vector<2x32xf32>
    %68 = math.tanh %67 : vector<2x32xf32>
    %69 = arith.mulf %64, %68 : vector<2x32xf32>
    %c0_38 = arith.constant 0 : index
    %c0_39 = arith.constant 0 : index
    %c0_40 = arith.constant 0 : index
    %70 = vector.load %arg8[%c0_38, %c0_39, %c0_40] : memref<8x32x32xf32, #tpu.memory_space<vmem>>, vector<1x32x32xf32>
    %71 = vector.shape_cast %70 : vector<1x32x32xf32> to vector<32x32xf32>
    %cst_41 = arith.constant dense<0.000000e+00> : vector<2x32xf32>
    %72 = tpu.matmul %69, %71, %cst_41 {dimension_numbers = #tpu.dot_dimension_numbers<[1], [0], [0], [1], [0, 0, 1, 1], [], []>} : vector<2x32xf32>, vector<32x32xf32>, vector<2x32xf32> -> vector<2x32xf32>
    %73 = arith.addf %23, %72 : vector<2x32xf32>
    %c1 = arith.constant 1 : index
    %c0_42 = arith.constant 0 : index
    %c0_43 = arith.constant 0 : index
    %74 = vector.load %arg0[%c1, %c0_42, %c0_43] : memref<8x2x128xf32, #tpu.memory_space<vmem>>, vector<1x2x128xf32>
    %75 = vector.shape_cast %74 : vector<1x2x128xf32> to vector<2x128xf32>
    %cst_44 = arith.constant dense<0.000000e+00> : vector<2x128xf32>
    %76 = tpu.matmul %75, %0, %cst_44 {dimension_numbers = #tpu.dot_dimension_numbers<[1], [0], [0], [1], [0, 0, 1, 1], [], []>} : vector<2x128xf32>, vector<128x128xf32>, vector<2x128xf32> -> vector<2x128xf32>
    %77 = arith.addf %76, %10 : vector<2x128xf32>
    %cst_45 = arith.constant dense<0.000000e+00> : vector<2x128xf32>
    %78 = tpu.matmul %47, %1, %cst_45 {dimension_numbers = #tpu.dot_dimension_numbers<[1], [0], [0], [1], [0, 0, 1, 1], [], []>} : vector<2x32xf32>, vector<32x128xf32>, vector<2x128xf32> -> vector<2x128xf32>
    %79 = arith.addf %77, %78 : vector<2x128xf32>
    %80 = arith.negf %79 : vector<2x128xf32>
    %81 = math.exp %80 : vector<2x128xf32>
    %cst_46 = arith.constant 1.000000e+00 : f32
    %82 = vector.broadcast %cst_46 : f32 to vector<2x128xf32>
    %83 = arith.addf %82, %81 : vector<2x128xf32>
    %84 = arith.divf %82, %83 : vector<2x128xf32>
    %85 = vector.extract_strided_slice %84 {offsets = [0, 0], sizes = [2, 32], strides = [1, 1]} : vector<2x128xf32> to vector<2x32xf32>
    %86 = vector.extract_strided_slice %84 {offsets = [0, 32], sizes = [2, 32], strides = [1, 1]} : vector<2x128xf32> to vector<2x32xf32>
    %87 = vector.extract_strided_slice %84 {offsets = [0, 64], sizes = [2, 32], strides = [1, 1]} : vector<2x128xf32> to vector<2x32xf32>
    %cst_47 = arith.constant 2.000000e+00 : f32
    %88 = vector.broadcast %cst_47 : f32 to vector<2x32xf32>
    %89 = arith.mulf %88, %87 : vector<2x32xf32>
    %cst_48 = arith.constant 1.000000e+00 : f32
    %90 = vector.broadcast %cst_48 : f32 to vector<2x32xf32>
    %91 = arith.subf %89, %90 : vector<2x32xf32>
    %92 = vector.extract_strided_slice %84 {offsets = [0, 96], sizes = [2, 32], strides = [1, 1]} : vector<2x128xf32> to vector<2x32xf32>
    %93 = arith.mulf %86, %45 : vector<2x32xf32>
    %94 = arith.mulf %85, %91 : vector<2x32xf32>
    %95 = arith.addf %93, %94 : vector<2x32xf32>
    %96 = math.tanh %95 : vector<2x32xf32>
    %97 = arith.mulf %92, %96 : vector<2x32xf32>
    %cst_49 = arith.constant dense<0.000000e+00> : vector<2x128xf32>
    %98 = tpu.matmul %97, %2, %cst_49 {dimension_numbers = #tpu.dot_dimension_numbers<[1], [0], [0], [1], [0, 0, 1, 1], [], []>} : vector<2x32xf32>, vector<32x128xf32>, vector<2x128xf32> -> vector<2x128xf32>
    %99 = arith.addf %98, %13 : vector<2x128xf32>
    %cst_50 = arith.constant dense<0.000000e+00> : vector<2x128xf32>
    %100 = tpu.matmul %69, %3, %cst_50 {dimension_numbers = #tpu.dot_dimension_numbers<[1], [0], [0], [1], [0, 0, 1, 1], [], []>} : vector<2x32xf32>, vector<32x128xf32>, vector<2x128xf32> -> vector<2x128xf32>
    %101 = arith.addf %99, %100 : vector<2x128xf32>
    %102 = arith.negf %101 : vector<2x128xf32>
    %103 = math.exp %102 : vector<2x128xf32>
    %cst_51 = arith.constant 1.000000e+00 : f32
    %104 = vector.broadcast %cst_51 : f32 to vector<2x128xf32>
    %105 = arith.addf %104, %103 : vector<2x128xf32>
    %106 = arith.divf %104, %105 : vector<2x128xf32>
    %107 = vector.extract_strided_slice %106 {offsets = [0, 0], sizes = [2, 32], strides = [1, 1]} : vector<2x128xf32> to vector<2x32xf32>
    %108 = vector.extract_strided_slice %106 {offsets = [0, 32], sizes = [2, 32], strides = [1, 1]} : vector<2x128xf32> to vector<2x32xf32>
    %109 = vector.extract_strided_slice %106 {offsets = [0, 64], sizes = [2, 32], strides = [1, 1]} : vector<2x128xf32> to vector<2x32xf32>
    %cst_52 = arith.constant 2.000000e+00 : f32
    %110 = vector.broadcast %cst_52 : f32 to vector<2x32xf32>
    %111 = arith.mulf %110, %109 : vector<2x32xf32>
    %cst_53 = arith.constant 1.000000e+00 : f32
    %112 = vector.broadcast %cst_53 : f32 to vector<2x32xf32>
    %113 = arith.subf %111, %112 : vector<2x32xf32>
    %114 = vector.extract_strided_slice %106 {offsets = [0, 96], sizes = [2, 32], strides = [1, 1]} : vector<2x128xf32> to vector<2x32xf32>
    %115 = arith.mulf %108, %67 : vector<2x32xf32>
    %116 = arith.mulf %107, %113 : vector<2x32xf32>
    %117 = arith.addf %115, %116 : vector<2x32xf32>
    %118 = math.tanh %117 : vector<2x32xf32>
    %119 = arith.mulf %114, %118 : vector<2x32xf32>
    %c1_54 = arith.constant 1 : index
    %c0_55 = arith.constant 0 : index
    %c0_56 = arith.constant 0 : index
    %120 = vector.load %arg8[%c1_54, %c0_55, %c0_56] : memref<8x32x32xf32, #tpu.memory_space<vmem>>, vector<1x32x32xf32>
    %121 = vector.shape_cast %120 : vector<1x32x32xf32> to vector<32x32xf32>
    %cst_57 = arith.constant dense<0.000000e+00> : vector<2x32xf32>
    %122 = tpu.matmul %119, %121, %cst_57 {dimension_numbers = #tpu.dot_dimension_numbers<[1], [0], [0], [1], [0, 0, 1, 1], [], []>} : vector<2x32xf32>, vector<32x32xf32>, vector<2x32xf32> -> vector<2x32xf32>
    %123 = arith.addf %73, %122 : vector<2x32xf32>
    %c2 = arith.constant 2 : index
    %c0_58 = arith.constant 0 : index
    %c0_59 = arith.constant 0 : index
    %124 = vector.load %arg0[%c2, %c0_58, %c0_59] : memref<8x2x128xf32, #tpu.memory_space<vmem>>, vector<1x2x128xf32>
    %125 = vector.shape_cast %124 : vector<1x2x128xf32> to vector<2x128xf32>
    %cst_60 = arith.constant dense<0.000000e+00> : vector<2x128xf32>
    %126 = tpu.matmul %125, %0, %cst_60 {dimension_numbers = #tpu.dot_dimension_numbers<[1], [0], [0], [1], [0, 0, 1, 1], [], []>} : vector<2x128xf32>, vector<128x128xf32>, vector<2x128xf32> -> vector<2x128xf32>
    %127 = arith.addf %126, %10 : vector<2x128xf32>
    %cst_61 = arith.constant dense<0.000000e+00> : vector<2x128xf32>
    %128 = tpu.matmul %97, %1, %cst_61 {dimension_numbers = #tpu.dot_dimension_numbers<[1], [0], [0], [1], [0, 0, 1, 1], [], []>} : vector<2x32xf32>, vector<32x128xf32>, vector<2x128xf32> -> vector<2x128xf32>
    %129 = arith.addf %127, %128 : vector<2x128xf32>
    %130 = arith.negf %129 : vector<2x128xf32>
    %131 = math.exp %130 : vector<2x128xf32>
    %cst_62 = arith.constant 1.000000e+00 : f32
    %132 = vector.broadcast %cst_62 : f32 to vector<2x128xf32>
    %133 = arith.addf %132, %131 : vector<2x128xf32>
    %134 = arith.divf %132, %133 : vector<2x128xf32>
    %135 = vector.extract_strided_slice %134 {offsets = [0, 0], sizes = [2, 32], strides = [1, 1]} : vector<2x128xf32> to vector<2x32xf32>
    %136 = vector.extract_strided_slice %134 {offsets = [0, 32], sizes = [2, 32], strides = [1, 1]} : vector<2x128xf32> to vector<2x32xf32>
    %137 = vector.extract_strided_slice %134 {offsets = [0, 64], sizes = [2, 32], strides = [1, 1]} : vector<2x128xf32> to vector<2x32xf32>
    %cst_63 = arith.constant 2.000000e+00 : f32
    %138 = vector.broadcast %cst_63 : f32 to vector<2x32xf32>
    %139 = arith.mulf %138, %137 : vector<2x32xf32>
    %cst_64 = arith.constant 1.000000e+00 : f32
    %140 = vector.broadcast %cst_64 : f32 to vector<2x32xf32>
    %141 = arith.subf %139, %140 : vector<2x32xf32>
    %142 = vector.extract_strided_slice %134 {offsets = [0, 96], sizes = [2, 32], strides = [1, 1]} : vector<2x128xf32> to vector<2x32xf32>
    %143 = arith.mulf %136, %95 : vector<2x32xf32>
    %144 = arith.mulf %135, %141 : vector<2x32xf32>
    %145 = arith.addf %143, %144 : vector<2x32xf32>
    %146 = math.tanh %145 : vector<2x32xf32>
    %147 = arith.mulf %142, %146 : vector<2x32xf32>
    %cst_65 = arith.constant dense<0.000000e+00> : vector<2x128xf32>
    %148 = tpu.matmul %147, %2, %cst_65 {dimension_numbers = #tpu.dot_dimension_numbers<[1], [0], [0], [1], [0, 0, 1, 1], [], []>} : vector<2x32xf32>, vector<32x128xf32>, vector<2x128xf32> -> vector<2x128xf32>
    %149 = arith.addf %148, %13 : vector<2x128xf32>
    %cst_66 = arith.constant dense<0.000000e+00> : vector<2x128xf32>
    %150 = tpu.matmul %119, %3, %cst_66 {dimension_numbers = #tpu.dot_dimension_numbers<[1], [0], [0], [1], [0, 0, 1, 1], [], []>} : vector<2x32xf32>, vector<32x128xf32>, vector<2x128xf32> -> vector<2x128xf32>
    %151 = arith.addf %149, %150 : vector<2x128xf32>
    %152 = arith.negf %151 : vector<2x128xf32>
    %153 = math.exp %152 : vector<2x128xf32>
    %cst_67 = arith.constant 1.000000e+00 : f32
    %154 = vector.broadcast %cst_67 : f32 to vector<2x128xf32>
    %155 = arith.addf %154, %153 : vector<2x128xf32>
    %156 = arith.divf %154, %155 : vector<2x128xf32>
    %157 = vector.extract_strided_slice %156 {offsets = [0, 0], sizes = [2, 32], strides = [1, 1]} : vector<2x128xf32> to vector<2x32xf32>
    %158 = vector.extract_strided_slice %156 {offsets = [0, 32], sizes = [2, 32], strides = [1, 1]} : vector<2x128xf32> to vector<2x32xf32>
    %159 = vector.extract_strided_slice %156 {offsets = [0, 64], sizes = [2, 32], strides = [1, 1]} : vector<2x128xf32> to vector<2x32xf32>
    %cst_68 = arith.constant 2.000000e+00 : f32
    %160 = vector.broadcast %cst_68 : f32 to vector<2x32xf32>
    %161 = arith.mulf %160, %159 : vector<2x32xf32>
    %cst_69 = arith.constant 1.000000e+00 : f32
    %162 = vector.broadcast %cst_69 : f32 to vector<2x32xf32>
    %163 = arith.subf %161, %162 : vector<2x32xf32>
    %164 = vector.extract_strided_slice %156 {offsets = [0, 96], sizes = [2, 32], strides = [1, 1]} : vector<2x128xf32> to vector<2x32xf32>
    %165 = arith.mulf %158, %117 : vector<2x32xf32>
    %166 = arith.mulf %157, %163 : vector<2x32xf32>
    %167 = arith.addf %165, %166 : vector<2x32xf32>
    %168 = math.tanh %167 : vector<2x32xf32>
    %169 = arith.mulf %164, %168 : vector<2x32xf32>
    %c2_70 = arith.constant 2 : index
    %c0_71 = arith.constant 0 : index
    %c0_72 = arith.constant 0 : index
    %170 = vector.load %arg8[%c2_70, %c0_71, %c0_72] : memref<8x32x32xf32, #tpu.memory_space<vmem>>, vector<1x32x32xf32>
    %171 = vector.shape_cast %170 : vector<1x32x32xf32> to vector<32x32xf32>
    %cst_73 = arith.constant dense<0.000000e+00> : vector<2x32xf32>
    %172 = tpu.matmul %169, %171, %cst_73 {dimension_numbers = #tpu.dot_dimension_numbers<[1], [0], [0], [1], [0, 0, 1, 1], [], []>} : vector<2x32xf32>, vector<32x32xf32>, vector<2x32xf32> -> vector<2x32xf32>
    %173 = arith.addf %123, %172 : vector<2x32xf32>
    %c3 = arith.constant 3 : index
    %c0_74 = arith.constant 0 : index
    %c0_75 = arith.constant 0 : index
    %174 = vector.load %arg0[%c3, %c0_74, %c0_75] : memref<8x2x128xf32, #tpu.memory_space<vmem>>, vector<1x2x128xf32>
    %175 = vector.shape_cast %174 : vector<1x2x128xf32> to vector<2x128xf32>
    %cst_76 = arith.constant dense<0.000000e+00> : vector<2x128xf32>
    %176 = tpu.matmul %175, %0, %cst_76 {dimension_numbers = #tpu.dot_dimension_numbers<[1], [0], [0], [1], [0, 0, 1, 1], [], []>} : vector<2x128xf32>, vector<128x128xf32>, vector<2x128xf32> -> vector<2x128xf32>
    %177 = arith.addf %176, %10 : vector<2x128xf32>
    %cst_77 = arith.constant dense<0.000000e+00> : vector<2x128xf32>
    %178 = tpu.matmul %147, %1, %cst_77 {dimension_numbers = #tpu.dot_dimension_numbers<[1], [0], [0], [1], [0, 0, 1, 1], [], []>} : vector<2x32xf32>, vector<32x128xf32>, vector<2x128xf32> -> vector<2x128xf32>
    %179 = arith.addf %177, %178 : vector<2x128xf32>
    %180 = arith.negf %179 : vector<2x128xf32>
    %181 = math.exp %180 : vector<2x128xf32>
    %cst_78 = arith.constant 1.000000e+00 : f32
    %182 = vector.broadcast %cst_78 : f32 to vector<2x128xf32>
    %183 = arith.addf %182, %181 : vector<2x128xf32>
    %184 = arith.divf %182, %183 : vector<2x128xf32>
    %185 = vector.extract_strided_slice %184 {offsets = [0, 0], sizes = [2, 32], strides = [1, 1]} : vector<2x128xf32> to vector<2x32xf32>
    %186 = vector.extract_strided_slice %184 {offsets = [0, 32], sizes = [2, 32], strides = [1, 1]} : vector<2x128xf32> to vector<2x32xf32>
    %187 = vector.extract_strided_slice %184 {offsets = [0, 64], sizes = [2, 32], strides = [1, 1]} : vector<2x128xf32> to vector<2x32xf32>
    %cst_79 = arith.constant 2.000000e+00 : f32
    %188 = vector.broadcast %cst_79 : f32 to vector<2x32xf32>
    %189 = arith.mulf %188, %187 : vector<2x32xf32>
    %cst_80 = arith.constant 1.000000e+00 : f32
    %190 = vector.broadcast %cst_80 : f32 to vector<2x32xf32>
    %191 = arith.subf %189, %190 : vector<2x32xf32>
    %192 = vector.extract_strided_slice %184 {offsets = [0, 96], sizes = [2, 32], strides = [1, 1]} : vector<2x128xf32> to vector<2x32xf32>
    %193 = arith.mulf %186, %145 : vector<2x32xf32>
    %194 = arith.mulf %185, %191 : vector<2x32xf32>
    %195 = arith.addf %193, %194 : vector<2x32xf32>
    %196 = math.tanh %195 : vector<2x32xf32>
    %197 = arith.mulf %192, %196 : vector<2x32xf32>
    %cst_81 = arith.constant dense<0.000000e+00> : vector<2x128xf32>
    %198 = tpu.matmul %197, %2, %cst_81 {dimension_numbers = #tpu.dot_dimension_numbers<[1], [0], [0], [1], [0, 0, 1, 1], [], []>} : vector<2x32xf32>, vector<32x128xf32>, vector<2x128xf32> -> vector<2x128xf32>
    %199 = arith.addf %198, %13 : vector<2x128xf32>
    %cst_82 = arith.constant dense<0.000000e+00> : vector<2x128xf32>
    %200 = tpu.matmul %169, %3, %cst_82 {dimension_numbers = #tpu.dot_dimension_numbers<[1], [0], [0], [1], [0, 0, 1, 1], [], []>} : vector<2x32xf32>, vector<32x128xf32>, vector<2x128xf32> -> vector<2x128xf32>
    %201 = arith.addf %199, %200 : vector<2x128xf32>
    %202 = arith.negf %201 : vector<2x128xf32>
    %203 = math.exp %202 : vector<2x128xf32>
    %cst_83 = arith.constant 1.000000e+00 : f32
    %204 = vector.broadcast %cst_83 : f32 to vector<2x128xf32>
    %205 = arith.addf %204, %203 : vector<2x128xf32>
    %206 = arith.divf %204, %205 : vector<2x128xf32>
    %207 = vector.extract_strided_slice %206 {offsets = [0, 0], sizes = [2, 32], strides = [1, 1]} : vector<2x128xf32> to vector<2x32xf32>
    %208 = vector.extract_strided_slice %206 {offsets = [0, 32], sizes = [2, 32], strides = [1, 1]} : vector<2x128xf32> to vector<2x32xf32>
    %209 = vector.extract_strided_slice %206 {offsets = [0, 64], sizes = [2, 32], strides = [1, 1]} : vector<2x128xf32> to vector<2x32xf32>
    %cst_84 = arith.constant 2.000000e+00 : f32
    %210 = vector.broadcast %cst_84 : f32 to vector<2x32xf32>
    %211 = arith.mulf %210, %209 : vector<2x32xf32>
    %cst_85 = arith.constant 1.000000e+00 : f32
    %212 = vector.broadcast %cst_85 : f32 to vector<2x32xf32>
    %213 = arith.subf %211, %212 : vector<2x32xf32>
    %214 = vector.extract_strided_slice %206 {offsets = [0, 96], sizes = [2, 32], strides = [1, 1]} : vector<2x128xf32> to vector<2x32xf32>
    %215 = arith.mulf %208, %167 : vector<2x32xf32>
    %216 = arith.mulf %207, %213 : vector<2x32xf32>
    %217 = arith.addf %215, %216 : vector<2x32xf32>
    %218 = math.tanh %217 : vector<2x32xf32>
    %219 = arith.mulf %214, %218 : vector<2x32xf32>
    %c3_86 = arith.constant 3 : index
    %c0_87 = arith.constant 0 : index
    %c0_88 = arith.constant 0 : index
    %220 = vector.load %arg8[%c3_86, %c0_87, %c0_88] : memref<8x32x32xf32, #tpu.memory_space<vmem>>, vector<1x32x32xf32>
    %221 = vector.shape_cast %220 : vector<1x32x32xf32> to vector<32x32xf32>
    %cst_89 = arith.constant dense<0.000000e+00> : vector<2x32xf32>
    %222 = tpu.matmul %219, %221, %cst_89 {dimension_numbers = #tpu.dot_dimension_numbers<[1], [0], [0], [1], [0, 0, 1, 1], [], []>} : vector<2x32xf32>, vector<32x32xf32>, vector<2x32xf32> -> vector<2x32xf32>
    %223 = arith.addf %173, %222 : vector<2x32xf32>
    %c4 = arith.constant 4 : index
    %c0_90 = arith.constant 0 : index
    %c0_91 = arith.constant 0 : index
    %224 = vector.load %arg0[%c4, %c0_90, %c0_91] : memref<8x2x128xf32, #tpu.memory_space<vmem>>, vector<1x2x128xf32>
    %225 = vector.shape_cast %224 : vector<1x2x128xf32> to vector<2x128xf32>
    %cst_92 = arith.constant dense<0.000000e+00> : vector<2x128xf32>
    %226 = tpu.matmul %225, %0, %cst_92 {dimension_numbers = #tpu.dot_dimension_numbers<[1], [0], [0], [1], [0, 0, 1, 1], [], []>} : vector<2x128xf32>, vector<128x128xf32>, vector<2x128xf32> -> vector<2x128xf32>
    %227 = arith.addf %226, %10 : vector<2x128xf32>
    %cst_93 = arith.constant dense<0.000000e+00> : vector<2x128xf32>
    %228 = tpu.matmul %197, %1, %cst_93 {dimension_numbers = #tpu.dot_dimension_numbers<[1], [0], [0], [1], [0, 0, 1, 1], [], []>} : vector<2x32xf32>, vector<32x128xf32>, vector<2x128xf32> -> vector<2x128xf32>
    %229 = arith.addf %227, %228 : vector<2x128xf32>
    %230 = arith.negf %229 : vector<2x128xf32>
    %231 = math.exp %230 : vector<2x128xf32>
    %cst_94 = arith.constant 1.000000e+00 : f32
    %232 = vector.broadcast %cst_94 : f32 to vector<2x128xf32>
    %233 = arith.addf %232, %231 : vector<2x128xf32>
    %234 = arith.divf %232, %233 : vector<2x128xf32>
    %235 = vector.extract_strided_slice %234 {offsets = [0, 0], sizes = [2, 32], strides = [1, 1]} : vector<2x128xf32> to vector<2x32xf32>
    %236 = vector.extract_strided_slice %234 {offsets = [0, 32], sizes = [2, 32], strides = [1, 1]} : vector<2x128xf32> to vector<2x32xf32>
    %237 = vector.extract_strided_slice %234 {offsets = [0, 64], sizes = [2, 32], strides = [1, 1]} : vector<2x128xf32> to vector<2x32xf32>
    %cst_95 = arith.constant 2.000000e+00 : f32
    %238 = vector.broadcast %cst_95 : f32 to vector<2x32xf32>
    %239 = arith.mulf %238, %237 : vector<2x32xf32>
    %cst_96 = arith.constant 1.000000e+00 : f32
    %240 = vector.broadcast %cst_96 : f32 to vector<2x32xf32>
    %241 = arith.subf %239, %240 : vector<2x32xf32>
    %242 = vector.extract_strided_slice %234 {offsets = [0, 96], sizes = [2, 32], strides = [1, 1]} : vector<2x128xf32> to vector<2x32xf32>
    %243 = arith.mulf %236, %195 : vector<2x32xf32>
    %244 = arith.mulf %235, %241 : vector<2x32xf32>
    %245 = arith.addf %243, %244 : vector<2x32xf32>
    %246 = math.tanh %245 : vector<2x32xf32>
    %247 = arith.mulf %242, %246 : vector<2x32xf32>
    %cst_97 = arith.constant dense<0.000000e+00> : vector<2x128xf32>
    %248 = tpu.matmul %247, %2, %cst_97 {dimension_numbers = #tpu.dot_dimension_numbers<[1], [0], [0], [1], [0, 0, 1, 1], [], []>} : vector<2x32xf32>, vector<32x128xf32>, vector<2x128xf32> -> vector<2x128xf32>
    %249 = arith.addf %248, %13 : vector<2x128xf32>
    %cst_98 = arith.constant dense<0.000000e+00> : vector<2x128xf32>
    %250 = tpu.matmul %219, %3, %cst_98 {dimension_numbers = #tpu.dot_dimension_numbers<[1], [0], [0], [1], [0, 0, 1, 1], [], []>} : vector<2x32xf32>, vector<32x128xf32>, vector<2x128xf32> -> vector<2x128xf32>
    %251 = arith.addf %249, %250 : vector<2x128xf32>
    %252 = arith.negf %251 : vector<2x128xf32>
    %253 = math.exp %252 : vector<2x128xf32>
    %cst_99 = arith.constant 1.000000e+00 : f32
    %254 = vector.broadcast %cst_99 : f32 to vector<2x128xf32>
    %255 = arith.addf %254, %253 : vector<2x128xf32>
    %256 = arith.divf %254, %255 : vector<2x128xf32>
    %257 = vector.extract_strided_slice %256 {offsets = [0, 0], sizes = [2, 32], strides = [1, 1]} : vector<2x128xf32> to vector<2x32xf32>
    %258 = vector.extract_strided_slice %256 {offsets = [0, 32], sizes = [2, 32], strides = [1, 1]} : vector<2x128xf32> to vector<2x32xf32>
    %259 = vector.extract_strided_slice %256 {offsets = [0, 64], sizes = [2, 32], strides = [1, 1]} : vector<2x128xf32> to vector<2x32xf32>
    %cst_100 = arith.constant 2.000000e+00 : f32
    %260 = vector.broadcast %cst_100 : f32 to vector<2x32xf32>
    %261 = arith.mulf %260, %259 : vector<2x32xf32>
    %cst_101 = arith.constant 1.000000e+00 : f32
    %262 = vector.broadcast %cst_101 : f32 to vector<2x32xf32>
    %263 = arith.subf %261, %262 : vector<2x32xf32>
    %264 = vector.extract_strided_slice %256 {offsets = [0, 96], sizes = [2, 32], strides = [1, 1]} : vector<2x128xf32> to vector<2x32xf32>
    %265 = arith.mulf %258, %217 : vector<2x32xf32>
    %266 = arith.mulf %257, %263 : vector<2x32xf32>
    %267 = arith.addf %265, %266 : vector<2x32xf32>
    %268 = math.tanh %267 : vector<2x32xf32>
    %269 = arith.mulf %264, %268 : vector<2x32xf32>
    %c4_102 = arith.constant 4 : index
    %c0_103 = arith.constant 0 : index
    %c0_104 = arith.constant 0 : index
    %270 = vector.load %arg8[%c4_102, %c0_103, %c0_104] : memref<8x32x32xf32, #tpu.memory_space<vmem>>, vector<1x32x32xf32>
    %271 = vector.shape_cast %270 : vector<1x32x32xf32> to vector<32x32xf32>
    %cst_105 = arith.constant dense<0.000000e+00> : vector<2x32xf32>
    %272 = tpu.matmul %269, %271, %cst_105 {dimension_numbers = #tpu.dot_dimension_numbers<[1], [0], [0], [1], [0, 0, 1, 1], [], []>} : vector<2x32xf32>, vector<32x32xf32>, vector<2x32xf32> -> vector<2x32xf32>
    %273 = arith.addf %223, %272 : vector<2x32xf32>
    %c5 = arith.constant 5 : index
    %c0_106 = arith.constant 0 : index
    %c0_107 = arith.constant 0 : index
    %274 = vector.load %arg0[%c5, %c0_106, %c0_107] : memref<8x2x128xf32, #tpu.memory_space<vmem>>, vector<1x2x128xf32>
    %275 = vector.shape_cast %274 : vector<1x2x128xf32> to vector<2x128xf32>
    %cst_108 = arith.constant dense<0.000000e+00> : vector<2x128xf32>
    %276 = tpu.matmul %275, %0, %cst_108 {dimension_numbers = #tpu.dot_dimension_numbers<[1], [0], [0], [1], [0, 0, 1, 1], [], []>} : vector<2x128xf32>, vector<128x128xf32>, vector<2x128xf32> -> vector<2x128xf32>
    %277 = arith.addf %276, %10 : vector<2x128xf32>
    %cst_109 = arith.constant dense<0.000000e+00> : vector<2x128xf32>
    %278 = tpu.matmul %247, %1, %cst_109 {dimension_numbers = #tpu.dot_dimension_numbers<[1], [0], [0], [1], [0, 0, 1, 1], [], []>} : vector<2x32xf32>, vector<32x128xf32>, vector<2x128xf32> -> vector<2x128xf32>
    %279 = arith.addf %277, %278 : vector<2x128xf32>
    %280 = arith.negf %279 : vector<2x128xf32>
    %281 = math.exp %280 : vector<2x128xf32>
    %cst_110 = arith.constant 1.000000e+00 : f32
    %282 = vector.broadcast %cst_110 : f32 to vector<2x128xf32>
    %283 = arith.addf %282, %281 : vector<2x128xf32>
    %284 = arith.divf %282, %283 : vector<2x128xf32>
    %285 = vector.extract_strided_slice %284 {offsets = [0, 0], sizes = [2, 32], strides = [1, 1]} : vector<2x128xf32> to vector<2x32xf32>
    %286 = vector.extract_strided_slice %284 {offsets = [0, 32], sizes = [2, 32], strides = [1, 1]} : vector<2x128xf32> to vector<2x32xf32>
    %287 = vector.extract_strided_slice %284 {offsets = [0, 64], sizes = [2, 32], strides = [1, 1]} : vector<2x128xf32> to vector<2x32xf32>
    %cst_111 = arith.constant 2.000000e+00 : f32
    %288 = vector.broadcast %cst_111 : f32 to vector<2x32xf32>
    %289 = arith.mulf %288, %287 : vector<2x32xf32>
    %cst_112 = arith.constant 1.000000e+00 : f32
    %290 = vector.broadcast %cst_112 : f32 to vector<2x32xf32>
    %291 = arith.subf %289, %290 : vector<2x32xf32>
    %292 = vector.extract_strided_slice %284 {offsets = [0, 96], sizes = [2, 32], strides = [1, 1]} : vector<2x128xf32> to vector<2x32xf32>
    %293 = arith.mulf %286, %245 : vector<2x32xf32>
    %294 = arith.mulf %285, %291 : vector<2x32xf32>
    %295 = arith.addf %293, %294 : vector<2x32xf32>
    %296 = math.tanh %295 : vector<2x32xf32>
    %297 = arith.mulf %292, %296 : vector<2x32xf32>
    %cst_113 = arith.constant dense<0.000000e+00> : vector<2x128xf32>
    %298 = tpu.matmul %297, %2, %cst_113 {dimension_numbers = #tpu.dot_dimension_numbers<[1], [0], [0], [1], [0, 0, 1, 1], [], []>} : vector<2x32xf32>, vector<32x128xf32>, vector<2x128xf32> -> vector<2x128xf32>
    %299 = arith.addf %298, %13 : vector<2x128xf32>
    %cst_114 = arith.constant dense<0.000000e+00> : vector<2x128xf32>
    %300 = tpu.matmul %269, %3, %cst_114 {dimension_numbers = #tpu.dot_dimension_numbers<[1], [0], [0], [1], [0, 0, 1, 1], [], []>} : vector<2x32xf32>, vector<32x128xf32>, vector<2x128xf32> -> vector<2x128xf32>
    %301 = arith.addf %299, %300 : vector<2x128xf32>
    %302 = arith.negf %301 : vector<2x128xf32>
    %303 = math.exp %302 : vector<2x128xf32>
    %cst_115 = arith.constant 1.000000e+00 : f32
    %304 = vector.broadcast %cst_115 : f32 to vector<2x128xf32>
    %305 = arith.addf %304, %303 : vector<2x128xf32>
    %306 = arith.divf %304, %305 : vector<2x128xf32>
    %307 = vector.extract_strided_slice %306 {offsets = [0, 0], sizes = [2, 32], strides = [1, 1]} : vector<2x128xf32> to vector<2x32xf32>
    %308 = vector.extract_strided_slice %306 {offsets = [0, 32], sizes = [2, 32], strides = [1, 1]} : vector<2x128xf32> to vector<2x32xf32>
    %309 = vector.extract_strided_slice %306 {offsets = [0, 64], sizes = [2, 32], strides = [1, 1]} : vector<2x128xf32> to vector<2x32xf32>
    %cst_116 = arith.constant 2.000000e+00 : f32
    %310 = vector.broadcast %cst_116 : f32 to vector<2x32xf32>
    %311 = arith.mulf %310, %309 : vector<2x32xf32>
    %cst_117 = arith.constant 1.000000e+00 : f32
    %312 = vector.broadcast %cst_117 : f32 to vector<2x32xf32>
    %313 = arith.subf %311, %312 : vector<2x32xf32>
    %314 = vector.extract_strided_slice %306 {offsets = [0, 96], sizes = [2, 32], strides = [1, 1]} : vector<2x128xf32> to vector<2x32xf32>
    %315 = arith.mulf %308, %267 : vector<2x32xf32>
    %316 = arith.mulf %307, %313 : vector<2x32xf32>
    %317 = arith.addf %315, %316 : vector<2x32xf32>
    %318 = math.tanh %317 : vector<2x32xf32>
    %319 = arith.mulf %314, %318 : vector<2x32xf32>
    %c5_118 = arith.constant 5 : index
    %c0_119 = arith.constant 0 : index
    %c0_120 = arith.constant 0 : index
    %320 = vector.load %arg8[%c5_118, %c0_119, %c0_120] : memref<8x32x32xf32, #tpu.memory_space<vmem>>, vector<1x32x32xf32>
    %321 = vector.shape_cast %320 : vector<1x32x32xf32> to vector<32x32xf32>
    %cst_121 = arith.constant dense<0.000000e+00> : vector<2x32xf32>
    %322 = tpu.matmul %319, %321, %cst_121 {dimension_numbers = #tpu.dot_dimension_numbers<[1], [0], [0], [1], [0, 0, 1, 1], [], []>} : vector<2x32xf32>, vector<32x32xf32>, vector<2x32xf32> -> vector<2x32xf32>
    %323 = arith.addf %273, %322 : vector<2x32xf32>
    %c6 = arith.constant 6 : index
    %c0_122 = arith.constant 0 : index
    %c0_123 = arith.constant 0 : index
    %324 = vector.load %arg0[%c6, %c0_122, %c0_123] : memref<8x2x128xf32, #tpu.memory_space<vmem>>, vector<1x2x128xf32>
    %325 = vector.shape_cast %324 : vector<1x2x128xf32> to vector<2x128xf32>
    %cst_124 = arith.constant dense<0.000000e+00> : vector<2x128xf32>
    %326 = tpu.matmul %325, %0, %cst_124 {dimension_numbers = #tpu.dot_dimension_numbers<[1], [0], [0], [1], [0, 0, 1, 1], [], []>} : vector<2x128xf32>, vector<128x128xf32>, vector<2x128xf32> -> vector<2x128xf32>
    %327 = arith.addf %326, %10 : vector<2x128xf32>
    %cst_125 = arith.constant dense<0.000000e+00> : vector<2x128xf32>
    %328 = tpu.matmul %297, %1, %cst_125 {dimension_numbers = #tpu.dot_dimension_numbers<[1], [0], [0], [1], [0, 0, 1, 1], [], []>} : vector<2x32xf32>, vector<32x128xf32>, vector<2x128xf32> -> vector<2x128xf32>
    %329 = arith.addf %327, %328 : vector<2x128xf32>
    %330 = arith.negf %329 : vector<2x128xf32>
    %331 = math.exp %330 : vector<2x128xf32>
    %cst_126 = arith.constant 1.000000e+00 : f32
    %332 = vector.broadcast %cst_126 : f32 to vector<2x128xf32>
    %333 = arith.addf %332, %331 : vector<2x128xf32>
    %334 = arith.divf %332, %333 : vector<2x128xf32>
    %335 = vector.extract_strided_slice %334 {offsets = [0, 0], sizes = [2, 32], strides = [1, 1]} : vector<2x128xf32> to vector<2x32xf32>
    %336 = vector.extract_strided_slice %334 {offsets = [0, 32], sizes = [2, 32], strides = [1, 1]} : vector<2x128xf32> to vector<2x32xf32>
    %337 = vector.extract_strided_slice %334 {offsets = [0, 64], sizes = [2, 32], strides = [1, 1]} : vector<2x128xf32> to vector<2x32xf32>
    %cst_127 = arith.constant 2.000000e+00 : f32
    %338 = vector.broadcast %cst_127 : f32 to vector<2x32xf32>
    %339 = arith.mulf %338, %337 : vector<2x32xf32>
    %cst_128 = arith.constant 1.000000e+00 : f32
    %340 = vector.broadcast %cst_128 : f32 to vector<2x32xf32>
    %341 = arith.subf %339, %340 : vector<2x32xf32>
    %342 = vector.extract_strided_slice %334 {offsets = [0, 96], sizes = [2, 32], strides = [1, 1]} : vector<2x128xf32> to vector<2x32xf32>
    %343 = arith.mulf %336, %295 : vector<2x32xf32>
    %344 = arith.mulf %335, %341 : vector<2x32xf32>
    %345 = arith.addf %343, %344 : vector<2x32xf32>
    %346 = math.tanh %345 : vector<2x32xf32>
    %347 = arith.mulf %342, %346 : vector<2x32xf32>
    %cst_129 = arith.constant dense<0.000000e+00> : vector<2x128xf32>
    %348 = tpu.matmul %347, %2, %cst_129 {dimension_numbers = #tpu.dot_dimension_numbers<[1], [0], [0], [1], [0, 0, 1, 1], [], []>} : vector<2x32xf32>, vector<32x128xf32>, vector<2x128xf32> -> vector<2x128xf32>
    %349 = arith.addf %348, %13 : vector<2x128xf32>
    %cst_130 = arith.constant dense<0.000000e+00> : vector<2x128xf32>
    %350 = tpu.matmul %319, %3, %cst_130 {dimension_numbers = #tpu.dot_dimension_numbers<[1], [0], [0], [1], [0, 0, 1, 1], [], []>} : vector<2x32xf32>, vector<32x128xf32>, vector<2x128xf32> -> vector<2x128xf32>
    %351 = arith.addf %349, %350 : vector<2x128xf32>
    %352 = arith.negf %351 : vector<2x128xf32>
    %353 = math.exp %352 : vector<2x128xf32>
    %cst_131 = arith.constant 1.000000e+00 : f32
    %354 = vector.broadcast %cst_131 : f32 to vector<2x128xf32>
    %355 = arith.addf %354, %353 : vector<2x128xf32>
    %356 = arith.divf %354, %355 : vector<2x128xf32>
    %357 = vector.extract_strided_slice %356 {offsets = [0, 0], sizes = [2, 32], strides = [1, 1]} : vector<2x128xf32> to vector<2x32xf32>
    %358 = vector.extract_strided_slice %356 {offsets = [0, 32], sizes = [2, 32], strides = [1, 1]} : vector<2x128xf32> to vector<2x32xf32>
    %359 = vector.extract_strided_slice %356 {offsets = [0, 64], sizes = [2, 32], strides = [1, 1]} : vector<2x128xf32> to vector<2x32xf32>
    %cst_132 = arith.constant 2.000000e+00 : f32
    %360 = vector.broadcast %cst_132 : f32 to vector<2x32xf32>
    %361 = arith.mulf %360, %359 : vector<2x32xf32>
    %cst_133 = arith.constant 1.000000e+00 : f32
    %362 = vector.broadcast %cst_133 : f32 to vector<2x32xf32>
    %363 = arith.subf %361, %362 : vector<2x32xf32>
    %364 = vector.extract_strided_slice %356 {offsets = [0, 96], sizes = [2, 32], strides = [1, 1]} : vector<2x128xf32> to vector<2x32xf32>
    %365 = arith.mulf %358, %317 : vector<2x32xf32>
    %366 = arith.mulf %357, %363 : vector<2x32xf32>
    %367 = arith.addf %365, %366 : vector<2x32xf32>
    %368 = math.tanh %367 : vector<2x32xf32>
    %369 = arith.mulf %364, %368 : vector<2x32xf32>
    %c6_134 = arith.constant 6 : index
    %c0_135 = arith.constant 0 : index
    %c0_136 = arith.constant 0 : index
    %370 = vector.load %arg8[%c6_134, %c0_135, %c0_136] : memref<8x32x32xf32, #tpu.memory_space<vmem>>, vector<1x32x32xf32>
    %371 = vector.shape_cast %370 : vector<1x32x32xf32> to vector<32x32xf32>
    %cst_137 = arith.constant dense<0.000000e+00> : vector<2x32xf32>
    %372 = tpu.matmul %369, %371, %cst_137 {dimension_numbers = #tpu.dot_dimension_numbers<[1], [0], [0], [1], [0, 0, 1, 1], [], []>} : vector<2x32xf32>, vector<32x32xf32>, vector<2x32xf32> -> vector<2x32xf32>
    %373 = arith.addf %323, %372 : vector<2x32xf32>
    %c7 = arith.constant 7 : index
    %c0_138 = arith.constant 0 : index
    %c0_139 = arith.constant 0 : index
    %374 = vector.load %arg0[%c7, %c0_138, %c0_139] : memref<8x2x128xf32, #tpu.memory_space<vmem>>, vector<1x2x128xf32>
    %375 = vector.shape_cast %374 : vector<1x2x128xf32> to vector<2x128xf32>
    %cst_140 = arith.constant dense<0.000000e+00> : vector<2x128xf32>
    %376 = tpu.matmul %375, %0, %cst_140 {dimension_numbers = #tpu.dot_dimension_numbers<[1], [0], [0], [1], [0, 0, 1, 1], [], []>} : vector<2x128xf32>, vector<128x128xf32>, vector<2x128xf32> -> vector<2x128xf32>
    %377 = arith.addf %376, %10 : vector<2x128xf32>
    %cst_141 = arith.constant dense<0.000000e+00> : vector<2x128xf32>
    %378 = tpu.matmul %347, %1, %cst_141 {dimension_numbers = #tpu.dot_dimension_numbers<[1], [0], [0], [1], [0, 0, 1, 1], [], []>} : vector<2x32xf32>, vector<32x128xf32>, vector<2x128xf32> -> vector<2x128xf32>
    %379 = arith.addf %377, %378 : vector<2x128xf32>
    %380 = arith.negf %379 : vector<2x128xf32>
    %381 = math.exp %380 : vector<2x128xf32>
    %cst_142 = arith.constant 1.000000e+00 : f32
    %382 = vector.broadcast %cst_142 : f32 to vector<2x128xf32>
    %383 = arith.addf %382, %381 : vector<2x128xf32>
    %384 = arith.divf %382, %383 : vector<2x128xf32>
    %385 = vector.extract_strided_slice %384 {offsets = [0, 0], sizes = [2, 32], strides = [1, 1]} : vector<2x128xf32> to vector<2x32xf32>
    %386 = vector.extract_strided_slice %384 {offsets = [0, 32], sizes = [2, 32], strides = [1, 1]} : vector<2x128xf32> to vector<2x32xf32>
    %387 = vector.extract_strided_slice %384 {offsets = [0, 64], sizes = [2, 32], strides = [1, 1]} : vector<2x128xf32> to vector<2x32xf32>
    %cst_143 = arith.constant 2.000000e+00 : f32
    %388 = vector.broadcast %cst_143 : f32 to vector<2x32xf32>
    %389 = arith.mulf %388, %387 : vector<2x32xf32>
    %cst_144 = arith.constant 1.000000e+00 : f32
    %390 = vector.broadcast %cst_144 : f32 to vector<2x32xf32>
    %391 = arith.subf %389, %390 : vector<2x32xf32>
    %392 = vector.extract_strided_slice %384 {offsets = [0, 96], sizes = [2, 32], strides = [1, 1]} : vector<2x128xf32> to vector<2x32xf32>
    %393 = arith.mulf %386, %345 : vector<2x32xf32>
    %394 = arith.mulf %385, %391 : vector<2x32xf32>
    %395 = arith.addf %393, %394 : vector<2x32xf32>
    %396 = math.tanh %395 : vector<2x32xf32>
    %397 = arith.mulf %392, %396 : vector<2x32xf32>
    %cst_145 = arith.constant dense<0.000000e+00> : vector<2x128xf32>
    %398 = tpu.matmul %397, %2, %cst_145 {dimension_numbers = #tpu.dot_dimension_numbers<[1], [0], [0], [1], [0, 0, 1, 1], [], []>} : vector<2x32xf32>, vector<32x128xf32>, vector<2x128xf32> -> vector<2x128xf32>
    %399 = arith.addf %398, %13 : vector<2x128xf32>
    %cst_146 = arith.constant dense<0.000000e+00> : vector<2x128xf32>
    %400 = tpu.matmul %369, %3, %cst_146 {dimension_numbers = #tpu.dot_dimension_numbers<[1], [0], [0], [1], [0, 0, 1, 1], [], []>} : vector<2x32xf32>, vector<32x128xf32>, vector<2x128xf32> -> vector<2x128xf32>
    %401 = arith.addf %399, %400 : vector<2x128xf32>
    %402 = arith.negf %401 : vector<2x128xf32>
    %403 = math.exp %402 : vector<2x128xf32>
    %cst_147 = arith.constant 1.000000e+00 : f32
    %404 = vector.broadcast %cst_147 : f32 to vector<2x128xf32>
    %405 = arith.addf %404, %403 : vector<2x128xf32>
    %406 = arith.divf %404, %405 : vector<2x128xf32>
    %407 = vector.extract_strided_slice %406 {offsets = [0, 0], sizes = [2, 32], strides = [1, 1]} : vector<2x128xf32> to vector<2x32xf32>
    %408 = vector.extract_strided_slice %406 {offsets = [0, 32], sizes = [2, 32], strides = [1, 1]} : vector<2x128xf32> to vector<2x32xf32>
    %409 = vector.extract_strided_slice %406 {offsets = [0, 64], sizes = [2, 32], strides = [1, 1]} : vector<2x128xf32> to vector<2x32xf32>
    %cst_148 = arith.constant 2.000000e+00 : f32
    %410 = vector.broadcast %cst_148 : f32 to vector<2x32xf32>
    %411 = arith.mulf %410, %409 : vector<2x32xf32>
    %cst_149 = arith.constant 1.000000e+00 : f32
    %412 = vector.broadcast %cst_149 : f32 to vector<2x32xf32>
    %413 = arith.subf %411, %412 : vector<2x32xf32>
    %414 = vector.extract_strided_slice %406 {offsets = [0, 96], sizes = [2, 32], strides = [1, 1]} : vector<2x128xf32> to vector<2x32xf32>
    %415 = arith.mulf %408, %367 : vector<2x32xf32>
    %416 = arith.mulf %407, %413 : vector<2x32xf32>
    %417 = arith.addf %415, %416 : vector<2x32xf32>
    %418 = math.tanh %417 : vector<2x32xf32>
    %419 = arith.mulf %414, %418 : vector<2x32xf32>
    %c7_150 = arith.constant 7 : index
    %c0_151 = arith.constant 0 : index
    %c0_152 = arith.constant 0 : index
    %420 = vector.load %arg8[%c7_150, %c0_151, %c0_152] : memref<8x32x32xf32, #tpu.memory_space<vmem>>, vector<1x32x32xf32>
    %421 = vector.shape_cast %420 : vector<1x32x32xf32> to vector<32x32xf32>
    %cst_153 = arith.constant dense<0.000000e+00> : vector<2x32xf32>
    %422 = tpu.matmul %419, %421, %cst_153 {dimension_numbers = #tpu.dot_dimension_numbers<[1], [0], [0], [1], [0, 0, 1, 1], [], []>} : vector<2x32xf32>, vector<32x32xf32>, vector<2x32xf32> -> vector<2x32xf32>
    %423 = arith.addf %373, %422 : vector<2x32xf32>
    %424 = vector.extract_strided_slice %423 {offsets = [0, 0], sizes = [2, 16], strides = [1, 1]} : vector<2x32xf32> to vector<2x16xf32>
    %425 = vector.extract_strided_slice %423 {offsets = [0, 16], sizes = [2, 16], strides = [1, 1]} : vector<2x32xf32> to vector<2x16xf32>
    %c0_154 = arith.constant 0 : index
    %c0_155 = arith.constant 0 : index
    %426 = vector.load %arg1[%c0_154, %c0_155] : memref<2x16xf32, #tpu.memory_space<vmem>>, vector<2x16xf32>
    %cst_156 = arith.constant 5.000000e-01 : f32
    %427 = vector.broadcast %cst_156 : f32 to vector<2x16xf32>
    %428 = arith.mulf %427, %425 : vector<2x16xf32>
    %429 = math.exp %428 : vector<2x16xf32>
    %430 = arith.mulf %426, %429 : vector<2x16xf32>
    %431 = arith.addf %424, %430 : vector<2x16xf32>
    %cst_157 = arith.constant 0.000000e+00 : f32
    %432 = vector.broadcast %cst_157 : f32 to vector<2x80xf32>
    %433 = tpu.concatenate %424, %425, %431, %432 in 1 : vector<2x16xf32>, vector<2x16xf32>, vector<2x16xf32>, vector<2x80xf32> -> vector<2x128xf32>
    %c0_158 = arith.constant 0 : index
    %c0_159 = arith.constant 0 : index
    %434 = vector.load %arg19[%c0_158, %c0_159] : memref<2x128xf32, #tpu.memory_space<vmem>>, vector<2x128xf32>
    tpu.vector_store %arg19[%c0_158, %c0_159], %433 {strides = array<i32>} : memref<2x128xf32, #tpu.memory_space<vmem>>, vector<2x128xf32>,
    %c0_160 = arith.constant 0 : index
    %c0_161 = arith.constant 0 : index
    %435 = vector.load %arg10[%c0_160, %c0_161] : memref<16x128xf32, #tpu.memory_space<vmem>>, vector<16x128xf32>
    %cst_162 = arith.constant dense<0.000000e+00> : vector<2x128xf32>
    %436 = tpu.matmul %431, %435, %cst_162 {dimension_numbers = #tpu.dot_dimension_numbers<[1], [0], [0], [1], [0, 0, 1, 1], [], []>} : vector<2x16xf32>, vector<16x128xf32>, vector<2x128xf32> -> vector<2x128xf32>
    %c0_163 = arith.constant 0 : index
    %c0_164 = arith.constant 0 : index
    %437 = vector.load %arg12[%c0_163, %c0_164] : memref<1x128xf32, #tpu.memory_space<vmem>>, vector<1x128xf32>
    %438 = vector.shape_cast %437 : vector<1x128xf32> to vector<1x128xf32>
    %439 = vector.broadcast %438 : vector<1x128xf32> to vector<2x128xf32>
    %440 = arith.addf %436, %439 : vector<2x128xf32>
    %cst_165 = arith.constant dense<0.000000e+00> : vector<2x128xf32>
    %441 = tpu.matmul %20, %4, %cst_165 {dimension_numbers = #tpu.dot_dimension_numbers<[1], [0], [0], [1], [0, 0, 1, 1], [], []>} : vector<2x32xf32>, vector<32x128xf32>, vector<2x128xf32> -> vector<2x128xf32>
    %442 = arith.addf %440, %441 : vector<2x128xf32>
    %443 = arith.negf %442 : vector<2x128xf32>
    %444 = math.exp %443 : vector<2x128xf32>
    %cst_166 = arith.constant 1.000000e+00 : f32
    %445 = vector.broadcast %cst_166 : f32 to vector<2x128xf32>
    %446 = arith.addf %445, %444 : vector<2x128xf32>
    %447 = arith.divf %445, %446 : vector<2x128xf32>
    %448 = vector.extract_strided_slice %447 {offsets = [0, 0], sizes = [2, 32], strides = [1, 1]} : vector<2x128xf32> to vector<2x32xf32>
    %449 = vector.extract_strided_slice %447 {offsets = [0, 32], sizes = [2, 32], strides = [1, 1]} : vector<2x128xf32> to vector<2x32xf32>
    %450 = vector.extract_strided_slice %447 {offsets = [0, 64], sizes = [2, 32], strides = [1, 1]} : vector<2x128xf32> to vector<2x32xf32>
    %cst_167 = arith.constant 2.000000e+00 : f32
    %451 = vector.broadcast %cst_167 : f32 to vector<2x32xf32>
    %452 = arith.mulf %451, %450 : vector<2x32xf32>
    %cst_168 = arith.constant 1.000000e+00 : f32
    %453 = vector.broadcast %cst_168 : f32 to vector<2x32xf32>
    %454 = arith.subf %452, %453 : vector<2x32xf32>
    %455 = vector.extract_strided_slice %447 {offsets = [0, 96], sizes = [2, 32], strides = [1, 1]} : vector<2x128xf32> to vector<2x32xf32>
    %456 = arith.mulf %449, %20 : vector<2x32xf32>
    %457 = arith.mulf %448, %454 : vector<2x32xf32>
    %458 = arith.addf %456, %457 : vector<2x32xf32>
    %459 = math.tanh %458 : vector<2x32xf32>
    %460 = arith.mulf %455, %459 : vector<2x32xf32>
    %cst_169 = arith.constant dense<0.000000e+00> : vector<2x128xf32>
    %461 = tpu.matmul %460, %5, %cst_169 {dimension_numbers = #tpu.dot_dimension_numbers<[1], [0], [0], [1], [0, 0, 1, 1], [], []>} : vector<2x32xf32>, vector<32x128xf32>, vector<2x128xf32> -> vector<2x128xf32>
    %462 = arith.addf %461, %16 : vector<2x128xf32>
    %cst_170 = arith.constant dense<0.000000e+00> : vector<2x128xf32>
    %463 = tpu.matmul %20, %6, %cst_170 {dimension_numbers = #tpu.dot_dimension_numbers<[1], [0], [0], [1], [0, 0, 1, 1], [], []>} : vector<2x32xf32>, vector<32x128xf32>, vector<2x128xf32> -> vector<2x128xf32>
    %464 = arith.addf %462, %463 : vector<2x128xf32>
    %465 = arith.negf %464 : vector<2x128xf32>
    %466 = math.exp %465 : vector<2x128xf32>
    %cst_171 = arith.constant 1.000000e+00 : f32
    %467 = vector.broadcast %cst_171 : f32 to vector<2x128xf32>
    %468 = arith.addf %467, %466 : vector<2x128xf32>
    %469 = arith.divf %467, %468 : vector<2x128xf32>
    %470 = vector.extract_strided_slice %469 {offsets = [0, 0], sizes = [2, 32], strides = [1, 1]} : vector<2x128xf32> to vector<2x32xf32>
    %471 = vector.extract_strided_slice %469 {offsets = [0, 32], sizes = [2, 32], strides = [1, 1]} : vector<2x128xf32> to vector<2x32xf32>
    %472 = vector.extract_strided_slice %469 {offsets = [0, 64], sizes = [2, 32], strides = [1, 1]} : vector<2x128xf32> to vector<2x32xf32>
    %cst_172 = arith.constant 2.000000e+00 : f32
    %473 = vector.broadcast %cst_172 : f32 to vector<2x32xf32>
    %474 = arith.mulf %473, %472 : vector<2x32xf32>
    %cst_173 = arith.constant 1.000000e+00 : f32
    %475 = vector.broadcast %cst_173 : f32 to vector<2x32xf32>
    %476 = arith.subf %474, %475 : vector<2x32xf32>
    %477 = vector.extract_strided_slice %469 {offsets = [0, 96], sizes = [2, 32], strides = [1, 1]} : vector<2x128xf32> to vector<2x32xf32>
    %478 = arith.mulf %471, %20 : vector<2x32xf32>
    %479 = arith.mulf %470, %476 : vector<2x32xf32>
    %480 = arith.addf %478, %479 : vector<2x32xf32>
    %481 = math.tanh %480 : vector<2x32xf32>
    %482 = arith.mulf %477, %481 : vector<2x32xf32>
    %cst_174 = arith.constant dense<0.000000e+00> : vector<2x128xf32>
    %483 = tpu.matmul %482, %7, %cst_174 {dimension_numbers = #tpu.dot_dimension_numbers<[1], [0], [0], [1], [0, 0, 1, 1], [], []>} : vector<2x32xf32>, vector<32x128xf32>, vector<2x128xf32> -> vector<2x128xf32>
    %484 = arith.addf %483, %19 : vector<2x128xf32>
    %485 = arith.negf %484 : vector<2x128xf32>
    %486 = math.exp %485 : vector<2x128xf32>
    %cst_175 = arith.constant 1.000000e+00 : f32
    %487 = vector.broadcast %cst_175 : f32 to vector<2x128xf32>
    %488 = arith.addf %487, %486 : vector<2x128xf32>
    %489 = arith.divf %487, %488 : vector<2x128xf32>
    %c0_176 = arith.constant 0 : index
    %c0_177 = arith.constant 0 : index
    %c0_178 = arith.constant 0 : index
    %490 = vector.load %arg18[%c0_176, %c0_177, %c0_178] : memref<8x2x128xf32, #tpu.memory_space<vmem>>, vector<1x2x128xf32>
    %491 = vector.shape_cast %490 : vector<1x2x128xf32> to vector<2x128xf32>
    %492 = vector.shape_cast %489 : vector<2x128xf32> to vector<1x2x128xf32>
    tpu.vector_store %arg18[%c0_176, %c0_177, %c0_178], %492 {strides = array<i32>} : memref<8x2x128xf32, #tpu.memory_space<vmem>>, vector<1x2x128xf32>,
    %cst_179 = arith.constant dense<0.000000e+00> : vector<2x128xf32>
    %493 = tpu.matmul %460, %4, %cst_179 {dimension_numbers = #tpu.dot_dimension_numbers<[1], [0], [0], [1], [0, 0, 1, 1], [], []>} : vector<2x32xf32>, vector<32x128xf32>, vector<2x128xf32> -> vector<2x128xf32>
    %494 = arith.addf %440, %493 : vector<2x128xf32>
    %495 = arith.negf %494 : vector<2x128xf32>
    %496 = math.exp %495 : vector<2x128xf32>
    %cst_180 = arith.constant 1.000000e+00 : f32
    %497 = vector.broadcast %cst_180 : f32 to vector<2x128xf32>
    %498 = arith.addf %497, %496 : vector<2x128xf32>
    %499 = arith.divf %497, %498 : vector<2x128xf32>
    %500 = vector.extract_strided_slice %499 {offsets = [0, 0], sizes = [2, 32], strides = [1, 1]} : vector<2x128xf32> to vector<2x32xf32>
    %501 = vector.extract_strided_slice %499 {offsets = [0, 32], sizes = [2, 32], strides = [1, 1]} : vector<2x128xf32> to vector<2x32xf32>
    %502 = vector.extract_strided_slice %499 {offsets = [0, 64], sizes = [2, 32], strides = [1, 1]} : vector<2x128xf32> to vector<2x32xf32>
    %cst_181 = arith.constant 2.000000e+00 : f32
    %503 = vector.broadcast %cst_181 : f32 to vector<2x32xf32>
    %504 = arith.mulf %503, %502 : vector<2x32xf32>
    %cst_182 = arith.constant 1.000000e+00 : f32
    %505 = vector.broadcast %cst_182 : f32 to vector<2x32xf32>
    %506 = arith.subf %504, %505 : vector<2x32xf32>
    %507 = vector.extract_strided_slice %499 {offsets = [0, 96], sizes = [2, 32], strides = [1, 1]} : vector<2x128xf32> to vector<2x32xf32>
    %508 = arith.mulf %501, %458 : vector<2x32xf32>
    %509 = arith.mulf %500, %506 : vector<2x32xf32>
    %510 = arith.addf %508, %509 : vector<2x32xf32>
    %511 = math.tanh %510 : vector<2x32xf32>
    %512 = arith.mulf %507, %511 : vector<2x32xf32>
    %cst_183 = arith.constant dense<0.000000e+00> : vector<2x128xf32>
    %513 = tpu.matmul %512, %5, %cst_183 {dimension_numbers = #tpu.dot_dimension_numbers<[1], [0], [0], [1], [0, 0, 1, 1], [], []>} : vector<2x32xf32>, vector<32x128xf32>, vector<2x128xf32> -> vector<2x128xf32>
    %514 = arith.addf %513, %16 : vector<2x128xf32>
    %cst_184 = arith.constant dense<0.000000e+00> : vector<2x128xf32>
    %515 = tpu.matmul %482, %6, %cst_184 {dimension_numbers = #tpu.dot_dimension_numbers<[1], [0], [0], [1], [0, 0, 1, 1], [], []>} : vector<2x32xf32>, vector<32x128xf32>, vector<2x128xf32> -> vector<2x128xf32>
    %516 = arith.addf %514, %515 : vector<2x128xf32>
    %517 = arith.negf %516 : vector<2x128xf32>
    %518 = math.exp %517 : vector<2x128xf32>
    %cst_185 = arith.constant 1.000000e+00 : f32
    %519 = vector.broadcast %cst_185 : f32 to vector<2x128xf32>
    %520 = arith.addf %519, %518 : vector<2x128xf32>
    %521 = arith.divf %519, %520 : vector<2x128xf32>
    %522 = vector.extract_strided_slice %521 {offsets = [0, 0], sizes = [2, 32], strides = [1, 1]} : vector<2x128xf32> to vector<2x32xf32>
    %523 = vector.extract_strided_slice %521 {offsets = [0, 32], sizes = [2, 32], strides = [1, 1]} : vector<2x128xf32> to vector<2x32xf32>
    %524 = vector.extract_strided_slice %521 {offsets = [0, 64], sizes = [2, 32], strides = [1, 1]} : vector<2x128xf32> to vector<2x32xf32>
    %cst_186 = arith.constant 2.000000e+00 : f32
    %525 = vector.broadcast %cst_186 : f32 to vector<2x32xf32>
    %526 = arith.mulf %525, %524 : vector<2x32xf32>
    %cst_187 = arith.constant 1.000000e+00 : f32
    %527 = vector.broadcast %cst_187 : f32 to vector<2x32xf32>
    %528 = arith.subf %526, %527 : vector<2x32xf32>
    %529 = vector.extract_strided_slice %521 {offsets = [0, 96], sizes = [2, 32], strides = [1, 1]} : vector<2x128xf32> to vector<2x32xf32>
    %530 = arith.mulf %523, %480 : vector<2x32xf32>
    %531 = arith.mulf %522, %528 : vector<2x32xf32>
    %532 = arith.addf %530, %531 : vector<2x32xf32>
    %533 = math.tanh %532 : vector<2x32xf32>
    %534 = arith.mulf %529, %533 : vector<2x32xf32>
    %cst_188 = arith.constant dense<0.000000e+00> : vector<2x128xf32>
    %535 = tpu.matmul %534, %7, %cst_188 {dimension_numbers = #tpu.dot_dimension_numbers<[1], [0], [0], [1], [0, 0, 1, 1], [], []>} : vector<2x32xf32>, vector<32x128xf32>, vector<2x128xf32> -> vector<2x128xf32>
    %536 = arith.addf %535, %19 : vector<2x128xf32>
    %537 = arith.negf %536 : vector<2x128xf32>
    %538 = math.exp %537 : vector<2x128xf32>
    %cst_189 = arith.constant 1.000000e+00 : f32
    %539 = vector.broadcast %cst_189 : f32 to vector<2x128xf32>
    %540 = arith.addf %539, %538 : vector<2x128xf32>
    %541 = arith.divf %539, %540 : vector<2x128xf32>
    %c1_190 = arith.constant 1 : index
    %c0_191 = arith.constant 0 : index
    %c0_192 = arith.constant 0 : index
    %542 = vector.load %arg18[%c1_190, %c0_191, %c0_192] : memref<8x2x128xf32, #tpu.memory_space<vmem>>, vector<1x2x128xf32>
    %543 = vector.shape_cast %542 : vector<1x2x128xf32> to vector<2x128xf32>
    %544 = vector.shape_cast %541 : vector<2x128xf32> to vector<1x2x128xf32>
    tpu.vector_store %arg18[%c1_190, %c0_191, %c0_192], %544 {strides = array<i32>} : memref<8x2x128xf32, #tpu.memory_space<vmem>>, vector<1x2x128xf32>,
    %cst_193 = arith.constant dense<0.000000e+00> : vector<2x128xf32>
    %545 = tpu.matmul %512, %4, %cst_193 {dimension_numbers = #tpu.dot_dimension_numbers<[1], [0], [0], [1], [0, 0, 1, 1], [], []>} : vector<2x32xf32>, vector<32x128xf32>, vector<2x128xf32> -> vector<2x128xf32>
    %546 = arith.addf %440, %545 : vector<2x128xf32>
    %547 = arith.negf %546 : vector<2x128xf32>
    %548 = math.exp %547 : vector<2x128xf32>
    %cst_194 = arith.constant 1.000000e+00 : f32
    %549 = vector.broadcast %cst_194 : f32 to vector<2x128xf32>
    %550 = arith.addf %549, %548 : vector<2x128xf32>
    %551 = arith.divf %549, %550 : vector<2x128xf32>
    %552 = vector.extract_strided_slice %551 {offsets = [0, 0], sizes = [2, 32], strides = [1, 1]} : vector<2x128xf32> to vector<2x32xf32>
    %553 = vector.extract_strided_slice %551 {offsets = [0, 32], sizes = [2, 32], strides = [1, 1]} : vector<2x128xf32> to vector<2x32xf32>
    %554 = vector.extract_strided_slice %551 {offsets = [0, 64], sizes = [2, 32], strides = [1, 1]} : vector<2x128xf32> to vector<2x32xf32>
    %cst_195 = arith.constant 2.000000e+00 : f32
    %555 = vector.broadcast %cst_195 : f32 to vector<2x32xf32>
    %556 = arith.mulf %555, %554 : vector<2x32xf32>
    %cst_196 = arith.constant 1.000000e+00 : f32
    %557 = vector.broadcast %cst_196 : f32 to vector<2x32xf32>
    %558 = arith.subf %556, %557 : vector<2x32xf32>
    %559 = vector.extract_strided_slice %551 {offsets = [0, 96], sizes = [2, 32], strides = [1, 1]} : vector<2x128xf32> to vector<2x32xf32>
    %560 = arith.mulf %553, %510 : vector<2x32xf32>
    %561 = arith.mulf %552, %558 : vector<2x32xf32>
    %562 = arith.addf %560, %561 : vector<2x32xf32>
    %563 = math.tanh %562 : vector<2x32xf32>
    %564 = arith.mulf %559, %563 : vector<2x32xf32>
    %cst_197 = arith.constant dense<0.000000e+00> : vector<2x128xf32>
    %565 = tpu.matmul %564, %5, %cst_197 {dimension_numbers = #tpu.dot_dimension_numbers<[1], [0], [0], [1], [0, 0, 1, 1], [], []>} : vector<2x32xf32>, vector<32x128xf32>, vector<2x128xf32> -> vector<2x128xf32>
    %566 = arith.addf %565, %16 : vector<2x128xf32>
    %cst_198 = arith.constant dense<0.000000e+00> : vector<2x128xf32>
    %567 = tpu.matmul %534, %6, %cst_198 {dimension_numbers = #tpu.dot_dimension_numbers<[1], [0], [0], [1], [0, 0, 1, 1], [], []>} : vector<2x32xf32>, vector<32x128xf32>, vector<2x128xf32> -> vector<2x128xf32>
    %568 = arith.addf %566, %567 : vector<2x128xf32>
    %569 = arith.negf %568 : vector<2x128xf32>
    %570 = math.exp %569 : vector<2x128xf32>
    %cst_199 = arith.constant 1.000000e+00 : f32
    %571 = vector.broadcast %cst_199 : f32 to vector<2x128xf32>
    %572 = arith.addf %571, %570 : vector<2x128xf32>
    %573 = arith.divf %571, %572 : vector<2x128xf32>
    %574 = vector.extract_strided_slice %573 {offsets = [0, 0], sizes = [2, 32], strides = [1, 1]} : vector<2x128xf32> to vector<2x32xf32>
    %575 = vector.extract_strided_slice %573 {offsets = [0, 32], sizes = [2, 32], strides = [1, 1]} : vector<2x128xf32> to vector<2x32xf32>
    %576 = vector.extract_strided_slice %573 {offsets = [0, 64], sizes = [2, 32], strides = [1, 1]} : vector<2x128xf32> to vector<2x32xf32>
    %cst_200 = arith.constant 2.000000e+00 : f32
    %577 = vector.broadcast %cst_200 : f32 to vector<2x32xf32>
    %578 = arith.mulf %577, %576 : vector<2x32xf32>
    %cst_201 = arith.constant 1.000000e+00 : f32
    %579 = vector.broadcast %cst_201 : f32 to vector<2x32xf32>
    %580 = arith.subf %578, %579 : vector<2x32xf32>
    %581 = vector.extract_strided_slice %573 {offsets = [0, 96], sizes = [2, 32], strides = [1, 1]} : vector<2x128xf32> to vector<2x32xf32>
    %582 = arith.mulf %575, %532 : vector<2x32xf32>
    %583 = arith.mulf %574, %580 : vector<2x32xf32>
    %584 = arith.addf %582, %583 : vector<2x32xf32>
    %585 = math.tanh %584 : vector<2x32xf32>
    %586 = arith.mulf %581, %585 : vector<2x32xf32>
    %cst_202 = arith.constant dense<0.000000e+00> : vector<2x128xf32>
    %587 = tpu.matmul %586, %7, %cst_202 {dimension_numbers = #tpu.dot_dimension_numbers<[1], [0], [0], [1], [0, 0, 1, 1], [], []>} : vector<2x32xf32>, vector<32x128xf32>, vector<2x128xf32> -> vector<2x128xf32>
    %588 = arith.addf %587, %19 : vector<2x128xf32>
    %589 = arith.negf %588 : vector<2x128xf32>
    %590 = math.exp %589 : vector<2x128xf32>
    %cst_203 = arith.constant 1.000000e+00 : f32
    %591 = vector.broadcast %cst_203 : f32 to vector<2x128xf32>
    %592 = arith.addf %591, %590 : vector<2x128xf32>
    %593 = arith.divf %591, %592 : vector<2x128xf32>
    %c2_204 = arith.constant 2 : index
    %c0_205 = arith.constant 0 : index
    %c0_206 = arith.constant 0 : index
    %594 = vector.load %arg18[%c2_204, %c0_205, %c0_206] : memref<8x2x128xf32, #tpu.memory_space<vmem>>, vector<1x2x128xf32>
    %595 = vector.shape_cast %594 : vector<1x2x128xf32> to vector<2x128xf32>
    %596 = vector.shape_cast %593 : vector<2x128xf32> to vector<1x2x128xf32>
    tpu.vector_store %arg18[%c2_204, %c0_205, %c0_206], %596 {strides = array<i32>} : memref<8x2x128xf32, #tpu.memory_space<vmem>>, vector<1x2x128xf32>,
    %cst_207 = arith.constant dense<0.000000e+00> : vector<2x128xf32>
    %597 = tpu.matmul %564, %4, %cst_207 {dimension_numbers = #tpu.dot_dimension_numbers<[1], [0], [0], [1], [0, 0, 1, 1], [], []>} : vector<2x32xf32>, vector<32x128xf32>, vector<2x128xf32> -> vector<2x128xf32>
    %598 = arith.addf %440, %597 : vector<2x128xf32>
    %599 = arith.negf %598 : vector<2x128xf32>
    %600 = math.exp %599 : vector<2x128xf32>
    %cst_208 = arith.constant 1.000000e+00 : f32
    %601 = vector.broadcast %cst_208 : f32 to vector<2x128xf32>
    %602 = arith.addf %601, %600 : vector<2x128xf32>
    %603 = arith.divf %601, %602 : vector<2x128xf32>
    %604 = vector.extract_strided_slice %603 {offsets = [0, 0], sizes = [2, 32], strides = [1, 1]} : vector<2x128xf32> to vector<2x32xf32>
    %605 = vector.extract_strided_slice %603 {offsets = [0, 32], sizes = [2, 32], strides = [1, 1]} : vector<2x128xf32> to vector<2x32xf32>
    %606 = vector.extract_strided_slice %603 {offsets = [0, 64], sizes = [2, 32], strides = [1, 1]} : vector<2x128xf32> to vector<2x32xf32>
    %cst_209 = arith.constant 2.000000e+00 : f32
    %607 = vector.broadcast %cst_209 : f32 to vector<2x32xf32>
    %608 = arith.mulf %607, %606 : vector<2x32xf32>
    %cst_210 = arith.constant 1.000000e+00 : f32
    %609 = vector.broadcast %cst_210 : f32 to vector<2x32xf32>
    %610 = arith.subf %608, %609 : vector<2x32xf32>
    %611 = vector.extract_strided_slice %603 {offsets = [0, 96], sizes = [2, 32], strides = [1, 1]} : vector<2x128xf32> to vector<2x32xf32>
    %612 = arith.mulf %605, %562 : vector<2x32xf32>
    %613 = arith.mulf %604, %610 : vector<2x32xf32>
    %614 = arith.addf %612, %613 : vector<2x32xf32>
    %615 = math.tanh %614 : vector<2x32xf32>
    %616 = arith.mulf %611, %615 : vector<2x32xf32>
    %cst_211 = arith.constant dense<0.000000e+00> : vector<2x128xf32>
    %617 = tpu.matmul %616, %5, %cst_211 {dimension_numbers = #tpu.dot_dimension_numbers<[1], [0], [0], [1], [0, 0, 1, 1], [], []>} : vector<2x32xf32>, vector<32x128xf32>, vector<2x128xf32> -> vector<2x128xf32>
    %618 = arith.addf %617, %16 : vector<2x128xf32>
    %cst_212 = arith.constant dense<0.000000e+00> : vector<2x128xf32>
    %619 = tpu.matmul %586, %6, %cst_212 {dimension_numbers = #tpu.dot_dimension_numbers<[1], [0], [0], [1], [0, 0, 1, 1], [], []>} : vector<2x32xf32>, vector<32x128xf32>, vector<2x128xf32> -> vector<2x128xf32>
    %620 = arith.addf %618, %619 : vector<2x128xf32>
    %621 = arith.negf %620 : vector<2x128xf32>
    %622 = math.exp %621 : vector<2x128xf32>
    %cst_213 = arith.constant 1.000000e+00 : f32
    %623 = vector.broadcast %cst_213 : f32 to vector<2x128xf32>
    %624 = arith.addf %623, %622 : vector<2x128xf32>
    %625 = arith.divf %623, %624 : vector<2x128xf32>
    %626 = vector.extract_strided_slice %625 {offsets = [0, 0], sizes = [2, 32], strides = [1, 1]} : vector<2x128xf32> to vector<2x32xf32>
    %627 = vector.extract_strided_slice %625 {offsets = [0, 32], sizes = [2, 32], strides = [1, 1]} : vector<2x128xf32> to vector<2x32xf32>
    %628 = vector.extract_strided_slice %625 {offsets = [0, 64], sizes = [2, 32], strides = [1, 1]} : vector<2x128xf32> to vector<2x32xf32>
    %cst_214 = arith.constant 2.000000e+00 : f32
    %629 = vector.broadcast %cst_214 : f32 to vector<2x32xf32>
    %630 = arith.mulf %629, %628 : vector<2x32xf32>
    %cst_215 = arith.constant 1.000000e+00 : f32
    %631 = vector.broadcast %cst_215 : f32 to vector<2x32xf32>
    %632 = arith.subf %630, %631 : vector<2x32xf32>
    %633 = vector.extract_strided_slice %625 {offsets = [0, 96], sizes = [2, 32], strides = [1, 1]} : vector<2x128xf32> to vector<2x32xf32>
    %634 = arith.mulf %627, %584 : vector<2x32xf32>
    %635 = arith.mulf %626, %632 : vector<2x32xf32>
    %636 = arith.addf %634, %635 : vector<2x32xf32>
    %637 = math.tanh %636 : vector<2x32xf32>
    %638 = arith.mulf %633, %637 : vector<2x32xf32>
    %cst_216 = arith.constant dense<0.000000e+00> : vector<2x128xf32>
    %639 = tpu.matmul %638, %7, %cst_216 {dimension_numbers = #tpu.dot_dimension_numbers<[1], [0], [0], [1], [0, 0, 1, 1], [], []>} : vector<2x32xf32>, vector<32x128xf32>, vector<2x128xf32> -> vector<2x128xf32>
    %640 = arith.addf %639, %19 : vector<2x128xf32>
    %641 = arith.negf %640 : vector<2x128xf32>
    %642 = math.exp %641 : vector<2x128xf32>
    %cst_217 = arith.constant 1.000000e+00 : f32
    %643 = vector.broadcast %cst_217 : f32 to vector<2x128xf32>
    %644 = arith.addf %643, %642 : vector<2x128xf32>
    %645 = arith.divf %643, %644 : vector<2x128xf32>
    %c3_218 = arith.constant 3 : index
    %c0_219 = arith.constant 0 : index
    %c0_220 = arith.constant 0 : index
    %646 = vector.load %arg18[%c3_218, %c0_219, %c0_220] : memref<8x2x128xf32, #tpu.memory_space<vmem>>, vector<1x2x128xf32>
    %647 = vector.shape_cast %646 : vector<1x2x128xf32> to vector<2x128xf32>
    %648 = vector.shape_cast %645 : vector<2x128xf32> to vector<1x2x128xf32>
    tpu.vector_store %arg18[%c3_218, %c0_219, %c0_220], %648 {strides = array<i32>} : memref<8x2x128xf32, #tpu.memory_space<vmem>>, vector<1x2x128xf32>,
    %cst_221 = arith.constant dense<0.000000e+00> : vector<2x128xf32>
    %649 = tpu.matmul %616, %4, %cst_221 {dimension_numbers = #tpu.dot_dimension_numbers<[1], [0], [0], [1], [0, 0, 1, 1], [], []>} : vector<2x32xf32>, vector<32x128xf32>, vector<2x128xf32> -> vector<2x128xf32>
    %650 = arith.addf %440, %649 : vector<2x128xf32>
    %651 = arith.negf %650 : vector<2x128xf32>
    %652 = math.exp %651 : vector<2x128xf32>
    %cst_222 = arith.constant 1.000000e+00 : f32
    %653 = vector.broadcast %cst_222 : f32 to vector<2x128xf32>
    %654 = arith.addf %653, %652 : vector<2x128xf32>
    %655 = arith.divf %653, %654 : vector<2x128xf32>
    %656 = vector.extract_strided_slice %655 {offsets = [0, 0], sizes = [2, 32], strides = [1, 1]} : vector<2x128xf32> to vector<2x32xf32>
    %657 = vector.extract_strided_slice %655 {offsets = [0, 32], sizes = [2, 32], strides = [1, 1]} : vector<2x128xf32> to vector<2x32xf32>
    %658 = vector.extract_strided_slice %655 {offsets = [0, 64], sizes = [2, 32], strides = [1, 1]} : vector<2x128xf32> to vector<2x32xf32>
    %cst_223 = arith.constant 2.000000e+00 : f32
    %659 = vector.broadcast %cst_223 : f32 to vector<2x32xf32>
    %660 = arith.mulf %659, %658 : vector<2x32xf32>
    %cst_224 = arith.constant 1.000000e+00 : f32
    %661 = vector.broadcast %cst_224 : f32 to vector<2x32xf32>
    %662 = arith.subf %660, %661 : vector<2x32xf32>
    %663 = vector.extract_strided_slice %655 {offsets = [0, 96], sizes = [2, 32], strides = [1, 1]} : vector<2x128xf32> to vector<2x32xf32>
    %664 = arith.mulf %657, %614 : vector<2x32xf32>
    %665 = arith.mulf %656, %662 : vector<2x32xf32>
    %666 = arith.addf %664, %665 : vector<2x32xf32>
    %667 = math.tanh %666 : vector<2x32xf32>
    %668 = arith.mulf %663, %667 : vector<2x32xf32>
    %cst_225 = arith.constant dense<0.000000e+00> : vector<2x128xf32>
    %669 = tpu.matmul %668, %5, %cst_225 {dimension_numbers = #tpu.dot_dimension_numbers<[1], [0], [0], [1], [0, 0, 1, 1], [], []>} : vector<2x32xf32>, vector<32x128xf32>, vector<2x128xf32> -> vector<2x128xf32>
    %670 = arith.addf %669, %16 : vector<2x128xf32>
    %cst_226 = arith.constant dense<0.000000e+00> : vector<2x128xf32>
    %671 = tpu.matmul %638, %6, %cst_226 {dimension_numbers = #tpu.dot_dimension_numbers<[1], [0], [0], [1], [0, 0, 1, 1], [], []>} : vector<2x32xf32>, vector<32x128xf32>, vector<2x128xf32> -> vector<2x128xf32>
    %672 = arith.addf %670, %671 : vector<2x128xf32>
    %673 = arith.negf %672 : vector<2x128xf32>
    %674 = math.exp %673 : vector<2x128xf32>
    %cst_227 = arith.constant 1.000000e+00 : f32
    %675 = vector.broadcast %cst_227 : f32 to vector<2x128xf32>
    %676 = arith.addf %675, %674 : vector<2x128xf32>
    %677 = arith.divf %675, %676 : vector<2x128xf32>
    %678 = vector.extract_strided_slice %677 {offsets = [0, 0], sizes = [2, 32], strides = [1, 1]} : vector<2x128xf32> to vector<2x32xf32>
    %679 = vector.extract_strided_slice %677 {offsets = [0, 32], sizes = [2, 32], strides = [1, 1]} : vector<2x128xf32> to vector<2x32xf32>
    %680 = vector.extract_strided_slice %677 {offsets = [0, 64], sizes = [2, 32], strides = [1, 1]} : vector<2x128xf32> to vector<2x32xf32>
    %cst_228 = arith.constant 2.000000e+00 : f32
    %681 = vector.broadcast %cst_228 : f32 to vector<2x32xf32>
    %682 = arith.mulf %681, %680 : vector<2x32xf32>
    %cst_229 = arith.constant 1.000000e+00 : f32
    %683 = vector.broadcast %cst_229 : f32 to vector<2x32xf32>
    %684 = arith.subf %682, %683 : vector<2x32xf32>
    %685 = vector.extract_strided_slice %677 {offsets = [0, 96], sizes = [2, 32], strides = [1, 1]} : vector<2x128xf32> to vector<2x32xf32>
    %686 = arith.mulf %679, %636 : vector<2x32xf32>
    %687 = arith.mulf %678, %684 : vector<2x32xf32>
    %688 = arith.addf %686, %687 : vector<2x32xf32>
    %689 = math.tanh %688 : vector<2x32xf32>
    %690 = arith.mulf %685, %689 : vector<2x32xf32>
    %cst_230 = arith.constant dense<0.000000e+00> : vector<2x128xf32>
    %691 = tpu.matmul %690, %7, %cst_230 {dimension_numbers = #tpu.dot_dimension_numbers<[1], [0], [0], [1], [0, 0, 1, 1], [], []>} : vector<2x32xf32>, vector<32x128xf32>, vector<2x128xf32> -> vector<2x128xf32>
    %692 = arith.addf %691, %19 : vector<2x128xf32>
    %693 = arith.negf %692 : vector<2x128xf32>
    %694 = math.exp %693 : vector<2x128xf32>
    %cst_231 = arith.constant 1.000000e+00 : f32
    %695 = vector.broadcast %cst_231 : f32 to vector<2x128xf32>
    %696 = arith.addf %695, %694 : vector<2x128xf32>
    %697 = arith.divf %695, %696 : vector<2x128xf32>
    %c4_232 = arith.constant 4 : index
    %c0_233 = arith.constant 0 : index
    %c0_234 = arith.constant 0 : index
    %698 = vector.load %arg18[%c4_232, %c0_233, %c0_234] : memref<8x2x128xf32, #tpu.memory_space<vmem>>, vector<1x2x128xf32>
    %699 = vector.shape_cast %698 : vector<1x2x128xf32> to vector<2x128xf32>
    %700 = vector.shape_cast %697 : vector<2x128xf32> to vector<1x2x128xf32>
    tpu.vector_store %arg18[%c4_232, %c0_233, %c0_234], %700 {strides = array<i32>} : memref<8x2x128xf32, #tpu.memory_space<vmem>>, vector<1x2x128xf32>,
    %cst_235 = arith.constant dense<0.000000e+00> : vector<2x128xf32>
    %701 = tpu.matmul %668, %4, %cst_235 {dimension_numbers = #tpu.dot_dimension_numbers<[1], [0], [0], [1], [0, 0, 1, 1], [], []>} : vector<2x32xf32>, vector<32x128xf32>, vector<2x128xf32> -> vector<2x128xf32>
    %702 = arith.addf %440, %701 : vector<2x128xf32>
    %703 = arith.negf %702 : vector<2x128xf32>
    %704 = math.exp %703 : vector<2x128xf32>
    %cst_236 = arith.constant 1.000000e+00 : f32
    %705 = vector.broadcast %cst_236 : f32 to vector<2x128xf32>
    %706 = arith.addf %705, %704 : vector<2x128xf32>
    %707 = arith.divf %705, %706 : vector<2x128xf32>
    %708 = vector.extract_strided_slice %707 {offsets = [0, 0], sizes = [2, 32], strides = [1, 1]} : vector<2x128xf32> to vector<2x32xf32>
    %709 = vector.extract_strided_slice %707 {offsets = [0, 32], sizes = [2, 32], strides = [1, 1]} : vector<2x128xf32> to vector<2x32xf32>
    %710 = vector.extract_strided_slice %707 {offsets = [0, 64], sizes = [2, 32], strides = [1, 1]} : vector<2x128xf32> to vector<2x32xf32>
    %cst_237 = arith.constant 2.000000e+00 : f32
    %711 = vector.broadcast %cst_237 : f32 to vector<2x32xf32>
    %712 = arith.mulf %711, %710 : vector<2x32xf32>
    %cst_238 = arith.constant 1.000000e+00 : f32
    %713 = vector.broadcast %cst_238 : f32 to vector<2x32xf32>
    %714 = arith.subf %712, %713 : vector<2x32xf32>
    %715 = vector.extract_strided_slice %707 {offsets = [0, 96], sizes = [2, 32], strides = [1, 1]} : vector<2x128xf32> to vector<2x32xf32>
    %716 = arith.mulf %709, %666 : vector<2x32xf32>
    %717 = arith.mulf %708, %714 : vector<2x32xf32>
    %718 = arith.addf %716, %717 : vector<2x32xf32>
    %719 = math.tanh %718 : vector<2x32xf32>
    %720 = arith.mulf %715, %719 : vector<2x32xf32>
    %cst_239 = arith.constant dense<0.000000e+00> : vector<2x128xf32>
    %721 = tpu.matmul %720, %5, %cst_239 {dimension_numbers = #tpu.dot_dimension_numbers<[1], [0], [0], [1], [0, 0, 1, 1], [], []>} : vector<2x32xf32>, vector<32x128xf32>, vector<2x128xf32> -> vector<2x128xf32>
    %722 = arith.addf %721, %16 : vector<2x128xf32>
    %cst_240 = arith.constant dense<0.000000e+00> : vector<2x128xf32>
    %723 = tpu.matmul %690, %6, %cst_240 {dimension_numbers = #tpu.dot_dimension_numbers<[1], [0], [0], [1], [0, 0, 1, 1], [], []>} : vector<2x32xf32>, vector<32x128xf32>, vector<2x128xf32> -> vector<2x128xf32>
    %724 = arith.addf %722, %723 : vector<2x128xf32>
    %725 = arith.negf %724 : vector<2x128xf32>
    %726 = math.exp %725 : vector<2x128xf32>
    %cst_241 = arith.constant 1.000000e+00 : f32
    %727 = vector.broadcast %cst_241 : f32 to vector<2x128xf32>
    %728 = arith.addf %727, %726 : vector<2x128xf32>
    %729 = arith.divf %727, %728 : vector<2x128xf32>
    %730 = vector.extract_strided_slice %729 {offsets = [0, 0], sizes = [2, 32], strides = [1, 1]} : vector<2x128xf32> to vector<2x32xf32>
    %731 = vector.extract_strided_slice %729 {offsets = [0, 32], sizes = [2, 32], strides = [1, 1]} : vector<2x128xf32> to vector<2x32xf32>
    %732 = vector.extract_strided_slice %729 {offsets = [0, 64], sizes = [2, 32], strides = [1, 1]} : vector<2x128xf32> to vector<2x32xf32>
    %cst_242 = arith.constant 2.000000e+00 : f32
    %733 = vector.broadcast %cst_242 : f32 to vector<2x32xf32>
    %734 = arith.mulf %733, %732 : vector<2x32xf32>
    %cst_243 = arith.constant 1.000000e+00 : f32
    %735 = vector.broadcast %cst_243 : f32 to vector<2x32xf32>
    %736 = arith.subf %734, %735 : vector<2x32xf32>
    %737 = vector.extract_strided_slice %729 {offsets = [0, 96], sizes = [2, 32], strides = [1, 1]} : vector<2x128xf32> to vector<2x32xf32>
    %738 = arith.mulf %731, %688 : vector<2x32xf32>
    %739 = arith.mulf %730, %736 : vector<2x32xf32>
    %740 = arith.addf %738, %739 : vector<2x32xf32>
    %741 = math.tanh %740 : vector<2x32xf32>
    %742 = arith.mulf %737, %741 : vector<2x32xf32>
    %cst_244 = arith.constant dense<0.000000e+00> : vector<2x128xf32>
    %743 = tpu.matmul %742, %7, %cst_244 {dimension_numbers = #tpu.dot_dimension_numbers<[1], [0], [0], [1], [0, 0, 1, 1], [], []>} : vector<2x32xf32>, vector<32x128xf32>, vector<2x128xf32> -> vector<2x128xf32>
    %744 = arith.addf %743, %19 : vector<2x128xf32>
    %745 = arith.negf %744 : vector<2x128xf32>
    %746 = math.exp %745 : vector<2x128xf32>
    %cst_245 = arith.constant 1.000000e+00 : f32
    %747 = vector.broadcast %cst_245 : f32 to vector<2x128xf32>
    %748 = arith.addf %747, %746 : vector<2x128xf32>
    %749 = arith.divf %747, %748 : vector<2x128xf32>
    %c5_246 = arith.constant 5 : index
    %c0_247 = arith.constant 0 : index
    %c0_248 = arith.constant 0 : index
    %750 = vector.load %arg18[%c5_246, %c0_247, %c0_248] : memref<8x2x128xf32, #tpu.memory_space<vmem>>, vector<1x2x128xf32>
    %751 = vector.shape_cast %750 : vector<1x2x128xf32> to vector<2x128xf32>
    %752 = vector.shape_cast %749 : vector<2x128xf32> to vector<1x2x128xf32>
    tpu.vector_store %arg18[%c5_246, %c0_247, %c0_248], %752 {strides = array<i32>} : memref<8x2x128xf32, #tpu.memory_space<vmem>>, vector<1x2x128xf32>,
    %cst_249 = arith.constant dense<0.000000e+00> : vector<2x128xf32>
    %753 = tpu.matmul %720, %4, %cst_249 {dimension_numbers = #tpu.dot_dimension_numbers<[1], [0], [0], [1], [0, 0, 1, 1], [], []>} : vector<2x32xf32>, vector<32x128xf32>, vector<2x128xf32> -> vector<2x128xf32>
    %754 = arith.addf %440, %753 : vector<2x128xf32>
    %755 = arith.negf %754 : vector<2x128xf32>
    %756 = math.exp %755 : vector<2x128xf32>
    %cst_250 = arith.constant 1.000000e+00 : f32
    %757 = vector.broadcast %cst_250 : f32 to vector<2x128xf32>
    %758 = arith.addf %757, %756 : vector<2x128xf32>
    %759 = arith.divf %757, %758 : vector<2x128xf32>
    %760 = vector.extract_strided_slice %759 {offsets = [0, 0], sizes = [2, 32], strides = [1, 1]} : vector<2x128xf32> to vector<2x32xf32>
    %761 = vector.extract_strided_slice %759 {offsets = [0, 32], sizes = [2, 32], strides = [1, 1]} : vector<2x128xf32> to vector<2x32xf32>
    %762 = vector.extract_strided_slice %759 {offsets = [0, 64], sizes = [2, 32], strides = [1, 1]} : vector<2x128xf32> to vector<2x32xf32>
    %cst_251 = arith.constant 2.000000e+00 : f32
    %763 = vector.broadcast %cst_251 : f32 to vector<2x32xf32>
    %764 = arith.mulf %763, %762 : vector<2x32xf32>
    %cst_252 = arith.constant 1.000000e+00 : f32
    %765 = vector.broadcast %cst_252 : f32 to vector<2x32xf32>
    %766 = arith.subf %764, %765 : vector<2x32xf32>
    %767 = vector.extract_strided_slice %759 {offsets = [0, 96], sizes = [2, 32], strides = [1, 1]} : vector<2x128xf32> to vector<2x32xf32>
    %768 = arith.mulf %761, %718 : vector<2x32xf32>
    %769 = arith.mulf %760, %766 : vector<2x32xf32>
    %770 = arith.addf %768, %769 : vector<2x32xf32>
    %771 = math.tanh %770 : vector<2x32xf32>
    %772 = arith.mulf %767, %771 : vector<2x32xf32>
    %cst_253 = arith.constant dense<0.000000e+00> : vector<2x128xf32>
    %773 = tpu.matmul %772, %5, %cst_253 {dimension_numbers = #tpu.dot_dimension_numbers<[1], [0], [0], [1], [0, 0, 1, 1], [], []>} : vector<2x32xf32>, vector<32x128xf32>, vector<2x128xf32> -> vector<2x128xf32>
    %774 = arith.addf %773, %16 : vector<2x128xf32>
    %cst_254 = arith.constant dense<0.000000e+00> : vector<2x128xf32>
    %775 = tpu.matmul %742, %6, %cst_254 {dimension_numbers = #tpu.dot_dimension_numbers<[1], [0], [0], [1], [0, 0, 1, 1], [], []>} : vector<2x32xf32>, vector<32x128xf32>, vector<2x128xf32> -> vector<2x128xf32>
    %776 = arith.addf %774, %775 : vector<2x128xf32>
    %777 = arith.negf %776 : vector<2x128xf32>
    %778 = math.exp %777 : vector<2x128xf32>
    %cst_255 = arith.constant 1.000000e+00 : f32
    %779 = vector.broadcast %cst_255 : f32 to vector<2x128xf32>
    %780 = arith.addf %779, %778 : vector<2x128xf32>
    %781 = arith.divf %779, %780 : vector<2x128xf32>
    %782 = vector.extract_strided_slice %781 {offsets = [0, 0], sizes = [2, 32], strides = [1, 1]} : vector<2x128xf32> to vector<2x32xf32>
    %783 = vector.extract_strided_slice %781 {offsets = [0, 32], sizes = [2, 32], strides = [1, 1]} : vector<2x128xf32> to vector<2x32xf32>
    %784 = vector.extract_strided_slice %781 {offsets = [0, 64], sizes = [2, 32], strides = [1, 1]} : vector<2x128xf32> to vector<2x32xf32>
    %cst_256 = arith.constant 2.000000e+00 : f32
    %785 = vector.broadcast %cst_256 : f32 to vector<2x32xf32>
    %786 = arith.mulf %785, %784 : vector<2x32xf32>
    %cst_257 = arith.constant 1.000000e+00 : f32
    %787 = vector.broadcast %cst_257 : f32 to vector<2x32xf32>
    %788 = arith.subf %786, %787 : vector<2x32xf32>
    %789 = vector.extract_strided_slice %781 {offsets = [0, 96], sizes = [2, 32], strides = [1, 1]} : vector<2x128xf32> to vector<2x32xf32>
    %790 = arith.mulf %783, %740 : vector<2x32xf32>
    %791 = arith.mulf %782, %788 : vector<2x32xf32>
    %792 = arith.addf %790, %791 : vector<2x32xf32>
    %793 = math.tanh %792 : vector<2x32xf32>
    %794 = arith.mulf %789, %793 : vector<2x32xf32>
    %cst_258 = arith.constant dense<0.000000e+00> : vector<2x128xf32>
    %795 = tpu.matmul %794, %7, %cst_258 {dimension_numbers = #tpu.dot_dimension_numbers<[1], [0], [0], [1], [0, 0, 1, 1], [], []>} : vector<2x32xf32>, vector<32x128xf32>, vector<2x128xf32> -> vector<2x128xf32>
    %796 = arith.addf %795, %19 : vector<2x128xf32>
    %797 = arith.negf %796 : vector<2x128xf32>
    %798 = math.exp %797 : vector<2x128xf32>
    %cst_259 = arith.constant 1.000000e+00 : f32
    %799 = vector.broadcast %cst_259 : f32 to vector<2x128xf32>
    %800 = arith.addf %799, %798 : vector<2x128xf32>
    %801 = arith.divf %799, %800 : vector<2x128xf32>
    %c6_260 = arith.constant 6 : index
    %c0_261 = arith.constant 0 : index
    %c0_262 = arith.constant 0 : index
    %802 = vector.load %arg18[%c6_260, %c0_261, %c0_262] : memref<8x2x128xf32, #tpu.memory_space<vmem>>, vector<1x2x128xf32>
    %803 = vector.shape_cast %802 : vector<1x2x128xf32> to vector<2x128xf32>
    %804 = vector.shape_cast %801 : vector<2x128xf32> to vector<1x2x128xf32>
    tpu.vector_store %arg18[%c6_260, %c0_261, %c0_262], %804 {strides = array<i32>} : memref<8x2x128xf32, #tpu.memory_space<vmem>>, vector<1x2x128xf32>,
    %cst_263 = arith.constant dense<0.000000e+00> : vector<2x128xf32>
    %805 = tpu.matmul %772, %4, %cst_263 {dimension_numbers = #tpu.dot_dimension_numbers<[1], [0], [0], [1], [0, 0, 1, 1], [], []>} : vector<2x32xf32>, vector<32x128xf32>, vector<2x128xf32> -> vector<2x128xf32>
    %806 = arith.addf %440, %805 : vector<2x128xf32>
    %807 = arith.negf %806 : vector<2x128xf32>
    %808 = math.exp %807 : vector<2x128xf32>
    %cst_264 = arith.constant 1.000000e+00 : f32
    %809 = vector.broadcast %cst_264 : f32 to vector<2x128xf32>
    %810 = arith.addf %809, %808 : vector<2x128xf32>
    %811 = arith.divf %809, %810 : vector<2x128xf32>
    %812 = vector.extract_strided_slice %811 {offsets = [0, 0], sizes = [2, 32], strides = [1, 1]} : vector<2x128xf32> to vector<2x32xf32>
    %813 = vector.extract_strided_slice %811 {offsets = [0, 32], sizes = [2, 32], strides = [1, 1]} : vector<2x128xf32> to vector<2x32xf32>
    %814 = vector.extract_strided_slice %811 {offsets = [0, 64], sizes = [2, 32], strides = [1, 1]} : vector<2x128xf32> to vector<2x32xf32>
    %cst_265 = arith.constant 2.000000e+00 : f32
    %815 = vector.broadcast %cst_265 : f32 to vector<2x32xf32>
    %816 = arith.mulf %815, %814 : vector<2x32xf32>
    %cst_266 = arith.constant 1.000000e+00 : f32
    %817 = vector.broadcast %cst_266 : f32 to vector<2x32xf32>
    %818 = arith.subf %816, %817 : vector<2x32xf32>
    %819 = vector.extract_strided_slice %811 {offsets = [0, 96], sizes = [2, 32], strides = [1, 1]} : vector<2x128xf32> to vector<2x32xf32>
    %820 = arith.mulf %813, %770 : vector<2x32xf32>
    %821 = arith.mulf %812, %818 : vector<2x32xf32>
    %822 = arith.addf %820, %821 : vector<2x32xf32>
    %823 = math.tanh %822 : vector<2x32xf32>
    %824 = arith.mulf %819, %823 : vector<2x32xf32>
    %cst_267 = arith.constant dense<0.000000e+00> : vector<2x128xf32>
    %825 = tpu.matmul %824, %5, %cst_267 {dimension_numbers = #tpu.dot_dimension_numbers<[1], [0], [0], [1], [0, 0, 1, 1], [], []>} : vector<2x32xf32>, vector<32x128xf32>, vector<2x128xf32> -> vector<2x128xf32>
    %826 = arith.addf %825, %16 : vector<2x128xf32>
    %cst_268 = arith.constant dense<0.000000e+00> : vector<2x128xf32>
    %827 = tpu.matmul %794, %6, %cst_268 {dimension_numbers = #tpu.dot_dimension_numbers<[1], [0], [0], [1], [0, 0, 1, 1], [], []>} : vector<2x32xf32>, vector<32x128xf32>, vector<2x128xf32> -> vector<2x128xf32>
    %828 = arith.addf %826, %827 : vector<2x128xf32>
    %829 = arith.negf %828 : vector<2x128xf32>
    %830 = math.exp %829 : vector<2x128xf32>
    %cst_269 = arith.constant 1.000000e+00 : f32
    %831 = vector.broadcast %cst_269 : f32 to vector<2x128xf32>
    %832 = arith.addf %831, %830 : vector<2x128xf32>
    %833 = arith.divf %831, %832 : vector<2x128xf32>
    %834 = vector.extract_strided_slice %833 {offsets = [0, 0], sizes = [2, 32], strides = [1, 1]} : vector<2x128xf32> to vector<2x32xf32>
    %835 = vector.extract_strided_slice %833 {offsets = [0, 32], sizes = [2, 32], strides = [1, 1]} : vector<2x128xf32> to vector<2x32xf32>
    %836 = vector.extract_strided_slice %833 {offsets = [0, 64], sizes = [2, 32], strides = [1, 1]} : vector<2x128xf32> to vector<2x32xf32>
    %cst_270 = arith.constant 2.000000e+00 : f32
    %837 = vector.broadcast %cst_270 : f32 to vector<2x32xf32>
    %838 = arith.mulf %837, %836 : vector<2x32xf32>
    %cst_271 = arith.constant 1.000000e+00 : f32
    %839 = vector.broadcast %cst_271 : f32 to vector<2x32xf32>
    %840 = arith.subf %838, %839 : vector<2x32xf32>
    %841 = vector.extract_strided_slice %833 {offsets = [0, 96], sizes = [2, 32], strides = [1, 1]} : vector<2x128xf32> to vector<2x32xf32>
    %842 = arith.mulf %835, %792 : vector<2x32xf32>
    %843 = arith.mulf %834, %840 : vector<2x32xf32>
    %844 = arith.addf %842, %843 : vector<2x32xf32>
    %845 = math.tanh %844 : vector<2x32xf32>
    %846 = arith.mulf %841, %845 : vector<2x32xf32>
    %cst_272 = arith.constant dense<0.000000e+00> : vector<2x128xf32>
    %847 = tpu.matmul %846, %7, %cst_272 {dimension_numbers = #tpu.dot_dimension_numbers<[1], [0], [0], [1], [0, 0, 1, 1], [], []>} : vector<2x32xf32>, vector<32x128xf32>, vector<2x128xf32> -> vector<2x128xf32>
    %848 = arith.addf %847, %19 : vector<2x128xf32>
    %849 = arith.negf %848 : vector<2x128xf32>
    %850 = math.exp %849 : vector<2x128xf32>
    %cst_273 = arith.constant 1.000000e+00 : f32
    %851 = vector.broadcast %cst_273 : f32 to vector<2x128xf32>
    %852 = arith.addf %851, %850 : vector<2x128xf32>
    %853 = arith.divf %851, %852 : vector<2x128xf32>
    %c7_274 = arith.constant 7 : index
    %c0_275 = arith.constant 0 : index
    %c0_276 = arith.constant 0 : index
    %854 = vector.load %arg18[%c7_274, %c0_275, %c0_276] : memref<8x2x128xf32, #tpu.memory_space<vmem>>, vector<1x2x128xf32>
    %855 = vector.shape_cast %854 : vector<1x2x128xf32> to vector<2x128xf32>
    %856 = vector.shape_cast %853 : vector<2x128xf32> to vector<1x2x128xf32>
    tpu.vector_store %arg18[%c7_274, %c0_275, %c0_276], %856 {strides = array<i32>} : memref<8x2x128xf32, #tpu.memory_space<vmem>>, vector<1x2x128xf32>,
    return
  }
}

</mosaic_0001>

<llo_original>
// kernel: vae_lstm_forward.1
$region0: #{vae_lstm_forward.1}
  #allocation0 [shape = 'u32[]', space=smem, size = 0x4, offset = 0x4, fixed_abs, tag = 'smem constant byte address 0x4 - core index']
  #allocation1 [shape = 'u32[144,128]{1,0:T(1,128)}', space=vmem, size = 0x12000, scoped, tag = 'internal scratch']
  %s0 = inlined_call_operand.vmem [shape: f32[8,2,128], index: 0, kind: input, shape index: {}]
  %s1 = inlined_call_operand.vmem [shape: f32[2,16], index: 1, kind: input, shape index: {}]
  %s2 = inlined_call_operand.hbm [shape: f32[128,128], index: 2, kind: input, shape index: {}]
  %s3 = inlined_call_operand.vmem [shape: f32[32,128], index: 3, kind: input, shape index: {}]
  %s4 = inlined_call_operand.vmem [shape: f32[1,128], index: 4, kind: input, shape index: {}]
  %s5 = inlined_call_operand.vmem [shape: f32[32,128], index: 5, kind: input, shape index: {}]
  %s6 = inlined_call_operand.hbm [shape: f32[32,128], index: 6, kind: input, shape index: {}]
  %s7 = inlined_call_operand.hbm [shape: f32[1,128], index: 7, kind: input, shape index: {}]
  %s8 = inlined_call_operand.hbm [shape: f32[8,32,32], index: 8, kind: input, shape index: {}]
  %s9 = inlined_call_operand.vmem [shape: f32[1,32], index: 9, kind: input, shape index: {}]
  %s10 = inlined_call_operand.hbm [shape: f32[16,128], index: 10, kind: input, shape index: {}]
  %s11 = inlined_call_operand.hbm [shape: f32[32,128], index: 11, kind: input, shape index: {}]
  %s12 = inlined_call_operand.hbm [shape: f32[1,128], index: 12, kind: input, shape index: {}]
  %s13 = inlined_call_operand.hbm [shape: f32[32,128], index: 13, kind: input, shape index: {}]
  %s14 = inlined_call_operand.hbm [shape: f32[32,128], index: 14, kind: input, shape index: {}]
  %s15 = inlined_call_operand.hbm [shape: f32[1,128], index: 15, kind: input, shape index: {}]
  %s16 = inlined_call_operand.hbm [shape: f32[32,128], index: 16, kind: input, shape index: {}]
  %s17 = inlined_call_operand.hbm [shape: f32[1,128], index: 17, kind: input, shape index: {}]
  %s18 = inlined_call_operand.vmem [shape: f32[8,2,128], index: 18, kind: output, shape index: {0}]
  %s19 = inlined_call_operand.vmem [shape: f32[2,128], index: 19, kind: output, shape index: {1}]
  %20 = xla_tuple %s18, %s19
  %s21 = sld [smem:[#allocation0]]
  $region138: #{vae_lstm_forward.1} parent=0
    _
  %s23 = ssub.s32 1, %s21
  %s24 = scalar_select 0, %s23, %s21
  $region1: #{vae_lstm_forward.1} parent=0
    #allocation2 [shape = 'u8[65536]{0}', space=vmem, size = 0x10000, scoped, tag = 'input window, operand 2, single buffered']
    #allocation3 [shape = 's32[1]{0}', space=sflag, size = 0x4, scoped, tag = 'scoped memory for vae_lstm_forward.1']
    #allocation4 [shape = 'u8[16384]{0}', space=vmem, size = 0x4000, scoped, tag = 'input window, operand 6, single buffered']
    #allocation5 [shape = 's32[1]{0}', space=sflag, size = 0x4, scoped, tag = 'scoped memory for vae_lstm_forward.1']
    #allocation6 [shape = 'u8[512]{0}', space=vmem, size = 0x400, scoped, tag = 'input window, operand 7, single buffered']
    #allocation7 [shape = 'u8[131072]{0}', space=vmem, size = 0x20000, scoped, tag = 'input window, operand 8, single buffered']
    #allocation8 [shape = 's32[1]{0}', space=sflag, size = 0x4, scoped, tag = 'scoped memory for vae_lstm_forward.1']
    #allocation9 [shape = 'u8[8192]{0}', space=vmem, size = 0x2000, scoped, tag = 'input window, operand 10, single buffered']
    #allocation10 [shape = 'u8[16384]{0}', space=vmem, size = 0x4000, scoped, tag = 'input window, operand 11, single buffered']
    #allocation11 [shape = 's32[1]{0}', space=sflag, size = 0x4, scoped, tag = 'scoped memory for vae_lstm_forward.1']
    #allocation12 [shape = 'u8[512]{0}', space=vmem, size = 0x400, scoped, tag = 'input window, operand 12, single buffered']
    #allocation13 [shape = 'u8[16384]{0}', space=vmem, size = 0x4000, scoped, tag = 'input window, operand 13, single buffered']
    #allocation14 [shape = 's32[1]{0}', space=sflag, size = 0x4, scoped, tag = 'scoped memory for vae_lstm_forward.1']
    #allocation15 [shape = 'u8[16384]{0}', space=vmem, size = 0x4000, scoped, tag = 'input window, operand 14, single buffered']
    #allocation16 [shape = 'u8[512]{0}', space=vmem, size = 0x400, scoped, tag = 'input window, operand 15, single buffered']
    #allocation17 [shape = 's32[1]{0}', space=sflag, size = 0x4, scoped, tag = 'scoped memory for vae_lstm_forward.1']
    #allocation18 [shape = 'u8[16384]{0}', space=vmem, size = 0x4000, scoped, tag = 'input window, operand 16, single buffered']
    #allocation19 [shape = 'u8[512]{0}', space=vmem, size = 0x400, scoped, tag = 'input window, operand 17, single buffered']
    #allocation20 [shape = 's32[1]{0}', space=sflag, size = 0x4, scoped, tag = 'scoped memory for vae_lstm_forward.1']
    %25 = vsyncpa [#allocation3], 0
    %26 = vsyncpa [#allocation5], 0
    %27 = vsyncpa [#allocation8], 0
    %28 = vsyncpa [#allocation11], 0
    %29 = vsyncpa [#allocation14], 0
    %30 = vsyncpa [#allocation17], 0
    %31 = vsyncpa [#allocation20], 0
    // Predicated region
    $region2: #{vae_lstm_forward.1} parent=1 // pred_check
      _
    $region3: #{vae_lstm_forward.1} parent=1 // pred_check_branch
      %33 = sbr.rel (0) target = $region5
    $region4: #{vae_lstm_forward.1} parent=1 // pred_region
      _
    $region5: #{vae_lstm_forward.1} parent=1 // pred_fallthru
      _
    // Predicated region
    $region6: #{vae_lstm_forward.1} parent=1 // pred_check
      _
    $region7: #{vae_lstm_forward.1} parent=1 // pred_check_branch
      %35 = sbr.rel (0) target = $region9
    $region8: #{vae_lstm_forward.1} parent=1 // pred_region
      _
    $region9: #{vae_lstm_forward.1} parent=1 // pred_fallthru
      _
    // Predicated region
    $region10: #{vae_lstm_forward.1} parent=1 // pred_check
      _
    $region11: #{vae_lstm_forward.1} parent=1 // pred_check_branch
      %37 = sbr.rel (0) target = $region13
    $region12: #{vae_lstm_forward.1} parent=1 // pred_region
      %s39 = ssub.s32 2048, 2048
      %40 = vsyncadd [#allocation3], %s39
      %s41 = sshll.u32 [#allocation2], 4
      %s42 = int_to_ptr.vmem [resolvable:$true] %s41
      %47 = dma.hbm_to_vmem [thread:$0]  %s2, 2048, %s42, [#allocation3], 128, 128, 8
    $region13: #{vae_lstm_forward.1} parent=1 // pred_fallthru
      _
    // Predicated region
    $region14: #{vae_lstm_forward.1} parent=1 // pred_check
      _
    $region15: #{vae_lstm_forward.1} parent=1 // pred_check_branch
      %49 = sbr.rel (0) target = $region17
    $region16: #{vae_lstm_forward.1} parent=1 // pred_region
      _
    $region17: #{vae_lstm_forward.1} parent=1 // pred_fallthru
      _
    // Predicated region
    $region18: #{vae_lstm_forward.1} parent=1 // pred_check
      _
    $region19: #{vae_lstm_forward.1} parent=1 // pred_check_branch
      %51 = sbr.rel (0) target = $region21
    $region20: #{vae_lstm_forward.1} parent=1 // pred_region
      _
    $region21: #{vae_lstm_forward.1} parent=1 // pred_fallthru
      _
    // Predicated region
    $region22: #{vae_lstm_forward.1} parent=1 // pred_check
      _
    $region23: #{vae_lstm_forward.1} parent=1 // pred_check_branch
      %53 = sbr.rel (0) target = $region25
    $region24: #{vae_lstm_forward.1} parent=1 // pred_region
      _
    $region25: #{vae_lstm_forward.1} parent=1 // pred_fallthru
      _
    // Predicated region
    $region26: #{vae_lstm_forward.1} parent=1 // pred_check
      _
    $region27: #{vae_lstm_forward.1} parent=1 // pred_check_branch
      %55 = sbr.rel (0) target = $region29
    $region28: #{vae_lstm_forward.1} parent=1 // pred_region
      %s57 = ssub.s32 512, 512
      %58 = vsyncadd [#allocation5], %s57
      %s59 = sshll.u32 [#allocation4], 4
      %s60 = int_to_ptr.vmem [resolvable:$true] %s59
      %65 = dma.hbm_to_vmem [thread:$0]  %s6, 512, %s60, [#allocation5], 128, 128, 8
    $region29: #{vae_lstm_forward.1} parent=1 // pred_fallthru
      _
    // Predicated region
    $region30: #{vae_lstm_forward.1} parent=1 // pred_check
      _
    $region31: #{vae_lstm_forward.1} parent=1 // pred_check_branch
      %67 = sbr.rel (0) target = $region33
    $region32: #{vae_lstm_forward.1} parent=1 // pred_region
      %s69 = ssub.s32 16, 16
      %70 = vsyncadd [#allocation5], %s69
      %s72 = sshll.u32 [#allocation6], 4
      %s73 = int_to_ptr.vmem [resolvable:$true] %s72
      %75 = dma.hbm_to_vmem [thread:$0]  %s7, 16, %s73, [#allocation5]
    $region33: #{vae_lstm_forward.1} parent=1 // pred_fallthru
      _
    // Predicated region
    $region34: #{vae_lstm_forward.1} parent=1 // pred_check
      _
    $region35: #{vae_lstm_forward.1} parent=1 // pred_check_branch
      %77 = sbr.rel (0) target = $region37
    $region36: #{vae_lstm_forward.1} parent=1 // pred_region
      %s79 = ssub.s32 4096, 4096
      %80 = vsyncadd [#allocation8], %s79
      %s81 = sshll.u32 [#allocation7], 4
      %s82 = int_to_ptr.vmem [resolvable:$true] %s81
      %87 = dma.hbm_to_vmem [thread:$0]  %s8, 4096, %s82, [#allocation8], 128, 128, 8
    $region37: #{vae_lstm_forward.1} parent=1 // pred_fallthru
      _
    // Predicated region
    $region38: #{vae_lstm_forward.1} parent=1 // pred_check
      _
    $region39: #{vae_lstm_forward.1} parent=1 // pred_check_branch
      %89 = sbr.rel (0) target = $region41
    $region40: #{vae_lstm_forward.1} parent=1 // pred_region
      _
    $region41: #{vae_lstm_forward.1} parent=1 // pred_fallthru
      _
    // Predicated region
    $region42: #{vae_lstm_forward.1} parent=1 // pred_check
      _
    $region43: #{vae_lstm_forward.1} parent=1 // pred_check_branch
      %91 = sbr.rel (0) target = $region45
    $region44: #{vae_lstm_forward.1} parent=1 // pred_region
      %s93 = ssub.s32 256, 256
      %94 = vsyncadd [#allocation8], %s93
      %s95 = sshll.u32 [#allocation9], 4
      %s96 = int_to_ptr.vmem [resolvable:$true] %s95
      %101 = dma.hbm_to_vmem [thread:$0]  %s10, 256, %s96, [#allocation8], 128, 128, 8
    $region45: #{vae_lstm_forward.1} parent=1 // pred_fallthru
      _
    // Predicated region
    $region46: #{vae_lstm_forward.1} parent=1 // pred_check
      _
    $region47: #{vae_lstm_forward.1} parent=1 // pred_check_branch
      %103 = sbr.rel (0) target = $region49
    $region48: #{vae_lstm_forward.1} parent=1 // pred_region
      %s105 = ssub.s32 512, 512
      %106 = vsyncadd [#allocation11], %s105
      %s107 = sshll.u32 [#allocation10], 4
      %s108 = int_to_ptr.vmem [resolvable:$true] %s107
      %113 = dma.hbm_to_vmem [thread:$0]  %s11, 512, %s108, [#allocation11], 128, 128, 8
    $region49: #{vae_lstm_forward.1} parent=1 // pred_fallthru
      _
    // Predicated region
    $region50: #{vae_lstm_forward.1} parent=1 // pred_check
      _
    $region51: #{vae_lstm_forward.1} parent=1 // pred_check_branch
      %115 = sbr.rel (0) target = $region53
    $region52: #{vae_lstm_forward.1} parent=1 // pred_region
      %s117 = ssub.s32 16, 16
      %118 = vsyncadd [#allocation11], %s117
      %s120 = sshll.u32 [#allocation12], 4
      %s121 = int_to_ptr.vmem [resolvable:$true] %s120
      %123 = dma.hbm_to_vmem [thread:$0]  %s12, 16, %s121, [#allocation11]
    $region53: #{vae_lstm_forward.1} parent=1 // pred_fallthru
      _
    // Predicated region
    $region54: #{vae_lstm_forward.1} parent=1 // pred_check
      _
    $region55: #{vae_lstm_forward.1} parent=1 // pred_check_branch
      %125 = sbr.rel (0) target = $region57
    $region56: #{vae_lstm_forward.1} parent=1 // pred_region
      %s127 = ssub.s32 512, 512
      %128 = vsyncadd [#allocation14], %s127
      %s129 = sshll.u32 [#allocation13], 4
      %s130 = int_to_ptr.vmem [resolvable:$true] %s129
      %135 = dma.hbm_to_vmem [thread:$0]  %s13, 512, %s130, [#allocation14], 128, 128, 8
    $region57: #{vae_lstm_forward.1} parent=1 // pred_fallthru
      _
    // Predicated region
    $region58: #{vae_lstm_forward.1} parent=1 // pred_check
      _
    $region59: #{vae_lstm_forward.1} parent=1 // pred_check_branch
      %137 = sbr.rel (0) target = $region61
    $region60: #{vae_lstm_forward.1} parent=1 // pred_region
      %s139 = ssub.s32 512, 512
      %140 = vsyncadd [#allocation14], %s139
      %s141 = sshll.u32 [#allocation15], 4
      %s142 = int_to_ptr.vmem [resolvable:$true] %s141
      %147 = dma.hbm_to_vmem [thread:$0]  %s14, 512, %s142, [#allocation14], 128, 128, 8
    $region61: #{vae_lstm_forward.1} parent=1 // pred_fallthru
      _
    // Predicated region
    $region62: #{vae_lstm_forward.1} parent=1 // pred_check
      _
    $region63: #{vae_lstm_forward.1} parent=1 // pred_check_branch
      %149 = sbr.rel (0) target = $region65
    $region64: #{vae_lstm_forward.1} parent=1 // pred_region
      %s151 = ssub.s32 16, 16
      %152 = vsyncadd [#allocation17], %s151
      %s154 = sshll.u32 [#allocation16], 4
      %s155 = int_to_ptr.vmem [resolvable:$true] %s154
      %157 = dma.hbm_to_vmem [thread:$0]  %s15, 16, %s155, [#allocation17]
    $region65: #{vae_lstm_forward.1} parent=1 // pred_fallthru
      _
    // Predicated region
    $region66: #{vae_lstm_forward.1} parent=1 // pred_check
      _
    $region67: #{vae_lstm_forward.1} parent=1 // pred_check_branch
      %159 = sbr.rel (0) target = $region69
    $region68: #{vae_lstm_forward.1} parent=1 // pred_region
      %s161 = ssub.s32 512, 512
      %162 = vsyncadd [#allocation17], %s161
      %s163 = sshll.u32 [#allocation18], 4
      %s164 = int_to_ptr.vmem [resolvable:$true] %s163
      %169 = dma.hbm_to_vmem [thread:$0]  %s16, 512, %s164, [#allocation17], 128, 128, 8
    $region69: #{vae_lstm_forward.1} parent=1 // pred_fallthru
      _
    // Predicated region
    $region70: #{vae_lstm_forward.1} parent=1 // pred_check
      _
    $region71: #{vae_lstm_forward.1} parent=1 // pred_check_branch
      %171 = sbr.rel (0) target = $region73
    $region72: #{vae_lstm_forward.1} parent=1 // pred_region
      %s173 = ssub.s32 16, 16
      %174 = vsyncadd [#allocation20], %s173
      %s176 = sshll.u32 [#allocation19], 4
      %s177 = int_to_ptr.vmem [resolvable:$true] %s176
      %179 = dma.hbm_to_vmem [thread:$0]  %s17, 16, %s177, [#allocation20]
    $region73: #{vae_lstm_forward.1} parent=1 // pred_fallthru
      _
    // Predicated region
    $region74: #{vae_lstm_forward.1} parent=1 // pred_check
      _
    $region75: #{vae_lstm_forward.1} parent=1 // pred_check_branch
      %181 = sbr.rel (0) target = $region77
    $region76: #{vae_lstm_forward.1} parent=1 // pred_region
      %182 = dma.done [#allocation3], 2048
    $region77: #{vae_lstm_forward.1} parent=1 // pred_fallthru
      _
    // Predicated region
    $region78: #{vae_lstm_forward.1} parent=1 // pred_check
      _
    $region79: #{vae_lstm_forward.1} parent=1 // pred_check_branch
      %184 = sbr.rel (0) target = $region81
    $region80: #{vae_lstm_forward.1} parent=1 // pred_region
      %185 = dma.done [#allocation5], 512
    $region81: #{vae_lstm_forward.1} parent=1 // pred_fallthru
      _
    // Predicated region
    $region82: #{vae_lstm_forward.1} parent=1 // pred_check
      _
    $region83: #{vae_lstm_forward.1} parent=1 // pred_check_branch
      %187 = sbr.rel (0) target = $region85
    $region84: #{vae_lstm_forward.1} parent=1 // pred_region
      %188 = dma.done [#allocation5], 16
    $region85: #{vae_lstm_forward.1} parent=1 // pred_fallthru
      _
    // Predicated region
    $region86: #{vae_lstm_forward.1} parent=1 // pred_check
      _
    $region87: #{vae_lstm_forward.1} parent=1 // pred_check_branch
      %190 = sbr.rel (0) target = $region89
    $region88: #{vae_lstm_forward.1} parent=1 // pred_region
      %191 = dma.done [#allocation8], 4096
    $region89: #{vae_lstm_forward.1} parent=1 // pred_fallthru
      _
    // Predicated region
    $region90: #{vae_lstm_forward.1} parent=1 // pred_check
      _
    $region91: #{vae_lstm_forward.1} parent=1 // pred_check_branch
      %193 = sbr.rel (0) target = $region93
    $region92: #{vae_lstm_forward.1} parent=1 // pred_region
      %194 = dma.done [#allocation8], 256
    $region93: #{vae_lstm_forward.1} parent=1 // pred_fallthru
      _
    // Predicated region
    $region94: #{vae_lstm_forward.1} parent=1 // pred_check
      _
    $region95: #{vae_lstm_forward.1} parent=1 // pred_check_branch
      %196 = sbr.rel (0) target = $region97
    $region96: #{vae_lstm_forward.1} parent=1 // pred_region
      %197 = dma.done [#allocation11], 512
    $region97: #{vae_lstm_forward.1} parent=1 // pred_fallthru
      _
    // Predicated region
    $region98: #{vae_lstm_forward.1} parent=1 // pred_check
      _
    $region99: #{vae_lstm_forward.1} parent=1 // pred_check_branch
      %199 = sbr.rel (0) target = $region101
    $region100: #{vae_lstm_forward.1} parent=1 // pred_region
      %200 = dma.done [#allocation11], 16
    $region101: #{vae_lstm_forward.1} parent=1 // pred_fallthru
      _
    // Predicated region
    $region102: #{vae_lstm_forward.1} parent=1 // pred_check
      _
    $region103: #{vae_lstm_forward.1} parent=1 // pred_check_branch
      %202 = sbr.rel (0) target = $region105
    $region104: #{vae_lstm_forward.1} parent=1 // pred_region
      %203 = dma.done [#allocation14], 512
    $region105: #{vae_lstm_forward.1} parent=1 // pred_fallthru
      _
    // Predicated region
    $region106: #{vae_lstm_forward.1} parent=1 // pred_check
      _
    $region107: #{vae_lstm_forward.1} parent=1 // pred_check_branch
      %205 = sbr.rel (0) target = $region109
    $region108: #{vae_lstm_forward.1} parent=1 // pred_region
      %206 = dma.done [#allocation14], 512
    $region109: #{vae_lstm_forward.1} parent=1 // pred_fallthru
      _
    // Predicated region
    $region110: #{vae_lstm_forward.1} parent=1 // pred_check
      _
    $region111: #{vae_lstm_forward.1} parent=1 // pred_check_branch
      %208 = sbr.rel (0) target = $region113
    $region112: #{vae_lstm_forward.1} parent=1 // pred_region
      %209 = dma.done [#allocation17], 16
    $region113: #{vae_lstm_forward.1} parent=1 // pred_fallthru
      _
    // Predicated region
    $region114: #{vae_lstm_forward.1} parent=1 // pred_check
      _
    $region115: #{vae_lstm_forward.1} parent=1 // pred_check_branch
      %211 = sbr.rel (0) target = $region117
    $region116: #{vae_lstm_forward.1} parent=1 // pred_region
      %212 = dma.done [#allocation17], 512
    $region117: #{vae_lstm_forward.1} parent=1 // pred_fallthru
      _
    // Predicated region
    $region118: #{vae_lstm_forward.1} parent=1 // pred_check
      _
    $region119: #{vae_lstm_forward.1} parent=1 // pred_check_branch
      %214 = sbr.rel (0) target = $region121
    $region120: #{vae_lstm_forward.1} parent=1 // pred_region
      %215 = dma.done [#allocation20], 16
    $region121: #{vae_lstm_forward.1} parent=1 // pred_fallthru
      _
    %v216 = vld [vmem:[#allocation2] sm:$0xff]
    %v217 = vld [vmem:[#allocation2 + $0x8] sm:$0xff]
    %v218 = vld [vmem:[#allocation2 + $0x10] sm:$0xff]
    %v219 = vld [vmem:[#allocation2 + $0x18] sm:$0xff]
    %v220 = vld [vmem:[#allocation2 + $0x20] sm:$0xff]
    %v221 = vld [vmem:[#allocation2 + $0x28] sm:$0xff]
    %v222 = vld [vmem:[#allocation2 + $0x30] sm:$0xff]
    %v223 = vld [vmem:[#allocation2 + $0x38] sm:$0xff]
    %v224 = vld [vmem:[#allocation2 + $0x40] sm:$0xff]
    %v225 = vld [vmem:[#allocation2 + $0x48] sm:$0xff]
    %v226 = vld [vmem:[#allocation2 + $0x50] sm:$0xff]
    %v227 = vld [vmem:[#allocation2 + $0x58] sm:$0xff]
    %v228 = vld [vmem:[#allocation2 + $0x60] sm:$0xff]
    %v229 = vld [vmem:[#allocation2 + $0x68] sm:$0xff]
    %v230 = vld [vmem:[#allocation2 + $0x70] sm:$0xff]
    %v231 = vld [vmem:[#allocation2 + $0x78] sm:$0xff]
    %v232 = vld [vmem:[%s3] sm:$0xff]
    %v233 = vld [vmem:[%s3 + $0x8] sm:$0xff]
    %v234 = vld [vmem:[%s3 + $0x10] sm:$0xff]
    %v235 = vld [vmem:[%s3 + $0x18] sm:$0xff]
    %v236 = vld [vmem:[%s5] sm:$0xff]
    %v237 = vld [vmem:[%s5 + $0x8] sm:$0xff]
    %v238 = vld [vmem:[%s5 + $0x10] sm:$0xff]
    %v239 = vld [vmem:[%s5 + $0x18] sm:$0xff]
    %v240 = vld [vmem:[#allocation4] sm:$0xff]
    %v241 = vld [vmem:[#allocation4 + $0x8] sm:$0xff]
    %v242 = vld [vmem:[#allocation4 + $0x10] sm:$0xff]
    %v243 = vld [vmem:[#allocation4 + $0x18] sm:$0xff]
    %v244 = vld [vmem:[#allocation10] sm:$0xff]
    %v245 = vld [vmem:[#allocation10 + $0x8] sm:$0xff]
    %v246 = vld [vmem:[#allocation10 + $0x10] sm:$0xff]
    %v247 = vld [vmem:[#allocation10 + $0x18] sm:$0xff]
    %v248 = vld [vmem:[#allocation13] sm:$0xff]
    %v249 = vld [vmem:[#allocation13 + $0x8] sm:$0xff]
    %v250 = vld [vmem:[#allocation13 + $0x10] sm:$0xff]
    %v251 = vld [vmem:[#allocation13 + $0x18] sm:$0xff]
    %v252 = vld [vmem:[#allocation15] sm:$0xff]
    %v253 = vld [vmem:[#allocation15 + $0x8] sm:$0xff]
    %v254 = vld [vmem:[#allocation15 + $0x10] sm:$0xff]
    %v255 = vld [vmem:[#allocation15 + $0x18] sm:$0xff]
    %v256 = vld [vmem:[#allocation18] sm:$0xff]
    %v257 = vld [vmem:[#allocation18 + $0x8] sm:$0xff]
    %v258 = vld [vmem:[#allocation18 + $0x10] sm:$0xff]
    %v259 = vld [vmem:[#allocation18 + $0x18] sm:$0xff]
    %v260 = vld [vmem:[%s4] sm:$0x1]
    %v262 = vlaneseq
    %v263 = vshrl.u32 %v262, 7
    %v264 = vsub.s32 0, %v263
    %v265 = vrot.slane %v260, %v264
    %v267 = vld [vmem:[#allocation6] sm:$0x1]
    %v269 = vlaneseq
    %v270 = vshrl.u32 %v269, 7
    %v271 = vsub.s32 0, %v270
    %v272 = vrot.slane %v267, %v271
    %v274 = vld [vmem:[#allocation16] sm:$0x1]
    %v276 = vlaneseq
    %v277 = vshrl.u32 %v276, 7
    %v278 = vsub.s32 0, %v277
    %v279 = vrot.slane %v274, %v278
    %v281 = vld [vmem:[#allocation19] sm:$0x1]
    %v283 = vlaneseq
    %v284 = vshrl.u32 %v283, 7
    %v285 = vsub.s32 0, %v284
    %v286 = vrot.slane %v281, %v285
    %v288 = vld [vmem:[%s9] sm:$0x1]
    %v290 = vlaneseq
    %v291 = vshrl.u32 %v290, 7
    %v292 = vsub.s32 0, %v291
    %v293 = vrot.slane %v288, %v292
    %v295 = vld [vmem:[%s0] sm:$0x3]
    %296 = vmatprep.subr.mxu0 0.0
    %297 = vmatpush1.msra.mxu0 %v231
    %298 = vmatprep.subr.mxu0 0.0
    %299 = vmatpush1.msra.mxu0 %v230
    %300 = vmatprep.subr.mxu0 0.0
    %301 = vmatpush1.msra.mxu0 %v229
    %302 = vmatprep.subr.mxu0 0.0
    %303 = vmatpush1.msra.mxu0 %v228
    %304 = vmatprep.subr.mxu0 0.0
    %305 = vmatpush1.msra.mxu0 %v227
    %306 = vmatprep.subr.mxu0 0.0
    %307 = vmatpush1.msra.mxu0 %v226
    %308 = vmatprep.subr.mxu0 0.0
    %309 = vmatpush1.msra.mxu0 %v225
    %310 = vmatprep.subr.mxu0 0.0
    %311 = vmatpush1.msra.mxu0 %v224
    %312 = vmatprep.subr.mxu0 0.0
    %313 = vmatpush1.msra.mxu0 %v223
    %314 = vmatprep.subr.mxu0 0.0
    %315 = vmatpush1.msra.mxu0 %v222
    %316 = vmatprep.subr.mxu0 0.0
    %317 = vmatpush1.msra.mxu0 %v221
    %318 = vmatprep.subr.mxu0 0.0
    %319 = vmatpush1.msra.mxu0 %v220
    %320 = vmatprep.subr.mxu0 0.0
    %321 = vmatpush1.msra.mxu0 %v219
    %322 = vmatprep.subr.mxu0 0.0
    %323 = vmatpush1.msra.mxu0 %v218
    %324 = vmatprep.subr.mxu0 0.0
    %325 = vmatpush1.msra.mxu0 %v217
    %326 = vmatprep.subr.mxu0 0.0
    %327 = vmatpush1.msra.mxu0 %v216
    %328 = vmatprep.subr.mxu0 0.0
    %329 = vmatpush2.msra.mxu0 0.0
    %330 = vmatprep.subr.mxu0 0.0
    %331 = vmatpush2.msra.mxu0 0.0
    %332 = vmatprep.subr.mxu0 0.0
    %333 = vmatpush2.msra.mxu0 0.0
    %334 = vmatprep.subr.mxu0 0.0
    %335 = vmatpush2.msra.mxu0 0.0
    %336 = vmatprep.subr.mxu0 0.0
    %337 = vmatpush2.msra.mxu0 0.0
    %338 = vmatprep.subr.mxu0 0.0
    %339 = vmatpush2.msra.mxu0 0.0
    %340 = vmatprep.subr.mxu0 0.0
    %341 = vmatpush2.msra.mxu0 0.0
    %342 = vmatprep.subr.mxu0 0.0
    %343 = vmatpush2.msra.mxu0 0.0
    %344 = vmatprep.subr.mxu0 0.0
    %345 = vmatpush2.msra.mxu0 0.0
    %346 = vmatprep.subr.mxu0 0.0
    %347 = vmatpush2.msra.mxu0 0.0
    %348 = vmatprep.subr.mxu0 0.0
    %349 = vmatpush2.msra.mxu0 0.0
    %350 = vmatprep.subr.mxu0 0.0
    %351 = vmatpush2.msra.mxu0 0.0
    %352 = vmatprep.subr.mxu0 0.0
    %353 = vmatpush2.msra.mxu0 0.0
    %354 = vmatprep.subr.mxu0 0.0
    %355 = vmatpush2.msra.mxu0 0.0
    %356 = vmatprep.subr.mxu0 0.0
    %357 = vmatpush2.msra.mxu0 0.0
    %358 = vmatprep.subr.mxu0 0.0
    %359 = vmatpush2.msra.mxu0 0.0
    %360 = vmatprep.mubr.f32.mxu0 0.0
    %361 = vmatmul.mubr.f32.gmra.mxu0 %v295
    %v362 = vpop.f32.mrf.mxu0
    %v363 = vadd.f32 %v265, %v362
    %v364 = vpop.f32.mrf.mxu0
    %365 = vdwg.mxu0
    %vm366 = vcmask 261120
    %v368 = vsel %vm366, 0.0, 0
    %370 = vmatprep.subr.mxu0 0.0
    %371 = vmatpush1.msra.mxu0 0.0
    %372 = vmatprep.subr.mxu0 0.0
    %373 = vmatpush1.msra.mxu0 0.0
    %374 = vmatprep.subr.mxu0 0.0
    %375 = vmatpush1.msra.mxu0 0.0
    %376 = vmatprep.subr.mxu0 0.0
    %377 = vmatpush1.msra.mxu0 0.0
    %378 = vmatprep.subr.mxu0 0.0
    %379 = vmatpush1.msra.mxu0 0.0
    %380 = vmatprep.subr.mxu0 0.0
    %381 = vmatpush1.msra.mxu0 0.0
    %382 = vmatprep.subr.mxu0 0.0
    %383 = vmatpush1.msra.mxu0 0.0
    %384 = vmatprep.subr.mxu0 0.0
    %385 = vmatpush1.msra.mxu0 0.0
    %386 = vmatprep.subr.mxu0 0.0
    %387 = vmatpush1.msra.mxu0 0.0
    %388 = vmatprep.subr.mxu0 0.0
    %389 = vmatpush1.msra.mxu0 0.0
    %390 = vmatprep.subr.mxu0 0.0
    %391 = vmatpush1.msra.mxu0 0.0
    %392 = vmatprep.subr.mxu0 0.0
    %393 = vmatpush1.msra.mxu0 0.0
    %394 = vmatprep.subr.mxu0 0.0
    %395 = vmatpush1.msra.mxu0 %v235
    %396 = vmatprep.subr.mxu0 0.0
    %397 = vmatpush1.msra.mxu0 %v234
    %398 = vmatprep.subr.mxu0 0.0
    %399 = vmatpush1.msra.mxu0 %v233
    %400 = vmatprep.subr.mxu0 0.0
    %401 = vmatpush1.msra.mxu0 %v232
    %402 = vmatprep.subr.mxu0 0.0
    %403 = vmatpush2.msra.mxu0 0.0
    %404 = vmatprep.subr.mxu0 0.0
    %405 = vmatpush2.msra.mxu0 0.0
    %406 = vmatprep.subr.mxu0 0.0
    %407 = vmatpush2.msra.mxu0 0.0
    %408 = vmatprep.subr.mxu0 0.0
    %409 = vmatpush2.msra.mxu0 0.0
    %410 = vmatprep.subr.mxu0 0.0
    %411 = vmatpush2.msra.mxu0 0.0
    %412 = vmatprep.subr.mxu0 0.0
    %413 = vmatpush2.msra.mxu0 0.0
    %414 = vmatprep.subr.mxu0 0.0
    %415 = vmatpush2.msra.mxu0 0.0
    %416 = vmatprep.subr.mxu0 0.0
    %417 = vmatpush2.msra.mxu0 0.0
    %418 = vmatprep.subr.mxu0 0.0
    %419 = vmatpush2.msra.mxu0 0.0
    %420 = vmatprep.subr.mxu0 0.0
    %421 = vmatpush2.msra.mxu0 0.0
    %422 = vmatprep.subr.mxu0 0.0
    %423 = vmatpush2.msra.mxu0 0.0
    %424 = vmatprep.subr.mxu0 0.0
    %425 = vmatpush2.msra.mxu0 0.0
    %426 = vmatprep.subr.mxu0 0.0
    %427 = vmatpush2.msra.mxu0 0.0
    %428 = vmatprep.subr.mxu0 0.0
    %429 = vmatpush2.msra.mxu0 0.0
    %430 = vmatprep.subr.mxu0 0.0
    %431 = vmatpush2.msra.mxu0 0.0
    %432 = vmatprep.subr.mxu0 0.0
    %433 = vmatpush2.msra.mxu0 0.0
    %434 = vmatprep.mubr.f32.mxu0 0.0
    %435 = vmatmul.mubr.f32.gmra.mxu0 %v368
    %v436 = vpop.f32.mrf.mxu0
    %v437 = vadd.f32 0.0, %v436
    %v438 = vpop.f32.mrf.mxu0
    %439 = vdwg.mxu0
    %v440 = vadd.f32 %v363, %v437
    %v441 = vxor.u32 %v440, 2147483648
    %v442 = vmul.f32 %v441, 1.442695
    %v443 = vpow.pop %v442
    %v444 = vadd.f32 %v443, 1.0
    %v445 = vrcp.pop %v444
    %v446 = vmul.f32 1.0, %v445
    %v447 = vmul.f32 %v446, 2.0
    %v448 = vsub.f32 %v447, 1.0
    %v449 = vmul.f32 %v446, 0.0
    %451 = vrot.lane.b32.xlu0 %v448, 64
    %v452 = vpop.permute.xlu0 %451
    %v454 = vmul.f32 %v446, %v452
    %456 = vrot.lane.b32.xlu0 %v454, 32
    %v457 = vpop.permute.xlu0 %456
    %v459 = vadd.f32 %v449, %v457
    %v460 = vtanh.pop %v459
    %462 = vrot.lane.b32.xlu0 %v460, 64
    %v463 = vpop.permute.xlu0 %462
    %v465 = vmul.f32 %v446, %v463
    %467 = vrot.lane.b32.xlu0 %v465, 32
    %v468 = vpop.permute.xlu0 %467
    %v469 = vsel %vm366, %v468, 0
    %471 = vmatprep.subr.mxu0 0.0
    %472 = vmatpush1.msra.mxu0 0.0
    %473 = vmatprep.subr.mxu0 0.0
    %474 = vmatpush1.msra.mxu0 0.0
    %475 = vmatprep.subr.mxu0 0.0
    %476 = vmatpush1.msra.mxu0 0.0
    %477 = vmatprep.subr.mxu0 0.0
    %478 = vmatpush1.msra.mxu0 0.0
    %479 = vmatprep.subr.mxu0 0.0
    %480 = vmatpush1.msra.mxu0 0.0
    %481 = vmatprep.subr.mxu0 0.0
    %482 = vmatpush1.msra.mxu0 0.0
    %483 = vmatprep.subr.mxu0 0.0
    %484 = vmatpush1.msra.mxu0 0.0
    %485 = vmatprep.subr.mxu0 0.0
    %486 = vmatpush1.msra.mxu0 0.0
    %487 = vmatprep.subr.mxu0 0.0
    %488 = vmatpush1.msra.mxu0 0.0
    %489 = vmatprep.subr.mxu0 0.0
    %490 = vmatpush1.msra.mxu0 0.0
    %491 = vmatprep.subr.mxu0 0.0
    %492 = vmatpush1.msra.mxu0 0.0
    %493 = vmatprep.subr.mxu0 0.0
    %494 = vmatpush1.msra.mxu0 0.0
    %495 = vmatprep.subr.mxu0 0.0
    %496 = vmatpush1.msra.mxu0 %v239
    %497 = vmatprep.subr.mxu0 0.0
    %498 = vmatpush1.msra.mxu0 %v238
    %499 = vmatprep.subr.mxu0 0.0
    %500 = vmatpush1.msra.mxu0 %v237
    %501 = vmatprep.subr.mxu0 0.0
    %502 = vmatpush1.msra.mxu0 %v236
    %503 = vmatprep.subr.mxu0 0.0
    %504 = vmatpush2.msra.mxu0 0.0
    %505 = vmatprep.subr.mxu0 0.0
    %506 = vmatpush2.msra.mxu0 0.0
    %507 = vmatprep.subr.mxu0 0.0
    %508 = vmatpush2.msra.mxu0 0.0
    %509 = vmatprep.subr.mxu0 0.0
    %510 = vmatpush2.msra.mxu0 0.0
    %511 = vmatprep.subr.mxu0 0.0
    %512 = vmatpush2.msra.mxu0 0.0
    %513 = vmatprep.subr.mxu0 0.0
    %514 = vmatpush2.msra.mxu0 0.0
    %515 = vmatprep.subr.mxu0 0.0
    %516 = vmatpush2.msra.mxu0 0.0
    %517 = vmatprep.subr.mxu0 0.0
    %518 = vmatpush2.msra.mxu0 0.0
    %519 = vmatprep.subr.mxu0 0.0
    %520 = vmatpush2.msra.mxu0 0.0
    %521 = vmatprep.subr.mxu0 0.0
    %522 = vmatpush2.msra.mxu0 0.0
    %523 = vmatprep.subr.mxu0 0.0
    %524 = vmatpush2.msra.mxu0 0.0
    %525 = vmatprep.subr.mxu0 0.0
    %526 = vmatpush2.msra.mxu0 0.0
    %527 = vmatprep.subr.mxu0 0.0
    %528 = vmatpush2.msra.mxu0 0.0
    %529 = vmatprep.subr.mxu0 0.0
    %530 = vmatpush2.msra.mxu0 0.0
    %531 = vmatprep.subr.mxu0 0.0
    %532 = vmatpush2.msra.mxu0 0.0
    %533 = vmatprep.subr.mxu0 0.0
    %534 = vmatpush2.msra.mxu0 0.0
    %535 = vmatprep.mubr.f32.mxu0 0.0
    %536 = vmatmul.mubr.f32.gmra.mxu0 %v469
    %v537 = vpop.f32.mrf.mxu0
    %v538 = vadd.f32 %v272, %v537
    %v539 = vpop.f32.mrf.mxu0
    %540 = vdwg.mxu0
    %541 = vmatprep.subr.mxu0 0.0
    %542 = vmatpush1.msra.mxu0 0.0
    %543 = vmatprep.subr.mxu0 0.0
    %544 = vmatpush1.msra.mxu0 0.0
    %545 = vmatprep.subr.mxu0 0.0
    %546 = vmatpush1.msra.mxu0 0.0
    %547 = vmatprep.subr.mxu0 0.0
    %548 = vmatpush1.msra.mxu0 0.0
    %549 = vmatprep.subr.mxu0 0.0
    %550 = vmatpush1.msra.mxu0 0.0
    %551 = vmatprep.subr.mxu0 0.0
    %552 = vmatpush1.msra.mxu0 0.0
    %553 = vmatprep.subr.mxu0 0.0
    %554 = vmatpush1.msra.mxu0 0.0
    %555 = vmatprep.subr.mxu0 0.0
    %556 = vmatpush1.msra.mxu0 0.0
    %557 = vmatprep.subr.mxu0 0.0
    %558 = vmatpush1.msra.mxu0 0.0
    %559 = vmatprep.subr.mxu0 0.0
    %560 = vmatpush1.msra.mxu0 0.0
    %561 = vmatprep.subr.mxu0 0.0
    %562 = vmatpush1.msra.mxu0 0.0
    %563 = vmatprep.subr.mxu0 0.0
    %564 = vmatpush1.msra.mxu0 0.0
    %565 = vmatprep.subr.mxu0 0.0
    %566 = vmatpush1.msra.mxu0 %v243
    %567 = vmatprep.subr.mxu0 0.0
    %568 = vmatpush1.msra.mxu0 %v242
    %569 = vmatprep.subr.mxu0 0.0
    %570 = vmatpush1.msra.mxu0 %v241
    %571 = vmatprep.subr.mxu0 0.0
    %572 = vmatpush1.msra.mxu0 %v240
    %573 = vmatprep.subr.mxu0 0.0
    %574 = vmatpush2.msra.mxu0 0.0
    %575 = vmatprep.subr.mxu0 0.0
    %576 = vmatpush2.msra.mxu0 0.0
    %577 = vmatprep.subr.mxu0 0.0
    %578 = vmatpush2.msra.mxu0 0.0
    %579 = vmatprep.subr.mxu0 0.0
    %580 = vmatpush2.msra.mxu0 0.0
    %581 = vmatprep.subr.mxu0 0.0
    %582 = vmatpush2.msra.mxu0 0.0
    %583 = vmatprep.subr.mxu0 0.0
    %584 = vmatpush2.msra.mxu0 0.0
    %585 = vmatprep.subr.mxu0 0.0
    %586 = vmatpush2.msra.mxu0 0.0
    %587 = vmatprep.subr.mxu0 0.0
    %588 = vmatpush2.msra.mxu0 0.0
    %589 = vmatprep.subr.mxu0 0.0
    %590 = vmatpush2.msra.mxu0 0.0
    %591 = vmatprep.subr.mxu0 0.0
    %592 = vmatpush2.msra.mxu0 0.0
    %593 = vmatprep.subr.mxu0 0.0
    %594 = vmatpush2.msra.mxu0 0.0
    %595 = vmatprep.subr.mxu0 0.0
    %596 = vmatpush2.msra.mxu0 0.0
    %597 = vmatprep.subr.mxu0 0.0
    %598 = vmatpush2.msra.mxu0 0.0
    %599 = vmatprep.subr.mxu0 0.0
    %600 = vmatpush2.msra.mxu0 0.0
    %601 = vmatprep.subr.mxu0 0.0
    %602 = vmatpush2.msra.mxu0 0.0
    %603 = vmatprep.subr.mxu0 0.0
    %604 = vmatpush2.msra.mxu0 0.0
    %605 = vmatprep.mubr.f32.mxu0 0.0
    %606 = vmatmul.mubr.f32.gmra.mxu0 %v368
    %v607 = vpop.f32.mrf.mxu0
    %v608 = vadd.f32 0.0, %v607
    %v609 = vpop.f32.mrf.mxu0
    %610 = vdwg.mxu0
    %v611 = vadd.f32 %v538, %v608
    %v612 = vxor.u32 %v611, 2147483648
    %v613 = vmul.f32 %v612, 1.442695
    %v614 = vpow.pop %v613
    %v615 = vadd.f32 %v614, 1.0
    %v616 = vrcp.pop %v615
    %v617 = vmul.f32 1.0, %v616
    %v618 = vmul.f32 %v617, 2.0
    %v619 = vsub.f32 %v618, 1.0
    %v620 = vmul.f32 %v617, 0.0
    %622 = vrot.lane.b32.xlu0 %v619, 64
    %v623 = vpop.permute.xlu0 %622
    %v625 = vmul.f32 %v617, %v623
    %627 = vrot.lane.b32.xlu0 %v625, 32
    %v628 = vpop.permute.xlu0 %627
    %v630 = vadd.f32 %v620, %v628
    %v631 = vtanh.pop %v630
    %633 = vrot.lane.b32.xlu0 %v631, 64
    %v634 = vpop.permute.xlu0 %633
    %v636 = vmul.f32 %v617, %v634
    %v637 = vld [vmem:[#allocation7] sm:$0xff]
    %v638 = vld [vmem:[#allocation7 + $0x8] sm:$0xff]
    %v639 = vld [vmem:[#allocation7 + $0x10] sm:$0xff]
    %v640 = vld [vmem:[#allocation7 + $0x18] sm:$0xff]
    %642 = vrot.lane.b32.xlu0 %v636, 32
    %v643 = vpop.permute.xlu0 %642
    %v644 = vsel %vm366, %v643, 0
    %646 = vmatprep.subr.mxu0 0.0
    %647 = vmatpush1.msra.mxu0 0.0
    %648 = vmatprep.subr.mxu0 0.0
    %649 = vmatpush1.msra.mxu0 0.0
    %650 = vmatprep.subr.mxu0 0.0
    %651 = vmatpush1.msra.mxu0 0.0
    %652 = vmatprep.subr.mxu0 0.0
    %653 = vmatpush1.msra.mxu0 0.0
    %654 = vmatprep.subr.mxu0 0.0
    %655 = vmatpush1.msra.mxu0 0.0
    %656 = vmatprep.subr.mxu0 0.0
    %657 = vmatpush1.msra.mxu0 0.0
    %658 = vmatprep.subr.mxu0 0.0
    %659 = vmatpush1.msra.mxu0 0.0
    %660 = vmatprep.subr.mxu0 0.0
    %661 = vmatpush1.msra.mxu0 0.0
    %662 = vmatprep.subr.mxu0 0.0
    %663 = vmatpush1.msra.mxu0 0.0
    %664 = vmatprep.subr.mxu0 0.0
    %665 = vmatpush1.msra.mxu0 0.0
    %666 = vmatprep.subr.mxu0 0.0
    %667 = vmatpush1.msra.mxu0 0.0
    %668 = vmatprep.subr.mxu0 0.0
    %669 = vmatpush1.msra.mxu0 0.0
    %670 = vmatprep.subr.mxu0 0.0
    %671 = vmatpush1.msra.mxu0 %v640
    %672 = vmatprep.subr.mxu0 0.0
    %673 = vmatpush1.msra.mxu0 %v639
    %674 = vmatprep.subr.mxu0 0.0
    %675 = vmatpush1.msra.mxu0 %v638
    %676 = vmatprep.subr.mxu0 0.0
    %677 = vmatpush1.msra.mxu0 %v637
    %678 = vmatprep.subr.mxu0 0.0
    %679 = vmatpush2.msra.mxu0 0.0
    %680 = vmatprep.subr.mxu0 0.0
    %681 = vmatpush2.msra.mxu0 0.0
    %682 = vmatprep.subr.mxu0 0.0
    %683 = vmatpush2.msra.mxu0 0.0
    %684 = vmatprep.subr.mxu0 0.0
    %685 = vmatpush2.msra.mxu0 0.0
    %686 = vmatprep.subr.mxu0 0.0
    %687 = vmatpush2.msra.mxu0 0.0
    %688 = vmatprep.subr.mxu0 0.0
    %689 = vmatpush2.msra.mxu0 0.0
    %690 = vmatprep.subr.mxu0 0.0
    %691 = vmatpush2.msra.mxu0 0.0
    %692 = vmatprep.subr.mxu0 0.0
    %693 = vmatpush2.msra.mxu0 0.0
    %694 = vmatprep.subr.mxu0 0.0
    %695 = vmatpush2.msra.mxu0 0.0
    %696 = vmatprep.subr.mxu0 0.0
    %697 = vmatpush2.msra.mxu0 0.0
    %698 = vmatprep.subr.mxu0 0.0
    %699 = vmatpush2.msra.mxu0 0.0
    %700 = vmatprep.subr.mxu0 0.0
    %701 = vmatpush2.msra.mxu0 0.0
    %702 = vmatprep.subr.mxu0 0.0
    %703 = vmatpush2.msra.mxu0 0.0
    %704 = vmatprep.subr.mxu0 0.0
    %705 = vmatpush2.msra.mxu0 0.0
    %706 = vmatprep.subr.mxu0 0.0
    %707 = vmatpush2.msra.mxu0 0.0
    %708 = vmatprep.subr.mxu0 0.0
    %709 = vmatpush2.msra.mxu0 0.0
    %710 = vmatprep.mubr.f32.mxu0 0.0
    %711 = vmatmul.mubr.f32.gmra.mxu0 %v644
    %v712 = vpop.f32.mrf.mxu0
    %v713 = vadd.f32 0.0, %v712
    %v714 = vpop.f32.mrf.mxu0
    %715 = vdwg.mxu0
    %v716 = vadd.f32 %v293, %v713
    %s717 = scalar_lea.vmem %s0, 2
    %v718 = vld [vmem:[%s717] sm:$0x3]
    %719 = vmatprep.subr.mxu0 0.0
    %720 = vmatpush1.msra.mxu0 %v231
    %721 = vmatprep.subr.mxu0 0.0
    %722 = vmatpush1.msra.mxu0 %v230
    %723 = vmatprep.subr.mxu0 0.0
    %724 = vmatpush1.msra.mxu0 %v229
    %725 = vmatprep.subr.mxu0 0.0
    %726 = vmatpush1.msra.mxu0 %v228
    %727 = vmatprep.subr.mxu0 0.0
    %728 = vmatpush1.msra.mxu0 %v227
    %729 = vmatprep.subr.mxu0 0.0
    %730 = vmatpush1.msra.mxu0 %v226
    %731 = vmatprep.subr.mxu0 0.0
    %732 = vmatpush1.msra.mxu0 %v225
    %733 = vmatprep.subr.mxu0 0.0
    %734 = vmatpush1.msra.mxu0 %v224
    %735 = vmatprep.subr.mxu0 0.0
    %736 = vmatpush1.msra.mxu0 %v223
    %737 = vmatprep.subr.mxu0 0.0
    %738 = vmatpush1.msra.mxu0 %v222
    %739 = vmatprep.subr.mxu0 0.0
    %740 = vmatpush1.msra.mxu0 %v221
    %741 = vmatprep.subr.mxu0 0.0
    %742 = vmatpush1.msra.mxu0 %v220
    %743 = vmatprep.subr.mxu0 0.0
    %744 = vmatpush1.msra.mxu0 %v219
    %745 = vmatprep.subr.mxu0 0.0
    %746 = vmatpush1.msra.mxu0 %v218
    %747 = vmatprep.subr.mxu0 0.0
    %748 = vmatpush1.msra.mxu0 %v217
    %749 = vmatprep.subr.mxu0 0.0
    %750 = vmatpush1.msra.mxu0 %v216
    %751 = vmatprep.subr.mxu0 0.0
    %752 = vmatpush2.msra.mxu0 0.0
    %753 = vmatprep.subr.mxu0 0.0
    %754 = vmatpush2.msra.mxu0 0.0
    %755 = vmatprep.subr.mxu0 0.0
    %756 = vmatpush2.msra.mxu0 0.0
    %757 = vmatprep.subr.mxu0 0.0
    %758 = vmatpush2.msra.mxu0 0.0
    %759 = vmatprep.subr.mxu0 0.0
    %760 = vmatpush2.msra.mxu0 0.0
    %761 = vmatprep.subr.mxu0 0.0
    %762 = vmatpush2.msra.mxu0 0.0
    %763 = vmatprep.subr.mxu0 0.0
    %764 = vmatpush2.msra.mxu0 0.0
    %765 = vmatprep.subr.mxu0 0.0
    %766 = vmatpush2.msra.mxu0 0.0
    %767 = vmatprep.subr.mxu0 0.0
    %768 = vmatpush2.msra.mxu0 0.0
    %769 = vmatprep.subr.mxu0 0.0
    %770 = vmatpush2.msra.mxu0 0.0
    %771 = vmatprep.subr.mxu0 0.0
    %772 = vmatpush2.msra.mxu0 0.0
    %773 = vmatprep.subr.mxu0 0.0
    %774 = vmatpush2.msra.mxu0 0.0
    %775 = vmatprep.subr.mxu0 0.0
    %776 = vmatpush2.msra.mxu0 0.0
    %777 = vmatprep.subr.mxu0 0.0
    %778 = vmatpush2.msra.mxu0 0.0
    %779 = vmatprep.subr.mxu0 0.0
    %780 = vmatpush2.msra.mxu0 0.0
    %781 = vmatprep.subr.mxu0 0.0
    %782 = vmatpush2.msra.mxu0 0.0
    %783 = vmatprep.mubr.f32.mxu0 0.0
    %784 = vmatmul.mubr.f32.gmra.mxu0 %v718
    %v785 = vpop.f32.mrf.mxu0
    %v786 = vadd.f32 %v265, %v785
    %v787 = vpop.f32.mrf.mxu0
    %788 = vdwg.mxu0
    %789 = vmatprep.subr.mxu0 0.0
    %790 = vmatpush1.msra.mxu0 0.0
    %791 = vmatprep.subr.mxu0 0.0
    %792 = vmatpush1.msra.mxu0 0.0
    %793 = vmatprep.subr.mxu0 0.0
    %794 = vmatpush1.msra.mxu0 0.0
    %795 = vmatprep.subr.mxu0 0.0
    %796 = vmatpush1.msra.mxu0 0.0
    %797 = vmatprep.subr.mxu0 0.0
    %798 = vmatpush1.msra.mxu0 0.0
    %799 = vmatprep.subr.mxu0 0.0
    %800 = vmatpush1.msra.mxu0 0.0
    %801 = vmatprep.subr.mxu0 0.0
    %802 = vmatpush1.msra.mxu0 0.0
    %803 = vmatprep.subr.mxu0 0.0
    %804 = vmatpush1.msra.mxu0 0.0
    %805 = vmatprep.subr.mxu0 0.0
    %806 = vmatpush1.msra.mxu0 0.0
    %807 = vmatprep.subr.mxu0 0.0
    %808 = vmatpush1.msra.mxu0 0.0
    %809 = vmatprep.subr.mxu0 0.0
    %810 = vmatpush1.msra.mxu0 0.0
    %811 = vmatprep.subr.mxu0 0.0
    %812 = vmatpush1.msra.mxu0 0.0
    %813 = vmatprep.subr.mxu0 0.0
    %814 = vmatpush1.msra.mxu0 %v235
    %815 = vmatprep.subr.mxu0 0.0
    %816 = vmatpush1.msra.mxu0 %v234
    %817 = vmatprep.subr.mxu0 0.0
    %818 = vmatpush1.msra.mxu0 %v233
    %819 = vmatprep.subr.mxu0 0.0
    %820 = vmatpush1.msra.mxu0 %v232
    %821 = vmatprep.subr.mxu0 0.0
    %822 = vmatpush2.msra.mxu0 0.0
    %823 = vmatprep.subr.mxu0 0.0
    %824 = vmatpush2.msra.mxu0 0.0
    %825 = vmatprep.subr.mxu0 0.0
    %826 = vmatpush2.msra.mxu0 0.0
    %827 = vmatprep.subr.mxu0 0.0
    %828 = vmatpush2.msra.mxu0 0.0
    %829 = vmatprep.subr.mxu0 0.0
    %830 = vmatpush2.msra.mxu0 0.0
    %831 = vmatprep.subr.mxu0 0.0
    %832 = vmatpush2.msra.mxu0 0.0
    %833 = vmatprep.subr.mxu0 0.0
    %834 = vmatpush2.msra.mxu0 0.0
    %835 = vmatprep.subr.mxu0 0.0
    %836 = vmatpush2.msra.mxu0 0.0
    %837 = vmatprep.subr.mxu0 0.0
    %838 = vmatpush2.msra.mxu0 0.0
    %839 = vmatprep.subr.mxu0 0.0
    %840 = vmatpush2.msra.mxu0 0.0
    %841 = vmatprep.subr.mxu0 0.0
    %842 = vmatpush2.msra.mxu0 0.0
    %843 = vmatprep.subr.mxu0 0.0
    %844 = vmatpush2.msra.mxu0 0.0
    %845 = vmatprep.subr.mxu0 0.0
    %846 = vmatpush2.msra.mxu0 0.0
    %847 = vmatprep.subr.mxu0 0.0
    %848 = vmatpush2.msra.mxu0 0.0
    %849 = vmatprep.subr.mxu0 0.0
    %850 = vmatpush2.msra.mxu0 0.0
    %851 = vmatprep.subr.mxu0 0.0
    %852 = vmatpush2.msra.mxu0 0.0
    %853 = vmatprep.mubr.f32.mxu0 0.0
    %854 = vmatmul.mubr.f32.gmra.mxu0 %v469
    %v855 = vpop.f32.mrf.mxu0
    %v856 = vadd.f32 0.0, %v855
    %v857 = vpop.f32.mrf.mxu0
    %858 = vdwg.mxu0
    %v859 = vadd.f32 %v786, %v856
    %v860 = vxor.u32 %v859, 2147483648
    %v861 = vmul.f32 %v860, 1.442695
    %v862 = vpow.pop %v861
    %v863 = vadd.f32 %v862, 1.0
    %v864 = vrcp.pop %v863
    %v865 = vmul.f32 1.0, %v864
    %v866 = vmul.f32 %v865, 2.0
    %v867 = vsub.f32 %v866, 1.0
    %v868 = vmul.f32 %v865, %v459
    %870 = vrot.lane.b32.xlu0 %v867, 64
    %v871 = vpop.permute.xlu0 %870
    %v873 = vmul.f32 %v865, %v871
    %875 = vrot.lane.b32.xlu0 %v873, 32
    %v876 = vpop.permute.xlu0 %875
    %v878 = vadd.f32 %v868, %v876
    %v879 = vtanh.pop %v878
    %881 = vrot.lane.b32.xlu0 %v879, 64
    %v882 = vpop.permute.xlu0 %881
    %v884 = vmul.f32 %v865, %v882
    %886 = vrot.lane.b32.xlu0 %v884, 32
    %v887 = vpop.permute.xlu0 %886
    %v888 = vsel %vm366, %v887, 0
    %890 = vmatprep.subr.mxu0 0.0
    %891 = vmatpush1.msra.mxu0 0.0
    %892 = vmatprep.subr.mxu0 0.0
    %893 = vmatpush1.msra.mxu0 0.0
    %894 = vmatprep.subr.mxu0 0.0
    %895 = vmatpush1.msra.mxu0 0.0
    %896 = vmatprep.subr.mxu0 0.0
    %897 = vmatpush1.msra.mxu0 0.0
    %898 = vmatprep.subr.mxu0 0.0
    %899 = vmatpush1.msra.mxu0 0.0
    %900 = vmatprep.subr.mxu0 0.0
    %901 = vmatpush1.msra.mxu0 0.0
    %902 = vmatprep.subr.mxu0 0.0
    %903 = vmatpush1.msra.mxu0 0.0
    %904 = vmatprep.subr.mxu0 0.0
    %905 = vmatpush1.msra.mxu0 0.0
    %906 = vmatprep.subr.mxu0 0.0
    %907 = vmatpush1.msra.mxu0 0.0
    %908 = vmatprep.subr.mxu0 0.0
    %909 = vmatpush1.msra.mxu0 0.0
    %910 = vmatprep.subr.mxu0 0.0
    %911 = vmatpush1.msra.mxu0 0.0
    %912 = vmatprep.subr.mxu0 0.0
    %913 = vmatpush1.msra.mxu0 0.0
    %914 = vmatprep.subr.mxu0 0.0
    %915 = vmatpush1.msra.mxu0 %v239
    %916 = vmatprep.subr.mxu0 0.0
    %917 = vmatpush1.msra.mxu0 %v238
    %918 = vmatprep.subr.mxu0 0.0
    %919 = vmatpush1.msra.mxu0 %v237
    %920 = vmatprep.subr.mxu0 0.0
    %921 = vmatpush1.msra.mxu0 %v236
    %922 = vmatprep.subr.mxu0 0.0
    %923 = vmatpush2.msra.mxu0 0.0
    %924 = vmatprep.subr.mxu0 0.0
    %925 = vmatpush2.msra.mxu0 0.0
    %926 = vmatprep.subr.mxu0 0.0
    %927 = vmatpush2.msra.mxu0 0.0
    %928 = vmatprep.subr.mxu0 0.0
    %929 = vmatpush2.msra.mxu0 0.0
    %930 = vmatprep.subr.mxu0 0.0
    %931 = vmatpush2.msra.mxu0 0.0
    %932 = vmatprep.subr.mxu0 0.0
    %933 = vmatpush2.msra.mxu0 0.0
    %934 = vmatprep.subr.mxu0 0.0
    %935 = vmatpush2.msra.mxu0 0.0
    %936 = vmatprep.subr.mxu0 0.0
    %937 = vmatpush2.msra.mxu0 0.0
    %938 = vmatprep.subr.mxu0 0.0
    %939 = vmatpush2.msra.mxu0 0.0
    %940 = vmatprep.subr.mxu0 0.0
    %941 = vmatpush2.msra.mxu0 0.0
    %942 = vmatprep.subr.mxu0 0.0
    %943 = vmatpush2.msra.mxu0 0.0
    %944 = vmatprep.subr.mxu0 0.0
    %945 = vmatpush2.msra.mxu0 0.0
    %946 = vmatprep.subr.mxu0 0.0
    %947 = vmatpush2.msra.mxu0 0.0
    %948 = vmatprep.subr.mxu0 0.0
    %949 = vmatpush2.msra.mxu0 0.0
    %950 = vmatprep.subr.mxu0 0.0
    %951 = vmatpush2.msra.mxu0 0.0
    %952 = vmatprep.subr.mxu0 0.0
    %953 = vmatpush2.msra.mxu0 0.0
    %954 = vmatprep.mubr.f32.mxu0 0.0
    %955 = vmatmul.mubr.f32.gmra.mxu0 %v888
    %v956 = vpop.f32.mrf.mxu0
    %v957 = vadd.f32 %v272, %v956
    %v958 = vpop.f32.mrf.mxu0
    %959 = vdwg.mxu0
    %960 = vmatprep.subr.mxu0 0.0
    %961 = vmatpush1.msra.mxu0 0.0
    %962 = vmatprep.subr.mxu0 0.0
    %963 = vmatpush1.msra.mxu0 0.0
    %964 = vmatprep.subr.mxu0 0.0
    %965 = vmatpush1.msra.mxu0 0.0
    %966 = vmatprep.subr.mxu0 0.0
    %967 = vmatpush1.msra.mxu0 0.0
    %968 = vmatprep.subr.mxu0 0.0
    %969 = vmatpush1.msra.mxu0 0.0
    %970 = vmatprep.subr.mxu0 0.0
    %971 = vmatpush1.msra.mxu0 0.0
    %972 = vmatprep.subr.mxu0 0.0
    %973 = vmatpush1.msra.mxu0 0.0
    %974 = vmatprep.subr.mxu0 0.0
    %975 = vmatpush1.msra.mxu0 0.0
    %976 = vmatprep.subr.mxu0 0.0
    %977 = vmatpush1.msra.mxu0 0.0
    %978 = vmatprep.subr.mxu0 0.0
    %979 = vmatpush1.msra.mxu0 0.0
    %980 = vmatprep.subr.mxu0 0.0
    %981 = vmatpush1.msra.mxu0 0.0
    %982 = vmatprep.subr.mxu0 0.0
    %983 = vmatpush1.msra.mxu0 0.0
    %984 = vmatprep.subr.mxu0 0.0
    %985 = vmatpush1.msra.mxu0 %v243
    %986 = vmatprep.subr.mxu0 0.0
    %987 = vmatpush1.msra.mxu0 %v242
    %988 = vmatprep.subr.mxu0 0.0
    %989 = vmatpush1.msra.mxu0 %v241
    %990 = vmatprep.subr.mxu0 0.0
    %991 = vmatpush1.msra.mxu0 %v240
    %992 = vmatprep.subr.mxu0 0.0
    %993 = vmatpush2.msra.mxu0 0.0
    %994 = vmatprep.subr.mxu0 0.0
    %995 = vmatpush2.msra.mxu0 0.0
    %996 = vmatprep.subr.mxu0 0.0
    %997 = vmatpush2.msra.mxu0 0.0
    %998 = vmatprep.subr.mxu0 0.0
    %999 = vmatpush2.msra.mxu0 0.0
    %1000 = vmatprep.subr.mxu0 0.0
    %1001 = vmatpush2.msra.mxu0 0.0
    %1002 = vmatprep.subr.mxu0 0.0
    %1003 = vmatpush2.msra.mxu0 0.0
    %1004 = vmatprep.subr.mxu0 0.0
    %1005 = vmatpush2.msra.mxu0 0.0
    %1006 = vmatprep.subr.mxu0 0.0
    %1007 = vmatpush2.msra.mxu0 0.0
    %1008 = vmatprep.subr.mxu0 0.0
    %1009 = vmatpush2.msra.mxu0 0.0
    %1010 = vmatprep.subr.mxu0 0.0
    %1011 = vmatpush2.msra.mxu0 0.0
    %1012 = vmatprep.subr.mxu0 0.0
    %1013 = vmatpush2.msra.mxu0 0.0
    %1014 = vmatprep.subr.mxu0 0.0
    %1015 = vmatpush2.msra.mxu0 0.0
    %1016 = vmatprep.subr.mxu0 0.0
    %1017 = vmatpush2.msra.mxu0 0.0
    %1018 = vmatprep.subr.mxu0 0.0
    %1019 = vmatpush2.msra.mxu0 0.0
    %1020 = vmatprep.subr.mxu0 0.0
    %1021 = vmatpush2.msra.mxu0 0.0
    %1022 = vmatprep.subr.mxu0 0.0
    %1023 = vmatpush2.msra.mxu0 0.0
    %1024 = vmatprep.mubr.f32.mxu0 0.0
    %1025 = vmatmul.mubr.f32.gmra.mxu0 %v644
    %v1026 = vpop.f32.mrf.mxu0
    %v1027 = vadd.f32 0.0, %v1026
    %v1028 = vpop.f32.mrf.mxu0
    %1029 = vdwg.mxu0
    %v1030 = vadd.f32 %v957, %v1027
    %v1031 = vxor.u32 %v1030, 2147483648
    %v1032 = vmul.f32 %v1031, 1.442695
    %v1033 = vpow.pop %v1032
    %v1034 = vadd.f32 %v1033, 1.0
    %v1035 = vrcp.pop %v1034
    %v1036 = vmul.f32 1.0, %v1035
    %v1037 = vmul.f32 %v1036, 2.0
    %v1038 = vsub.f32 %v1037, 1.0
    %v1039 = vmul.f32 %v1036, %v630
    %1041 = vrot.lane.b32.xlu0 %v1038, 64
    %v1042 = vpop.permute.xlu0 %1041
    %v1044 = vmul.f32 %v1036, %v1042
    %1046 = vrot.lane.b32.xlu0 %v1044, 32
    %v1047 = vpop.permute.xlu0 %1046
    %v1049 = vadd.f32 %v1039, %v1047
    %v1050 = vtanh.pop %v1049
    %1052 = vrot.lane.b32.xlu0 %v1050, 64
    %v1053 = vpop.permute.xlu0 %1052
    %v1055 = vmul.f32 %v1036, %v1053
    %s1056 = scalar_lea.vmem [#allocation7], 32
    %v1057 = vld [vmem:[%s1056] sm:$0xff]
    %v1058 = vld [vmem:[%s1056 + $0x8] sm:$0xff]
    %v1059 = vld [vmem:[%s1056 + $0x10] sm:$0xff]
    %v1060 = vld [vmem:[%s1056 + $0x18] sm:$0xff]
    %1062 = vrot.lane.b32.xlu0 %v1055, 32
    %v1063 = vpop.permute.xlu0 %1062
    %v1064 = vsel %vm366, %v1063, 0
    %1066 = vmatprep.subr.mxu0 0.0
    %1067 = vmatpush1.msra.mxu0 0.0
    %1068 = vmatprep.subr.mxu0 0.0
    %1069 = vmatpush1.msra.mxu0 0.0
    %1070 = vmatprep.subr.mxu0 0.0
    %1071 = vmatpush1.msra.mxu0 0.0
    %1072 = vmatprep.subr.mxu0 0.0
    %1073 = vmatpush1.msra.mxu0 0.0
    %1074 = vmatprep.subr.mxu0 0.0
    %1075 = vmatpush1.msra.mxu0 0.0
    %1076 = vmatprep.subr.mxu0 0.0
    %1077 = vmatpush1.msra.mxu0 0.0
    %1078 = vmatprep.subr.mxu0 0.0
    %1079 = vmatpush1.msra.mxu0 0.0
    %1080 = vmatprep.subr.mxu0 0.0
    %1081 = vmatpush1.msra.mxu0 0.0
    %1082 = vmatprep.subr.mxu0 0.0
    %1083 = vmatpush1.msra.mxu0 0.0
    %1084 = vmatprep.subr.mxu0 0.0
    %1085 = vmatpush1.msra.mxu0 0.0
    %1086 = vmatprep.subr.mxu0 0.0
    %1087 = vmatpush1.msra.mxu0 0.0
    %1088 = vmatprep.subr.mxu0 0.0
    %1089 = vmatpush1.msra.mxu0 0.0
    %1090 = vmatprep.subr.mxu0 0.0
    %1091 = vmatpush1.msra.mxu0 %v1060
    %1092 = vmatprep.subr.mxu0 0.0
    %1093 = vmatpush1.msra.mxu0 %v1059
    %1094 = vmatprep.subr.mxu0 0.0
    %1095 = vmatpush1.msra.mxu0 %v1058
    %1096 = vmatprep.subr.mxu0 0.0
    %1097 = vmatpush1.msra.mxu0 %v1057
    %1098 = vmatprep.subr.mxu0 0.0
    %1099 = vmatpush2.msra.mxu0 0.0
    %1100 = vmatprep.subr.mxu0 0.0
    %1101 = vmatpush2.msra.mxu0 0.0
    %1102 = vmatprep.subr.mxu0 0.0
    %1103 = vmatpush2.msra.mxu0 0.0
    %1104 = vmatprep.subr.mxu0 0.0
    %1105 = vmatpush2.msra.mxu0 0.0
    %1106 = vmatprep.subr.mxu0 0.0
    %1107 = vmatpush2.msra.mxu0 0.0
    %1108 = vmatprep.subr.mxu0 0.0
    %1109 = vmatpush2.msra.mxu0 0.0
    %1110 = vmatprep.subr.mxu0 0.0
    %1111 = vmatpush2.msra.mxu0 0.0
    %1112 = vmatprep.subr.mxu0 0.0
    %1113 = vmatpush2.msra.mxu0 0.0
    %1114 = vmatprep.subr.mxu0 0.0
    %1115 = vmatpush2.msra.mxu0 0.0
    %1116 = vmatprep.subr.mxu0 0.0
    %1117 = vmatpush2.msra.mxu0 0.0
    %1118 = vmatprep.subr.mxu0 0.0
    %1119 = vmatpush2.msra.mxu0 0.0
    %1120 = vmatprep.subr.mxu0 0.0
    %1121 = vmatpush2.msra.mxu0 0.0
    %1122 = vmatprep.subr.mxu0 0.0
    %1123 = vmatpush2.msra.mxu0 0.0
    %1124 = vmatprep.subr.mxu0 0.0
    %1125 = vmatpush2.msra.mxu0 0.0
    %1126 = vmatprep.subr.mxu0 0.0
    %1127 = vmatpush2.msra.mxu0 0.0
    %1128 = vmatprep.subr.mxu0 0.0
    %1129 = vmatpush2.msra.mxu0 0.0
    %1130 = vmatprep.mubr.f32.mxu0 0.0
    %1131 = vmatmul.mubr.f32.gmra.mxu0 %v1064
    %v1132 = vpop.f32.mrf.mxu0
    %v1133 = vadd.f32 0.0, %v1132
    %v1134 = vpop.f32.mrf.mxu0
    %1135 = vdwg.mxu0
    %v1136 = vadd.f32 %v716, %v1133
    %s1137 = scalar_lea.vmem %s0, 4
    %v1138 = vld [vmem:[%s1137] sm:$0x3]
    %1139 = vmatprep.subr.mxu0 0.0
    %1140 = vmatpush1.msra.mxu0 %v231
    %1141 = vmatprep.subr.mxu0 0.0
    %1142 = vmatpush1.msra.mxu0 %v230
    %1143 = vmatprep.subr.mxu0 0.0
    %1144 = vmatpush1.msra.mxu0 %v229
    %1145 = vmatprep.subr.mxu0 0.0
    %1146 = vmatpush1.msra.mxu0 %v228
    %1147 = vmatprep.subr.mxu0 0.0
    %1148 = vmatpush1.msra.mxu0 %v227
    %1149 = vmatprep.subr.mxu0 0.0
    %1150 = vmatpush1.msra.mxu0 %v226
    %1151 = vmatprep.subr.mxu0 0.0
    %1152 = vmatpush1.msra.mxu0 %v225
    %1153 = vmatprep.subr.mxu0 0.0
    %1154 = vmatpush1.msra.mxu0 %v224
    %1155 = vmatprep.subr.mxu0 0.0
    %1156 = vmatpush1.msra.mxu0 %v223
    %1157 = vmatprep.subr.mxu0 0.0
    %1158 = vmatpush1.msra.mxu0 %v222
    %1159 = vmatprep.subr.mxu0 0.0
    %1160 = vmatpush1.msra.mxu0 %v221
    %1161 = vmatprep.subr.mxu0 0.0
    %1162 = vmatpush1.msra.mxu0 %v220
    %1163 = vmatprep.subr.mxu0 0.0
    %1164 = vmatpush1.msra.mxu0 %v219
    %1165 = vmatprep.subr.mxu0 0.0
    %1166 = vmatpush1.msra.mxu0 %v218
    %1167 = vmatprep.subr.mxu0 0.0
    %1168 = vmatpush1.msra.mxu0 %v217
    %1169 = vmatprep.subr.mxu0 0.0
    %1170 = vmatpush1.msra.mxu0 %v216
    %1171 = vmatprep.subr.mxu0 0.0
    %1172 = vmatpush2.msra.mxu0 0.0
    %1173 = vmatprep.subr.mxu0 0.0
    %1174 = vmatpush2.msra.mxu0 0.0
    %1175 = vmatprep.subr.mxu0 0.0
    %1176 = vmatpush2.msra.mxu0 0.0
    %1177 = vmatprep.subr.mxu0 0.0
    %1178 = vmatpush2.msra.mxu0 0.0
    %1179 = vmatprep.subr.mxu0 0.0
    %1180 = vmatpush2.msra.mxu0 0.0
    %1181 = vmatprep.subr.mxu0 0.0
    %1182 = vmatpush2.msra.mxu0 0.0
    %1183 = vmatprep.subr.mxu0 0.0
    %1184 = vmatpush2.msra.mxu0 0.0
    %1185 = vmatprep.subr.mxu0 0.0
    %1186 = vmatpush2.msra.mxu0 0.0
    %1187 = vmatprep.subr.mxu0 0.0
    %1188 = vmatpush2.msra.mxu0 0.0
    %1189 = vmatprep.subr.mxu0 0.0
    %1190 = vmatpush2.msra.mxu0 0.0
    %1191 = vmatprep.subr.mxu0 0.0
    %1192 = vmatpush2.msra.mxu0 0.0
    %1193 = vmatprep.subr.mxu0 0.0
    %1194 = vmatpush2.msra.mxu0 0.0
    %1195 = vmatprep.subr.mxu0 0.0
    %1196 = vmatpush2.msra.mxu0 0.0
    %1197 = vmatprep.subr.mxu0 0.0
    %1198 = vmatpush2.msra.mxu0 0.0
    %1199 = vmatprep.subr.mxu0 0.0
    %1200 = vmatpush2.msra.mxu0 0.0
    %1201 = vmatprep.subr.mxu0 0.0
    %1202 = vmatpush2.msra.mxu0 0.0
    %1203 = vmatprep.mubr.f32.mxu0 0.0
    %1204 = vmatmul.mubr.f32.gmra.mxu0 %v1138
    %v1205 = vpop.f32.mrf.mxu0
    %v1206 = vadd.f32 %v265, %v1205
    %v1207 = vpop.f32.mrf.mxu0
    %1208 = vdwg.mxu0
    %1209 = vmatprep.subr.mxu0 0.0
    %1210 = vmatpush1.msra.mxu0 0.0
    %1211 = vmatprep.subr.mxu0 0.0
    %1212 = vmatpush1.msra.mxu0 0.0
    %1213 = vmatprep.subr.mxu0 0.0
    %1214 = vmatpush1.msra.mxu0 0.0
    %1215 = vmatprep.subr.mxu0 0.0
    %1216 = vmatpush1.msra.mxu0 0.0
    %1217 = vmatprep.subr.mxu0 0.0
    %1218 = vmatpush1.msra.mxu0 0.0
    %1219 = vmatprep.subr.mxu0 0.0
    %1220 = vmatpush1.msra.mxu0 0.0
    %1221 = vmatprep.subr.mxu0 0.0
    %1222 = vmatpush1.msra.mxu0 0.0
    %1223 = vmatprep.subr.mxu0 0.0
    %1224 = vmatpush1.msra.mxu0 0.0
    %1225 = vmatprep.subr.mxu0 0.0
    %1226 = vmatpush1.msra.mxu0 0.0
    %1227 = vmatprep.subr.mxu0 0.0
    %1228 = vmatpush1.msra.mxu0 0.0
    %1229 = vmatprep.subr.mxu0 0.0
    %1230 = vmatpush1.msra.mxu0 0.0
    %1231 = vmatprep.subr.mxu0 0.0
    %1232 = vmatpush1.msra.mxu0 0.0
    %1233 = vmatprep.subr.mxu0 0.0
    %1234 = vmatpush1.msra.mxu0 %v235
    %1235 = vmatprep.subr.mxu0 0.0
    %1236 = vmatpush1.msra.mxu0 %v234
    %1237 = vmatprep.subr.mxu0 0.0
    %1238 = vmatpush1.msra.mxu0 %v233
    %1239 = vmatprep.subr.mxu0 0.0
    %1240 = vmatpush1.msra.mxu0 %v232
    %1241 = vmatprep.subr.mxu0 0.0
    %1242 = vmatpush2.msra.mxu0 0.0
    %1243 = vmatprep.subr.mxu0 0.0
    %1244 = vmatpush2.msra.mxu0 0.0
    %1245 = vmatprep.subr.mxu0 0.0
    %1246 = vmatpush2.msra.mxu0 0.0
    %1247 = vmatprep.subr.mxu0 0.0
    %1248 = vmatpush2.msra.mxu0 0.0
    %1249 = vmatprep.subr.mxu0 0.0
    %1250 = vmatpush2.msra.mxu0 0.0
    %1251 = vmatprep.subr.mxu0 0.0
    %1252 = vmatpush2.msra.mxu0 0.0
    %1253 = vmatprep.subr.mxu0 0.0
    %1254 = vmatpush2.msra.mxu0 0.0
    %1255 = vmatprep.subr.mxu0 0.0
    %1256 = vmatpush2.msra.mxu0 0.0
    %1257 = vmatprep.subr.mxu0 0.0
    %1258 = vmatpush2.msra.mxu0 0.0
    %1259 = vmatprep.subr.mxu0 0.0
    %1260 = vmatpush2.msra.mxu0 0.0
    %1261 = vmatprep.subr.mxu0 0.0
    %1262 = vmatpush2.msra.mxu0 0.0
    %1263 = vmatprep.subr.mxu0 0.0
    %1264 = vmatpush2.msra.mxu0 0.0
    %1265 = vmatprep.subr.mxu0 0.0
    %1266 = vmatpush2.msra.mxu0 0.0
    %1267 = vmatprep.subr.mxu0 0.0
    %1268 = vmatpush2.msra.mxu0 0.0
    %1269 = vmatprep.subr.mxu0 0.0
    %1270 = vmatpush2.msra.mxu0 0.0
    %1271 = vmatprep.subr.mxu0 0.0
    %1272 = vmatpush2.msra.mxu0 0.0
    %1273 = vmatprep.mubr.f32.mxu0 0.0
    %1274 = vmatmul.mubr.f32.gmra.mxu0 %v888
    %v1275 = vpop.f32.mrf.mxu0
    %v1276 = vadd.f32 0.0, %v1275
    %v1277 = vpop.f32.mrf.mxu0
    %1278 = vdwg.mxu0
    %v1279 = vadd.f32 %v1206, %v1276
    %v1280 = vxor.u32 %v1279, 2147483648
    %v1281 = vmul.f32 %v1280, 1.442695
    %v1282 = vpow.pop %v1281
    %v1283 = vadd.f32 %v1282, 1.0
    %v1284 = vrcp.pop %v1283
    %v1285 = vmul.f32 1.0, %v1284
    %v1286 = vmul.f32 %v1285, 2.0
    %v1287 = vsub.f32 %v1286, 1.0
    %v1288 = vmul.f32 %v1285, %v878
    %1290 = vrot.lane.b32.xlu0 %v1287, 64
    %v1291 = vpop.permute.xlu0 %1290
    %v1293 = vmul.f32 %v1285, %v1291
    %1295 = vrot.lane.b32.xlu0 %v1293, 32
    %v1296 = vpop.permute.xlu0 %1295
    %v1298 = vadd.f32 %v1288, %v1296
    %v1299 = vtanh.pop %v1298
    %1301 = vrot.lane.b32.xlu0 %v1299, 64
    %v1302 = vpop.permute.xlu0 %1301
    %v1304 = vmul.f32 %v1285, %v1302
    %1306 = vrot.lane.b32.xlu0 %v1304, 32
    %v1307 = vpop.permute.xlu0 %1306
    %v1308 = vsel %vm366, %v1307, 0
    %1310 = vmatprep.subr.mxu0 0.0
    %1311 = vmatpush1.msra.mxu0 0.0
    %1312 = vmatprep.subr.mxu0 0.0
    %1313 = vmatpush1.msra.mxu0 0.0
    %1314 = vmatprep.subr.mxu0 0.0
    %1315 = vmatpush1.msra.mxu0 0.0
    %1316 = vmatprep.subr.mxu0 0.0
    %1317 = vmatpush1.msra.mxu0 0.0
    %1318 = vmatprep.subr.mxu0 0.0
    %1319 = vmatpush1.msra.mxu0 0.0
    %1320 = vmatprep.subr.mxu0 0.0
    %1321 = vmatpush1.msra.mxu0 0.0
    %1322 = vmatprep.subr.mxu0 0.0
    %1323 = vmatpush1.msra.mxu0 0.0
    %1324 = vmatprep.subr.mxu0 0.0
    %1325 = vmatpush1.msra.mxu0 0.0
    %1326 = vmatprep.subr.mxu0 0.0
    %1327 = vmatpush1.msra.mxu0 0.0
    %1328 = vmatprep.subr.mxu0 0.0
    %1329 = vmatpush1.msra.mxu0 0.0
    %1330 = vmatprep.subr.mxu0 0.0
    %1331 = vmatpush1.msra.mxu0 0.0
    %1332 = vmatprep.subr.mxu0 0.0
    %1333 = vmatpush1.msra.mxu0 0.0
    %1334 = vmatprep.subr.mxu0 0.0
    %1335 = vmatpush1.msra.mxu0 %v239
    %1336 = vmatprep.subr.mxu0 0.0
    %1337 = vmatpush1.msra.mxu0 %v238
    %1338 = vmatprep.subr.mxu0 0.0
    %1339 = vmatpush1.msra.mxu0 %v237
    %1340 = vmatprep.subr.mxu0 0.0
    %1341 = vmatpush1.msra.mxu0 %v236
    %1342 = vmatprep.subr.mxu0 0.0
    %1343 = vmatpush2.msra.mxu0 0.0
    %1344 = vmatprep.subr.mxu0 0.0
    %1345 = vmatpush2.msra.mxu0 0.0
    %1346 = vmatprep.subr.mxu0 0.0
    %1347 = vmatpush2.msra.mxu0 0.0
    %1348 = vmatprep.subr.mxu0 0.0
    %1349 = vmatpush2.msra.mxu0 0.0
    %1350 = vmatprep.subr.mxu0 0.0
    %1351 = vmatpush2.msra.mxu0 0.0
    %1352 = vmatprep.subr.mxu0 0.0
    %1353 = vmatpush2.msra.mxu0 0.0
    %1354 = vmatprep.subr.mxu0 0.0
    %1355 = vmatpush2.msra.mxu0 0.0
    %1356 = vmatprep.subr.mxu0 0.0
    %1357 = vmatpush2.msra.mxu0 0.0
    %1358 = vmatprep.subr.mxu0 0.0
    %1359 = vmatpush2.msra.mxu0 0.0
    %1360 = vmatprep.subr.mxu0 0.0
    %1361 = vmatpush2.msra.mxu0 0.0
    %1362 = vmatprep.subr.mxu0 0.0
    %1363 = vmatpush2.msra.mxu0 0.0
    %1364 = vmatprep.subr.mxu0 0.0
    %1365 = vmatpush2.msra.mxu0 0.0
    %1366 = vmatprep.subr.mxu0 0.0
    %1367 = vmatpush2.msra.mxu0 0.0
    %1368 = vmatprep.subr.mxu0 0.0
    %1369 = vmatpush2.msra.mxu0 0.0
    %1370 = vmatprep.subr.mxu0 0.0
    %1371 = vmatpush2.msra.mxu0 0.0
    %1372 = vmatprep.subr.mxu0 0.0
    %1373 = vmatpush2.msra.mxu0 0.0
    %1374 = vmatprep.mubr.f32.mxu0 0.0
    %1375 = vmatmul.mubr.f32.gmra.mxu0 %v1308
    %v1376 = vpop.f32.mrf.mxu0
    %v1377 = vadd.f32 %v272, %v1376
    %v1378 = vpop.f32.mrf.mxu0
    %1379 = vdwg.mxu0
    %1380 = vmatprep.subr.mxu0 0.0
    %1381 = vmatpush1.msra.mxu0 0.0
    %1382 = vmatprep.subr.mxu0 0.0
    %1383 = vmatpush1.msra.mxu0 0.0
    %1384 = vmatprep.subr.mxu0 0.0
    %1385 = vmatpush1.msra.mxu0 0.0
    %1386 = vmatprep.subr.mxu0 0.0
    %1387 = vmatpush1.msra.mxu0 0.0
    %1388 = vmatprep.subr.mxu0 0.0
    %1389 = vmatpush1.msra.mxu0 0.0
    %1390 = vmatprep.subr.mxu0 0.0
    %1391 = vmatpush1.msra.mxu0 0.0
    %1392 = vmatprep.subr.mxu0 0.0
    %1393 = vmatpush1.msra.mxu0 0.0
    %1394 = vmatprep.subr.mxu0 0.0
    %1395 = vmatpush1.msra.mxu0 0.0
    %1396 = vmatprep.subr.mxu0 0.0
    %1397 = vmatpush1.msra.mxu0 0.0
    %1398 = vmatprep.subr.mxu0 0.0
    %1399 = vmatpush1.msra.mxu0 0.0
    %1400 = vmatprep.subr.mxu0 0.0
    %1401 = vmatpush1.msra.mxu0 0.0
    %1402 = vmatprep.subr.mxu0 0.0
    %1403 = vmatpush1.msra.mxu0 0.0
    %1404 = vmatprep.subr.mxu0 0.0
    %1405 = vmatpush1.msra.mxu0 %v243
    %1406 = vmatprep.subr.mxu0 0.0
    %1407 = vmatpush1.msra.mxu0 %v242
    %1408 = vmatprep.subr.mxu0 0.0
    %1409 = vmatpush1.msra.mxu0 %v241
    %1410 = vmatprep.subr.mxu0 0.0
    %1411 = vmatpush1.msra.mxu0 %v240
    %1412 = vmatprep.subr.mxu0 0.0
    %1413 = vmatpush2.msra.mxu0 0.0
    %1414 = vmatprep.subr.mxu0 0.0
    %1415 = vmatpush2.msra.mxu0 0.0
    %1416 = vmatprep.subr.mxu0 0.0
    %1417 = vmatpush2.msra.mxu0 0.0
    %1418 = vmatprep.subr.mxu0 0.0
    %1419 = vmatpush2.msra.mxu0 0.0
    %1420 = vmatprep.subr.mxu0 0.0
    %1421 = vmatpush2.msra.mxu0 0.0
    %1422 = vmatprep.subr.mxu0 0.0
    %1423 = vmatpush2.msra.mxu0 0.0
    %1424 = vmatprep.subr.mxu0 0.0
    %1425 = vmatpush2.msra.mxu0 0.0
    %1426 = vmatprep.subr.mxu0 0.0
    %1427 = vmatpush2.msra.mxu0 0.0
    %1428 = vmatprep.subr.mxu0 0.0
    %1429 = vmatpush2.msra.mxu0 0.0
    %1430 = vmatprep.subr.mxu0 0.0
    %1431 = vmatpush2.msra.mxu0 0.0
    %1432 = vmatprep.subr.mxu0 0.0
    %1433 = vmatpush2.msra.mxu0 0.0
    %1434 = vmatprep.subr.mxu0 0.0
    %1435 = vmatpush2.msra.mxu0 0.0
    %1436 = vmatprep.subr.mxu0 0.0
    %1437 = vmatpush2.msra.mxu0 0.0
    %1438 = vmatprep.subr.mxu0 0.0
    %1439 = vmatpush2.msra.mxu0 0.0
    %1440 = vmatprep.subr.mxu0 0.0
    %1441 = vmatpush2.msra.mxu0 0.0
    %1442 = vmatprep.subr.mxu0 0.0
    %1443 = vmatpush2.msra.mxu0 0.0
    %1444 = vmatprep.mubr.f32.mxu0 0.0
    %1445 = vmatmul.mubr.f32.gmra.mxu0 %v1064
    %v1446 = vpop.f32.mrf.mxu0
    %v1447 = vadd.f32 0.0, %v1446
    %v1448 = vpop.f32.mrf.mxu0
    %1449 = vdwg.mxu0
    %v1450 = vadd.f32 %v1377, %v1447
    %v1451 = vxor.u32 %v1450, 2147483648
    %v1452 = vmul.f32 %v1451, 1.442695
    %v1453 = vpow.pop %v1452
    %v1454 = vadd.f32 %v1453, 1.0
    %v1455 = vrcp.pop %v1454
    %v1456 = vmul.f32 1.0, %v1455
    %v1457 = vmul.f32 %v1456, 2.0
    %v1458 = vsub.f32 %v1457, 1.0
    %v1459 = vmul.f32 %v1456, %v1049
    %1461 = vrot.lane.b32.xlu0 %v1458, 64
    %v1462 = vpop.permute.xlu0 %1461
    %v1464 = vmul.f32 %v1456, %v1462
    %1466 = vrot.lane.b32.xlu0 %v1464, 32
    %v1467 = vpop.permute.xlu0 %1466
    %v1469 = vadd.f32 %v1459, %v1467
    %v1470 = vtanh.pop %v1469
    %1472 = vrot.lane.b32.xlu0 %v1470, 64
    %v1473 = vpop.permute.xlu0 %1472
    %v1475 = vmul.f32 %v1456, %v1473
    %s1476 = scalar_lea.vmem [#allocation7], 64
    %v1477 = vld [vmem:[%s1476] sm:$0xff]
    %v1478 = vld [vmem:[%s1476 + $0x8] sm:$0xff]
    %v1479 = vld [vmem:[%s1476 + $0x10] sm:$0xff]
    %v1480 = vld [vmem:[%s1476 + $0x18] sm:$0xff]
    %1482 = vrot.lane.b32.xlu0 %v1475, 32
    %v1483 = vpop.permute.xlu0 %1482
    %v1484 = vsel %vm366, %v1483, 0
    %1486 = vmatprep.subr.mxu0 0.0
    %1487 = vmatpush1.msra.mxu0 0.0
    %1488 = vmatprep.subr.mxu0 0.0
    %1489 = vmatpush1.msra.mxu0 0.0
    %1490 = vmatprep.subr.mxu0 0.0
    %1491 = vmatpush1.msra.mxu0 0.0
    %1492 = vmatprep.subr.mxu0 0.0
    %1493 = vmatpush1.msra.mxu0 0.0
    %1494 = vmatprep.subr.mxu0 0.0
    %1495 = vmatpush1.msra.mxu0 0.0
    %1496 = vmatprep.subr.mxu0 0.0
    %1497 = vmatpush1.msra.mxu0 0.0
    %1498 = vmatprep.subr.mxu0 0.0
    %1499 = vmatpush1.msra.mxu0 0.0
    %1500 = vmatprep.subr.mxu0 0.0
    %1501 = vmatpush1.msra.mxu0 0.0
    %1502 = vmatprep.subr.mxu0 0.0
    %1503 = vmatpush1.msra.mxu0 0.0
    %1504 = vmatprep.subr.mxu0 0.0
    %1505 = vmatpush1.msra.mxu0 0.0
    %1506 = vmatprep.subr.mxu0 0.0
    %1507 = vmatpush1.msra.mxu0 0.0
    %1508 = vmatprep.subr.mxu0 0.0
    %1509 = vmatpush1.msra.mxu0 0.0
    %1510 = vmatprep.subr.mxu0 0.0
    %1511 = vmatpush1.msra.mxu0 %v1480
    %1512 = vmatprep.subr.mxu0 0.0
    %1513 = vmatpush1.msra.mxu0 %v1479
    %1514 = vmatprep.subr.mxu0 0.0
    %1515 = vmatpush1.msra.mxu0 %v1478
    %1516 = vmatprep.subr.mxu0 0.0
    %1517 = vmatpush1.msra.mxu0 %v1477
    %1518 = vmatprep.subr.mxu0 0.0
    %1519 = vmatpush2.msra.mxu0 0.0
    %1520 = vmatprep.subr.mxu0 0.0
    %1521 = vmatpush2.msra.mxu0 0.0
    %1522 = vmatprep.subr.mxu0 0.0
    %1523 = vmatpush2.msra.mxu0 0.0
    %1524 = vmatprep.subr.mxu0 0.0
    %1525 = vmatpush2.msra.mxu0 0.0
    %1526 = vmatprep.subr.mxu0 0.0
    %1527 = vmatpush2.msra.mxu0 0.0
    %1528 = vmatprep.subr.mxu0 0.0
    %1529 = vmatpush2.msra.mxu0 0.0
    %1530 = vmatprep.subr.mxu0 0.0
    %1531 = vmatpush2.msra.mxu0 0.0
    %1532 = vmatprep.subr.mxu0 0.0
    %1533 = vmatpush2.msra.mxu0 0.0
    %1534 = vmatprep.subr.mxu0 0.0
    %1535 = vmatpush2.msra.mxu0 0.0
    %1536 = vmatprep.subr.mxu0 0.0
    %1537 = vmatpush2.msra.mxu0 0.0
    %1538 = vmatprep.subr.mxu0 0.0
    %1539 = vmatpush2.msra.mxu0 0.0
    %1540 = vmatprep.subr.mxu0 0.0
    %1541 = vmatpush2.msra.mxu0 0.0
    %1542 = vmatprep.subr.mxu0 0.0
    %1543 = vmatpush2.msra.mxu0 0.0
    %1544 = vmatprep.subr.mxu0 0.0
    %1545 = vmatpush2.msra.mxu0 0.0
    %1546 = vmatprep.subr.mxu0 0.0
    %1547 = vmatpush2.msra.mxu0 0.0
    %1548 = vmatprep.subr.mxu0 0.0
    %1549 = vmatpush2.msra.mxu0 0.0
    %1550 = vmatprep.mubr.f32.mxu0 0.0
    %1551 = vmatmul.mubr.f32.gmra.mxu0 %v1484
    %v1552 = vpop.f32.mrf.mxu0
    %v1553 = vadd.f32 0.0, %v1552
    %v1554 = vpop.f32.mrf.mxu0
    %1555 = vdwg.mxu0
    %v1556 = vadd.f32 %v1136, %v1553
    %s1557 = scalar_lea.vmem %s0, 6
    %v1558 = vld [vmem:[%s1557] sm:$0x3]
    %1559 = vmatprep.subr.mxu0 0.0
    %1560 = vmatpush1.msra.mxu0 %v231
    %1561 = vmatprep.subr.mxu0 0.0
    %1562 = vmatpush1.msra.mxu0 %v230
    %1563 = vmatprep.subr.mxu0 0.0
    %1564 = vmatpush1.msra.mxu0 %v229
    %1565 = vmatprep.subr.mxu0 0.0
    %1566 = vmatpush1.msra.mxu0 %v228
    %1567 = vmatprep.subr.mxu0 0.0
    %1568 = vmatpush1.msra.mxu0 %v227
    %1569 = vmatprep.subr.mxu0 0.0
    %1570 = vmatpush1.msra.mxu0 %v226
    %1571 = vmatprep.subr.mxu0 0.0
    %1572 = vmatpush1.msra.mxu0 %v225
    %1573 = vmatprep.subr.mxu0 0.0
    %1574 = vmatpush1.msra.mxu0 %v224
    %1575 = vmatprep.subr.mxu0 0.0
    %1576 = vmatpush1.msra.mxu0 %v223
    %1577 = vmatprep.subr.mxu0 0.0
    %1578 = vmatpush1.msra.mxu0 %v222
    %1579 = vmatprep.subr.mxu0 0.0
    %1580 = vmatpush1.msra.mxu0 %v221
    %1581 = vmatprep.subr.mxu0 0.0
    %1582 = vmatpush1.msra.mxu0 %v220
    %1583 = vmatprep.subr.mxu0 0.0
    %1584 = vmatpush1.msra.mxu0 %v219
    %1585 = vmatprep.subr.mxu0 0.0
    %1586 = vmatpush1.msra.mxu0 %v218
    %1587 = vmatprep.subr.mxu0 0.0
    %1588 = vmatpush1.msra.mxu0 %v217
    %1589 = vmatprep.subr.mxu0 0.0
    %1590 = vmatpush1.msra.mxu0 %v216
    %1591 = vmatprep.subr.mxu0 0.0
    %1592 = vmatpush2.msra.mxu0 0.0
    %1593 = vmatprep.subr.mxu0 0.0
    %1594 = vmatpush2.msra.mxu0 0.0
    %1595 = vmatprep.subr.mxu0 0.0
    %1596 = vmatpush2.msra.mxu0 0.0
    %1597 = vmatprep.subr.mxu0 0.0
    %1598 = vmatpush2.msra.mxu0 0.0
    %1599 = vmatprep.subr.mxu0 0.0
    %1600 = vmatpush2.msra.mxu0 0.0
    %1601 = vmatprep.subr.mxu0 0.0
    %1602 = vmatpush2.msra.mxu0 0.0
    %1603 = vmatprep.subr.mxu0 0.0
    %1604 = vmatpush2.msra.mxu0 0.0
    %1605 = vmatprep.subr.mxu0 0.0
    %1606 = vmatpush2.msra.mxu0 0.0
    %1607 = vmatprep.subr.mxu0 0.0
    %1608 = vmatpush2.msra.mxu0 0.0
    %1609 = vmatprep.subr.mxu0 0.0
    %1610 = vmatpush2.msra.mxu0 0.0
    %1611 = vmatprep.subr.mxu0 0.0
    %1612 = vmatpush2.msra.mxu0 0.0
    %1613 = vmatprep.subr.mxu0 0.0
    %1614 = vmatpush2.msra.mxu0 0.0
    %1615 = vmatprep.subr.mxu0 0.0
    %1616 = vmatpush2.msra.mxu0 0.0
    %1617 = vmatprep.subr.mxu0 0.0
    %1618 = vmatpush2.msra.mxu0 0.0
    %1619 = vmatprep.subr.mxu0 0.0
    %1620 = vmatpush2.msra.mxu0 0.0
    %1621 = vmatprep.subr.mxu0 0.0
    %1622 = vmatpush2.msra.mxu0 0.0
    %1623 = vmatprep.mubr.f32.mxu0 0.0
    %1624 = vmatmul.mubr.f32.gmra.mxu0 %v1558
    %v1625 = vpop.f32.mrf.mxu0
    %v1626 = vadd.f32 %v265, %v1625
    %v1627 = vpop.f32.mrf.mxu0
    %1628 = vdwg.mxu0
    %1629 = vmatprep.subr.mxu0 0.0
    %1630 = vmatpush1.msra.mxu0 0.0
    %1631 = vmatprep.subr.mxu0 0.0
    %1632 = vmatpush1.msra.mxu0 0.0
    %1633 = vmatprep.subr.mxu0 0.0
    %1634 = vmatpush1.msra.mxu0 0.0
    %1635 = vmatprep.subr.mxu0 0.0
    %1636 = vmatpush1.msra.mxu0 0.0
    %1637 = vmatprep.subr.mxu0 0.0
    %1638 = vmatpush1.msra.mxu0 0.0
    %1639 = vmatprep.subr.mxu0 0.0
    %1640 = vmatpush1.msra.mxu0 0.0
    %1641 = vmatprep.subr.mxu0 0.0
    %1642 = vmatpush1.msra.mxu0 0.0
    %1643 = vmatprep.subr.mxu0 0.0
    %1644 = vmatpush1.msra.mxu0 0.0
    %1645 = vmatprep.subr.mxu0 0.0
    %1646 = vmatpush1.msra.mxu0 0.0
    %1647 = vmatprep.subr.mxu0 0.0
    %1648 = vmatpush1.msra.mxu0 0.0
    %1649 = vmatprep.subr.mxu0 0.0
    %1650 = vmatpush1.msra.mxu0 0.0
    %1651 = vmatprep.subr.mxu0 0.0
    %1652 = vmatpush1.msra.mxu0 0.0
    %1653 = vmatprep.subr.mxu0 0.0
    %1654 = vmatpush1.msra.mxu0 %v235
    %1655 = vmatprep.subr.mxu0 0.0
    %1656 = vmatpush1.msra.mxu0 %v234
    %1657 = vmatprep.subr.mxu0 0.0
    %1658 = vmatpush1.msra.mxu0 %v233
    %1659 = vmatprep.subr.mxu0 0.0
    %1660 = vmatpush1.msra.mxu0 %v232
    %1661 = vmatprep.subr.mxu0 0.0
    %1662 = vmatpush2.msra.mxu0 0.0
    %1663 = vmatprep.subr.mxu0 0.0
    %1664 = vmatpush2.msra.mxu0 0.0
    %1665 = vmatprep.subr.mxu0 0.0
    %1666 = vmatpush2.msra.mxu0 0.0
    %1667 = vmatprep.subr.mxu0 0.0
    %1668 = vmatpush2.msra.mxu0 0.0
    %1669 = vmatprep.subr.mxu0 0.0
    %1670 = vmatpush2.msra.mxu0 0.0
    %1671 = vmatprep.subr.mxu0 0.0
    %1672 = vmatpush2.msra.mxu0 0.0
    %1673 = vmatprep.subr.mxu0 0.0
    %1674 = vmatpush2.msra.mxu0 0.0
    %1675 = vmatprep.subr.mxu0 0.0
    %1676 = vmatpush2.msra.mxu0 0.0
    %1677 = vmatprep.subr.mxu0 0.0
    %1678 = vmatpush2.msra.mxu0 0.0
    %1679 = vmatprep.subr.mxu0 0.0
    %1680 = vmatpush2.msra.mxu0 0.0
    %1681 = vmatprep.subr.mxu0 0.0
    %1682 = vmatpush2.msra.mxu0 0.0
    %1683 = vmatprep.subr.mxu0 0.0
    %1684 = vmatpush2.msra.mxu0 0.0
    %1685 = vmatprep.subr.mxu0 0.0
    %1686 = vmatpush2.msra.mxu0 0.0
    %1687 = vmatprep.subr.mxu0 0.0
    %1688 = vmatpush2.msra.mxu0 0.0
    %1689 = vmatprep.subr.mxu0 0.0
    %1690 = vmatpush2.msra.mxu0 0.0
    %1691 = vmatprep.subr.mxu0 0.0
    %1692 = vmatpush2.msra.mxu0 0.0
    %1693 = vmatprep.mubr.f32.mxu0 0.0
    %1694 = vmatmul.mubr.f32.gmra.mxu0 %v1308
    %v1695 = vpop.f32.mrf.mxu0
    %v1696 = vadd.f32 0.0, %v1695
    %v1697 = vpop.f32.mrf.mxu0
    %1698 = vdwg.mxu0
    %v1699 = vadd.f32 %v1626, %v1696
    %v1700 = vxor.u32 %v1699, 2147483648
    %v1701 = vmul.f32 %v1700, 1.442695
    %v1702 = vpow.pop %v1701
    %v1703 = vadd.f32 %v1702, 1.0
    %v1704 = vrcp.pop %v1703
    %v1705 = vmul.f32 1.0, %v1704
    %v1706 = vmul.f32 %v1705, 2.0
    %v1707 = vsub.f32 %v1706, 1.0
    %v1708 = vmul.f32 %v1705, %v1298
    %1710 = vrot.lane.b32.xlu0 %v1707, 64
    %v1711 = vpop.permute.xlu0 %1710
    %v1713 = vmul.f32 %v1705, %v1711
    %1715 = vrot.lane.b32.xlu0 %v1713, 32
    %v1716 = vpop.permute.xlu0 %1715
    %v1718 = vadd.f32 %v1708, %v1716
    %v1719 = vtanh.pop %v1718
    %1721 = vrot.lane.b32.xlu0 %v1719, 64
    %v1722 = vpop.permute.xlu0 %1721
    %v1724 = vmul.f32 %v1705, %v1722
    %1726 = vrot.lane.b32.xlu0 %v1724, 32
    %v1727 = vpop.permute.xlu0 %1726
    %v1728 = vsel %vm366, %v1727, 0
    %1730 = vmatprep.subr.mxu0 0.0
    %1731 = vmatpush1.msra.mxu0 0.0
    %1732 = vmatprep.subr.mxu0 0.0
    %1733 = vmatpush1.msra.mxu0 0.0
    %1734 = vmatprep.subr.mxu0 0.0
    %1735 = vmatpush1.msra.mxu0 0.0
    %1736 = vmatprep.subr.mxu0 0.0
    %1737 = vmatpush1.msra.mxu0 0.0
    %1738 = vmatprep.subr.mxu0 0.0
    %1739 = vmatpush1.msra.mxu0 0.0
    %1740 = vmatprep.subr.mxu0 0.0
    %1741 = vmatpush1.msra.mxu0 0.0
    %1742 = vmatprep.subr.mxu0 0.0
    %1743 = vmatpush1.msra.mxu0 0.0
    %1744 = vmatprep.subr.mxu0 0.0
    %1745 = vmatpush1.msra.mxu0 0.0
    %1746 = vmatprep.subr.mxu0 0.0
    %1747 = vmatpush1.msra.mxu0 0.0
    %1748 = vmatprep.subr.mxu0 0.0
    %1749 = vmatpush1.msra.mxu0 0.0
    %1750 = vmatprep.subr.mxu0 0.0
    %1751 = vmatpush1.msra.mxu0 0.0
    %1752 = vmatprep.subr.mxu0 0.0
    %1753 = vmatpush1.msra.mxu0 0.0
    %1754 = vmatprep.subr.mxu0 0.0
    %1755 = vmatpush1.msra.mxu0 %v239
    %1756 = vmatprep.subr.mxu0 0.0
    %1757 = vmatpush1.msra.mxu0 %v238
    %1758 = vmatprep.subr.mxu0 0.0
    %1759 = vmatpush1.msra.mxu0 %v237
    %1760 = vmatprep.subr.mxu0 0.0
    %1761 = vmatpush1.msra.mxu0 %v236
    %1762 = vmatprep.subr.mxu0 0.0
    %1763 = vmatpush2.msra.mxu0 0.0
    %1764 = vmatprep.subr.mxu0 0.0
    %1765 = vmatpush2.msra.mxu0 0.0
    %1766 = vmatprep.subr.mxu0 0.0
    %1767 = vmatpush2.msra.mxu0 0.0
    %1768 = vmatprep.subr.mxu0 0.0
    %1769 = vmatpush2.msra.mxu0 0.0
    %1770 = vmatprep.subr.mxu0 0.0
    %1771 = vmatpush2.msra.mxu0 0.0
    %1772 = vmatprep.subr.mxu0 0.0
    %1773 = vmatpush2.msra.mxu0 0.0
    %1774 = vmatprep.subr.mxu0 0.0
    %1775 = vmatpush2.msra.mxu0 0.0
    %1776 = vmatprep.subr.mxu0 0.0
    %1777 = vmatpush2.msra.mxu0 0.0
    %1778 = vmatprep.subr.mxu0 0.0
    %1779 = vmatpush2.msra.mxu0 0.0
    %1780 = vmatprep.subr.mxu0 0.0
    %1781 = vmatpush2.msra.mxu0 0.0
    %1782 = vmatprep.subr.mxu0 0.0
    %1783 = vmatpush2.msra.mxu0 0.0
    %1784 = vmatprep.subr.mxu0 0.0
    %1785 = vmatpush2.msra.mxu0 0.0
    %1786 = vmatprep.subr.mxu0 0.0
    %1787 = vmatpush2.msra.mxu0 0.0
    %1788 = vmatprep.subr.mxu0 0.0
    %1789 = vmatpush2.msra.mxu0 0.0
    %1790 = vmatprep.subr.mxu0 0.0
    %1791 = vmatpush2.msra.mxu0 0.0
    %1792 = vmatprep.subr.mxu0 0.0
    %1793 = vmatpush2.msra.mxu0 0.0
    %1794 = vmatprep.mubr.f32.mxu0 0.0
    %1795 = vmatmul.mubr.f32.gmra.mxu0 %v1728
    %v1796 = vpop.f32.mrf.mxu0
    %v1797 = vadd.f32 %v272, %v1796
    %v1798 = vpop.f32.mrf.mxu0
    %1799 = vdwg.mxu0
    %1800 = vmatprep.subr.mxu0 0.0
    %1801 = vmatpush1.msra.mxu0 0.0
    %1802 = vmatprep.subr.mxu0 0.0
    %1803 = vmatpush1.msra.mxu0 0.0
    %1804 = vmatprep.subr.mxu0 0.0
    %1805 = vmatpush1.msra.mxu0 0.0
    %1806 = vmatprep.subr.mxu0 0.0
    %1807 = vmatpush1.msra.mxu0 0.0
    %1808 = vmatprep.subr.mxu0 0.0
    %1809 = vmatpush1.msra.mxu0 0.0
    %1810 = vmatprep.subr.mxu0 0.0
    %1811 = vmatpush1.msra.mxu0 0.0
    %1812 = vmatprep.subr.mxu0 0.0
    %1813 = vmatpush1.msra.mxu0 0.0
    %1814 = vmatprep.subr.mxu0 0.0
    %1815 = vmatpush1.msra.mxu0 0.0
    %1816 = vmatprep.subr.mxu0 0.0
    %1817 = vmatpush1.msra.mxu0 0.0
    %1818 = vmatprep.subr.mxu0 0.0
    %1819 = vmatpush1.msra.mxu0 0.0
    %1820 = vmatprep.subr.mxu0 0.0
    %1821 = vmatpush1.msra.mxu0 0.0
    %1822 = vmatprep.subr.mxu0 0.0
    %1823 = vmatpush1.msra.mxu0 0.0
    %1824 = vmatprep.subr.mxu0 0.0
    %1825 = vmatpush1.msra.mxu0 %v243
    %1826 = vmatprep.subr.mxu0 0.0
    %1827 = vmatpush1.msra.mxu0 %v242
    %1828 = vmatprep.subr.mxu0 0.0
    %1829 = vmatpush1.msra.mxu0 %v241
    %1830 = vmatprep.subr.mxu0 0.0
    %1831 = vmatpush1.msra.mxu0 %v240
    %1832 = vmatprep.subr.mxu0 0.0
    %1833 = vmatpush2.msra.mxu0 0.0
    %1834 = vmatprep.subr.mxu0 0.0
    %1835 = vmatpush2.msra.mxu0 0.0
    %1836 = vmatprep.subr.mxu0 0.0
    %1837 = vmatpush2.msra.mxu0 0.0
    %1838 = vmatprep.subr.mxu0 0.0
    %1839 = vmatpush2.msra.mxu0 0.0
    %1840 = vmatprep.subr.mxu0 0.0
    %1841 = vmatpush2.msra.mxu0 0.0
    %1842 = vmatprep.subr.mxu0 0.0
    %1843 = vmatpush2.msra.mxu0 0.0
    %1844 = vmatprep.subr.mxu0 0.0
    %1845 = vmatpush2.msra.mxu0 0.0
    %1846 = vmatprep.subr.mxu0 0.0
    %1847 = vmatpush2.msra.mxu0 0.0
    %1848 = vmatprep.subr.mxu0 0.0
    %1849 = vmatpush2.msra.mxu0 0.0
    %1850 = vmatprep.subr.mxu0 0.0
    %1851 = vmatpush2.msra.mxu0 0.0
    %1852 = vmatprep.subr.mxu0 0.0
    %1853 = vmatpush2.msra.mxu0 0.0
    %1854 = vmatprep.subr.mxu0 0.0
    %1855 = vmatpush2.msra.mxu0 0.0
    %1856 = vmatprep.subr.mxu0 0.0
    %1857 = vmatpush2.msra.mxu0 0.0
    %1858 = vmatprep.subr.mxu0 0.0
    %1859 = vmatpush2.msra.mxu0 0.0
    %1860 = vmatprep.subr.mxu0 0.0
    %1861 = vmatpush2.msra.mxu0 0.0
    %1862 = vmatprep.subr.mxu0 0.0
    %1863 = vmatpush2.msra.mxu0 0.0
    %1864 = vmatprep.mubr.f32.mxu0 0.0
    %1865 = vmatmul.mubr.f32.gmra.mxu0 %v1484
    %v1866 = vpop.f32.mrf.mxu0
    %v1867 = vadd.f32 0.0, %v1866
    %v1868 = vpop.f32.mrf.mxu0
    %1869 = vdwg.mxu0
    %v1870 = vadd.f32 %v1797, %v1867
    %v1871 = vxor.u32 %v1870, 2147483648
    %v1872 = vmul.f32 %v1871, 1.442695
    %v1873 = vpow.pop %v1872
    %v1874 = vadd.f32 %v1873, 1.0
    %v1875 = vrcp.pop %v1874
    %v1876 = vmul.f32 1.0, %v1875
    %v1877 = vmul.f32 %v1876, 2.0
    %v1878 = vsub.f32 %v1877, 1.0
    %v1879 = vmul.f32 %v1876, %v1469
    %1881 = vrot.lane.b32.xlu0 %v1878, 64
    %v1882 = vpop.permute.xlu0 %1881
    %v1884 = vmul.f32 %v1876, %v1882
    %1886 = vrot.lane.b32.xlu0 %v1884, 32
    %v1887 = vpop.permute.xlu0 %1886
    %v1889 = vadd.f32 %v1879, %v1887
    %v1890 = vtanh.pop %v1889
    %1892 = vrot.lane.b32.xlu0 %v1890, 64
    %v1893 = vpop.permute.xlu0 %1892
    %v1895 = vmul.f32 %v1876, %v1893
    %s1896 = scalar_lea.vmem [#allocation7], 96
    %v1897 = vld [vmem:[%s1896] sm:$0xff]
    %v1898 = vld [vmem:[%s1896 + $0x8] sm:$0xff]
    %v1899 = vld [vmem:[%s1896 + $0x10] sm:$0xff]
    %v1900 = vld [vmem:[%s1896 + $0x18] sm:$0xff]
    %1902 = vrot.lane.b32.xlu0 %v1895, 32
    %v1903 = vpop.permute.xlu0 %1902
    %v1904 = vsel %vm366, %v1903, 0
    %1906 = vmatprep.subr.mxu0 0.0
    %1907 = vmatpush1.msra.mxu0 0.0
    %1908 = vmatprep.subr.mxu0 0.0
    %1909 = vmatpush1.msra.mxu0 0.0
    %1910 = vmatprep.subr.mxu0 0.0
    %1911 = vmatpush1.msra.mxu0 0.0
    %1912 = vmatprep.subr.mxu0 0.0
    %1913 = vmatpush1.msra.mxu0 0.0
    %1914 = vmatprep.subr.mxu0 0.0
    %1915 = vmatpush1.msra.mxu0 0.0
    %1916 = vmatprep.subr.mxu0 0.0
    %1917 = vmatpush1.msra.mxu0 0.0
    %1918 = vmatprep.subr.mxu0 0.0
    %1919 = vmatpush1.msra.mxu0 0.0
    %1920 = vmatprep.subr.mxu0 0.0
    %1921 = vmatpush1.msra.mxu0 0.0
    %1922 = vmatprep.subr.mxu0 0.0
    %1923 = vmatpush1.msra.mxu0 0.0
    %1924 = vmatprep.subr.mxu0 0.0
    %1925 = vmatpush1.msra.mxu0 0.0
    %1926 = vmatprep.subr.mxu0 0.0
    %1927 = vmatpush1.msra.mxu0 0.0
    %1928 = vmatprep.subr.mxu0 0.0
    %1929 = vmatpush1.msra.mxu0 0.0
    %1930 = vmatprep.subr.mxu0 0.0
    %1931 = vmatpush1.msra.mxu0 %v1900
    %1932 = vmatprep.subr.mxu0 0.0
    %1933 = vmatpush1.msra.mxu0 %v1899
    %1934 = vmatprep.subr.mxu0 0.0
    %1935 = vmatpush1.msra.mxu0 %v1898
    %1936 = vmatprep.subr.mxu0 0.0
    %1937 = vmatpush1.msra.mxu0 %v1897
    %1938 = vmatprep.subr.mxu0 0.0
    %1939 = vmatpush2.msra.mxu0 0.0
    %1940 = vmatprep.subr.mxu0 0.0
    %1941 = vmatpush2.msra.mxu0 0.0
    %1942 = vmatprep.subr.mxu0 0.0
    %1943 = vmatpush2.msra.mxu0 0.0
    %1944 = vmatprep.subr.mxu0 0.0
    %1945 = vmatpush2.msra.mxu0 0.0
    %1946 = vmatprep.subr.mxu0 0.0
    %1947 = vmatpush2.msra.mxu0 0.0
    %1948 = vmatprep.subr.mxu0 0.0
    %1949 = vmatpush2.msra.mxu0 0.0
    %1950 = vmatprep.subr.mxu0 0.0
    %1951 = vmatpush2.msra.mxu0 0.0
    %1952 = vmatprep.subr.mxu0 0.0
    %1953 = vmatpush2.msra.mxu0 0.0
    %1954 = vmatprep.subr.mxu0 0.0
    %1955 = vmatpush2.msra.mxu0 0.0
    %1956 = vmatprep.subr.mxu0 0.0
    %1957 = vmatpush2.msra.mxu0 0.0
    %1958 = vmatprep.subr.mxu0 0.0
    %1959 = vmatpush2.msra.mxu0 0.0
    %1960 = vmatprep.subr.mxu0 0.0
    %1961 = vmatpush2.msra.mxu0 0.0
    %1962 = vmatprep.subr.mxu0 0.0
    %1963 = vmatpush2.msra.mxu0 0.0
    %1964 = vmatprep.subr.mxu0 0.0
    %1965 = vmatpush2.msra.mxu0 0.0
    %1966 = vmatprep.subr.mxu0 0.0
    %1967 = vmatpush2.msra.mxu0 0.0
    %1968 = vmatprep.subr.mxu0 0.0
    %1969 = vmatpush2.msra.mxu0 0.0
    %1970 = vmatprep.mubr.f32.mxu0 0.0
    %1971 = vmatmul.mubr.f32.gmra.mxu0 %v1904
    %v1972 = vpop.f32.mrf.mxu0
    %v1973 = vadd.f32 0.0, %v1972
    %v1974 = vpop.f32.mrf.mxu0
    %1975 = vdwg.mxu0
    %v1976 = vadd.f32 %v1556, %v1973
    %s1977 = scalar_lea.vmem %s0, 8
    %v1978 = vld [vmem:[%s1977] sm:$0x3]
    %1979 = vmatprep.subr.mxu0 0.0
    %1980 = vmatpush1.msra.mxu0 %v231
    %1981 = vmatprep.subr.mxu0 0.0
    %1982 = vmatpush1.msra.mxu0 %v230
    %1983 = vmatprep.subr.mxu0 0.0
    %1984 = vmatpush1.msra.mxu0 %v229
    %1985 = vmatprep.subr.mxu0 0.0
    %1986 = vmatpush1.msra.mxu0 %v228
    %1987 = vmatprep.subr.mxu0 0.0
    %1988 = vmatpush1.msra.mxu0 %v227
    %1989 = vmatprep.subr.mxu0 0.0
    %1990 = vmatpush1.msra.mxu0 %v226
    %1991 = vmatprep.subr.mxu0 0.0
    %1992 = vmatpush1.msra.mxu0 %v225
    %1993 = vmatprep.subr.mxu0 0.0
    %1994 = vmatpush1.msra.mxu0 %v224
    %1995 = vmatprep.subr.mxu0 0.0
    %1996 = vmatpush1.msra.mxu0 %v223
    %1997 = vmatprep.subr.mxu0 0.0
    %1998 = vmatpush1.msra.mxu0 %v222
    %1999 = vmatprep.subr.mxu0 0.0
    %2000 = vmatpush1.msra.mxu0 %v221
    %2001 = vmatprep.subr.mxu0 0.0
    %2002 = vmatpush1.msra.mxu0 %v220
    %2003 = vmatprep.subr.mxu0 0.0
    %2004 = vmatpush1.msra.mxu0 %v219
    %2005 = vmatprep.subr.mxu0 0.0
    %2006 = vmatpush1.msra.mxu0 %v218
    %2007 = vmatprep.subr.mxu0 0.0
    %2008 = vmatpush1.msra.mxu0 %v217
    %2009 = vmatprep.subr.mxu0 0.0
    %2010 = vmatpush1.msra.mxu0 %v216
    %2011 = vmatprep.subr.mxu0 0.0
    %2012 = vmatpush2.msra.mxu0 0.0
    %2013 = vmatprep.subr.mxu0 0.0
    %2014 = vmatpush2.msra.mxu0 0.0
    %2015 = vmatprep.subr.mxu0 0.0
    %2016 = vmatpush2.msra.mxu0 0.0
    %2017 = vmatprep.subr.mxu0 0.0
    %2018 = vmatpush2.msra.mxu0 0.0
    %2019 = vmatprep.subr.mxu0 0.0
    %2020 = vmatpush2.msra.mxu0 0.0
    %2021 = vmatprep.subr.mxu0 0.0
    %2022 = vmatpush2.msra.mxu0 0.0
    %2023 = vmatprep.subr.mxu0 0.0
    %2024 = vmatpush2.msra.mxu0 0.0
    %2025 = vmatprep.subr.mxu0 0.0
    %2026 = vmatpush2.msra.mxu0 0.0
    %2027 = vmatprep.subr.mxu0 0.0
    %2028 = vmatpush2.msra.mxu0 0.0
    %2029 = vmatprep.subr.mxu0 0.0
    %2030 = vmatpush2.msra.mxu0 0.0
    %2031 = vmatprep.subr.mxu0 0.0
    %2032 = vmatpush2.msra.mxu0 0.0
    %2033 = vmatprep.subr.mxu0 0.0
    %2034 = vmatpush2.msra.mxu0 0.0
    %2035 = vmatprep.subr.mxu0 0.0
    %2036 = vmatpush2.msra.mxu0 0.0
    %2037 = vmatprep.subr.mxu0 0.0
    %2038 = vmatpush2.msra.mxu0 0.0
    %2039 = vmatprep.subr.mxu0 0.0
    %2040 = vmatpush2.msra.mxu0 0.0
    %2041 = vmatprep.subr.mxu0 0.0
    %2042 = vmatpush2.msra.mxu0 0.0
    %2043 = vmatprep.mubr.f32.mxu0 0.0
    %2044 = vmatmul.mubr.f32.gmra.mxu0 %v1978
    %v2045 = vpop.f32.mrf.mxu0
    %v2046 = vadd.f32 %v265, %v2045
    %v2047 = vpop.f32.mrf.mxu0
    %2048 = vdwg.mxu0
    %2049 = vmatprep.subr.mxu0 0.0
    %2050 = vmatpush1.msra.mxu0 0.0
    %2051 = vmatprep.subr.mxu0 0.0
    %2052 = vmatpush1.msra.mxu0 0.0
    %2053 = vmatprep.subr.mxu0 0.0
    %2054 = vmatpush1.msra.mxu0 0.0
    %2055 = vmatprep.subr.mxu0 0.0
    %2056 = vmatpush1.msra.mxu0 0.0
    %2057 = vmatprep.subr.mxu0 0.0
    %2058 = vmatpush1.msra.mxu0 0.0
    %2059 = vmatprep.subr.mxu0 0.0
    %2060 = vmatpush1.msra.mxu0 0.0
    %2061 = vmatprep.subr.mxu0 0.0
    %2062 = vmatpush1.msra.mxu0 0.0
    %2063 = vmatprep.subr.mxu0 0.0
    %2064 = vmatpush1.msra.mxu0 0.0
    %2065 = vmatprep.subr.mxu0 0.0
    %2066 = vmatpush1.msra.mxu0 0.0
    %2067 = vmatprep.subr.mxu0 0.0
    %2068 = vmatpush1.msra.mxu0 0.0
    %2069 = vmatprep.subr.mxu0 0.0
    %2070 = vmatpush1.msra.mxu0 0.0
    %2071 = vmatprep.subr.mxu0 0.0
    %2072 = vmatpush1.msra.mxu0 0.0
    %2073 = vmatprep.subr.mxu0 0.0
    %2074 = vmatpush1.msra.mxu0 %v235
    %2075 = vmatprep.subr.mxu0 0.0
    %2076 = vmatpush1.msra.mxu0 %v234
    %2077 = vmatprep.subr.mxu0 0.0
    %2078 = vmatpush1.msra.mxu0 %v233
    %2079 = vmatprep.subr.mxu0 0.0
    %2080 = vmatpush1.msra.mxu0 %v232
    %2081 = vmatprep.subr.mxu0 0.0
    %2082 = vmatpush2.msra.mxu0 0.0
    %2083 = vmatprep.subr.mxu0 0.0
    %2084 = vmatpush2.msra.mxu0 0.0
    %2085 = vmatprep.subr.mxu0 0.0
    %2086 = vmatpush2.msra.mxu0 0.0
    %2087 = vmatprep.subr.mxu0 0.0
    %2088 = vmatpush2.msra.mxu0 0.0
    %2089 = vmatprep.subr.mxu0 0.0
    %2090 = vmatpush2.msra.mxu0 0.0
    %2091 = vmatprep.subr.mxu0 0.0
    %2092 = vmatpush2.msra.mxu0 0.0
    %2093 = vmatprep.subr.mxu0 0.0
    %2094 = vmatpush2.msra.mxu0 0.0
    %2095 = vmatprep.subr.mxu0 0.0
    %2096 = vmatpush2.msra.mxu0 0.0
    %2097 = vmatprep.subr.mxu0 0.0
    %2098 = vmatpush2.msra.mxu0 0.0
    %2099 = vmatprep.subr.mxu0 0.0
    %2100 = vmatpush2.msra.mxu0 0.0
    %2101 = vmatprep.subr.mxu0 0.0
    %2102 = vmatpush2.msra.mxu0 0.0
    %2103 = vmatprep.subr.mxu0 0.0
    %2104 = vmatpush2.msra.mxu0 0.0
    %2105 = vmatprep.subr.mxu0 0.0
    %2106 = vmatpush2.msra.mxu0 0.0
    %2107 = vmatprep.subr.mxu0 0.0
    %2108 = vmatpush2.msra.mxu0 0.0
    %2109 = vmatprep.subr.mxu0 0.0
    %2110 = vmatpush2.msra.mxu0 0.0
    %2111 = vmatprep.subr.mxu0 0.0
    %2112 = vmatpush2.msra.mxu0 0.0
    %2113 = vmatprep.mubr.f32.mxu0 0.0
    %2114 = vmatmul.mubr.f32.gmra.mxu0 %v1728
    %v2115 = vpop.f32.mrf.mxu0
    %v2116 = vadd.f32 0.0, %v2115
    %v2117 = vpop.f32.mrf.mxu0
    %2118 = vdwg.mxu0
    %v2119 = vadd.f32 %v2046, %v2116
    %v2120 = vxor.u32 %v2119, 2147483648
    %v2121 = vmul.f32 %v2120, 1.442695
    %v2122 = vpow.pop %v2121
    %v2123 = vadd.f32 %v2122, 1.0
    %v2124 = vrcp.pop %v2123
    %v2125 = vmul.f32 1.0, %v2124
    %v2126 = vmul.f32 %v2125, 2.0
    %v2127 = vsub.f32 %v2126, 1.0
    %v2128 = vmul.f32 %v2125, %v1718
    %2130 = vrot.lane.b32.xlu0 %v2127, 64
    %v2131 = vpop.permute.xlu0 %2130
    %v2133 = vmul.f32 %v2125, %v2131
    %2135 = vrot.lane.b32.xlu0 %v2133, 32
    %v2136 = vpop.permute.xlu0 %2135
    %v2138 = vadd.f32 %v2128, %v2136
    %v2139 = vtanh.pop %v2138
    %2141 = vrot.lane.b32.xlu0 %v2139, 64
    %v2142 = vpop.permute.xlu0 %2141
    %v2144 = vmul.f32 %v2125, %v2142
    %2146 = vrot.lane.b32.xlu0 %v2144, 32
    %v2147 = vpop.permute.xlu0 %2146
    %v2148 = vsel %vm366, %v2147, 0
    %2150 = vmatprep.subr.mxu0 0.0
    %2151 = vmatpush1.msra.mxu0 0.0
    %2152 = vmatprep.subr.mxu0 0.0
    %2153 = vmatpush1.msra.mxu0 0.0
    %2154 = vmatprep.subr.mxu0 0.0
    %2155 = vmatpush1.msra.mxu0 0.0
    %2156 = vmatprep.subr.mxu0 0.0
    %2157 = vmatpush1.msra.mxu0 0.0
    %2158 = vmatprep.subr.mxu0 0.0
    %2159 = vmatpush1.msra.mxu0 0.0
    %2160 = vmatprep.subr.mxu0 0.0
    %2161 = vmatpush1.msra.mxu0 0.0
    %2162 = vmatprep.subr.mxu0 0.0
    %2163 = vmatpush1.msra.mxu0 0.0
    %2164 = vmatprep.subr.mxu0 0.0
    %2165 = vmatpush1.msra.mxu0 0.0
    %2166 = vmatprep.subr.mxu0 0.0
    %2167 = vmatpush1.msra.mxu0 0.0
    %2168 = vmatprep.subr.mxu0 0.0
    %2169 = vmatpush1.msra.mxu0 0.0
    %2170 = vmatprep.subr.mxu0 0.0
    %2171 = vmatpush1.msra.mxu0 0.0
    %2172 = vmatprep.subr.mxu0 0.0
    %2173 = vmatpush1.msra.mxu0 0.0
    %2174 = vmatprep.subr.mxu0 0.0
    %2175 = vmatpush1.msra.mxu0 %v239
    %2176 = vmatprep.subr.mxu0 0.0
    %2177 = vmatpush1.msra.mxu0 %v238
    %2178 = vmatprep.subr.mxu0 0.0
    %2179 = vmatpush1.msra.mxu0 %v237
    %2180 = vmatprep.subr.mxu0 0.0
    %2181 = vmatpush1.msra.mxu0 %v236
    %2182 = vmatprep.subr.mxu0 0.0
    %2183 = vmatpush2.msra.mxu0 0.0
    %2184 = vmatprep.subr.mxu0 0.0
    %2185 = vmatpush2.msra.mxu0 0.0
    %2186 = vmatprep.subr.mxu0 0.0
    %2187 = vmatpush2.msra.mxu0 0.0
    %2188 = vmatprep.subr.mxu0 0.0
    %2189 = vmatpush2.msra.mxu0 0.0
    %2190 = vmatprep.subr.mxu0 0.0
    %2191 = vmatpush2.msra.mxu0 0.0
    %2192 = vmatprep.subr.mxu0 0.0
    %2193 = vmatpush2.msra.mxu0 0.0
    %2194 = vmatprep.subr.mxu0 0.0
    %2195 = vmatpush2.msra.mxu0 0.0
    %2196 = vmatprep.subr.mxu0 0.0
    %2197 = vmatpush2.msra.mxu0 0.0
    %2198 = vmatprep.subr.mxu0 0.0
    %2199 = vmatpush2.msra.mxu0 0.0
    %2200 = vmatprep.subr.mxu0 0.0
    %2201 = vmatpush2.msra.mxu0 0.0
    %2202 = vmatprep.subr.mxu0 0.0
    %2203 = vmatpush2.msra.mxu0 0.0
    %2204 = vmatprep.subr.mxu0 0.0
    %2205 = vmatpush2.msra.mxu0 0.0
    %2206 = vmatprep.subr.mxu0 0.0
    %2207 = vmatpush2.msra.mxu0 0.0
    %2208 = vmatprep.subr.mxu0 0.0
    %2209 = vmatpush2.msra.mxu0 0.0
    %2210 = vmatprep.subr.mxu0 0.0
    %2211 = vmatpush2.msra.mxu0 0.0
    %2212 = vmatprep.subr.mxu0 0.0
    %2213 = vmatpush2.msra.mxu0 0.0
    %2214 = vmatprep.mubr.f32.mxu0 0.0
    %2215 = vmatmul.mubr.f32.gmra.mxu0 %v2148
    %v2216 = vpop.f32.mrf.mxu0
    %v2217 = vadd.f32 %v272, %v2216
    %v2218 = vpop.f32.mrf.mxu0
    %2219 = vdwg.mxu0
    %2220 = vmatprep.subr.mxu0 0.0
    %2221 = vmatpush1.msra.mxu0 0.0
    %2222 = vmatprep.subr.mxu0 0.0
    %2223 = vmatpush1.msra.mxu0 0.0
    %2224 = vmatprep.subr.mxu0 0.0
    %2225 = vmatpush1.msra.mxu0 0.0
    %2226 = vmatprep.subr.mxu0 0.0
    %2227 = vmatpush1.msra.mxu0 0.0
    %2228 = vmatprep.subr.mxu0 0.0
    %2229 = vmatpush1.msra.mxu0 0.0
    %2230 = vmatprep.subr.mxu0 0.0
    %2231 = vmatpush1.msra.mxu0 0.0
    %2232 = vmatprep.subr.mxu0 0.0
    %2233 = vmatpush1.msra.mxu0 0.0
    %2234 = vmatprep.subr.mxu0 0.0
    %2235 = vmatpush1.msra.mxu0 0.0
    %2236 = vmatprep.subr.mxu0 0.0
    %2237 = vmatpush1.msra.mxu0 0.0
    %2238 = vmatprep.subr.mxu0 0.0
    %2239 = vmatpush1.msra.mxu0 0.0
    %2240 = vmatprep.subr.mxu0 0.0
    %2241 = vmatpush1.msra.mxu0 0.0
    %2242 = vmatprep.subr.mxu0 0.0
    %2243 = vmatpush1.msra.mxu0 0.0
    %2244 = vmatprep.subr.mxu0 0.0
    %2245 = vmatpush1.msra.mxu0 %v243
    %2246 = vmatprep.subr.mxu0 0.0
    %2247 = vmatpush1.msra.mxu0 %v242
    %2248 = vmatprep.subr.mxu0 0.0
    %2249 = vmatpush1.msra.mxu0 %v241
    %2250 = vmatprep.subr.mxu0 0.0
    %2251 = vmatpush1.msra.mxu0 %v240
    %2252 = vmatprep.subr.mxu0 0.0
    %2253 = vmatpush2.msra.mxu0 0.0
    %2254 = vmatprep.subr.mxu0 0.0
    %2255 = vmatpush2.msra.mxu0 0.0
    %2256 = vmatprep.subr.mxu0 0.0
    %2257 = vmatpush2.msra.mxu0 0.0
    %2258 = vmatprep.subr.mxu0 0.0
    %2259 = vmatpush2.msra.mxu0 0.0
    %2260 = vmatprep.subr.mxu0 0.0
    %2261 = vmatpush2.msra.mxu0 0.0
    %2262 = vmatprep.subr.mxu0 0.0
    %2263 = vmatpush2.msra.mxu0 0.0
    %2264 = vmatprep.subr.mxu0 0.0
    %2265 = vmatpush2.msra.mxu0 0.0
    %2266 = vmatprep.subr.mxu0 0.0
    %2267 = vmatpush2.msra.mxu0 0.0
    %2268 = vmatprep.subr.mxu0 0.0
    %2269 = vmatpush2.msra.mxu0 0.0
    %2270 = vmatprep.subr.mxu0 0.0
    %2271 = vmatpush2.msra.mxu0 0.0
    %2272 = vmatprep.subr.mxu0 0.0
    %2273 = vmatpush2.msra.mxu0 0.0
    %2274 = vmatprep.subr.mxu0 0.0
    %2275 = vmatpush2.msra.mxu0 0.0
    %2276 = vmatprep.subr.mxu0 0.0
    %2277 = vmatpush2.msra.mxu0 0.0
    %2278 = vmatprep.subr.mxu0 0.0
    %2279 = vmatpush2.msra.mxu0 0.0
    %2280 = vmatprep.subr.mxu0 0.0
    %2281 = vmatpush2.msra.mxu0 0.0
    %2282 = vmatprep.subr.mxu0 0.0
    %2283 = vmatpush2.msra.mxu0 0.0
    %2284 = vmatprep.mubr.f32.mxu0 0.0
    %2285 = vmatmul.mubr.f32.gmra.mxu0 %v1904
    %v2286 = vpop.f32.mrf.mxu0
    %v2287 = vadd.f32 0.0, %v2286
    %v2288 = vpop.f32.mrf.mxu0
    %2289 = vdwg.mxu0
    %v2290 = vadd.f32 %v2217, %v2287
    %v2291 = vxor.u32 %v2290, 2147483648
    %v2292 = vmul.f32 %v2291, 1.442695
    %v2293 = vpow.pop %v2292
    %v2294 = vadd.f32 %v2293, 1.0
    %v2295 = vrcp.pop %v2294
    %v2296 = vmul.f32 1.0, %v2295
    %v2297 = vmul.f32 %v2296, 2.0
    %v2298 = vsub.f32 %v2297, 1.0
    %v2299 = vmul.f32 %v2296, %v1889
    %2301 = vrot.lane.b32.xlu0 %v2298, 64
    %v2302 = vpop.permute.xlu0 %2301
    %v2304 = vmul.f32 %v2296, %v2302
    %2306 = vrot.lane.b32.xlu0 %v2304, 32
    %v2307 = vpop.permute.xlu0 %2306
    %v2309 = vadd.f32 %v2299, %v2307
    %v2310 = vtanh.pop %v2309
    %2312 = vrot.lane.b32.xlu0 %v2310, 64
    %v2313 = vpop.permute.xlu0 %2312
    %v2315 = vmul.f32 %v2296, %v2313
    %s2316 = scalar_lea.vmem [#allocation7], 128
    %v2317 = vld [vmem:[%s2316] sm:$0xff]
    %v2318 = vld [vmem:[%s2316 + $0x8] sm:$0xff]
    %v2319 = vld [vmem:[%s2316 + $0x10] sm:$0xff]
    %v2320 = vld [vmem:[%s2316 + $0x18] sm:$0xff]
    %2322 = vrot.lane.b32.xlu0 %v2315, 32
    %v2323 = vpop.permute.xlu0 %2322
    %v2324 = vsel %vm366, %v2323, 0
    %2326 = vmatprep.subr.mxu0 0.0
    %2327 = vmatpush1.msra.mxu0 0.0
    %2328 = vmatprep.subr.mxu0 0.0
    %2329 = vmatpush1.msra.mxu0 0.0
    %2330 = vmatprep.subr.mxu0 0.0
    %2331 = vmatpush1.msra.mxu0 0.0
    %2332 = vmatprep.subr.mxu0 0.0
    %2333 = vmatpush1.msra.mxu0 0.0
    %2334 = vmatprep.subr.mxu0 0.0
    %2335 = vmatpush1.msra.mxu0 0.0
    %2336 = vmatprep.subr.mxu0 0.0
    %2337 = vmatpush1.msra.mxu0 0.0
    %2338 = vmatprep.subr.mxu0 0.0
    %2339 = vmatpush1.msra.mxu0 0.0
    %2340 = vmatprep.subr.mxu0 0.0
    %2341 = vmatpush1.msra.mxu0 0.0
    %2342 = vmatprep.subr.mxu0 0.0
    %2343 = vmatpush1.msra.mxu0 0.0
    %2344 = vmatprep.subr.mxu0 0.0
    %2345 = vmatpush1.msra.mxu0 0.0
    %2346 = vmatprep.subr.mxu0 0.0
    %2347 = vmatpush1.msra.mxu0 0.0
    %2348 = vmatprep.subr.mxu0 0.0
    %2349 = vmatpush1.msra.mxu0 0.0
    %2350 = vmatprep.subr.mxu0 0.0
    %2351 = vmatpush1.msra.mxu0 %v2320
    %2352 = vmatprep.subr.mxu0 0.0
    %2353 = vmatpush1.msra.mxu0 %v2319
    %2354 = vmatprep.subr.mxu0 0.0
    %2355 = vmatpush1.msra.mxu0 %v2318
    %2356 = vmatprep.subr.mxu0 0.0
    %2357 = vmatpush1.msra.mxu0 %v2317
    %2358 = vmatprep.subr.mxu0 0.0
    %2359 = vmatpush2.msra.mxu0 0.0
    %2360 = vmatprep.subr.mxu0 0.0
    %2361 = vmatpush2.msra.mxu0 0.0
    %2362 = vmatprep.subr.mxu0 0.0
    %2363 = vmatpush2.msra.mxu0 0.0
    %2364 = vmatprep.subr.mxu0 0.0
    %2365 = vmatpush2.msra.mxu0 0.0
    %2366 = vmatprep.subr.mxu0 0.0
    %2367 = vmatpush2.msra.mxu0 0.0
    %2368 = vmatprep.subr.mxu0 0.0
    %2369 = vmatpush2.msra.mxu0 0.0
    %2370 = vmatprep.subr.mxu0 0.0
    %2371 = vmatpush2.msra.mxu0 0.0
    %2372 = vmatprep.subr.mxu0 0.0
    %2373 = vmatpush2.msra.mxu0 0.0
    %2374 = vmatprep.subr.mxu0 0.0
    %2375 = vmatpush2.msra.mxu0 0.0
    %2376 = vmatprep.subr.mxu0 0.0
    %2377 = vmatpush2.msra.mxu0 0.0
    %2378 = vmatprep.subr.mxu0 0.0
    %2379 = vmatpush2.msra.mxu0 0.0
    %2380 = vmatprep.subr.mxu0 0.0
    %2381 = vmatpush2.msra.mxu0 0.0
    %2382 = vmatprep.subr.mxu0 0.0
    %2383 = vmatpush2.msra.mxu0 0.0
    %2384 = vmatprep.subr.mxu0 0.0
    %2385 = vmatpush2.msra.mxu0 0.0
    %2386 = vmatprep.subr.mxu0 0.0
    %2387 = vmatpush2.msra.mxu0 0.0
    %2388 = vmatprep.subr.mxu0 0.0
    %2389 = vmatpush2.msra.mxu0 0.0
    %2390 = vmatprep.mubr.f32.mxu0 0.0
    %2391 = vmatmul.mubr.f32.gmra.mxu0 %v2324
    %v2392 = vpop.f32.mrf.mxu0
    %v2393 = vadd.f32 0.0, %v2392
    %v2394 = vpop.f32.mrf.mxu0
    %2395 = vdwg.mxu0
    %v2396 = vadd.f32 %v1976, %v2393
    %s2397 = scalar_lea.vmem %s0, 10
    %v2398 = vld [vmem:[%s2397] sm:$0x3]
    %2399 = vmatprep.subr.mxu0 0.0
    %2400 = vmatpush1.msra.mxu0 %v231
    %2401 = vmatprep.subr.mxu0 0.0
    %2402 = vmatpush1.msra.mxu0 %v230
    %2403 = vmatprep.subr.mxu0 0.0
    %2404 = vmatpush1.msra.mxu0 %v229
    %2405 = vmatprep.subr.mxu0 0.0
    %2406 = vmatpush1.msra.mxu0 %v228
    %2407 = vmatprep.subr.mxu0 0.0
    %2408 = vmatpush1.msra.mxu0 %v227
    %2409 = vmatprep.subr.mxu0 0.0
    %2410 = vmatpush1.msra.mxu0 %v226
    %2411 = vmatprep.subr.mxu0 0.0
    %2412 = vmatpush1.msra.mxu0 %v225
    %2413 = vmatprep.subr.mxu0 0.0
    %2414 = vmatpush1.msra.mxu0 %v224
    %2415 = vmatprep.subr.mxu0 0.0
    %2416 = vmatpush1.msra.mxu0 %v223
    %2417 = vmatprep.subr.mxu0 0.0
    %2418 = vmatpush1.msra.mxu0 %v222
    %2419 = vmatprep.subr.mxu0 0.0
    %2420 = vmatpush1.msra.mxu0 %v221
    %2421 = vmatprep.subr.mxu0 0.0
    %2422 = vmatpush1.msra.mxu0 %v220
    %2423 = vmatprep.subr.mxu0 0.0
    %2424 = vmatpush1.msra.mxu0 %v219
    %2425 = vmatprep.subr.mxu0 0.0
    %2426 = vmatpush1.msra.mxu0 %v218
    %2427 = vmatprep.subr.mxu0 0.0
    %2428 = vmatpush1.msra.mxu0 %v217
    %2429 = vmatprep.subr.mxu0 0.0
    %2430 = vmatpush1.msra.mxu0 %v216
    %2431 = vmatprep.subr.mxu0 0.0
    %2432 = vmatpush2.msra.mxu0 0.0
    %2433 = vmatprep.subr.mxu0 0.0
    %2434 = vmatpush2.msra.mxu0 0.0
    %2435 = vmatprep.subr.mxu0 0.0
    %2436 = vmatpush2.msra.mxu0 0.0
    %2437 = vmatprep.subr.mxu0 0.0
    %2438 = vmatpush2.msra.mxu0 0.0
    %2439 = vmatprep.subr.mxu0 0.0
    %2440 = vmatpush2.msra.mxu0 0.0
    %2441 = vmatprep.subr.mxu0 0.0
    %2442 = vmatpush2.msra.mxu0 0.0
    %2443 = vmatprep.subr.mxu0 0.0
    %2444 = vmatpush2.msra.mxu0 0.0
    %2445 = vmatprep.subr.mxu0 0.0
    %2446 = vmatpush2.msra.mxu0 0.0
    %2447 = vmatprep.subr.mxu0 0.0
    %2448 = vmatpush2.msra.mxu0 0.0
    %2449 = vmatprep.subr.mxu0 0.0
    %2450 = vmatpush2.msra.mxu0 0.0
    %2451 = vmatprep.subr.mxu0 0.0
    %2452 = vmatpush2.msra.mxu0 0.0
    %2453 = vmatprep.subr.mxu0 0.0
    %2454 = vmatpush2.msra.mxu0 0.0
    %2455 = vmatprep.subr.mxu0 0.0
    %2456 = vmatpush2.msra.mxu0 0.0
    %2457 = vmatprep.subr.mxu0 0.0
    %2458 = vmatpush2.msra.mxu0 0.0
    %2459 = vmatprep.subr.mxu0 0.0
    %2460 = vmatpush2.msra.mxu0 0.0
    %2461 = vmatprep.subr.mxu0 0.0
    %2462 = vmatpush2.msra.mxu0 0.0
    %2463 = vmatprep.mubr.f32.mxu0 0.0
    %2464 = vmatmul.mubr.f32.gmra.mxu0 %v2398
    %v2465 = vpop.f32.mrf.mxu0
    %v2466 = vadd.f32 %v265, %v2465
    %v2467 = vpop.f32.mrf.mxu0
    %2468 = vdwg.mxu0
    %2469 = vmatprep.subr.mxu0 0.0
    %2470 = vmatpush1.msra.mxu0 0.0
    %2471 = vmatprep.subr.mxu0 0.0
    %2472 = vmatpush1.msra.mxu0 0.0
    %2473 = vmatprep.subr.mxu0 0.0
    %2474 = vmatpush1.msra.mxu0 0.0
    %2475 = vmatprep.subr.mxu0 0.0
    %2476 = vmatpush1.msra.mxu0 0.0
    %2477 = vmatprep.subr.mxu0 0.0
    %2478 = vmatpush1.msra.mxu0 0.0
    %2479 = vmatprep.subr.mxu0 0.0
    %2480 = vmatpush1.msra.mxu0 0.0
    %2481 = vmatprep.subr.mxu0 0.0
    %2482 = vmatpush1.msra.mxu0 0.0
    %2483 = vmatprep.subr.mxu0 0.0
    %2484 = vmatpush1.msra.mxu0 0.0
    %2485 = vmatprep.subr.mxu0 0.0
    %2486 = vmatpush1.msra.mxu0 0.0
    %2487 = vmatprep.subr.mxu0 0.0
    %2488 = vmatpush1.msra.mxu0 0.0
    %2489 = vmatprep.subr.mxu0 0.0
    %2490 = vmatpush1.msra.mxu0 0.0
    %2491 = vmatprep.subr.mxu0 0.0
    %2492 = vmatpush1.msra.mxu0 0.0
    %2493 = vmatprep.subr.mxu0 0.0
    %2494 = vmatpush1.msra.mxu0 %v235
    %2495 = vmatprep.subr.mxu0 0.0
    %2496 = vmatpush1.msra.mxu0 %v234
    %2497 = vmatprep.subr.mxu0 0.0
    %2498 = vmatpush1.msra.mxu0 %v233
    %2499 = vmatprep.subr.mxu0 0.0
    %2500 = vmatpush1.msra.mxu0 %v232
    %2501 = vmatprep.subr.mxu0 0.0
    %2502 = vmatpush2.msra.mxu0 0.0
    %2503 = vmatprep.subr.mxu0 0.0
    %2504 = vmatpush2.msra.mxu0 0.0
    %2505 = vmatprep.subr.mxu0 0.0
    %2506 = vmatpush2.msra.mxu0 0.0
    %2507 = vmatprep.subr.mxu0 0.0
    %2508 = vmatpush2.msra.mxu0 0.0
    %2509 = vmatprep.subr.mxu0 0.0
    %2510 = vmatpush2.msra.mxu0 0.0
    %2511 = vmatprep.subr.mxu0 0.0
    %2512 = vmatpush2.msra.mxu0 0.0
    %2513 = vmatprep.subr.mxu0 0.0
    %2514 = vmatpush2.msra.mxu0 0.0
    %2515 = vmatprep.subr.mxu0 0.0
    %2516 = vmatpush2.msra.mxu0 0.0
    %2517 = vmatprep.subr.mxu0 0.0
    %2518 = vmatpush2.msra.mxu0 0.0
    %2519 = vmatprep.subr.mxu0 0.0
    %2520 = vmatpush2.msra.mxu0 0.0
    %2521 = vmatprep.subr.mxu0 0.0
    %2522 = vmatpush2.msra.mxu0 0.0
    %2523 = vmatprep.subr.mxu0 0.0
    %2524 = vmatpush2.msra.mxu0 0.0
    %2525 = vmatprep.subr.mxu0 0.0
    %2526 = vmatpush2.msra.mxu0 0.0
    %2527 = vmatprep.subr.mxu0 0.0
    %2528 = vmatpush2.msra.mxu0 0.0
    %2529 = vmatprep.subr.mxu0 0.0
    %2530 = vmatpush2.msra.mxu0 0.0
    %2531 = vmatprep.subr.mxu0 0.0
    %2532 = vmatpush2.msra.mxu0 0.0
    %2533 = vmatprep.mubr.f32.mxu0 0.0
    %2534 = vmatmul.mubr.f32.gmra.mxu0 %v2148
    %v2535 = vpop.f32.mrf.mxu0
    %v2536 = vadd.f32 0.0, %v2535
    %v2537 = vpop.f32.mrf.mxu0
    %2538 = vdwg.mxu0
    %v2539 = vadd.f32 %v2466, %v2536
    %v2540 = vxor.u32 %v2539, 2147483648
    %v2541 = vmul.f32 %v2540, 1.442695
    %v2542 = vpow.pop %v2541
    %v2543 = vadd.f32 %v2542, 1.0
    %v2544 = vrcp.pop %v2543
    %v2545 = vmul.f32 1.0, %v2544
    %v2546 = vmul.f32 %v2545, 2.0
    %v2547 = vsub.f32 %v2546, 1.0
    %v2548 = vmul.f32 %v2545, %v2138
    %2550 = vrot.lane.b32.xlu0 %v2547, 64
    %v2551 = vpop.permute.xlu0 %2550
    %v2553 = vmul.f32 %v2545, %v2551
    %2555 = vrot.lane.b32.xlu0 %v2553, 32
    %v2556 = vpop.permute.xlu0 %2555
    %v2558 = vadd.f32 %v2548, %v2556
    %v2559 = vtanh.pop %v2558
    %2561 = vrot.lane.b32.xlu0 %v2559, 64
    %v2562 = vpop.permute.xlu0 %2561
    %v2564 = vmul.f32 %v2545, %v2562
    %2566 = vrot.lane.b32.xlu0 %v2564, 32
    %v2567 = vpop.permute.xlu0 %2566
    %v2568 = vsel %vm366, %v2567, 0
    %2570 = vmatprep.subr.mxu0 0.0
    %2571 = vmatpush1.msra.mxu0 0.0
    %2572 = vmatprep.subr.mxu0 0.0
    %2573 = vmatpush1.msra.mxu0 0.0
    %2574 = vmatprep.subr.mxu0 0.0
    %2575 = vmatpush1.msra.mxu0 0.0
    %2576 = vmatprep.subr.mxu0 0.0
    %2577 = vmatpush1.msra.mxu0 0.0
    %2578 = vmatprep.subr.mxu0 0.0
    %2579 = vmatpush1.msra.mxu0 0.0
    %2580 = vmatprep.subr.mxu0 0.0
    %2581 = vmatpush1.msra.mxu0 0.0
    %2582 = vmatprep.subr.mxu0 0.0
    %2583 = vmatpush1.msra.mxu0 0.0
    %2584 = vmatprep.subr.mxu0 0.0
    %2585 = vmatpush1.msra.mxu0 0.0
    %2586 = vmatprep.subr.mxu0 0.0
    %2587 = vmatpush1.msra.mxu0 0.0
    %2588 = vmatprep.subr.mxu0 0.0
    %2589 = vmatpush1.msra.mxu0 0.0
    %2590 = vmatprep.subr.mxu0 0.0
    %2591 = vmatpush1.msra.mxu0 0.0
    %2592 = vmatprep.subr.mxu0 0.0
    %2593 = vmatpush1.msra.mxu0 0.0
    %2594 = vmatprep.subr.mxu0 0.0
    %2595 = vmatpush1.msra.mxu0 %v239
    %2596 = vmatprep.subr.mxu0 0.0
    %2597 = vmatpush1.msra.mxu0 %v238
    %2598 = vmatprep.subr.mxu0 0.0
    %2599 = vmatpush1.msra.mxu0 %v237
    %2600 = vmatprep.subr.mxu0 0.0
    %2601 = vmatpush1.msra.mxu0 %v236
    %2602 = vmatprep.subr.mxu0 0.0
    %2603 = vmatpush2.msra.mxu0 0.0
    %2604 = vmatprep.subr.mxu0 0.0
    %2605 = vmatpush2.msra.mxu0 0.0
    %2606 = vmatprep.subr.mxu0 0.0
    %2607 = vmatpush2.msra.mxu0 0.0
    %2608 = vmatprep.subr.mxu0 0.0
    %2609 = vmatpush2.msra.mxu0 0.0
    %2610 = vmatprep.subr.mxu0 0.0
    %2611 = vmatpush2.msra.mxu0 0.0
    %2612 = vmatprep.subr.mxu0 0.0
    %2613 = vmatpush2.msra.mxu0 0.0
    %2614 = vmatprep.subr.mxu0 0.0
    %2615 = vmatpush2.msra.mxu0 0.0
    %2616 = vmatprep.subr.mxu0 0.0
    %2617 = vmatpush2.msra.mxu0 0.0
    %2618 = vmatprep.subr.mxu0 0.0
    %2619 = vmatpush2.msra.mxu0 0.0
    %2620 = vmatprep.subr.mxu0 0.0
    %2621 = vmatpush2.msra.mxu0 0.0
    %2622 = vmatprep.subr.mxu0 0.0
    %2623 = vmatpush2.msra.mxu0 0.0
    %2624 = vmatprep.subr.mxu0 0.0
    %2625 = vmatpush2.msra.mxu0 0.0
    %2626 = vmatprep.subr.mxu0 0.0
    %2627 = vmatpush2.msra.mxu0 0.0
    %2628 = vmatprep.subr.mxu0 0.0
    %2629 = vmatpush2.msra.mxu0 0.0
    %2630 = vmatprep.subr.mxu0 0.0
    %2631 = vmatpush2.msra.mxu0 0.0
    %2632 = vmatprep.subr.mxu0 0.0
    %2633 = vmatpush2.msra.mxu0 0.0
    %2634 = vmatprep.mubr.f32.mxu0 0.0
    %2635 = vmatmul.mubr.f32.gmra.mxu0 %v2568
    %v2636 = vpop.f32.mrf.mxu0
    %v2637 = vadd.f32 %v272, %v2636
    %v2638 = vpop.f32.mrf.mxu0
    %2639 = vdwg.mxu0
    %2640 = vmatprep.subr.mxu0 0.0
    %2641 = vmatpush1.msra.mxu0 0.0
    %2642 = vmatprep.subr.mxu0 0.0
    %2643 = vmatpush1.msra.mxu0 0.0
    %2644 = vmatprep.subr.mxu0 0.0
    %2645 = vmatpush1.msra.mxu0 0.0
    %2646 = vmatprep.subr.mxu0 0.0
    %2647 = vmatpush1.msra.mxu0 0.0
    %2648 = vmatprep.subr.mxu0 0.0
    %2649 = vmatpush1.msra.mxu0 0.0
    %2650 = vmatprep.subr.mxu0 0.0
    %2651 = vmatpush1.msra.mxu0 0.0
    %2652 = vmatprep.subr.mxu0 0.0
    %2653 = vmatpush1.msra.mxu0 0.0
    %2654 = vmatprep.subr.mxu0 0.0
    %2655 = vmatpush1.msra.mxu0 0.0
    %2656 = vmatprep.subr.mxu0 0.0
    %2657 = vmatpush1.msra.mxu0 0.0
    %2658 = vmatprep.subr.mxu0 0.0
    %2659 = vmatpush1.msra.mxu0 0.0
    %2660 = vmatprep.subr.mxu0 0.0
    %2661 = vmatpush1.msra.mxu0 0.0
    %2662 = vmatprep.subr.mxu0 0.0
    %2663 = vmatpush1.msra.mxu0 0.0
    %2664 = vmatprep.subr.mxu0 0.0
    %2665 = vmatpush1.msra.mxu0 %v243
    %2666 = vmatprep.subr.mxu0 0.0
    %2667 = vmatpush1.msra.mxu0 %v242
    %2668 = vmatprep.subr.mxu0 0.0
    %2669 = vmatpush1.msra.mxu0 %v241
    %2670 = vmatprep.subr.mxu0 0.0
    %2671 = vmatpush1.msra.mxu0 %v240
    %2672 = vmatprep.subr.mxu0 0.0
    %2673 = vmatpush2.msra.mxu0 0.0
    %2674 = vmatprep.subr.mxu0 0.0
    %2675 = vmatpush2.msra.mxu0 0.0
    %2676 = vmatprep.subr.mxu0 0.0
    %2677 = vmatpush2.msra.mxu0 0.0
    %2678 = vmatprep.subr.mxu0 0.0
    %2679 = vmatpush2.msra.mxu0 0.0
    %2680 = vmatprep.subr.mxu0 0.0
    %2681 = vmatpush2.msra.mxu0 0.0
    %2682 = vmatprep.subr.mxu0 0.0
    %2683 = vmatpush2.msra.mxu0 0.0
    %2684 = vmatprep.subr.mxu0 0.0
    %2685 = vmatpush2.msra.mxu0 0.0
    %2686 = vmatprep.subr.mxu0 0.0
    %2687 = vmatpush2.msra.mxu0 0.0
    %2688 = vmatprep.subr.mxu0 0.0
    %2689 = vmatpush2.msra.mxu0 0.0
    %2690 = vmatprep.subr.mxu0 0.0
    %2691 = vmatpush2.msra.mxu0 0.0
    %2692 = vmatprep.subr.mxu0 0.0
    %2693 = vmatpush2.msra.mxu0 0.0
    %2694 = vmatprep.subr.mxu0 0.0
    %2695 = vmatpush2.msra.mxu0 0.0
    %2696 = vmatprep.subr.mxu0 0.0
    %2697 = vmatpush2.msra.mxu0 0.0
    %2698 = vmatprep.subr.mxu0 0.0
    %2699 = vmatpush2.msra.mxu0 0.0
    %2700 = vmatprep.subr.mxu0 0.0
    %2701 = vmatpush2.msra.mxu0 0.0
    %2702 = vmatprep.subr.mxu0 0.0
    %2703 = vmatpush2.msra.mxu0 0.0
    %2704 = vmatprep.mubr.f32.mxu0 0.0
    %2705 = vmatmul.mubr.f32.gmra.mxu0 %v2324
    %v2706 = vpop.f32.mrf.mxu0
    %v2707 = vadd.f32 0.0, %v2706
    %v2708 = vpop.f32.mrf.mxu0
    %2709 = vdwg.mxu0
    %v2710 = vadd.f32 %v2637, %v2707
    %v2711 = vxor.u32 %v2710, 2147483648
    %v2712 = vmul.f32 %v2711, 1.442695
    %v2713 = vpow.pop %v2712
    %v2714 = vadd.f32 %v2713, 1.0
    %v2715 = vrcp.pop %v2714
    %v2716 = vmul.f32 1.0, %v2715
    %v2717 = vmul.f32 %v2716, 2.0
    %v2718 = vsub.f32 %v2717, 1.0
    %v2719 = vmul.f32 %v2716, %v2309
    %2721 = vrot.lane.b32.xlu0 %v2718, 64
    %v2722 = vpop.permute.xlu0 %2721
    %v2724 = vmul.f32 %v2716, %v2722
    %2726 = vrot.lane.b32.xlu0 %v2724, 32
    %v2727 = vpop.permute.xlu0 %2726
    %v2729 = vadd.f32 %v2719, %v2727
    %v2730 = vtanh.pop %v2729
    %2732 = vrot.lane.b32.xlu0 %v2730, 64
    %v2733 = vpop.permute.xlu0 %2732
    %v2735 = vmul.f32 %v2716, %v2733
    %s2736 = scalar_lea.vmem [#allocation7], 160
    %v2737 = vld [vmem:[%s2736] sm:$0xff]
    %v2738 = vld [vmem:[%s2736 + $0x8] sm:$0xff]
    %v2739 = vld [vmem:[%s2736 + $0x10] sm:$0xff]
    %v2740 = vld [vmem:[%s2736 + $0x18] sm:$0xff]
    %2742 = vrot.lane.b32.xlu0 %v2735, 32
    %v2743 = vpop.permute.xlu0 %2742
    %v2744 = vsel %vm366, %v2743, 0
    %2746 = vmatprep.subr.mxu0 0.0
    %2747 = vmatpush1.msra.mxu0 0.0
    %2748 = vmatprep.subr.mxu0 0.0
    %2749 = vmatpush1.msra.mxu0 0.0
    %2750 = vmatprep.subr.mxu0 0.0
    %2751 = vmatpush1.msra.mxu0 0.0
    %2752 = vmatprep.subr.mxu0 0.0
    %2753 = vmatpush1.msra.mxu0 0.0
    %2754 = vmatprep.subr.mxu0 0.0
    %2755 = vmatpush1.msra.mxu0 0.0
    %2756 = vmatprep.subr.mxu0 0.0
    %2757 = vmatpush1.msra.mxu0 0.0
    %2758 = vmatprep.subr.mxu0 0.0
    %2759 = vmatpush1.msra.mxu0 0.0
    %2760 = vmatprep.subr.mxu0 0.0
    %2761 = vmatpush1.msra.mxu0 0.0
    %2762 = vmatprep.subr.mxu0 0.0
    %2763 = vmatpush1.msra.mxu0 0.0
    %2764 = vmatprep.subr.mxu0 0.0
    %2765 = vmatpush1.msra.mxu0 0.0
    %2766 = vmatprep.subr.mxu0 0.0
    %2767 = vmatpush1.msra.mxu0 0.0
    %2768 = vmatprep.subr.mxu0 0.0
    %2769 = vmatpush1.msra.mxu0 0.0
    %2770 = vmatprep.subr.mxu0 0.0
    %2771 = vmatpush1.msra.mxu0 %v2740
    %2772 = vmatprep.subr.mxu0 0.0
    %2773 = vmatpush1.msra.mxu0 %v2739
    %2774 = vmatprep.subr.mxu0 0.0
    %2775 = vmatpush1.msra.mxu0 %v2738
    %2776 = vmatprep.subr.mxu0 0.0
    %2777 = vmatpush1.msra.mxu0 %v2737
    %2778 = vmatprep.subr.mxu0 0.0
    %2779 = vmatpush2.msra.mxu0 0.0
    %2780 = vmatprep.subr.mxu0 0.0
    %2781 = vmatpush2.msra.mxu0 0.0
    %2782 = vmatprep.subr.mxu0 0.0
    %2783 = vmatpush2.msra.mxu0 0.0
    %2784 = vmatprep.subr.mxu0 0.0
    %2785 = vmatpush2.msra.mxu0 0.0
    %2786 = vmatprep.subr.mxu0 0.0
    %2787 = vmatpush2.msra.mxu0 0.0
    %2788 = vmatprep.subr.mxu0 0.0
    %2789 = vmatpush2.msra.mxu0 0.0
    %2790 = vmatprep.subr.mxu0 0.0
    %2791 = vmatpush2.msra.mxu0 0.0
    %2792 = vmatprep.subr.mxu0 0.0
    %2793 = vmatpush2.msra.mxu0 0.0
    %2794 = vmatprep.subr.mxu0 0.0
    %2795 = vmatpush2.msra.mxu0 0.0
    %2796 = vmatprep.subr.mxu0 0.0
    %2797 = vmatpush2.msra.mxu0 0.0
    %2798 = vmatprep.subr.mxu0 0.0
    %2799 = vmatpush2.msra.mxu0 0.0
    %2800 = vmatprep.subr.mxu0 0.0
    %2801 = vmatpush2.msra.mxu0 0.0
    %2802 = vmatprep.subr.mxu0 0.0
    %2803 = vmatpush2.msra.mxu0 0.0
    %2804 = vmatprep.subr.mxu0 0.0
    %2805 = vmatpush2.msra.mxu0 0.0
    %2806 = vmatprep.subr.mxu0 0.0
    %2807 = vmatpush2.msra.mxu0 0.0
    %2808 = vmatprep.subr.mxu0 0.0
    %2809 = vmatpush2.msra.mxu0 0.0
    %2810 = vmatprep.mubr.f32.mxu0 0.0
    %2811 = vmatmul.mubr.f32.gmra.mxu0 %v2744
    %v2812 = vpop.f32.mrf.mxu0
    %v2813 = vadd.f32 0.0, %v2812
    %v2814 = vpop.f32.mrf.mxu0
    %2815 = vdwg.mxu0
    %v2816 = vadd.f32 %v2396, %v2813
    %s2817 = scalar_lea.vmem %s0, 12
    %v2818 = vld [vmem:[%s2817] sm:$0x3]
    %2819 = vmatprep.subr.mxu0 0.0
    %2820 = vmatpush1.msra.mxu0 %v231
    %2821 = vmatprep.subr.mxu0 0.0
    %2822 = vmatpush1.msra.mxu0 %v230
    %2823 = vmatprep.subr.mxu0 0.0
    %2824 = vmatpush1.msra.mxu0 %v229
    %2825 = vmatprep.subr.mxu0 0.0
    %2826 = vmatpush1.msra.mxu0 %v228
    %2827 = vmatprep.subr.mxu0 0.0
    %2828 = vmatpush1.msra.mxu0 %v227
    %2829 = vmatprep.subr.mxu0 0.0
    %2830 = vmatpush1.msra.mxu0 %v226
    %2831 = vmatprep.subr.mxu0 0.0
    %2832 = vmatpush1.msra.mxu0 %v225
    %2833 = vmatprep.subr.mxu0 0.0
    %2834 = vmatpush1.msra.mxu0 %v224
    %2835 = vmatprep.subr.mxu0 0.0
    %2836 = vmatpush1.msra.mxu0 %v223
    %2837 = vmatprep.subr.mxu0 0.0
    %2838 = vmatpush1.msra.mxu0 %v222
    %2839 = vmatprep.subr.mxu0 0.0
    %2840 = vmatpush1.msra.mxu0 %v221
    %2841 = vmatprep.subr.mxu0 0.0
    %2842 = vmatpush1.msra.mxu0 %v220
    %2843 = vmatprep.subr.mxu0 0.0
    %2844 = vmatpush1.msra.mxu0 %v219
    %2845 = vmatprep.subr.mxu0 0.0
    %2846 = vmatpush1.msra.mxu0 %v218
    %2847 = vmatprep.subr.mxu0 0.0
    %2848 = vmatpush1.msra.mxu0 %v217
    %2849 = vmatprep.subr.mxu0 0.0
    %2850 = vmatpush1.msra.mxu0 %v216
    %2851 = vmatprep.subr.mxu0 0.0
    %2852 = vmatpush2.msra.mxu0 0.0
    %2853 = vmatprep.subr.mxu0 0.0
    %2854 = vmatpush2.msra.mxu0 0.0
    %2855 = vmatprep.subr.mxu0 0.0
    %2856 = vmatpush2.msra.mxu0 0.0
    %2857 = vmatprep.subr.mxu0 0.0
    %2858 = vmatpush2.msra.mxu0 0.0
    %2859 = vmatprep.subr.mxu0 0.0
    %2860 = vmatpush2.msra.mxu0 0.0
    %2861 = vmatprep.subr.mxu0 0.0
    %2862 = vmatpush2.msra.mxu0 0.0
    %2863 = vmatprep.subr.mxu0 0.0
    %2864 = vmatpush2.msra.mxu0 0.0
    %2865 = vmatprep.subr.mxu0 0.0
    %2866 = vmatpush2.msra.mxu0 0.0
    %2867 = vmatprep.subr.mxu0 0.0
    %2868 = vmatpush2.msra.mxu0 0.0
    %2869 = vmatprep.subr.mxu0 0.0
    %2870 = vmatpush2.msra.mxu0 0.0
    %2871 = vmatprep.subr.mxu0 0.0
    %2872 = vmatpush2.msra.mxu0 0.0
    %2873 = vmatprep.subr.mxu0 0.0
    %2874 = vmatpush2.msra.mxu0 0.0
    %2875 = vmatprep.subr.mxu0 0.0
    %2876 = vmatpush2.msra.mxu0 0.0
    %2877 = vmatprep.subr.mxu0 0.0
    %2878 = vmatpush2.msra.mxu0 0.0
    %2879 = vmatprep.subr.mxu0 0.0
    %2880 = vmatpush2.msra.mxu0 0.0
    %2881 = vmatprep.subr.mxu0 0.0
    %2882 = vmatpush2.msra.mxu0 0.0
    %2883 = vmatprep.mubr.f32.mxu0 0.0
    %2884 = vmatmul.mubr.f32.gmra.mxu0 %v2818
    %v2885 = vpop.f32.mrf.mxu0
    %v2886 = vadd.f32 %v265, %v2885
    %v2887 = vpop.f32.mrf.mxu0
    %2888 = vdwg.mxu0
    %2889 = vmatprep.subr.mxu0 0.0
    %2890 = vmatpush1.msra.mxu0 0.0
    %2891 = vmatprep.subr.mxu0 0.0
    %2892 = vmatpush1.msra.mxu0 0.0
    %2893 = vmatprep.subr.mxu0 0.0
    %2894 = vmatpush1.msra.mxu0 0.0
    %2895 = vmatprep.subr.mxu0 0.0
    %2896 = vmatpush1.msra.mxu0 0.0
    %2897 = vmatprep.subr.mxu0 0.0
    %2898 = vmatpush1.msra.mxu0 0.0
    %2899 = vmatprep.subr.mxu0 0.0
    %2900 = vmatpush1.msra.mxu0 0.0
    %2901 = vmatprep.subr.mxu0 0.0
    %2902 = vmatpush1.msra.mxu0 0.0
    %2903 = vmatprep.subr.mxu0 0.0
    %2904 = vmatpush1.msra.mxu0 0.0
    %2905 = vmatprep.subr.mxu0 0.0
    %2906 = vmatpush1.msra.mxu0 0.0
    %2907 = vmatprep.subr.mxu0 0.0
    %2908 = vmatpush1.msra.mxu0 0.0
    %2909 = vmatprep.subr.mxu0 0.0
    %2910 = vmatpush1.msra.mxu0 0.0
    %2911 = vmatprep.subr.mxu0 0.0
    %2912 = vmatpush1.msra.mxu0 0.0
    %2913 = vmatprep.subr.mxu0 0.0
    %2914 = vmatpush1.msra.mxu0 %v235
    %2915 = vmatprep.subr.mxu0 0.0
    %2916 = vmatpush1.msra.mxu0 %v234
    %2917 = vmatprep.subr.mxu0 0.0
    %2918 = vmatpush1.msra.mxu0 %v233
    %2919 = vmatprep.subr.mxu0 0.0
    %2920 = vmatpush1.msra.mxu0 %v232
    %2921 = vmatprep.subr.mxu0 0.0
    %2922 = vmatpush2.msra.mxu0 0.0
    %2923 = vmatprep.subr.mxu0 0.0
    %2924 = vmatpush2.msra.mxu0 0.0
    %2925 = vmatprep.subr.mxu0 0.0
    %2926 = vmatpush2.msra.mxu0 0.0
    %2927 = vmatprep.subr.mxu0 0.0
    %2928 = vmatpush2.msra.mxu0 0.0
    %2929 = vmatprep.subr.mxu0 0.0
    %2930 = vmatpush2.msra.mxu0 0.0
    %2931 = vmatprep.subr.mxu0 0.0
    %2932 = vmatpush2.msra.mxu0 0.0
    %2933 = vmatprep.subr.mxu0 0.0
    %2934 = vmatpush2.msra.mxu0 0.0
    %2935 = vmatprep.subr.mxu0 0.0
    %2936 = vmatpush2.msra.mxu0 0.0
    %2937 = vmatprep.subr.mxu0 0.0
    %2938 = vmatpush2.msra.mxu0 0.0
    %2939 = vmatprep.subr.mxu0 0.0
    %2940 = vmatpush2.msra.mxu0 0.0
    %2941 = vmatprep.subr.mxu0 0.0
    %2942 = vmatpush2.msra.mxu0 0.0
    %2943 = vmatprep.subr.mxu0 0.0
    %2944 = vmatpush2.msra.mxu0 0.0
    %2945 = vmatprep.subr.mxu0 0.0
    %2946 = vmatpush2.msra.mxu0 0.0
    %2947 = vmatprep.subr.mxu0 0.0
    %2948 = vmatpush2.msra.mxu0 0.0
    %2949 = vmatprep.subr.mxu0 0.0
    %2950 = vmatpush2.msra.mxu0 0.0
    %2951 = vmatprep.subr.mxu0 0.0
    %2952 = vmatpush2.msra.mxu0 0.0
    %2953 = vmatprep.mubr.f32.mxu0 0.0
    %2954 = vmatmul.mubr.f32.gmra.mxu0 %v2568
    %v2955 = vpop.f32.mrf.mxu0
    %v2956 = vadd.f32 0.0, %v2955
    %v2957 = vpop.f32.mrf.mxu0
    %2958 = vdwg.mxu0
    %v2959 = vadd.f32 %v2886, %v2956
    %v2960 = vxor.u32 %v2959, 2147483648
    %v2961 = vmul.f32 %v2960, 1.442695
    %v2962 = vpow.pop %v2961
    %v2963 = vadd.f32 %v2962, 1.0
    %v2964 = vrcp.pop %v2963
    %v2965 = vmul.f32 1.0, %v2964
    %v2966 = vmul.f32 %v2965, 2.0
    %v2967 = vsub.f32 %v2966, 1.0
    %v2968 = vmul.f32 %v2965, %v2558
    %2970 = vrot.lane.b32.xlu0 %v2967, 64
    %v2971 = vpop.permute.xlu0 %2970
    %v2973 = vmul.f32 %v2965, %v2971
    %2975 = vrot.lane.b32.xlu0 %v2973, 32
    %v2976 = vpop.permute.xlu0 %2975
    %v2978 = vadd.f32 %v2968, %v2976
    %v2979 = vtanh.pop %v2978
    %2981 = vrot.lane.b32.xlu0 %v2979, 64
    %v2982 = vpop.permute.xlu0 %2981
    %v2984 = vmul.f32 %v2965, %v2982
    %2986 = vrot.lane.b32.xlu0 %v2984, 32
    %v2987 = vpop.permute.xlu0 %2986
    %v2988 = vsel %vm366, %v2987, 0
    %2990 = vmatprep.subr.mxu0 0.0
    %2991 = vmatpush1.msra.mxu0 0.0
    %2992 = vmatprep.subr.mxu0 0.0
    %2993 = vmatpush1.msra.mxu0 0.0
    %2994 = vmatprep.subr.mxu0 0.0
    %2995 = vmatpush1.msra.mxu0 0.0
    %2996 = vmatprep.subr.mxu0 0.0
    %2997 = vmatpush1.msra.mxu0 0.0
    %2998 = vmatprep.subr.mxu0 0.0
    %2999 = vmatpush1.msra.mxu0 0.0
    %3000 = vmatprep.subr.mxu0 0.0
    %3001 = vmatpush1.msra.mxu0 0.0
    %3002 = vmatprep.subr.mxu0 0.0
    %3003 = vmatpush1.msra.mxu0 0.0
    %3004 = vmatprep.subr.mxu0 0.0
    %3005 = vmatpush1.msra.mxu0 0.0
    %3006 = vmatprep.subr.mxu0 0.0
    %3007 = vmatpush1.msra.mxu0 0.0
    %3008 = vmatprep.subr.mxu0 0.0
    %3009 = vmatpush1.msra.mxu0 0.0
    %3010 = vmatprep.subr.mxu0 0.0
    %3011 = vmatpush1.msra.mxu0 0.0
    %3012 = vmatprep.subr.mxu0 0.0
    %3013 = vmatpush1.msra.mxu0 0.0
    %3014 = vmatprep.subr.mxu0 0.0
    %3015 = vmatpush1.msra.mxu0 %v239
    %3016 = vmatprep.subr.mxu0 0.0
    %3017 = vmatpush1.msra.mxu0 %v238
    %3018 = vmatprep.subr.mxu0 0.0
    %3019 = vmatpush1.msra.mxu0 %v237
    %3020 = vmatprep.subr.mxu0 0.0
    %3021 = vmatpush1.msra.mxu0 %v236
    %3022 = vmatprep.subr.mxu0 0.0
    %3023 = vmatpush2.msra.mxu0 0.0
    %3024 = vmatprep.subr.mxu0 0.0
    %3025 = vmatpush2.msra.mxu0 0.0
    %3026 = vmatprep.subr.mxu0 0.0
    %3027 = vmatpush2.msra.mxu0 0.0
    %3028 = vmatprep.subr.mxu0 0.0
    %3029 = vmatpush2.msra.mxu0 0.0
    %3030 = vmatprep.subr.mxu0 0.0
    %3031 = vmatpush2.msra.mxu0 0.0
    %3032 = vmatprep.subr.mxu0 0.0
    %3033 = vmatpush2.msra.mxu0 0.0
    %3034 = vmatprep.subr.mxu0 0.0
    %3035 = vmatpush2.msra.mxu0 0.0
    %3036 = vmatprep.subr.mxu0 0.0
    %3037 = vmatpush2.msra.mxu0 0.0
    %3038 = vmatprep.subr.mxu0 0.0
    %3039 = vmatpush2.msra.mxu0 0.0
    %3040 = vmatprep.subr.mxu0 0.0
    %3041 = vmatpush2.msra.mxu0 0.0
    %3042 = vmatprep.subr.mxu0 0.0
    %3043 = vmatpush2.msra.mxu0 0.0
    %3044 = vmatprep.subr.mxu0 0.0
    %3045 = vmatpush2.msra.mxu0 0.0
    %3046 = vmatprep.subr.mxu0 0.0
    %3047 = vmatpush2.msra.mxu0 0.0
    %3048 = vmatprep.subr.mxu0 0.0
    %3049 = vmatpush2.msra.mxu0 0.0
    %3050 = vmatprep.subr.mxu0 0.0
    %3051 = vmatpush2.msra.mxu0 0.0
    %3052 = vmatprep.subr.mxu0 0.0
    %3053 = vmatpush2.msra.mxu0 0.0
    %3054 = vmatprep.mubr.f32.mxu0 0.0
    %3055 = vmatmul.mubr.f32.gmra.mxu0 %v2988
    %v3056 = vpop.f32.mrf.mxu0
    %v3057 = vadd.f32 %v272, %v3056
    %v3058 = vpop.f32.mrf.mxu0
    %3059 = vdwg.mxu0
    %3060 = vmatprep.subr.mxu0 0.0
    %3061 = vmatpush1.msra.mxu0 0.0
    %3062 = vmatprep.subr.mxu0 0.0
    %3063 = vmatpush1.msra.mxu0 0.0
    %3064 = vmatprep.subr.mxu0 0.0
    %3065 = vmatpush1.msra.mxu0 0.0
    %3066 = vmatprep.subr.mxu0 0.0
    %3067 = vmatpush1.msra.mxu0 0.0
    %3068 = vmatprep.subr.mxu0 0.0
    %3069 = vmatpush1.msra.mxu0 0.0
    %3070 = vmatprep.subr.mxu0 0.0
    %3071 = vmatpush1.msra.mxu0 0.0
    %3072 = vmatprep.subr.mxu0 0.0
    %3073 = vmatpush1.msra.mxu0 0.0
    %3074 = vmatprep.subr.mxu0 0.0
    %3075 = vmatpush1.msra.mxu0 0.0
    %3076 = vmatprep.subr.mxu0 0.0
    %3077 = vmatpush1.msra.mxu0 0.0
    %3078 = vmatprep.subr.mxu0 0.0
    %3079 = vmatpush1.msra.mxu0 0.0
    %3080 = vmatprep.subr.mxu0 0.0
    %3081 = vmatpush1.msra.mxu0 0.0
    %3082 = vmatprep.subr.mxu0 0.0
    %3083 = vmatpush1.msra.mxu0 0.0
    %3084 = vmatprep.subr.mxu0 0.0
    %3085 = vmatpush1.msra.mxu0 %v243
    %3086 = vmatprep.subr.mxu0 0.0
    %3087 = vmatpush1.msra.mxu0 %v242
    %3088 = vmatprep.subr.mxu0 0.0
    %3089 = vmatpush1.msra.mxu0 %v241
    %3090 = vmatprep.subr.mxu0 0.0
    %3091 = vmatpush1.msra.mxu0 %v240
    %3092 = vmatprep.subr.mxu0 0.0
    %3093 = vmatpush2.msra.mxu0 0.0
    %3094 = vmatprep.subr.mxu0 0.0
    %3095 = vmatpush2.msra.mxu0 0.0
    %3096 = vmatprep.subr.mxu0 0.0
    %3097 = vmatpush2.msra.mxu0 0.0
    %3098 = vmatprep.subr.mxu0 0.0
    %3099 = vmatpush2.msra.mxu0 0.0
    %3100 = vmatprep.subr.mxu0 0.0
    %3101 = vmatpush2.msra.mxu0 0.0
    %3102 = vmatprep.subr.mxu0 0.0
    %3103 = vmatpush2.msra.mxu0 0.0
    %3104 = vmatprep.subr.mxu0 0.0
    %3105 = vmatpush2.msra.mxu0 0.0
    %3106 = vmatprep.subr.mxu0 0.0
    %3107 = vmatpush2.msra.mxu0 0.0
    %3108 = vmatprep.subr.mxu0 0.0
    %3109 = vmatpush2.msra.mxu0 0.0
    %3110 = vmatprep.subr.mxu0 0.0
    %3111 = vmatpush2.msra.mxu0 0.0
    %3112 = vmatprep.subr.mxu0 0.0
    %3113 = vmatpush2.msra.mxu0 0.0
    %3114 = vmatprep.subr.mxu0 0.0
    %3115 = vmatpush2.msra.mxu0 0.0
    %3116 = vmatprep.subr.mxu0 0.0
    %3117 = vmatpush2.msra.mxu0 0.0
    %3118 = vmatprep.subr.mxu0 0.0
    %3119 = vmatpush2.msra.mxu0 0.0
    %3120 = vmatprep.subr.mxu0 0.0
    %3121 = vmatpush2.msra.mxu0 0.0
    %3122 = vmatprep.subr.mxu0 0.0
    %3123 = vmatpush2.msra.mxu0 0.0
    %3124 = vmatprep.mubr.f32.mxu0 0.0
    %3125 = vmatmul.mubr.f32.gmra.mxu0 %v2744
    %v3126 = vpop.f32.mrf.mxu0
    %v3127 = vadd.f32 0.0, %v3126
    %v3128 = vpop.f32.mrf.mxu0
    %3129 = vdwg.mxu0
    %v3130 = vadd.f32 %v3057, %v3127
    %v3131 = vxor.u32 %v3130, 2147483648
    %v3132 = vmul.f32 %v3131, 1.442695
    %v3133 = vpow.pop %v3132
    %v3134 = vadd.f32 %v3133, 1.0
    %v3135 = vrcp.pop %v3134
    %v3136 = vmul.f32 1.0, %v3135
    %v3137 = vmul.f32 %v3136, 2.0
    %v3138 = vsub.f32 %v3137, 1.0
    %v3139 = vmul.f32 %v3136, %v2729
    %3141 = vrot.lane.b32.xlu0 %v3138, 64
    %v3142 = vpop.permute.xlu0 %3141
    %v3144 = vmul.f32 %v3136, %v3142
    %3146 = vrot.lane.b32.xlu0 %v3144, 32
    %v3147 = vpop.permute.xlu0 %3146
    %v3149 = vadd.f32 %v3139, %v3147
    %v3150 = vtanh.pop %v3149
    %3152 = vrot.lane.b32.xlu0 %v3150, 64
    %v3153 = vpop.permute.xlu0 %3152
    %v3155 = vmul.f32 %v3136, %v3153
    %s3156 = scalar_lea.vmem [#allocation7], 192
    %v3157 = vld [vmem:[%s3156] sm:$0xff]
    %v3158 = vld [vmem:[%s3156 + $0x8] sm:$0xff]
    %v3159 = vld [vmem:[%s3156 + $0x10] sm:$0xff]
    %v3160 = vld [vmem:[%s3156 + $0x18] sm:$0xff]
    %3162 = vrot.lane.b32.xlu0 %v3155, 32
    %v3163 = vpop.permute.xlu0 %3162
    %v3164 = vsel %vm366, %v3163, 0
    %3166 = vmatprep.subr.mxu0 0.0
    %3167 = vmatpush1.msra.mxu0 0.0
    %3168 = vmatprep.subr.mxu0 0.0
    %3169 = vmatpush1.msra.mxu0 0.0
    %3170 = vmatprep.subr.mxu0 0.0
    %3171 = vmatpush1.msra.mxu0 0.0
    %3172 = vmatprep.subr.mxu0 0.0
    %3173 = vmatpush1.msra.mxu0 0.0
    %3174 = vmatprep.subr.mxu0 0.0
    %3175 = vmatpush1.msra.mxu0 0.0
    %3176 = vmatprep.subr.mxu0 0.0
    %3177 = vmatpush1.msra.mxu0 0.0
    %3178 = vmatprep.subr.mxu0 0.0
    %3179 = vmatpush1.msra.mxu0 0.0
    %3180 = vmatprep.subr.mxu0 0.0
    %3181 = vmatpush1.msra.mxu0 0.0
    %3182 = vmatprep.subr.mxu0 0.0
    %3183 = vmatpush1.msra.mxu0 0.0
    %3184 = vmatprep.subr.mxu0 0.0
    %3185 = vmatpush1.msra.mxu0 0.0
    %3186 = vmatprep.subr.mxu0 0.0
    %3187 = vmatpush1.msra.mxu0 0.0
    %3188 = vmatprep.subr.mxu0 0.0
    %3189 = vmatpush1.msra.mxu0 0.0
    %3190 = vmatprep.subr.mxu0 0.0
    %3191 = vmatpush1.msra.mxu0 %v3160
    %3192 = vmatprep.subr.mxu0 0.0
    %3193 = vmatpush1.msra.mxu0 %v3159
    %3194 = vmatprep.subr.mxu0 0.0
    %3195 = vmatpush1.msra.mxu0 %v3158
    %3196 = vmatprep.subr.mxu0 0.0
    %3197 = vmatpush1.msra.mxu0 %v3157
    %3198 = vmatprep.subr.mxu0 0.0
    %3199 = vmatpush2.msra.mxu0 0.0
    %3200 = vmatprep.subr.mxu0 0.0
    %3201 = vmatpush2.msra.mxu0 0.0
    %3202 = vmatprep.subr.mxu0 0.0
    %3203 = vmatpush2.msra.mxu0 0.0
    %3204 = vmatprep.subr.mxu0 0.0
    %3205 = vmatpush2.msra.mxu0 0.0
    %3206 = vmatprep.subr.mxu0 0.0
    %3207 = vmatpush2.msra.mxu0 0.0
    %3208 = vmatprep.subr.mxu0 0.0
    %3209 = vmatpush2.msra.mxu0 0.0
    %3210 = vmatprep.subr.mxu0 0.0
    %3211 = vmatpush2.msra.mxu0 0.0
    %3212 = vmatprep.subr.mxu0 0.0
    %3213 = vmatpush2.msra.mxu0 0.0
    %3214 = vmatprep.subr.mxu0 0.0
    %3215 = vmatpush2.msra.mxu0 0.0
    %3216 = vmatprep.subr.mxu0 0.0
    %3217 = vmatpush2.msra.mxu0 0.0
    %3218 = vmatprep.subr.mxu0 0.0
    %3219 = vmatpush2.msra.mxu0 0.0
    %3220 = vmatprep.subr.mxu0 0.0
    %3221 = vmatpush2.msra.mxu0 0.0
    %3222 = vmatprep.subr.mxu0 0.0
    %3223 = vmatpush2.msra.mxu0 0.0
    %3224 = vmatprep.subr.mxu0 0.0
    %3225 = vmatpush2.msra.mxu0 0.0
    %3226 = vmatprep.subr.mxu0 0.0
    %3227 = vmatpush2.msra.mxu0 0.0
    %3228 = vmatprep.subr.mxu0 0.0
    %3229 = vmatpush2.msra.mxu0 0.0
    %3230 = vmatprep.mubr.f32.mxu0 0.0
    %3231 = vmatmul.mubr.f32.gmra.mxu0 %v3164
    %v3232 = vpop.f32.mrf.mxu0
    %v3233 = vadd.f32 0.0, %v3232
    %v3234 = vpop.f32.mrf.mxu0
    %3235 = vdwg.mxu0
    %v3236 = vadd.f32 %v2816, %v3233
    %s3237 = scalar_lea.vmem %s0, 14
    %v3238 = vld [vmem:[%s3237] sm:$0x3]
    %3239 = vmatprep.subr.mxu0 0.0
    %3240 = vmatpush1.msra.mxu0 %v231
    %3241 = vmatprep.subr.mxu0 0.0
    %3242 = vmatpush1.msra.mxu0 %v230
    %3243 = vmatprep.subr.mxu0 0.0
    %3244 = vmatpush1.msra.mxu0 %v229
    %3245 = vmatprep.subr.mxu0 0.0
    %3246 = vmatpush1.msra.mxu0 %v228
    %3247 = vmatprep.subr.mxu0 0.0
    %3248 = vmatpush1.msra.mxu0 %v227
    %3249 = vmatprep.subr.mxu0 0.0
    %3250 = vmatpush1.msra.mxu0 %v226
    %3251 = vmatprep.subr.mxu0 0.0
    %3252 = vmatpush1.msra.mxu0 %v225
    %3253 = vmatprep.subr.mxu0 0.0
    %3254 = vmatpush1.msra.mxu0 %v224
    %3255 = vmatprep.subr.mxu0 0.0
    %3256 = vmatpush1.msra.mxu0 %v223
    %3257 = vmatprep.subr.mxu0 0.0
    %3258 = vmatpush1.msra.mxu0 %v222
    %3259 = vmatprep.subr.mxu0 0.0
    %3260 = vmatpush1.msra.mxu0 %v221
    %3261 = vmatprep.subr.mxu0 0.0
    %3262 = vmatpush1.msra.mxu0 %v220
    %3263 = vmatprep.subr.mxu0 0.0
    %3264 = vmatpush1.msra.mxu0 %v219
    %3265 = vmatprep.subr.mxu0 0.0
    %3266 = vmatpush1.msra.mxu0 %v218
    %3267 = vmatprep.subr.mxu0 0.0
    %3268 = vmatpush1.msra.mxu0 %v217
    %3269 = vmatprep.subr.mxu0 0.0
    %3270 = vmatpush1.msra.mxu0 %v216
    %3271 = vmatprep.subr.mxu0 0.0
    %3272 = vmatpush2.msra.mxu0 0.0
    %3273 = vmatprep.subr.mxu0 0.0
    %3274 = vmatpush2.msra.mxu0 0.0
    %3275 = vmatprep.subr.mxu0 0.0
    %3276 = vmatpush2.msra.mxu0 0.0
    %3277 = vmatprep.subr.mxu0 0.0
    %3278 = vmatpush2.msra.mxu0 0.0
    %3279 = vmatprep.subr.mxu0 0.0
    %3280 = vmatpush2.msra.mxu0 0.0
    %3281 = vmatprep.subr.mxu0 0.0
    %3282 = vmatpush2.msra.mxu0 0.0
    %3283 = vmatprep.subr.mxu0 0.0
    %3284 = vmatpush2.msra.mxu0 0.0
    %3285 = vmatprep.subr.mxu0 0.0
    %3286 = vmatpush2.msra.mxu0 0.0
    %3287 = vmatprep.subr.mxu0 0.0
    %3288 = vmatpush2.msra.mxu0 0.0
    %3289 = vmatprep.subr.mxu0 0.0
    %3290 = vmatpush2.msra.mxu0 0.0
    %3291 = vmatprep.subr.mxu0 0.0
    %3292 = vmatpush2.msra.mxu0 0.0
    %3293 = vmatprep.subr.mxu0 0.0
    %3294 = vmatpush2.msra.mxu0 0.0
    %3295 = vmatprep.subr.mxu0 0.0
    %3296 = vmatpush2.msra.mxu0 0.0
    %3297 = vmatprep.subr.mxu0 0.0
    %3298 = vmatpush2.msra.mxu0 0.0
    %3299 = vmatprep.subr.mxu0 0.0
    %3300 = vmatpush2.msra.mxu0 0.0
    %3301 = vmatprep.subr.mxu0 0.0
    %3302 = vmatpush2.msra.mxu0 0.0
    %3303 = vmatprep.mubr.f32.mxu0 0.0
    %3304 = vmatmul.mubr.f32.gmra.mxu0 %v3238
    %v3305 = vpop.f32.mrf.mxu0
    %v3306 = vadd.f32 %v265, %v3305
    %v3307 = vpop.f32.mrf.mxu0
    %3308 = vdwg.mxu0
    %3309 = vmatprep.subr.mxu0 0.0
    %3310 = vmatpush1.msra.mxu0 0.0
    %3311 = vmatprep.subr.mxu0 0.0
    %3312 = vmatpush1.msra.mxu0 0.0
    %3313 = vmatprep.subr.mxu0 0.0
    %3314 = vmatpush1.msra.mxu0 0.0
    %3315 = vmatprep.subr.mxu0 0.0
    %3316 = vmatpush1.msra.mxu0 0.0
    %3317 = vmatprep.subr.mxu0 0.0
    %3318 = vmatpush1.msra.mxu0 0.0
    %3319 = vmatprep.subr.mxu0 0.0
    %3320 = vmatpush1.msra.mxu0 0.0
    %3321 = vmatprep.subr.mxu0 0.0
    %3322 = vmatpush1.msra.mxu0 0.0
    %3323 = vmatprep.subr.mxu0 0.0
    %3324 = vmatpush1.msra.mxu0 0.0
    %3325 = vmatprep.subr.mxu0 0.0
    %3326 = vmatpush1.msra.mxu0 0.0
    %3327 = vmatprep.subr.mxu0 0.0
    %3328 = vmatpush1.msra.mxu0 0.0
    %3329 = vmatprep.subr.mxu0 0.0
    %3330 = vmatpush1.msra.mxu0 0.0
    %3331 = vmatprep.subr.mxu0 0.0
    %3332 = vmatpush1.msra.mxu0 0.0
    %3333 = vmatprep.subr.mxu0 0.0
    %3334 = vmatpush1.msra.mxu0 %v235
    %3335 = vmatprep.subr.mxu0 0.0
    %3336 = vmatpush1.msra.mxu0 %v234
    %3337 = vmatprep.subr.mxu0 0.0
    %3338 = vmatpush1.msra.mxu0 %v233
    %3339 = vmatprep.subr.mxu0 0.0
    %3340 = vmatpush1.msra.mxu0 %v232
    %3341 = vmatprep.subr.mxu0 0.0
    %3342 = vmatpush2.msra.mxu0 0.0
    %3343 = vmatprep.subr.mxu0 0.0
    %3344 = vmatpush2.msra.mxu0 0.0
    %3345 = vmatprep.subr.mxu0 0.0
    %3346 = vmatpush2.msra.mxu0 0.0
    %3347 = vmatprep.subr.mxu0 0.0
    %3348 = vmatpush2.msra.mxu0 0.0
    %3349 = vmatprep.subr.mxu0 0.0
    %3350 = vmatpush2.msra.mxu0 0.0
    %3351 = vmatprep.subr.mxu0 0.0
    %3352 = vmatpush2.msra.mxu0 0.0
    %3353 = vmatprep.subr.mxu0 0.0
    %3354 = vmatpush2.msra.mxu0 0.0
    %3355 = vmatprep.subr.mxu0 0.0
    %3356 = vmatpush2.msra.mxu0 0.0
    %3357 = vmatprep.subr.mxu0 0.0
    %3358 = vmatpush2.msra.mxu0 0.0
    %3359 = vmatprep.subr.mxu0 0.0
    %3360 = vmatpush2.msra.mxu0 0.0
    %3361 = vmatprep.subr.mxu0 0.0
    %3362 = vmatpush2.msra.mxu0 0.0
    %3363 = vmatprep.subr.mxu0 0.0
    %3364 = vmatpush2.msra.mxu0 0.0
    %3365 = vmatprep.subr.mxu0 0.0
    %3366 = vmatpush2.msra.mxu0 0.0
    %3367 = vmatprep.subr.mxu0 0.0
    %3368 = vmatpush2.msra.mxu0 0.0
    %3369 = vmatprep.subr.mxu0 0.0
    %3370 = vmatpush2.msra.mxu0 0.0
    %3371 = vmatprep.subr.mxu0 0.0
    %3372 = vmatpush2.msra.mxu0 0.0
    %3373 = vmatprep.mubr.f32.mxu0 0.0
    %3374 = vmatmul.mubr.f32.gmra.mxu0 %v2988
    %v3375 = vpop.f32.mrf.mxu0
    %v3376 = vadd.f32 0.0, %v3375
    %v3377 = vpop.f32.mrf.mxu0
    %3378 = vdwg.mxu0
    %v3379 = vadd.f32 %v3306, %v3376
    %v3380 = vxor.u32 %v3379, 2147483648
    %v3381 = vmul.f32 %v3380, 1.442695
    %v3382 = vpow.pop %v3381
    %v3383 = vadd.f32 %v3382, 1.0
    %v3384 = vrcp.pop %v3383
    %v3385 = vmul.f32 1.0, %v3384
    %v3386 = vmul.f32 %v3385, 2.0
    %v3387 = vsub.f32 %v3386, 1.0
    %v3388 = vmul.f32 %v3385, %v2978
    %3390 = vrot.lane.b32.xlu0 %v3387, 64
    %v3391 = vpop.permute.xlu0 %3390
    %v3393 = vmul.f32 %v3385, %v3391
    %3395 = vrot.lane.b32.xlu0 %v3393, 32
    %v3396 = vpop.permute.xlu0 %3395
    %v3398 = vadd.f32 %v3388, %v3396
    %v3399 = vtanh.pop %v3398
    %3401 = vrot.lane.b32.xlu0 %v3399, 64
    %v3402 = vpop.permute.xlu0 %3401
    %v3404 = vmul.f32 %v3385, %v3402
    %3406 = vrot.lane.b32.xlu0 %v3404, 32
    %v3407 = vpop.permute.xlu0 %3406
    %v3408 = vsel %vm366, %v3407, 0
    %3410 = vmatprep.subr.mxu0 0.0
    %3411 = vmatpush1.msra.mxu0 0.0
    %3412 = vmatprep.subr.mxu0 0.0
    %3413 = vmatpush1.msra.mxu0 0.0
    %3414 = vmatprep.subr.mxu0 0.0
    %3415 = vmatpush1.msra.mxu0 0.0
    %3416 = vmatprep.subr.mxu0 0.0
    %3417 = vmatpush1.msra.mxu0 0.0
    %3418 = vmatprep.subr.mxu0 0.0
    %3419 = vmatpush1.msra.mxu0 0.0
    %3420 = vmatprep.subr.mxu0 0.0
    %3421 = vmatpush1.msra.mxu0 0.0
    %3422 = vmatprep.subr.mxu0 0.0
    %3423 = vmatpush1.msra.mxu0 0.0
    %3424 = vmatprep.subr.mxu0 0.0
    %3425 = vmatpush1.msra.mxu0 0.0
    %3426 = vmatprep.subr.mxu0 0.0
    %3427 = vmatpush1.msra.mxu0 0.0
    %3428 = vmatprep.subr.mxu0 0.0
    %3429 = vmatpush1.msra.mxu0 0.0
    %3430 = vmatprep.subr.mxu0 0.0
    %3431 = vmatpush1.msra.mxu0 0.0
    %3432 = vmatprep.subr.mxu0 0.0
    %3433 = vmatpush1.msra.mxu0 0.0
    %3434 = vmatprep.subr.mxu0 0.0
    %3435 = vmatpush1.msra.mxu0 %v239
    %3436 = vmatprep.subr.mxu0 0.0
    %3437 = vmatpush1.msra.mxu0 %v238
    %3438 = vmatprep.subr.mxu0 0.0
    %3439 = vmatpush1.msra.mxu0 %v237
    %3440 = vmatprep.subr.mxu0 0.0
    %3441 = vmatpush1.msra.mxu0 %v236
    %3442 = vmatprep.subr.mxu0 0.0
    %3443 = vmatpush2.msra.mxu0 0.0
    %3444 = vmatprep.subr.mxu0 0.0
    %3445 = vmatpush2.msra.mxu0 0.0
    %3446 = vmatprep.subr.mxu0 0.0
    %3447 = vmatpush2.msra.mxu0 0.0
    %3448 = vmatprep.subr.mxu0 0.0
    %3449 = vmatpush2.msra.mxu0 0.0
    %3450 = vmatprep.subr.mxu0 0.0
    %3451 = vmatpush2.msra.mxu0 0.0
    %3452 = vmatprep.subr.mxu0 0.0
    %3453 = vmatpush2.msra.mxu0 0.0
    %3454 = vmatprep.subr.mxu0 0.0
    %3455 = vmatpush2.msra.mxu0 0.0
    %3456 = vmatprep.subr.mxu0 0.0
    %3457 = vmatpush2.msra.mxu0 0.0
    %3458 = vmatprep.subr.mxu0 0.0
    %3459 = vmatpush2.msra.mxu0 0.0
    %3460 = vmatprep.subr.mxu0 0.0
    %3461 = vmatpush2.msra.mxu0 0.0
    %3462 = vmatprep.subr.mxu0 0.0
    %3463 = vmatpush2.msra.mxu0 0.0
    %3464 = vmatprep.subr.mxu0 0.0
    %3465 = vmatpush2.msra.mxu0 0.0
    %3466 = vmatprep.subr.mxu0 0.0
    %3467 = vmatpush2.msra.mxu0 0.0
    %3468 = vmatprep.subr.mxu0 0.0
    %3469 = vmatpush2.msra.mxu0 0.0
    %3470 = vmatprep.subr.mxu0 0.0
    %3471 = vmatpush2.msra.mxu0 0.0
    %3472 = vmatprep.subr.mxu0 0.0
    %3473 = vmatpush2.msra.mxu0 0.0
    %3474 = vmatprep.mubr.f32.mxu0 0.0
    %3475 = vmatmul.mubr.f32.gmra.mxu0 %v3408
    %v3476 = vpop.f32.mrf.mxu0
    %v3477 = vadd.f32 %v272, %v3476
    %v3478 = vpop.f32.mrf.mxu0
    %3479 = vdwg.mxu0
    %3480 = vmatprep.subr.mxu0 0.0
    %3481 = vmatpush1.msra.mxu0 0.0
    %3482 = vmatprep.subr.mxu0 0.0
    %3483 = vmatpush1.msra.mxu0 0.0
    %3484 = vmatprep.subr.mxu0 0.0
    %3485 = vmatpush1.msra.mxu0 0.0
    %3486 = vmatprep.subr.mxu0 0.0
    %3487 = vmatpush1.msra.mxu0 0.0
    %3488 = vmatprep.subr.mxu0 0.0
    %3489 = vmatpush1.msra.mxu0 0.0
    %3490 = vmatprep.subr.mxu0 0.0
    %3491 = vmatpush1.msra.mxu0 0.0
    %3492 = vmatprep.subr.mxu0 0.0
    %3493 = vmatpush1.msra.mxu0 0.0
    %3494 = vmatprep.subr.mxu0 0.0
    %3495 = vmatpush1.msra.mxu0 0.0
    %3496 = vmatprep.subr.mxu0 0.0
    %3497 = vmatpush1.msra.mxu0 0.0
    %3498 = vmatprep.subr.mxu0 0.0
    %3499 = vmatpush1.msra.mxu0 0.0
    %3500 = vmatprep.subr.mxu0 0.0
    %3501 = vmatpush1.msra.mxu0 0.0
    %3502 = vmatprep.subr.mxu0 0.0
    %3503 = vmatpush1.msra.mxu0 0.0
    %3504 = vmatprep.subr.mxu0 0.0
    %3505 = vmatpush1.msra.mxu0 %v243
    %3506 = vmatprep.subr.mxu0 0.0
    %3507 = vmatpush1.msra.mxu0 %v242
    %3508 = vmatprep.subr.mxu0 0.0
    %3509 = vmatpush1.msra.mxu0 %v241
    %3510 = vmatprep.subr.mxu0 0.0
    %3511 = vmatpush1.msra.mxu0 %v240
    %3512 = vmatprep.subr.mxu0 0.0
    %3513 = vmatpush2.msra.mxu0 0.0
    %3514 = vmatprep.subr.mxu0 0.0
    %3515 = vmatpush2.msra.mxu0 0.0
    %3516 = vmatprep.subr.mxu0 0.0
    %3517 = vmatpush2.msra.mxu0 0.0
    %3518 = vmatprep.subr.mxu0 0.0
    %3519 = vmatpush2.msra.mxu0 0.0
    %3520 = vmatprep.subr.mxu0 0.0
    %3521 = vmatpush2.msra.mxu0 0.0
    %3522 = vmatprep.subr.mxu0 0.0
    %3523 = vmatpush2.msra.mxu0 0.0
    %3524 = vmatprep.subr.mxu0 0.0
    %3525 = vmatpush2.msra.mxu0 0.0
    %3526 = vmatprep.subr.mxu0 0.0
    %3527 = vmatpush2.msra.mxu0 0.0
    %3528 = vmatprep.subr.mxu0 0.0
    %3529 = vmatpush2.msra.mxu0 0.0
    %3530 = vmatprep.subr.mxu0 0.0
    %3531 = vmatpush2.msra.mxu0 0.0
    %3532 = vmatprep.subr.mxu0 0.0
    %3533 = vmatpush2.msra.mxu0 0.0
    %3534 = vmatprep.subr.mxu0 0.0
    %3535 = vmatpush2.msra.mxu0 0.0
    %3536 = vmatprep.subr.mxu0 0.0
    %3537 = vmatpush2.msra.mxu0 0.0
    %3538 = vmatprep.subr.mxu0 0.0
    %3539 = vmatpush2.msra.mxu0 0.0
    %3540 = vmatprep.subr.mxu0 0.0
    %3541 = vmatpush2.msra.mxu0 0.0
    %3542 = vmatprep.subr.mxu0 0.0
    %3543 = vmatpush2.msra.mxu0 0.0
    %3544 = vmatprep.mubr.f32.mxu0 0.0
    %3545 = vmatmul.mubr.f32.gmra.mxu0 %v3164
    %v3546 = vpop.f32.mrf.mxu0
    %v3547 = vadd.f32 0.0, %v3546
    %v3548 = vpop.f32.mrf.mxu0
    %3549 = vdwg.mxu0
    %v3550 = vadd.f32 %v3477, %v3547
    %v3551 = vxor.u32 %v3550, 2147483648
    %v3552 = vmul.f32 %v3551, 1.442695
    %v3553 = vpow.pop %v3552
    %v3554 = vadd.f32 %v3553, 1.0
    %v3555 = vrcp.pop %v3554
    %v3556 = vmul.f32 1.0, %v3555
    %v3557 = vmul.f32 %v3556, 2.0
    %v3558 = vsub.f32 %v3557, 1.0
    %v3559 = vmul.f32 %v3556, %v3149
    %3561 = vrot.lane.b32.xlu0 %v3558, 64
    %v3562 = vpop.permute.xlu0 %3561
    %v3564 = vmul.f32 %v3556, %v3562
    %3566 = vrot.lane.b32.xlu0 %v3564, 32
    %v3567 = vpop.permute.xlu0 %3566
    %v3569 = vadd.f32 %v3559, %v3567
    %v3570 = vtanh.pop %v3569
    %3572 = vrot.lane.b32.xlu0 %v3570, 64
    %v3573 = vpop.permute.xlu0 %3572
    %v3575 = vmul.f32 %v3556, %v3573
    %s3576 = scalar_lea.vmem [#allocation7], 224
    %v3577 = vld [vmem:[%s3576] sm:$0xff]
    %v3578 = vld [vmem:[%s3576 + $0x8] sm:$0xff]
    %v3579 = vld [vmem:[%s3576 + $0x10] sm:$0xff]
    %v3580 = vld [vmem:[%s3576 + $0x18] sm:$0xff]
    %3582 = vrot.lane.b32.xlu0 %v3575, 32
    %v3583 = vpop.permute.xlu0 %3582
    %v3584 = vsel %vm366, %v3583, 0
    %3586 = vmatprep.subr.mxu0 0.0
    %3587 = vmatpush1.msra.mxu0 0.0
    %3588 = vmatprep.subr.mxu0 0.0
    %3589 = vmatpush1.msra.mxu0 0.0
    %3590 = vmatprep.subr.mxu0 0.0
    %3591 = vmatpush1.msra.mxu0 0.0
    %3592 = vmatprep.subr.mxu0 0.0
    %3593 = vmatpush1.msra.mxu0 0.0
    %3594 = vmatprep.subr.mxu0 0.0
    %3595 = vmatpush1.msra.mxu0 0.0
    %3596 = vmatprep.subr.mxu0 0.0
    %3597 = vmatpush1.msra.mxu0 0.0
    %3598 = vmatprep.subr.mxu0 0.0
    %3599 = vmatpush1.msra.mxu0 0.0
    %3600 = vmatprep.subr.mxu0 0.0
    %3601 = vmatpush1.msra.mxu0 0.0
    %3602 = vmatprep.subr.mxu0 0.0
    %3603 = vmatpush1.msra.mxu0 0.0
    %3604 = vmatprep.subr.mxu0 0.0
    %3605 = vmatpush1.msra.mxu0 0.0
    %3606 = vmatprep.subr.mxu0 0.0
    %3607 = vmatpush1.msra.mxu0 0.0
    %3608 = vmatprep.subr.mxu0 0.0
    %3609 = vmatpush1.msra.mxu0 0.0
    %3610 = vmatprep.subr.mxu0 0.0
    %3611 = vmatpush1.msra.mxu0 %v3580
    %3612 = vmatprep.subr.mxu0 0.0
    %3613 = vmatpush1.msra.mxu0 %v3579
    %3614 = vmatprep.subr.mxu0 0.0
    %3615 = vmatpush1.msra.mxu0 %v3578
    %3616 = vmatprep.subr.mxu0 0.0
    %3617 = vmatpush1.msra.mxu0 %v3577
    %3618 = vmatprep.subr.mxu0 0.0
    %3619 = vmatpush2.msra.mxu0 0.0
    %3620 = vmatprep.subr.mxu0 0.0
    %3621 = vmatpush2.msra.mxu0 0.0
    %3622 = vmatprep.subr.mxu0 0.0
    %3623 = vmatpush2.msra.mxu0 0.0
    %3624 = vmatprep.subr.mxu0 0.0
    %3625 = vmatpush2.msra.mxu0 0.0
    %3626 = vmatprep.subr.mxu0 0.0
    %3627 = vmatpush2.msra.mxu0 0.0
    %3628 = vmatprep.subr.mxu0 0.0
    %3629 = vmatpush2.msra.mxu0 0.0
    %3630 = vmatprep.subr.mxu0 0.0
    %3631 = vmatpush2.msra.mxu0 0.0
    %3632 = vmatprep.subr.mxu0 0.0
    %3633 = vmatpush2.msra.mxu0 0.0
    %3634 = vmatprep.subr.mxu0 0.0
    %3635 = vmatpush2.msra.mxu0 0.0
    %3636 = vmatprep.subr.mxu0 0.0
    %3637 = vmatpush2.msra.mxu0 0.0
    %3638 = vmatprep.subr.mxu0 0.0
    %3639 = vmatpush2.msra.mxu0 0.0
    %3640 = vmatprep.subr.mxu0 0.0
    %3641 = vmatpush2.msra.mxu0 0.0
    %3642 = vmatprep.subr.mxu0 0.0
    %3643 = vmatpush2.msra.mxu0 0.0
    %3644 = vmatprep.subr.mxu0 0.0
    %3645 = vmatpush2.msra.mxu0 0.0
    %3646 = vmatprep.subr.mxu0 0.0
    %3647 = vmatpush2.msra.mxu0 0.0
    %3648 = vmatprep.subr.mxu0 0.0
    %3649 = vmatpush2.msra.mxu0 0.0
    %3650 = vmatprep.mubr.f32.mxu0 0.0
    %3651 = vmatmul.mubr.f32.gmra.mxu0 %v3584
    %v3652 = vpop.f32.mrf.mxu0
    %v3653 = vadd.f32 0.0, %v3652
    %v3654 = vpop.f32.mrf.mxu0
    %3655 = vdwg.mxu0
    %v3656 = vadd.f32 %v3236, %v3653
    %v3657 = vld [vmem:[%s1] sm:$0x3]
    %v3658 = vmul.f32 %v3656, 0.5
    %v3659 = vmul.f32 %v3658, 1.442695
    %v3660 = vpow.pop %v3659
    %3662 = vrot.lane.b32.xlu0 %v3660, 112
    %v3663 = vpop.permute.xlu0 %3662
    %v3665 = vmul.f32 %v3657, %v3663
    %v3666 = vadd.f32 %v3656, %v3665
    %3668 = vrot.lane.b32.xlu0 %v3666, 32
    %v3669 = vpop.permute.xlu0 %3668
    %v3671 = vsel %vm366, %v3656, %v3669
    %vm3672 = vcmask 392192
    %v3673 = vsel %vm3672, %v3671, 0.0
    %3674 = vst [vmem:[%s19] sm:$0x3] %v3673
    %v3675 = vld [vmem:[#allocation9] sm:$0xff]
    %v3676 = vld [vmem:[#allocation9 + $0x8] sm:$0xff]
    %v3677 = vld [vmem:[#allocation12] sm:$0x1]
    %v3679 = vlaneseq
    %v3680 = vshrl.u32 %v3679, 7
    %v3681 = vsub.s32 0, %v3680
    %v3682 = vrot.slane %v3677, %v3681
    %vm3684 = vcmask 130048
    %v3685 = vsel %vm3684, %v3666, 0
    %3687 = vmatprep.subr.mxu0 0.0
    %3688 = vmatpush1.msra.mxu0 0.0
    %3689 = vmatprep.subr.mxu0 0.0
    %3690 = vmatpush1.msra.mxu0 0.0
    %3691 = vmatprep.subr.mxu0 0.0
    %3692 = vmatpush1.msra.mxu0 0.0
    %3693 = vmatprep.subr.mxu0 0.0
    %3694 = vmatpush1.msra.mxu0 0.0
    %3695 = vmatprep.subr.mxu0 0.0
    %3696 = vmatpush1.msra.mxu0 0.0
    %3697 = vmatprep.subr.mxu0 0.0
    %3698 = vmatpush1.msra.mxu0 0.0
    %3699 = vmatprep.subr.mxu0 0.0
    %3700 = vmatpush1.msra.mxu0 0.0
    %3701 = vmatprep.subr.mxu0 0.0
    %3702 = vmatpush1.msra.mxu0 0.0
    %3703 = vmatprep.subr.mxu0 0.0
    %3704 = vmatpush1.msra.mxu0 0.0
    %3705 = vmatprep.subr.mxu0 0.0
    %3706 = vmatpush1.msra.mxu0 0.0
    %3707 = vmatprep.subr.mxu0 0.0
    %3708 = vmatpush1.msra.mxu0 0.0
    %3709 = vmatprep.subr.mxu0 0.0
    %3710 = vmatpush1.msra.mxu0 0.0
    %3711 = vmatprep.subr.mxu0 0.0
    %3712 = vmatpush1.msra.mxu0 0.0
    %3713 = vmatprep.subr.mxu0 0.0
    %3714 = vmatpush1.msra.mxu0 0.0
    %3715 = vmatprep.subr.mxu0 0.0
    %3716 = vmatpush1.msra.mxu0 %v3676
    %3717 = vmatprep.subr.mxu0 0.0
    %3718 = vmatpush1.msra.mxu0 %v3675
    %3719 = vmatprep.subr.mxu0 0.0
    %3720 = vmatpush2.msra.mxu0 0.0
    %3721 = vmatprep.subr.mxu0 0.0
    %3722 = vmatpush2.msra.mxu0 0.0
    %3723 = vmatprep.subr.mxu0 0.0
    %3724 = vmatpush2.msra.mxu0 0.0
    %3725 = vmatprep.subr.mxu0 0.0
    %3726 = vmatpush2.msra.mxu0 0.0
    %3727 = vmatprep.subr.mxu0 0.0
    %3728 = vmatpush2.msra.mxu0 0.0
    %3729 = vmatprep.subr.mxu0 0.0
    %3730 = vmatpush2.msra.mxu0 0.0
    %3731 = vmatprep.subr.mxu0 0.0
    %3732 = vmatpush2.msra.mxu0 0.0
    %3733 = vmatprep.subr.mxu0 0.0
    %3734 = vmatpush2.msra.mxu0 0.0
    %3735 = vmatprep.subr.mxu0 0.0
    %3736 = vmatpush2.msra.mxu0 0.0
    %3737 = vmatprep.subr.mxu0 0.0
    %3738 = vmatpush2.msra.mxu0 0.0
    %3739 = vmatprep.subr.mxu0 0.0
    %3740 = vmatpush2.msra.mxu0 0.0
    %3741 = vmatprep.subr.mxu0 0.0
    %3742 = vmatpush2.msra.mxu0 0.0
    %3743 = vmatprep.subr.mxu0 0.0
    %3744 = vmatpush2.msra.mxu0 0.0
    %3745 = vmatprep.subr.mxu0 0.0
    %3746 = vmatpush2.msra.mxu0 0.0
    %3747 = vmatprep.subr.mxu0 0.0
    %3748 = vmatpush2.msra.mxu0 0.0
    %3749 = vmatprep.subr.mxu0 0.0
    %3750 = vmatpush2.msra.mxu0 0.0
    %3751 = vmatprep.mubr.f32.mxu0 0.0
    %3752 = vmatmul.mubr.f32.gmra.mxu0 %v3685
    %v3753 = vpop.f32.mrf.mxu0
    %v3754 = vadd.f32 %v3682, %v3753
    %v3755 = vpop.f32.mrf.mxu0
    %3756 = vdwg.mxu0
    %3757 = vmatprep.subr.mxu0 0.0
    %3758 = vmatpush1.msra.mxu0 0.0
    %3759 = vmatprep.subr.mxu0 0.0
    %3760 = vmatpush1.msra.mxu0 0.0
    %3761 = vmatprep.subr.mxu0 0.0
    %3762 = vmatpush1.msra.mxu0 0.0
    %3763 = vmatprep.subr.mxu0 0.0
    %3764 = vmatpush1.msra.mxu0 0.0
    %3765 = vmatprep.subr.mxu0 0.0
    %3766 = vmatpush1.msra.mxu0 0.0
    %3767 = vmatprep.subr.mxu0 0.0
    %3768 = vmatpush1.msra.mxu0 0.0
    %3769 = vmatprep.subr.mxu0 0.0
    %3770 = vmatpush1.msra.mxu0 0.0
    %3771 = vmatprep.subr.mxu0 0.0
    %3772 = vmatpush1.msra.mxu0 0.0
    %3773 = vmatprep.subr.mxu0 0.0
    %3774 = vmatpush1.msra.mxu0 0.0
    %3775 = vmatprep.subr.mxu0 0.0
    %3776 = vmatpush1.msra.mxu0 0.0
    %3777 = vmatprep.subr.mxu0 0.0
    %3778 = vmatpush1.msra.mxu0 0.0
    %3779 = vmatprep.subr.mxu0 0.0
    %3780 = vmatpush1.msra.mxu0 0.0
    %3781 = vmatprep.subr.mxu0 0.0
    %3782 = vmatpush1.msra.mxu0 %v247
    %3783 = vmatprep.subr.mxu0 0.0
    %3784 = vmatpush1.msra.mxu0 %v246
    %3785 = vmatprep.subr.mxu0 0.0
    %3786 = vmatpush1.msra.mxu0 %v245
    %3787 = vmatprep.subr.mxu0 0.0
    %3788 = vmatpush1.msra.mxu0 %v244
    %3789 = vmatprep.subr.mxu0 0.0
    %3790 = vmatpush2.msra.mxu0 0.0
    %3791 = vmatprep.subr.mxu0 0.0
    %3792 = vmatpush2.msra.mxu0 0.0
    %3793 = vmatprep.subr.mxu0 0.0
    %3794 = vmatpush2.msra.mxu0 0.0
    %3795 = vmatprep.subr.mxu0 0.0
    %3796 = vmatpush2.msra.mxu0 0.0
    %3797 = vmatprep.subr.mxu0 0.0
    %3798 = vmatpush2.msra.mxu0 0.0
    %3799 = vmatprep.subr.mxu0 0.0
    %3800 = vmatpush2.msra.mxu0 0.0
    %3801 = vmatprep.subr.mxu0 0.0
    %3802 = vmatpush2.msra.mxu0 0.0
    %3803 = vmatprep.subr.mxu0 0.0
    %3804 = vmatpush2.msra.mxu0 0.0
    %3805 = vmatprep.subr.mxu0 0.0
    %3806 = vmatpush2.msra.mxu0 0.0
    %3807 = vmatprep.subr.mxu0 0.0
    %3808 = vmatpush2.msra.mxu0 0.0
    %3809 = vmatprep.subr.mxu0 0.0
    %3810 = vmatpush2.msra.mxu0 0.0
    %3811 = vmatprep.subr.mxu0 0.0
    %3812 = vmatpush2.msra.mxu0 0.0
    %3813 = vmatprep.subr.mxu0 0.0
    %3814 = vmatpush2.msra.mxu0 0.0
    %3815 = vmatprep.subr.mxu0 0.0
    %3816 = vmatpush2.msra.mxu0 0.0
    %3817 = vmatprep.subr.mxu0 0.0
    %3818 = vmatpush2.msra.mxu0 0.0
    %3819 = vmatprep.subr.mxu0 0.0
    %3820 = vmatpush2.msra.mxu0 0.0
    %3821 = vmatprep.mubr.f32.mxu0 0.0
    %3822 = vmatmul.mubr.f32.gmra.mxu0 %v368
    %v3823 = vpop.f32.mrf.mxu0
    %v3824 = vadd.f32 0.0, %v3823
    %v3825 = vpop.f32.mrf.mxu0
    %3826 = vdwg.mxu0
    %v3827 = vadd.f32 %v3754, %v3824
    %v3828 = vxor.u32 %v3827, 2147483648
    %v3829 = vmul.f32 %v3828, 1.442695
    %v3830 = vpow.pop %v3829
    %v3831 = vadd.f32 %v3830, 1.0
    %v3832 = vrcp.pop %v3831
    %v3833 = vmul.f32 1.0, %v3832
    %v3834 = vmul.f32 %v3833, 2.0
    %v3835 = vsub.f32 %v3834, 1.0
    %v3836 = vmul.f32 %v3833, 0.0
    %3838 = vrot.lane.b32.xlu0 %v3835, 64
    %v3839 = vpop.permute.xlu0 %3838
    %v3841 = vmul.f32 %v3833, %v3839
    %3843 = vrot.lane.b32.xlu0 %v3841, 32
    %v3844 = vpop.permute.xlu0 %3843
    %v3846 = vadd.f32 %v3836, %v3844
    %v3847 = vtanh.pop %v3846
    %3849 = vrot.lane.b32.xlu0 %v3847, 64
    %v3850 = vpop.permute.xlu0 %3849
    %v3852 = vmul.f32 %v3833, %v3850
    %3854 = vrot.lane.b32.xlu0 %v3852, 32
    %v3855 = vpop.permute.xlu0 %3854
    %v3856 = vsel %vm366, %v3855, 0
    %3858 = vmatprep.subr.mxu0 0.0
    %3859 = vmatpush1.msra.mxu0 0.0
    %3860 = vmatprep.subr.mxu0 0.0
    %3861 = vmatpush1.msra.mxu0 0.0
    %3862 = vmatprep.subr.mxu0 0.0
    %3863 = vmatpush1.msra.mxu0 0.0
    %3864 = vmatprep.subr.mxu0 0.0
    %3865 = vmatpush1.msra.mxu0 0.0
    %3866 = vmatprep.subr.mxu0 0.0
    %3867 = vmatpush1.msra.mxu0 0.0
    %3868 = vmatprep.subr.mxu0 0.0
    %3869 = vmatpush1.msra.mxu0 0.0
    %3870 = vmatprep.subr.mxu0 0.0
    %3871 = vmatpush1.msra.mxu0 0.0
    %3872 = vmatprep.subr.mxu0 0.0
    %3873 = vmatpush1.msra.mxu0 0.0
    %3874 = vmatprep.subr.mxu0 0.0
    %3875 = vmatpush1.msra.mxu0 0.0
    %3876 = vmatprep.subr.mxu0 0.0
    %3877 = vmatpush1.msra.mxu0 0.0
    %3878 = vmatprep.subr.mxu0 0.0
    %3879 = vmatpush1.msra.mxu0 0.0
    %3880 = vmatprep.subr.mxu0 0.0
    %3881 = vmatpush1.msra.mxu0 0.0
    %3882 = vmatprep.subr.mxu0 0.0
    %3883 = vmatpush1.msra.mxu0 %v251
    %3884 = vmatprep.subr.mxu0 0.0
    %3885 = vmatpush1.msra.mxu0 %v250
    %3886 = vmatprep.subr.mxu0 0.0
    %3887 = vmatpush1.msra.mxu0 %v249
    %3888 = vmatprep.subr.mxu0 0.0
    %3889 = vmatpush1.msra.mxu0 %v248
    %3890 = vmatprep.subr.mxu0 0.0
    %3891 = vmatpush2.msra.mxu0 0.0
    %3892 = vmatprep.subr.mxu0 0.0
    %3893 = vmatpush2.msra.mxu0 0.0
    %3894 = vmatprep.subr.mxu0 0.0
    %3895 = vmatpush2.msra.mxu0 0.0
    %3896 = vmatprep.subr.mxu0 0.0
    %3897 = vmatpush2.msra.mxu0 0.0
    %3898 = vmatprep.subr.mxu0 0.0
    %3899 = vmatpush2.msra.mxu0 0.0
    %3900 = vmatprep.subr.mxu0 0.0
    %3901 = vmatpush2.msra.mxu0 0.0
    %3902 = vmatprep.subr.mxu0 0.0
    %3903 = vmatpush2.msra.mxu0 0.0
    %3904 = vmatprep.subr.mxu0 0.0
    %3905 = vmatpush2.msra.mxu0 0.0
    %3906 = vmatprep.subr.mxu0 0.0
    %3907 = vmatpush2.msra.mxu0 0.0
    %3908 = vmatprep.subr.mxu0 0.0
    %3909 = vmatpush2.msra.mxu0 0.0
    %3910 = vmatprep.subr.mxu0 0.0
    %3911 = vmatpush2.msra.mxu0 0.0
    %3912 = vmatprep.subr.mxu0 0.0
    %3913 = vmatpush2.msra.mxu0 0.0
    %3914 = vmatprep.subr.mxu0 0.0
    %3915 = vmatpush2.msra.mxu0 0.0
    %3916 = vmatprep.subr.mxu0 0.0
    %3917 = vmatpush2.msra.mxu0 0.0
    %3918 = vmatprep.subr.mxu0 0.0
    %3919 = vmatpush2.msra.mxu0 0.0
    %3920 = vmatprep.subr.mxu0 0.0
    %3921 = vmatpush2.msra.mxu0 0.0
    %3922 = vmatprep.mubr.f32.mxu0 0.0
    %3923 = vmatmul.mubr.f32.gmra.mxu0 %v3856
    %v3924 = vpop.f32.mrf.mxu0
    %v3925 = vadd.f32 %v279, %v3924
    %v3926 = vpop.f32.mrf.mxu0
    %3927 = vdwg.mxu0
    %3928 = vmatprep.subr.mxu0 0.0
    %3929 = vmatpush1.msra.mxu0 0.0
    %3930 = vmatprep.subr.mxu0 0.0
    %3931 = vmatpush1.msra.mxu0 0.0
    %3932 = vmatprep.subr.mxu0 0.0
    %3933 = vmatpush1.msra.mxu0 0.0
    %3934 = vmatprep.subr.mxu0 0.0
    %3935 = vmatpush1.msra.mxu0 0.0
    %3936 = vmatprep.subr.mxu0 0.0
    %3937 = vmatpush1.msra.mxu0 0.0
    %3938 = vmatprep.subr.mxu0 0.0
    %3939 = vmatpush1.msra.mxu0 0.0
    %3940 = vmatprep.subr.mxu0 0.0
    %3941 = vmatpush1.msra.mxu0 0.0
    %3942 = vmatprep.subr.mxu0 0.0
    %3943 = vmatpush1.msra.mxu0 0.0
    %3944 = vmatprep.subr.mxu0 0.0
    %3945 = vmatpush1.msra.mxu0 0.0
    %3946 = vmatprep.subr.mxu0 0.0
    %3947 = vmatpush1.msra.mxu0 0.0
    %3948 = vmatprep.subr.mxu0 0.0
    %3949 = vmatpush1.msra.mxu0 0.0
    %3950 = vmatprep.subr.mxu0 0.0
    %3951 = vmatpush1.msra.mxu0 0.0
    %3952 = vmatprep.subr.mxu0 0.0
    %3953 = vmatpush1.msra.mxu0 %v255
    %3954 = vmatprep.subr.mxu0 0.0
    %3955 = vmatpush1.msra.mxu0 %v254
    %3956 = vmatprep.subr.mxu0 0.0
    %3957 = vmatpush1.msra.mxu0 %v253
    %3958 = vmatprep.subr.mxu0 0.0
    %3959 = vmatpush1.msra.mxu0 %v252
    %3960 = vmatprep.subr.mxu0 0.0
    %3961 = vmatpush2.msra.mxu0 0.0
    %3962 = vmatprep.subr.mxu0 0.0
    %3963 = vmatpush2.msra.mxu0 0.0
    %3964 = vmatprep.subr.mxu0 0.0
    %3965 = vmatpush2.msra.mxu0 0.0
    %3966 = vmatprep.subr.mxu0 0.0
    %3967 = vmatpush2.msra.mxu0 0.0
    %3968 = vmatprep.subr.mxu0 0.0
    %3969 = vmatpush2.msra.mxu0 0.0
    %3970 = vmatprep.subr.mxu0 0.0
    %3971 = vmatpush2.msra.mxu0 0.0
    %3972 = vmatprep.subr.mxu0 0.0
    %3973 = vmatpush2.msra.mxu0 0.0
    %3974 = vmatprep.subr.mxu0 0.0
    %3975 = vmatpush2.msra.mxu0 0.0
    %3976 = vmatprep.subr.mxu0 0.0
    %3977 = vmatpush2.msra.mxu0 0.0
    %3978 = vmatprep.subr.mxu0 0.0
    %3979 = vmatpush2.msra.mxu0 0.0
    %3980 = vmatprep.subr.mxu0 0.0
    %3981 = vmatpush2.msra.mxu0 0.0
    %3982 = vmatprep.subr.mxu0 0.0
    %3983 = vmatpush2.msra.mxu0 0.0
    %3984 = vmatprep.subr.mxu0 0.0
    %3985 = vmatpush2.msra.mxu0 0.0
    %3986 = vmatprep.subr.mxu0 0.0
    %3987 = vmatpush2.msra.mxu0 0.0
    %3988 = vmatprep.subr.mxu0 0.0
    %3989 = vmatpush2.msra.mxu0 0.0
    %3990 = vmatprep.subr.mxu0 0.0
    %3991 = vmatpush2.msra.mxu0 0.0
    %3992 = vmatprep.mubr.f32.mxu0 0.0
    %3993 = vmatmul.mubr.f32.gmra.mxu0 %v368
    %v3994 = vpop.f32.mrf.mxu0
    %v3995 = vadd.f32 0.0, %v3994
    %v3996 = vpop.f32.mrf.mxu0
    %3997 = vdwg.mxu0
    %v3998 = vadd.f32 %v3925, %v3995
    %v3999 = vxor.u32 %v3998, 2147483648
    %v4000 = vmul.f32 %v3999, 1.442695
    %v4001 = vpow.pop %v4000
    %v4002 = vadd.f32 %v4001, 1.0
    %v4003 = vrcp.pop %v4002
    %v4004 = vmul.f32 1.0, %v4003
    %v4005 = vmul.f32 %v4004, 2.0
    %v4006 = vsub.f32 %v4005, 1.0
    %v4007 = vmul.f32 %v4004, 0.0
    %4009 = vrot.lane.b32.xlu0 %v4006, 64
    %v4010 = vpop.permute.xlu0 %4009
    %v4012 = vmul.f32 %v4004, %v4010
    %4014 = vrot.lane.b32.xlu0 %v4012, 32
    %v4015 = vpop.permute.xlu0 %4014
    %v4017 = vadd.f32 %v4007, %v4015
    %v4018 = vtanh.pop %v4017
    %4020 = vrot.lane.b32.xlu0 %v4018, 64
    %v4021 = vpop.permute.xlu0 %4020
    %v4023 = vmul.f32 %v4004, %v4021
    %4025 = vrot.lane.b32.xlu0 %v4023, 32
    %v4026 = vpop.permute.xlu0 %4025
    %v4027 = vsel %vm366, %v4026, 0
    %4029 = vmatprep.subr.mxu0 0.0
    %4030 = vmatpush1.msra.mxu0 0.0
    %4031 = vmatprep.subr.mxu0 0.0
    %4032 = vmatpush1.msra.mxu0 0.0
    %4033 = vmatprep.subr.mxu0 0.0
    %4034 = vmatpush1.msra.mxu0 0.0
    %4035 = vmatprep.subr.mxu0 0.0
    %4036 = vmatpush1.msra.mxu0 0.0
    %4037 = vmatprep.subr.mxu0 0.0
    %4038 = vmatpush1.msra.mxu0 0.0
    %4039 = vmatprep.subr.mxu0 0.0
    %4040 = vmatpush1.msra.mxu0 0.0
    %4041 = vmatprep.subr.mxu0 0.0
    %4042 = vmatpush1.msra.mxu0 0.0
    %4043 = vmatprep.subr.mxu0 0.0
    %4044 = vmatpush1.msra.mxu0 0.0
    %4045 = vmatprep.subr.mxu0 0.0
    %4046 = vmatpush1.msra.mxu0 0.0
    %4047 = vmatprep.subr.mxu0 0.0
    %4048 = vmatpush1.msra.mxu0 0.0
    %4049 = vmatprep.subr.mxu0 0.0
    %4050 = vmatpush1.msra.mxu0 0.0
    %4051 = vmatprep.subr.mxu0 0.0
    %4052 = vmatpush1.msra.mxu0 0.0
    %4053 = vmatprep.subr.mxu0 0.0
    %4054 = vmatpush1.msra.mxu0 %v259
    %4055 = vmatprep.subr.mxu0 0.0
    %4056 = vmatpush1.msra.mxu0 %v258
    %4057 = vmatprep.subr.mxu0 0.0
    %4058 = vmatpush1.msra.mxu0 %v257
    %4059 = vmatprep.subr.mxu0 0.0
    %4060 = vmatpush1.msra.mxu0 %v256
    %4061 = vmatprep.subr.mxu0 0.0
    %4062 = vmatpush2.msra.mxu0 0.0
    %4063 = vmatprep.subr.mxu0 0.0
    %4064 = vmatpush2.msra.mxu0 0.0
    %4065 = vmatprep.subr.mxu0 0.0
    %4066 = vmatpush2.msra.mxu0 0.0
    %4067 = vmatprep.subr.mxu0 0.0
    %4068 = vmatpush2.msra.mxu0 0.0
    %4069 = vmatprep.subr.mxu0 0.0
    %4070 = vmatpush2.msra.mxu0 0.0
    %4071 = vmatprep.subr.mxu0 0.0
    %4072 = vmatpush2.msra.mxu0 0.0
    %4073 = vmatprep.subr.mxu0 0.0
    %4074 = vmatpush2.msra.mxu0 0.0
    %4075 = vmatprep.subr.mxu0 0.0
    %4076 = vmatpush2.msra.mxu0 0.0
    %4077 = vmatprep.subr.mxu0 0.0
    %4078 = vmatpush2.msra.mxu0 0.0
    %4079 = vmatprep.subr.mxu0 0.0
    %4080 = vmatpush2.msra.mxu0 0.0
    %4081 = vmatprep.subr.mxu0 0.0
    %4082 = vmatpush2.msra.mxu0 0.0
    %4083 = vmatprep.subr.mxu0 0.0
    %4084 = vmatpush2.msra.mxu0 0.0
    %4085 = vmatprep.subr.mxu0 0.0
    %4086 = vmatpush2.msra.mxu0 0.0
    %4087 = vmatprep.subr.mxu0 0.0
    %4088 = vmatpush2.msra.mxu0 0.0
    %4089 = vmatprep.subr.mxu0 0.0
    %4090 = vmatpush2.msra.mxu0 0.0
    %4091 = vmatprep.subr.mxu0 0.0
    %4092 = vmatpush2.msra.mxu0 0.0
    %4093 = vmatprep.mubr.f32.mxu0 0.0
    %4094 = vmatmul.mubr.f32.gmra.mxu0 %v4027
    %v4095 = vpop.f32.mrf.mxu0
    %v4096 = vadd.f32 %v286, %v4095
    %v4097 = vpop.f32.mrf.mxu0
    %4098 = vdwg.mxu0
    %v4099 = vxor.u32 %v4096, 2147483648
    %v4100 = vmul.f32 %v4099, 1.442695
    %v4101 = vpow.pop %v4100
    %v4102 = vadd.f32 %v4101, 1.0
    %v4103 = vrcp.pop %v4102
    %v4104 = vmul.f32 1.0, %v4103
    %4105 = vst [vmem:[%s18] sm:$0x3] %v4104
    %4106 = vmatprep.subr.mxu0 0.0
    %4107 = vmatpush1.msra.mxu0 0.0
    %4108 = vmatprep.subr.mxu0 0.0
    %4109 = vmatpush1.msra.mxu0 0.0
    %4110 = vmatprep.subr.mxu0 0.0
    %4111 = vmatpush1.msra.mxu0 0.0
    %4112 = vmatprep.subr.mxu0 0.0
    %4113 = vmatpush1.msra.mxu0 0.0
    %4114 = vmatprep.subr.mxu0 0.0
    %4115 = vmatpush1.msra.mxu0 0.0
    %4116 = vmatprep.subr.mxu0 0.0
    %4117 = vmatpush1.msra.mxu0 0.0
    %4118 = vmatprep.subr.mxu0 0.0
    %4119 = vmatpush1.msra.mxu0 0.0
    %4120 = vmatprep.subr.mxu0 0.0
    %4121 = vmatpush1.msra.mxu0 0.0
    %4122 = vmatprep.subr.mxu0 0.0
    %4123 = vmatpush1.msra.mxu0 0.0
    %4124 = vmatprep.subr.mxu0 0.0
    %4125 = vmatpush1.msra.mxu0 0.0
    %4126 = vmatprep.subr.mxu0 0.0
    %4127 = vmatpush1.msra.mxu0 0.0
    %4128 = vmatprep.subr.mxu0 0.0
    %4129 = vmatpush1.msra.mxu0 0.0
    %4130 = vmatprep.subr.mxu0 0.0
    %4131 = vmatpush1.msra.mxu0 %v247
    %4132 = vmatprep.subr.mxu0 0.0
    %4133 = vmatpush1.msra.mxu0 %v246
    %4134 = vmatprep.subr.mxu0 0.0
    %4135 = vmatpush1.msra.mxu0 %v245
    %4136 = vmatprep.subr.mxu0 0.0
    %4137 = vmatpush1.msra.mxu0 %v244
    %4138 = vmatprep.subr.mxu0 0.0
    %4139 = vmatpush2.msra.mxu0 0.0
    %4140 = vmatprep.subr.mxu0 0.0
    %4141 = vmatpush2.msra.mxu0 0.0
    %4142 = vmatprep.subr.mxu0 0.0
    %4143 = vmatpush2.msra.mxu0 0.0
    %4144 = vmatprep.subr.mxu0 0.0
    %4145 = vmatpush2.msra.mxu0 0.0
    %4146 = vmatprep.subr.mxu0 0.0
    %4147 = vmatpush2.msra.mxu0 0.0
    %4148 = vmatprep.subr.mxu0 0.0
    %4149 = vmatpush2.msra.mxu0 0.0
    %4150 = vmatprep.subr.mxu0 0.0
    %4151 = vmatpush2.msra.mxu0 0.0
    %4152 = vmatprep.subr.mxu0 0.0
    %4153 = vmatpush2.msra.mxu0 0.0
    %4154 = vmatprep.subr.mxu0 0.0
    %4155 = vmatpush2.msra.mxu0 0.0
    %4156 = vmatprep.subr.mxu0 0.0
    %4157 = vmatpush2.msra.mxu0 0.0
    %4158 = vmatprep.subr.mxu0 0.0
    %4159 = vmatpush2.msra.mxu0 0.0
    %4160 = vmatprep.subr.mxu0 0.0
    %4161 = vmatpush2.msra.mxu0 0.0
    %4162 = vmatprep.subr.mxu0 0.0
    %4163 = vmatpush2.msra.mxu0 0.0
    %4164 = vmatprep.subr.mxu0 0.0
    %4165 = vmatpush2.msra.mxu0 0.0
    %4166 = vmatprep.subr.mxu0 0.0
    %4167 = vmatpush2.msra.mxu0 0.0
    %4168 = vmatprep.subr.mxu0 0.0
    %4169 = vmatpush2.msra.mxu0 0.0
    %4170 = vmatprep.mubr.f32.mxu0 0.0
    %4171 = vmatmul.mubr.f32.gmra.mxu0 %v3856
    %v4172 = vpop.f32.mrf.mxu0
    %v4173 = vadd.f32 0.0, %v4172
    %v4174 = vpop.f32.mrf.mxu0
    %4175 = vdwg.mxu0
    %v4176 = vadd.f32 %v3754, %v4173
    %v4177 = vxor.u32 %v4176, 2147483648
    %v4178 = vmul.f32 %v4177, 1.442695
    %v4179 = vpow.pop %v4178
    %v4180 = vadd.f32 %v4179, 1.0
    %v4181 = vrcp.pop %v4180
    %v4182 = vmul.f32 1.0, %v4181
    %v4183 = vmul.f32 %v4182, 2.0
    %v4184 = vsub.f32 %v4183, 1.0
    %v4185 = vmul.f32 %v4182, %v3846
    %4187 = vrot.lane.b32.xlu0 %v4184, 64
    %v4188 = vpop.permute.xlu0 %4187
    %v4190 = vmul.f32 %v4182, %v4188
    %4192 = vrot.lane.b32.xlu0 %v4190, 32
    %v4193 = vpop.permute.xlu0 %4192
    %v4195 = vadd.f32 %v4185, %v4193
    %v4196 = vtanh.pop %v4195
    %4198 = vrot.lane.b32.xlu0 %v4196, 64
    %v4199 = vpop.permute.xlu0 %4198
    %v4201 = vmul.f32 %v4182, %v4199
    %4203 = vrot.lane.b32.xlu0 %v4201, 32
    %v4204 = vpop.permute.xlu0 %4203
    %v4205 = vsel %vm366, %v4204, 0
    %4207 = vmatprep.subr.mxu0 0.0
    %4208 = vmatpush1.msra.mxu0 0.0
    %4209 = vmatprep.subr.mxu0 0.0
    %4210 = vmatpush1.msra.mxu0 0.0
    %4211 = vmatprep.subr.mxu0 0.0
    %4212 = vmatpush1.msra.mxu0 0.0
    %4213 = vmatprep.subr.mxu0 0.0
    %4214 = vmatpush1.msra.mxu0 0.0
    %4215 = vmatprep.subr.mxu0 0.0
    %4216 = vmatpush1.msra.mxu0 0.0
    %4217 = vmatprep.subr.mxu0 0.0
    %4218 = vmatpush1.msra.mxu0 0.0
    %4219 = vmatprep.subr.mxu0 0.0
    %4220 = vmatpush1.msra.mxu0 0.0
    %4221 = vmatprep.subr.mxu0 0.0
    %4222 = vmatpush1.msra.mxu0 0.0
    %4223 = vmatprep.subr.mxu0 0.0
    %4224 = vmatpush1.msra.mxu0 0.0
    %4225 = vmatprep.subr.mxu0 0.0
    %4226 = vmatpush1.msra.mxu0 0.0
    %4227 = vmatprep.subr.mxu0 0.0
    %4228 = vmatpush1.msra.mxu0 0.0
    %4229 = vmatprep.subr.mxu0 0.0
    %4230 = vmatpush1.msra.mxu0 0.0
    %4231 = vmatprep.subr.mxu0 0.0
    %4232 = vmatpush1.msra.mxu0 %v251
    %4233 = vmatprep.subr.mxu0 0.0
    %4234 = vmatpush1.msra.mxu0 %v250
    %4235 = vmatprep.subr.mxu0 0.0
    %4236 = vmatpush1.msra.mxu0 %v249
    %4237 = vmatprep.subr.mxu0 0.0
    %4238 = vmatpush1.msra.mxu0 %v248
    %4239 = vmatprep.subr.mxu0 0.0
    %4240 = vmatpush2.msra.mxu0 0.0
    %4241 = vmatprep.subr.mxu0 0.0
    %4242 = vmatpush2.msra.mxu0 0.0
    %4243 = vmatprep.subr.mxu0 0.0
    %4244 = vmatpush2.msra.mxu0 0.0
    %4245 = vmatprep.subr.mxu0 0.0
    %4246 = vmatpush2.msra.mxu0 0.0
    %4247 = vmatprep.subr.mxu0 0.0
    %4248 = vmatpush2.msra.mxu0 0.0
    %4249 = vmatprep.subr.mxu0 0.0
    %4250 = vmatpush2.msra.mxu0 0.0
    %4251 = vmatprep.subr.mxu0 0.0
    %4252 = vmatpush2.msra.mxu0 0.0
    %4253 = vmatprep.subr.mxu0 0.0
    %4254 = vmatpush2.msra.mxu0 0.0
    %4255 = vmatprep.subr.mxu0 0.0
    %4256 = vmatpush2.msra.mxu0 0.0
    %4257 = vmatprep.subr.mxu0 0.0
    %4258 = vmatpush2.msra.mxu0 0.0
    %4259 = vmatprep.subr.mxu0 0.0
    %4260 = vmatpush2.msra.mxu0 0.0
    %4261 = vmatprep.subr.mxu0 0.0
    %4262 = vmatpush2.msra.mxu0 0.0
    %4263 = vmatprep.subr.mxu0 0.0
    %4264 = vmatpush2.msra.mxu0 0.0
    %4265 = vmatprep.subr.mxu0 0.0
    %4266 = vmatpush2.msra.mxu0 0.0
    %4267 = vmatprep.subr.mxu0 0.0
    %4268 = vmatpush2.msra.mxu0 0.0
    %4269 = vmatprep.subr.mxu0 0.0
    %4270 = vmatpush2.msra.mxu0 0.0
    %4271 = vmatprep.mubr.f32.mxu0 0.0
    %4272 = vmatmul.mubr.f32.gmra.mxu0 %v4205
    %v4273 = vpop.f32.mrf.mxu0
    %v4274 = vadd.f32 %v279, %v4273
    %v4275 = vpop.f32.mrf.mxu0
    %4276 = vdwg.mxu0
    %4277 = vmatprep.subr.mxu0 0.0
    %4278 = vmatpush1.msra.mxu0 0.0
    %4279 = vmatprep.subr.mxu0 0.0
    %4280 = vmatpush1.msra.mxu0 0.0
    %4281 = vmatprep.subr.mxu0 0.0
    %4282 = vmatpush1.msra.mxu0 0.0
    %4283 = vmatprep.subr.mxu0 0.0
    %4284 = vmatpush1.msra.mxu0 0.0
    %4285 = vmatprep.subr.mxu0 0.0
    %4286 = vmatpush1.msra.mxu0 0.0
    %4287 = vmatprep.subr.mxu0 0.0
    %4288 = vmatpush1.msra.mxu0 0.0
    %4289 = vmatprep.subr.mxu0 0.0
    %4290 = vmatpush1.msra.mxu0 0.0
    %4291 = vmatprep.subr.mxu0 0.0
    %4292 = vmatpush1.msra.mxu0 0.0
    %4293 = vmatprep.subr.mxu0 0.0
    %4294 = vmatpush1.msra.mxu0 0.0
    %4295 = vmatprep.subr.mxu0 0.0
    %4296 = vmatpush1.msra.mxu0 0.0
    %4297 = vmatprep.subr.mxu0 0.0
    %4298 = vmatpush1.msra.mxu0 0.0
    %4299 = vmatprep.subr.mxu0 0.0
    %4300 = vmatpush1.msra.mxu0 0.0
    %4301 = vmatprep.subr.mxu0 0.0
    %4302 = vmatpush1.msra.mxu0 %v255
    %4303 = vmatprep.subr.mxu0 0.0
    %4304 = vmatpush1.msra.mxu0 %v254
    %4305 = vmatprep.subr.mxu0 0.0
    %4306 = vmatpush1.msra.mxu0 %v253
    %4307 = vmatprep.subr.mxu0 0.0
    %4308 = vmatpush1.msra.mxu0 %v252
    %4309 = vmatprep.subr.mxu0 0.0
    %4310 = vmatpush2.msra.mxu0 0.0
    %4311 = vmatprep.subr.mxu0 0.0
    %4312 = vmatpush2.msra.mxu0 0.0
    %4313 = vmatprep.subr.mxu0 0.0
    %4314 = vmatpush2.msra.mxu0 0.0
    %4315 = vmatprep.subr.mxu0 0.0
    %4316 = vmatpush2.msra.mxu0 0.0
    %4317 = vmatprep.subr.mxu0 0.0
    %4318 = vmatpush2.msra.mxu0 0.0
    %4319 = vmatprep.subr.mxu0 0.0
    %4320 = vmatpush2.msra.mxu0 0.0
    %4321 = vmatprep.subr.mxu0 0.0
    %4322 = vmatpush2.msra.mxu0 0.0
    %4323 = vmatprep.subr.mxu0 0.0
    %4324 = vmatpush2.msra.mxu0 0.0
    %4325 = vmatprep.subr.mxu0 0.0
    %4326 = vmatpush2.msra.mxu0 0.0
    %4327 = vmatprep.subr.mxu0 0.0
    %4328 = vmatpush2.msra.mxu0 0.0
    %4329 = vmatprep.subr.mxu0 0.0
    %4330 = vmatpush2.msra.mxu0 0.0
    %4331 = vmatprep.subr.mxu0 0.0
    %4332 = vmatpush2.msra.mxu0 0.0
    %4333 = vmatprep.subr.mxu0 0.0
    %4334 = vmatpush2.msra.mxu0 0.0
    %4335 = vmatprep.subr.mxu0 0.0
    %4336 = vmatpush2.msra.mxu0 0.0
    %4337 = vmatprep.subr.mxu0 0.0
    %4338 = vmatpush2.msra.mxu0 0.0
    %4339 = vmatprep.subr.mxu0 0.0
    %4340 = vmatpush2.msra.mxu0 0.0
    %4341 = vmatprep.mubr.f32.mxu0 0.0
    %4342 = vmatmul.mubr.f32.gmra.mxu0 %v4027
    %v4343 = vpop.f32.mrf.mxu0
    %v4344 = vadd.f32 0.0, %v4343
    %v4345 = vpop.f32.mrf.mxu0
    %4346 = vdwg.mxu0
    %v4347 = vadd.f32 %v4274, %v4344
    %v4348 = vxor.u32 %v4347, 2147483648
    %v4349 = vmul.f32 %v4348, 1.442695
    %v4350 = vpow.pop %v4349
    %v4351 = vadd.f32 %v4350, 1.0
    %v4352 = vrcp.pop %v4351
    %v4353 = vmul.f32 1.0, %v4352
    %v4354 = vmul.f32 %v4353, 2.0
    %v4355 = vsub.f32 %v4354, 1.0
    %v4356 = vmul.f32 %v4353, %v4017
    %4358 = vrot.lane.b32.xlu0 %v4355, 64
    %v4359 = vpop.permute.xlu0 %4358
    %v4361 = vmul.f32 %v4353, %v4359
    %4363 = vrot.lane.b32.xlu0 %v4361, 32
    %v4364 = vpop.permute.xlu0 %4363
    %v4366 = vadd.f32 %v4356, %v4364
    %v4367 = vtanh.pop %v4366
    %4369 = vrot.lane.b32.xlu0 %v4367, 64
    %v4370 = vpop.permute.xlu0 %4369
    %v4372 = vmul.f32 %v4353, %v4370
    %4374 = vrot.lane.b32.xlu0 %v4372, 32
    %v4375 = vpop.permute.xlu0 %4374
    %v4376 = vsel %vm366, %v4375, 0
    %4378 = vmatprep.subr.mxu0 0.0
    %4379 = vmatpush1.msra.mxu0 0.0
    %4380 = vmatprep.subr.mxu0 0.0
    %4381 = vmatpush1.msra.mxu0 0.0
    %4382 = vmatprep.subr.mxu0 0.0
    %4383 = vmatpush1.msra.mxu0 0.0
    %4384 = vmatprep.subr.mxu0 0.0
    %4385 = vmatpush1.msra.mxu0 0.0
    %4386 = vmatprep.subr.mxu0 0.0
    %4387 = vmatpush1.msra.mxu0 0.0
    %4388 = vmatprep.subr.mxu0 0.0
    %4389 = vmatpush1.msra.mxu0 0.0
    %4390 = vmatprep.subr.mxu0 0.0
    %4391 = vmatpush1.msra.mxu0 0.0
    %4392 = vmatprep.subr.mxu0 0.0
    %4393 = vmatpush1.msra.mxu0 0.0
    %4394 = vmatprep.subr.mxu0 0.0
    %4395 = vmatpush1.msra.mxu0 0.0
    %4396 = vmatprep.subr.mxu0 0.0
    %4397 = vmatpush1.msra.mxu0 0.0
    %4398 = vmatprep.subr.mxu0 0.0
    %4399 = vmatpush1.msra.mxu0 0.0
    %4400 = vmatprep.subr.mxu0 0.0
    %4401 = vmatpush1.msra.mxu0 0.0
    %4402 = vmatprep.subr.mxu0 0.0
    %4403 = vmatpush1.msra.mxu0 %v259
    %4404 = vmatprep.subr.mxu0 0.0
    %4405 = vmatpush1.msra.mxu0 %v258
    %4406 = vmatprep.subr.mxu0 0.0
    %4407 = vmatpush1.msra.mxu0 %v257
    %4408 = vmatprep.subr.mxu0 0.0
    %4409 = vmatpush1.msra.mxu0 %v256
    %4410 = vmatprep.subr.mxu0 0.0
    %4411 = vmatpush2.msra.mxu0 0.0
    %4412 = vmatprep.subr.mxu0 0.0
    %4413 = vmatpush2.msra.mxu0 0.0
    %4414 = vmatprep.subr.mxu0 0.0
    %4415 = vmatpush2.msra.mxu0 0.0
    %4416 = vmatprep.subr.mxu0 0.0
    %4417 = vmatpush2.msra.mxu0 0.0
    %4418 = vmatprep.subr.mxu0 0.0
    %4419 = vmatpush2.msra.mxu0 0.0
    %4420 = vmatprep.subr.mxu0 0.0
    %4421 = vmatpush2.msra.mxu0 0.0
    %4422 = vmatprep.subr.mxu0 0.0
    %4423 = vmatpush2.msra.mxu0 0.0
    %4424 = vmatprep.subr.mxu0 0.0
    %4425 = vmatpush2.msra.mxu0 0.0
    %4426 = vmatprep.subr.mxu0 0.0
    %4427 = vmatpush2.msra.mxu0 0.0
    %4428 = vmatprep.subr.mxu0 0.0
    %4429 = vmatpush2.msra.mxu0 0.0
    %4430 = vmatprep.subr.mxu0 0.0
    %4431 = vmatpush2.msra.mxu0 0.0
    %4432 = vmatprep.subr.mxu0 0.0
    %4433 = vmatpush2.msra.mxu0 0.0
    %4434 = vmatprep.subr.mxu0 0.0
    %4435 = vmatpush2.msra.mxu0 0.0
    %4436 = vmatprep.subr.mxu0 0.0
    %4437 = vmatpush2.msra.mxu0 0.0
    %4438 = vmatprep.subr.mxu0 0.0
    %4439 = vmatpush2.msra.mxu0 0.0
    %4440 = vmatprep.subr.mxu0 0.0
    %4441 = vmatpush2.msra.mxu0 0.0
    %4442 = vmatprep.mubr.f32.mxu0 0.0
    %4443 = vmatmul.mubr.f32.gmra.mxu0 %v4376
    %v4444 = vpop.f32.mrf.mxu0
    %v4445 = vadd.f32 %v286, %v4444
    %v4446 = vpop.f32.mrf.mxu0
    %4447 = vdwg.mxu0
    %v4448 = vxor.u32 %v4445, 2147483648
    %v4449 = vmul.f32 %v4448, 1.442695
    %v4450 = vpow.pop %v4449
    %v4451 = vadd.f32 %v4450, 1.0
    %v4452 = vrcp.pop %v4451
    %v4453 = vmul.f32 1.0, %v4452
    %s4454 = scalar_lea.vmem %s18, 2
    %4455 = vst [vmem:[%s4454] sm:$0x3] %v4453
    %4456 = vmatprep.subr.mxu0 0.0
    %4457 = vmatpush1.msra.mxu0 0.0
    %4458 = vmatprep.subr.mxu0 0.0
    %4459 = vmatpush1.msra.mxu0 0.0
    %4460 = vmatprep.subr.mxu0 0.0
    %4461 = vmatpush1.msra.mxu0 0.0
    %4462 = vmatprep.subr.mxu0 0.0
    %4463 = vmatpush1.msra.mxu0 0.0
    %4464 = vmatprep.subr.mxu0 0.0
    %4465 = vmatpush1.msra.mxu0 0.0
    %4466 = vmatprep.subr.mxu0 0.0
    %4467 = vmatpush1.msra.mxu0 0.0
    %4468 = vmatprep.subr.mxu0 0.0
    %4469 = vmatpush1.msra.mxu0 0.0
    %4470 = vmatprep.subr.mxu0 0.0
    %4471 = vmatpush1.msra.mxu0 0.0
    %4472 = vmatprep.subr.mxu0 0.0
    %4473 = vmatpush1.msra.mxu0 0.0
    %4474 = vmatprep.subr.mxu0 0.0
    %4475 = vmatpush1.msra.mxu0 0.0
    %4476 = vmatprep.subr.mxu0 0.0
    %4477 = vmatpush1.msra.mxu0 0.0
    %4478 = vmatprep.subr.mxu0 0.0
    %4479 = vmatpush1.msra.mxu0 0.0
    %4480 = vmatprep.subr.mxu0 0.0
    %4481 = vmatpush1.msra.mxu0 %v247
    %4482 = vmatprep.subr.mxu0 0.0
    %4483 = vmatpush1.msra.mxu0 %v246
    %4484 = vmatprep.subr.mxu0 0.0
    %4485 = vmatpush1.msra.mxu0 %v245
    %4486 = vmatprep.subr.mxu0 0.0
    %4487 = vmatpush1.msra.mxu0 %v244
    %4488 = vmatprep.subr.mxu0 0.0
    %4489 = vmatpush2.msra.mxu0 0.0
    %4490 = vmatprep.subr.mxu0 0.0
    %4491 = vmatpush2.msra.mxu0 0.0
    %4492 = vmatprep.subr.mxu0 0.0
    %4493 = vmatpush2.msra.mxu0 0.0
    %4494 = vmatprep.subr.mxu0 0.0
    %4495 = vmatpush2.msra.mxu0 0.0
    %4496 = vmatprep.subr.mxu0 0.0
    %4497 = vmatpush2.msra.mxu0 0.0
    %4498 = vmatprep.subr.mxu0 0.0
    %4499 = vmatpush2.msra.mxu0 0.0
    %4500 = vmatprep.subr.mxu0 0.0
    %4501 = vmatpush2.msra.mxu0 0.0
    %4502 = vmatprep.subr.mxu0 0.0
    %4503 = vmatpush2.msra.mxu0 0.0
    %4504 = vmatprep.subr.mxu0 0.0
    %4505 = vmatpush2.msra.mxu0 0.0
    %4506 = vmatprep.subr.mxu0 0.0
    %4507 = vmatpush2.msra.mxu0 0.0
    %4508 = vmatprep.subr.mxu0 0.0
    %4509 = vmatpush2.msra.mxu0 0.0
    %4510 = vmatprep.subr.mxu0 0.0
    %4511 = vmatpush2.msra.mxu0 0.0
    %4512 = vmatprep.subr.mxu0 0.0
    %4513 = vmatpush2.msra.mxu0 0.0
    %4514 = vmatprep.subr.mxu0 0.0
    %4515 = vmatpush2.msra.mxu0 0.0
    %4516 = vmatprep.subr.mxu0 0.0
    %4517 = vmatpush2.msra.mxu0 0.0
    %4518 = vmatprep.subr.mxu0 0.0
    %4519 = vmatpush2.msra.mxu0 0.0
    %4520 = vmatprep.mubr.f32.mxu0 0.0
    %4521 = vmatmul.mubr.f32.gmra.mxu0 %v4205
    %v4522 = vpop.f32.mrf.mxu0
    %v4523 = vadd.f32 0.0, %v4522
    %v4524 = vpop.f32.mrf.mxu0
    %4525 = vdwg.mxu0
    %v4526 = vadd.f32 %v3754, %v4523
    %v4527 = vxor.u32 %v4526, 2147483648
    %v4528 = vmul.f32 %v4527, 1.442695
    %v4529 = vpow.pop %v4528
    %v4530 = vadd.f32 %v4529, 1.0
    %v4531 = vrcp.pop %v4530
    %v4532 = vmul.f32 1.0, %v4531
    %v4533 = vmul.f32 %v4532, 2.0
    %v4534 = vsub.f32 %v4533, 1.0
    %v4535 = vmul.f32 %v4532, %v4195
    %4537 = vrot.lane.b32.xlu0 %v4534, 64
    %v4538 = vpop.permute.xlu0 %4537
    %v4540 = vmul.f32 %v4532, %v4538
    %4542 = vrot.lane.b32.xlu0 %v4540, 32
    %v4543 = vpop.permute.xlu0 %4542
    %v4545 = vadd.f32 %v4535, %v4543
    %v4546 = vtanh.pop %v4545
    %4548 = vrot.lane.b32.xlu0 %v4546, 64
    %v4549 = vpop.permute.xlu0 %4548
    %v4551 = vmul.f32 %v4532, %v4549
    %4553 = vrot.lane.b32.xlu0 %v4551, 32
    %v4554 = vpop.permute.xlu0 %4553
    %v4555 = vsel %vm366, %v4554, 0
    %4557 = vmatprep.subr.mxu0 0.0
    %4558 = vmatpush1.msra.mxu0 0.0
    %4559 = vmatprep.subr.mxu0 0.0
    %4560 = vmatpush1.msra.mxu0 0.0
    %4561 = vmatprep.subr.mxu0 0.0
    %4562 = vmatpush1.msra.mxu0 0.0
    %4563 = vmatprep.subr.mxu0 0.0
    %4564 = vmatpush1.msra.mxu0 0.0
    %4565 = vmatprep.subr.mxu0 0.0
    %4566 = vmatpush1.msra.mxu0 0.0
    %4567 = vmatprep.subr.mxu0 0.0
    %4568 = vmatpush1.msra.mxu0 0.0
    %4569 = vmatprep.subr.mxu0 0.0
    %4570 = vmatpush1.msra.mxu0 0.0
    %4571 = vmatprep.subr.mxu0 0.0
    %4572 = vmatpush1.msra.mxu0 0.0
    %4573 = vmatprep.subr.mxu0 0.0
    %4574 = vmatpush1.msra.mxu0 0.0
    %4575 = vmatprep.subr.mxu0 0.0
    %4576 = vmatpush1.msra.mxu0 0.0
    %4577 = vmatprep.subr.mxu0 0.0
    %4578 = vmatpush1.msra.mxu0 0.0
    %4579 = vmatprep.subr.mxu0 0.0
    %4580 = vmatpush1.msra.mxu0 0.0
    %4581 = vmatprep.subr.mxu0 0.0
    %4582 = vmatpush1.msra.mxu0 %v251
    %4583 = vmatprep.subr.mxu0 0.0
    %4584 = vmatpush1.msra.mxu0 %v250
    %4585 = vmatprep.subr.mxu0 0.0
    %4586 = vmatpush1.msra.mxu0 %v249
    %4587 = vmatprep.subr.mxu0 0.0
    %4588 = vmatpush1.msra.mxu0 %v248
    %4589 = vmatprep.subr.mxu0 0.0
    %4590 = vmatpush2.msra.mxu0 0.0
    %4591 = vmatprep.subr.mxu0 0.0
    %4592 = vmatpush2.msra.mxu0 0.0
    %4593 = vmatprep.subr.mxu0 0.0
    %4594 = vmatpush2.msra.mxu0 0.0
    %4595 = vmatprep.subr.mxu0 0.0
    %4596 = vmatpush2.msra.mxu0 0.0
    %4597 = vmatprep.subr.mxu0 0.0
    %4598 = vmatpush2.msra.mxu0 0.0
    %4599 = vmatprep.subr.mxu0 0.0
    %4600 = vmatpush2.msra.mxu0 0.0
    %4601 = vmatprep.subr.mxu0 0.0
    %4602 = vmatpush2.msra.mxu0 0.0
    %4603 = vmatprep.subr.mxu0 0.0
    %4604 = vmatpush2.msra.mxu0 0.0
    %4605 = vmatprep.subr.mxu0 0.0
    %4606 = vmatpush2.msra.mxu0 0.0
    %4607 = vmatprep.subr.mxu0 0.0
    %4608 = vmatpush2.msra.mxu0 0.0
    %4609 = vmatprep.subr.mxu0 0.0
    %4610 = vmatpush2.msra.mxu0 0.0
    %4611 = vmatprep.subr.mxu0 0.0
    %4612 = vmatpush2.msra.mxu0 0.0
    %4613 = vmatprep.subr.mxu0 0.0
    %4614 = vmatpush2.msra.mxu0 0.0
    %4615 = vmatprep.subr.mxu0 0.0
    %4616 = vmatpush2.msra.mxu0 0.0
    %4617 = vmatprep.subr.mxu0 0.0
    %4618 = vmatpush2.msra.mxu0 0.0
    %4619 = vmatprep.subr.mxu0 0.0
    %4620 = vmatpush2.msra.mxu0 0.0
    %4621 = vmatprep.mubr.f32.mxu0 0.0
    %4622 = vmatmul.mubr.f32.gmra.mxu0 %v4555
    %v4623 = vpop.f32.mrf.mxu0
    %v4624 = vadd.f32 %v279, %v4623
    %v4625 = vpop.f32.mrf.mxu0
    %4626 = vdwg.mxu0
    %4627 = vmatprep.subr.mxu0 0.0
    %4628 = vmatpush1.msra.mxu0 0.0
    %4629 = vmatprep.subr.mxu0 0.0
    %4630 = vmatpush1.msra.mxu0 0.0
    %4631 = vmatprep.subr.mxu0 0.0
    %4632 = vmatpush1.msra.mxu0 0.0
    %4633 = vmatprep.subr.mxu0 0.0
    %4634 = vmatpush1.msra.mxu0 0.0
    %4635 = vmatprep.subr.mxu0 0.0
    %4636 = vmatpush1.msra.mxu0 0.0
    %4637 = vmatprep.subr.mxu0 0.0
    %4638 = vmatpush1.msra.mxu0 0.0
    %4639 = vmatprep.subr.mxu0 0.0
    %4640 = vmatpush1.msra.mxu0 0.0
    %4641 = vmatprep.subr.mxu0 0.0
    %4642 = vmatpush1.msra.mxu0 0.0
    %4643 = vmatprep.subr.mxu0 0.0
    %4644 = vmatpush1.msra.mxu0 0.0
    %4645 = vmatprep.subr.mxu0 0.0
    %4646 = vmatpush1.msra.mxu0 0.0
    %4647 = vmatprep.subr.mxu0 0.0
    %4648 = vmatpush1.msra.mxu0 0.0
    %4649 = vmatprep.subr.mxu0 0.0
    %4650 = vmatpush1.msra.mxu0 0.0
    %4651 = vmatprep.subr.mxu0 0.0
    %4652 = vmatpush1.msra.mxu0 %v255
    %4653 = vmatprep.subr.mxu0 0.0
    %4654 = vmatpush1.msra.mxu0 %v254
    %4655 = vmatprep.subr.mxu0 0.0
    %4656 = vmatpush1.msra.mxu0 %v253
    %4657 = vmatprep.subr.mxu0 0.0
    %4658 = vmatpush1.msra.mxu0 %v252
    %4659 = vmatprep.subr.mxu0 0.0
    %4660 = vmatpush2.msra.mxu0 0.0
    %4661 = vmatprep.subr.mxu0 0.0
    %4662 = vmatpush2.msra.mxu0 0.0
    %4663 = vmatprep.subr.mxu0 0.0
    %4664 = vmatpush2.msra.mxu0 0.0
    %4665 = vmatprep.subr.mxu0 0.0
    %4666 = vmatpush2.msra.mxu0 0.0
    %4667 = vmatprep.subr.mxu0 0.0
    %4668 = vmatpush2.msra.mxu0 0.0
    %4669 = vmatprep.subr.mxu0 0.0
    %4670 = vmatpush2.msra.mxu0 0.0
    %4671 = vmatprep.subr.mxu0 0.0
    %4672 = vmatpush2.msra.mxu0 0.0
    %4673 = vmatprep.subr.mxu0 0.0
    %4674 = vmatpush2.msra.mxu0 0.0
    %4675 = vmatprep.subr.mxu0 0.0
    %4676 = vmatpush2.msra.mxu0 0.0
    %4677 = vmatprep.subr.mxu0 0.0
    %4678 = vmatpush2.msra.mxu0 0.0
    %4679 = vmatprep.subr.mxu0 0.0
    %4680 = vmatpush2.msra.mxu0 0.0
    %4681 = vmatprep.subr.mxu0 0.0
    %4682 = vmatpush2.msra.mxu0 0.0
    %4683 = vmatprep.subr.mxu0 0.0
    %4684 = vmatpush2.msra.mxu0 0.0
    %4685 = vmatprep.subr.mxu0 0.0
    %4686 = vmatpush2.msra.mxu0 0.0
    %4687 = vmatprep.subr.mxu0 0.0
    %4688 = vmatpush2.msra.mxu0 0.0
    %4689 = vmatprep.subr.mxu0 0.0
    %4690 = vmatpush2.msra.mxu0 0.0
    %4691 = vmatprep.mubr.f32.mxu0 0.0
    %4692 = vmatmul.mubr.f32.gmra.mxu0 %v4376
    %v4693 = vpop.f32.mrf.mxu0
    %v4694 = vadd.f32 0.0, %v4693
    %v4695 = vpop.f32.mrf.mxu0
    %4696 = vdwg.mxu0
    %v4697 = vadd.f32 %v4624, %v4694
    %v4698 = vxor.u32 %v4697, 2147483648
    %v4699 = vmul.f32 %v4698, 1.442695
    %v4700 = vpow.pop %v4699
    %v4701 = vadd.f32 %v4700, 1.0
    %v4702 = vrcp.pop %v4701
    %v4703 = vmul.f32 1.0, %v4702
    %v4704 = vmul.f32 %v4703, 2.0
    %v4705 = vsub.f32 %v4704, 1.0
    %v4706 = vmul.f32 %v4703, %v4366
    %4708 = vrot.lane.b32.xlu0 %v4705, 64
    %v4709 = vpop.permute.xlu0 %4708
    %v4711 = vmul.f32 %v4703, %v4709
    %4713 = vrot.lane.b32.xlu0 %v4711, 32
    %v4714 = vpop.permute.xlu0 %4713
    %v4716 = vadd.f32 %v4706, %v4714
    %v4717 = vtanh.pop %v4716
    %4719 = vrot.lane.b32.xlu0 %v4717, 64
    %v4720 = vpop.permute.xlu0 %4719
    %v4722 = vmul.f32 %v4703, %v4720
    %4724 = vrot.lane.b32.xlu0 %v4722, 32
    %v4725 = vpop.permute.xlu0 %4724
    %v4726 = vsel %vm366, %v4725, 0
    %4728 = vmatprep.subr.mxu0 0.0
    %4729 = vmatpush1.msra.mxu0 0.0
    %4730 = vmatprep.subr.mxu0 0.0
    %4731 = vmatpush1.msra.mxu0 0.0
    %4732 = vmatprep.subr.mxu0 0.0
    %4733 = vmatpush1.msra.mxu0 0.0
    %4734 = vmatprep.subr.mxu0 0.0
    %4735 = vmatpush1.msra.mxu0 0.0
    %4736 = vmatprep.subr.mxu0 0.0
    %4737 = vmatpush1.msra.mxu0 0.0
    %4738 = vmatprep.subr.mxu0 0.0
    %4739 = vmatpush1.msra.mxu0 0.0
    %4740 = vmatprep.subr.mxu0 0.0
    %4741 = vmatpush1.msra.mxu0 0.0
    %4742 = vmatprep.subr.mxu0 0.0
    %4743 = vmatpush1.msra.mxu0 0.0
    %4744 = vmatprep.subr.mxu0 0.0
    %4745 = vmatpush1.msra.mxu0 0.0
    %4746 = vmatprep.subr.mxu0 0.0
    %4747 = vmatpush1.msra.mxu0 0.0
    %4748 = vmatprep.subr.mxu0 0.0
    %4749 = vmatpush1.msra.mxu0 0.0
    %4750 = vmatprep.subr.mxu0 0.0
    %4751 = vmatpush1.msra.mxu0 0.0
    %4752 = vmatprep.subr.mxu0 0.0
    %4753 = vmatpush1.msra.mxu0 %v259
    %4754 = vmatprep.subr.mxu0 0.0
    %4755 = vmatpush1.msra.mxu0 %v258
    %4756 = vmatprep.subr.mxu0 0.0
    %4757 = vmatpush1.msra.mxu0 %v257
    %4758 = vmatprep.subr.mxu0 0.0
    %4759 = vmatpush1.msra.mxu0 %v256
    %4760 = vmatprep.subr.mxu0 0.0
    %4761 = vmatpush2.msra.mxu0 0.0
    %4762 = vmatprep.subr.mxu0 0.0
    %4763 = vmatpush2.msra.mxu0 0.0
    %4764 = vmatprep.subr.mxu0 0.0
    %4765 = vmatpush2.msra.mxu0 0.0
    %4766 = vmatprep.subr.mxu0 0.0
    %4767 = vmatpush2.msra.mxu0 0.0
    %4768 = vmatprep.subr.mxu0 0.0
    %4769 = vmatpush2.msra.mxu0 0.0
    %4770 = vmatprep.subr.mxu0 0.0
    %4771 = vmatpush2.msra.mxu0 0.0
    %4772 = vmatprep.subr.mxu0 0.0
    %4773 = vmatpush2.msra.mxu0 0.0
    %4774 = vmatprep.subr.mxu0 0.0
    %4775 = vmatpush2.msra.mxu0 0.0
    %4776 = vmatprep.subr.mxu0 0.0
    %4777 = vmatpush2.msra.mxu0 0.0
    %4778 = vmatprep.subr.mxu0 0.0
    %4779 = vmatpush2.msra.mxu0 0.0
    %4780 = vmatprep.subr.mxu0 0.0
    %4781 = vmatpush2.msra.mxu0 0.0
    %4782 = vmatprep.subr.mxu0 0.0
    %4783 = vmatpush2.msra.mxu0 0.0
    %4784 = vmatprep.subr.mxu0 0.0
    %4785 = vmatpush2.msra.mxu0 0.0
    %4786 = vmatprep.subr.mxu0 0.0
    %4787 = vmatpush2.msra.mxu0 0.0
    %4788 = vmatprep.subr.mxu0 0.0
    %4789 = vmatpush2.msra.mxu0 0.0
    %4790 = vmatprep.subr.mxu0 0.0
    %4791 = vmatpush2.msra.mxu0 0.0
    %4792 = vmatprep.mubr.f32.mxu0 0.0
    %4793 = vmatmul.mubr.f32.gmra.mxu0 %v4726
    %v4794 = vpop.f32.mrf.mxu0
    %v4795 = vadd.f32 %v286, %v4794
    %v4796 = vpop.f32.mrf.mxu0
    %4797 = vdwg.mxu0
    %v4798 = vxor.u32 %v4795, 2147483648
    %v4799 = vmul.f32 %v4798, 1.442695
    %v4800 = vpow.pop %v4799
    %v4801 = vadd.f32 %v4800, 1.0
    %v4802 = vrcp.pop %v4801
    %v4803 = vmul.f32 1.0, %v4802
    %s4804 = scalar_lea.vmem %s18, 4
    %4805 = vst [vmem:[%s4804] sm:$0x3] %v4803
    %4806 = vmatprep.subr.mxu0 0.0
    %4807 = vmatpush1.msra.mxu0 0.0
    %4808 = vmatprep.subr.mxu0 0.0
    %4809 = vmatpush1.msra.mxu0 0.0
    %4810 = vmatprep.subr.mxu0 0.0
    %4811 = vmatpush1.msra.mxu0 0.0
    %4812 = vmatprep.subr.mxu0 0.0
    %4813 = vmatpush1.msra.mxu0 0.0
    %4814 = vmatprep.subr.mxu0 0.0
    %4815 = vmatpush1.msra.mxu0 0.0
    %4816 = vmatprep.subr.mxu0 0.0
    %4817 = vmatpush1.msra.mxu0 0.0
    %4818 = vmatprep.subr.mxu0 0.0
    %4819 = vmatpush1.msra.mxu0 0.0
    %4820 = vmatprep.subr.mxu0 0.0
    %4821 = vmatpush1.msra.mxu0 0.0
    %4822 = vmatprep.subr.mxu0 0.0
    %4823 = vmatpush1.msra.mxu0 0.0
    %4824 = vmatprep.subr.mxu0 0.0
    %4825 = vmatpush1.msra.mxu0 0.0
    %4826 = vmatprep.subr.mxu0 0.0
    %4827 = vmatpush1.msra.mxu0 0.0
    %4828 = vmatprep.subr.mxu0 0.0
    %4829 = vmatpush1.msra.mxu0 0.0
    %4830 = vmatprep.subr.mxu0 0.0
    %4831 = vmatpush1.msra.mxu0 %v247
    %4832 = vmatprep.subr.mxu0 0.0
    %4833 = vmatpush1.msra.mxu0 %v246
    %4834 = vmatprep.subr.mxu0 0.0
    %4835 = vmatpush1.msra.mxu0 %v245
    %4836 = vmatprep.subr.mxu0 0.0
    %4837 = vmatpush1.msra.mxu0 %v244
    %4838 = vmatprep.subr.mxu0 0.0
    %4839 = vmatpush2.msra.mxu0 0.0
    %4840 = vmatprep.subr.mxu0 0.0
    %4841 = vmatpush2.msra.mxu0 0.0
    %4842 = vmatprep.subr.mxu0 0.0
    %4843 = vmatpush2.msra.mxu0 0.0
    %4844 = vmatprep.subr.mxu0 0.0
    %4845 = vmatpush2.msra.mxu0 0.0
    %4846 = vmatprep.subr.mxu0 0.0
    %4847 = vmatpush2.msra.mxu0 0.0
    %4848 = vmatprep.subr.mxu0 0.0
    %4849 = vmatpush2.msra.mxu0 0.0
    %4850 = vmatprep.subr.mxu0 0.0
    %4851 = vmatpush2.msra.mxu0 0.0
    %4852 = vmatprep.subr.mxu0 0.0
    %4853 = vmatpush2.msra.mxu0 0.0
    %4854 = vmatprep.subr.mxu0 0.0
    %4855 = vmatpush2.msra.mxu0 0.0
    %4856 = vmatprep.subr.mxu0 0.0
    %4857 = vmatpush2.msra.mxu0 0.0
    %4858 = vmatprep.subr.mxu0 0.0
    %4859 = vmatpush2.msra.mxu0 0.0
    %4860 = vmatprep.subr.mxu0 0.0
    %4861 = vmatpush2.msra.mxu0 0.0
    %4862 = vmatprep.subr.mxu0 0.0
    %4863 = vmatpush2.msra.mxu0 0.0
    %4864 = vmatprep.subr.mxu0 0.0
    %4865 = vmatpush2.msra.mxu0 0.0
    %4866 = vmatprep.subr.mxu0 0.0
    %4867 = vmatpush2.msra.mxu0 0.0
    %4868 = vmatprep.subr.mxu0 0.0
    %4869 = vmatpush2.msra.mxu0 0.0
    %4870 = vmatprep.mubr.f32.mxu0 0.0
    %4871 = vmatmul.mubr.f32.gmra.mxu0 %v4555
    %v4872 = vpop.f32.mrf.mxu0
    %v4873 = vadd.f32 0.0, %v4872
    %v4874 = vpop.f32.mrf.mxu0
    %4875 = vdwg.mxu0
    %v4876 = vadd.f32 %v3754, %v4873
    %v4877 = vxor.u32 %v4876, 2147483648
    %v4878 = vmul.f32 %v4877, 1.442695
    %v4879 = vpow.pop %v4878
    %v4880 = vadd.f32 %v4879, 1.0
    %v4881 = vrcp.pop %v4880
    %v4882 = vmul.f32 1.0, %v4881
    %v4883 = vmul.f32 %v4882, 2.0
    %v4884 = vsub.f32 %v4883, 1.0
    %v4885 = vmul.f32 %v4882, %v4545
    %4887 = vrot.lane.b32.xlu0 %v4884, 64
    %v4888 = vpop.permute.xlu0 %4887
    %v4890 = vmul.f32 %v4882, %v4888
    %4892 = vrot.lane.b32.xlu0 %v4890, 32
    %v4893 = vpop.permute.xlu0 %4892
    %v4895 = vadd.f32 %v4885, %v4893
    %v4896 = vtanh.pop %v4895
    %4898 = vrot.lane.b32.xlu0 %v4896, 64
    %v4899 = vpop.permute.xlu0 %4898
    %v4901 = vmul.f32 %v4882, %v4899
    %4903 = vrot.lane.b32.xlu0 %v4901, 32
    %v4904 = vpop.permute.xlu0 %4903
    %v4905 = vsel %vm366, %v4904, 0
    %4907 = vmatprep.subr.mxu0 0.0
    %4908 = vmatpush1.msra.mxu0 0.0
    %4909 = vmatprep.subr.mxu0 0.0
    %4910 = vmatpush1.msra.mxu0 0.0
    %4911 = vmatprep.subr.mxu0 0.0
    %4912 = vmatpush1.msra.mxu0 0.0
    %4913 = vmatprep.subr.mxu0 0.0
    %4914 = vmatpush1.msra.mxu0 0.0
    %4915 = vmatprep.subr.mxu0 0.0
    %4916 = vmatpush1.msra.mxu0 0.0
    %4917 = vmatprep.subr.mxu0 0.0
    %4918 = vmatpush1.msra.mxu0 0.0
    %4919 = vmatprep.subr.mxu0 0.0
    %4920 = vmatpush1.msra.mxu0 0.0
    %4921 = vmatprep.subr.mxu0 0.0
    %4922 = vmatpush1.msra.mxu0 0.0
    %4923 = vmatprep.subr.mxu0 0.0
    %4924 = vmatpush1.msra.mxu0 0.0
    %4925 = vmatprep.subr.mxu0 0.0
    %4926 = vmatpush1.msra.mxu0 0.0
    %4927 = vmatprep.subr.mxu0 0.0
    %4928 = vmatpush1.msra.mxu0 0.0
    %4929 = vmatprep.subr.mxu0 0.0
    %4930 = vmatpush1.msra.mxu0 0.0
    %4931 = vmatprep.subr.mxu0 0.0
    %4932 = vmatpush1.msra.mxu0 %v251
    %4933 = vmatprep.subr.mxu0 0.0
    %4934 = vmatpush1.msra.mxu0 %v250
    %4935 = vmatprep.subr.mxu0 0.0
    %4936 = vmatpush1.msra.mxu0 %v249
    %4937 = vmatprep.subr.mxu0 0.0
    %4938 = vmatpush1.msra.mxu0 %v248
    %4939 = vmatprep.subr.mxu0 0.0
    %4940 = vmatpush2.msra.mxu0 0.0
    %4941 = vmatprep.subr.mxu0 0.0
    %4942 = vmatpush2.msra.mxu0 0.0
    %4943 = vmatprep.subr.mxu0 0.0
    %4944 = vmatpush2.msra.mxu0 0.0
    %4945 = vmatprep.subr.mxu0 0.0
    %4946 = vmatpush2.msra.mxu0 0.0
    %4947 = vmatprep.subr.mxu0 0.0
    %4948 = vmatpush2.msra.mxu0 0.0
    %4949 = vmatprep.subr.mxu0 0.0
    %4950 = vmatpush2.msra.mxu0 0.0
    %4951 = vmatprep.subr.mxu0 0.0
    %4952 = vmatpush2.msra.mxu0 0.0
    %4953 = vmatprep.subr.mxu0 0.0
    %4954 = vmatpush2.msra.mxu0 0.0
    %4955 = vmatprep.subr.mxu0 0.0
    %4956 = vmatpush2.msra.mxu0 0.0
    %4957 = vmatprep.subr.mxu0 0.0
    %4958 = vmatpush2.msra.mxu0 0.0
    %4959 = vmatprep.subr.mxu0 0.0
    %4960 = vmatpush2.msra.mxu0 0.0
    %4961 = vmatprep.subr.mxu0 0.0
    %4962 = vmatpush2.msra.mxu0 0.0
    %4963 = vmatprep.subr.mxu0 0.0
    %4964 = vmatpush2.msra.mxu0 0.0
    %4965 = vmatprep.subr.mxu0 0.0
    %4966 = vmatpush2.msra.mxu0 0.0
    %4967 = vmatprep.subr.mxu0 0.0
    %4968 = vmatpush2.msra.mxu0 0.0
    %4969 = vmatprep.subr.mxu0 0.0
    %4970 = vmatpush2.msra.mxu0 0.0
    %4971 = vmatprep.mubr.f32.mxu0 0.0
    %4972 = vmatmul.mubr.f32.gmra.mxu0 %v4905
    %v4973 = vpop.f32.mrf.mxu0
    %v4974 = vadd.f32 %v279, %v4973
    %v4975 = vpop.f32.mrf.mxu0
    %4976 = vdwg.mxu0
    %4977 = vmatprep.subr.mxu0 0.0
    %4978 = vmatpush1.msra.mxu0 0.0
    %4979 = vmatprep.subr.mxu0 0.0
    %4980 = vmatpush1.msra.mxu0 0.0
    %4981 = vmatprep.subr.mxu0 0.0
    %4982 = vmatpush1.msra.mxu0 0.0
    %4983 = vmatprep.subr.mxu0 0.0
    %4984 = vmatpush1.msra.mxu0 0.0
    %4985 = vmatprep.subr.mxu0 0.0
    %4986 = vmatpush1.msra.mxu0 0.0
    %4987 = vmatprep.subr.mxu0 0.0
    %4988 = vmatpush1.msra.mxu0 0.0
    %4989 = vmatprep.subr.mxu0 0.0
    %4990 = vmatpush1.msra.mxu0 0.0
    %4991 = vmatprep.subr.mxu0 0.0
    %4992 = vmatpush1.msra.mxu0 0.0
    %4993 = vmatprep.subr.mxu0 0.0
    %4994 = vmatpush1.msra.mxu0 0.0
    %4995 = vmatprep.subr.mxu0 0.0
    %4996 = vmatpush1.msra.mxu0 0.0
    %4997 = vmatprep.subr.mxu0 0.0
    %4998 = vmatpush1.msra.mxu0 0.0
    %4999 = vmatprep.subr.mxu0 0.0
    %5000 = vmatpush1.msra.mxu0 0.0
    %5001 = vmatprep.subr.mxu0 0.0
    %5002 = vmatpush1.msra.mxu0 %v255
    %5003 = vmatprep.subr.mxu0 0.0
    %5004 = vmatpush1.msra.mxu0 %v254
    %5005 = vmatprep.subr.mxu0 0.0
    %5006 = vmatpush1.msra.mxu0 %v253
    %5007 = vmatprep.subr.mxu0 0.0
    %5008 = vmatpush1.msra.mxu0 %v252
    %5009 = vmatprep.subr.mxu0 0.0
    %5010 = vmatpush2.msra.mxu0 0.0
    %5011 = vmatprep.subr.mxu0 0.0
    %5012 = vmatpush2.msra.mxu0 0.0
    %5013 = vmatprep.subr.mxu0 0.0
    %5014 = vmatpush2.msra.mxu0 0.0
    %5015 = vmatprep.subr.mxu0 0.0
    %5016 = vmatpush2.msra.mxu0 0.0
    %5017 = vmatprep.subr.mxu0 0.0
    %5018 = vmatpush2.msra.mxu0 0.0
    %5019 = vmatprep.subr.mxu0 0.0
    %5020 = vmatpush2.msra.mxu0 0.0
    %5021 = vmatprep.subr.mxu0 0.0
    %5022 = vmatpush2.msra.mxu0 0.0
    %5023 = vmatprep.subr.mxu0 0.0
    %5024 = vmatpush2.msra.mxu0 0.0
    %5025 = vmatprep.subr.mxu0 0.0
    %5026 = vmatpush2.msra.mxu0 0.0
    %5027 = vmatprep.subr.mxu0 0.0
    %5028 = vmatpush2.msra.mxu0 0.0
    %5029 = vmatprep.subr.mxu0 0.0
    %5030 = vmatpush2.msra.mxu0 0.0
    %5031 = vmatprep.subr.mxu0 0.0
    %5032 = vmatpush2.msra.mxu0 0.0
    %5033 = vmatprep.subr.mxu0 0.0
    %5034 = vmatpush2.msra.mxu0 0.0
    %5035 = vmatprep.subr.mxu0 0.0
    %5036 = vmatpush2.msra.mxu0 0.0
    %5037 = vmatprep.subr.mxu0 0.0
    %5038 = vmatpush2.msra.mxu0 0.0
    %5039 = vmatprep.subr.mxu0 0.0
    %5040 = vmatpush2.msra.mxu0 0.0
    %5041 = vmatprep.mubr.f32.mxu0 0.0
    %5042 = vmatmul.mubr.f32.gmra.mxu0 %v4726
    %v5043 = vpop.f32.mrf.mxu0
    %v5044 = vadd.f32 0.0, %v5043
    %v5045 = vpop.f32.mrf.mxu0
    %5046 = vdwg.mxu0
    %v5047 = vadd.f32 %v4974, %v5044
    %v5048 = vxor.u32 %v5047, 2147483648
    %v5049 = vmul.f32 %v5048, 1.442695
    %v5050 = vpow.pop %v5049
    %v5051 = vadd.f32 %v5050, 1.0
    %v5052 = vrcp.pop %v5051
    %v5053 = vmul.f32 1.0, %v5052
    %v5054 = vmul.f32 %v5053, 2.0
    %v5055 = vsub.f32 %v5054, 1.0
    %v5056 = vmul.f32 %v5053, %v4716
    %5058 = vrot.lane.b32.xlu0 %v5055, 64
    %v5059 = vpop.permute.xlu0 %5058
    %v5061 = vmul.f32 %v5053, %v5059
    %5063 = vrot.lane.b32.xlu0 %v5061, 32
    %v5064 = vpop.permute.xlu0 %5063
    %v5066 = vadd.f32 %v5056, %v5064
    %v5067 = vtanh.pop %v5066
    %5069 = vrot.lane.b32.xlu0 %v5067, 64
    %v5070 = vpop.permute.xlu0 %5069
    %v5072 = vmul.f32 %v5053, %v5070
    %5074 = vrot.lane.b32.xlu0 %v5072, 32
    %v5075 = vpop.permute.xlu0 %5074
    %v5076 = vsel %vm366, %v5075, 0
    %5078 = vmatprep.subr.mxu0 0.0
    %5079 = vmatpush1.msra.mxu0 0.0
    %5080 = vmatprep.subr.mxu0 0.0
    %5081 = vmatpush1.msra.mxu0 0.0
    %5082 = vmatprep.subr.mxu0 0.0
    %5083 = vmatpush1.msra.mxu0 0.0
    %5084 = vmatprep.subr.mxu0 0.0
    %5085 = vmatpush1.msra.mxu0 0.0
    %5086 = vmatprep.subr.mxu0 0.0
    %5087 = vmatpush1.msra.mxu0 0.0
    %5088 = vmatprep.subr.mxu0 0.0
    %5089 = vmatpush1.msra.mxu0 0.0
    %5090 = vmatprep.subr.mxu0 0.0
    %5091 = vmatpush1.msra.mxu0 0.0
    %5092 = vmatprep.subr.mxu0 0.0
    %5093 = vmatpush1.msra.mxu0 0.0
    %5094 = vmatprep.subr.mxu0 0.0
    %5095 = vmatpush1.msra.mxu0 0.0
    %5096 = vmatprep.subr.mxu0 0.0
    %5097 = vmatpush1.msra.mxu0 0.0
    %5098 = vmatprep.subr.mxu0 0.0
    %5099 = vmatpush1.msra.mxu0 0.0
    %5100 = vmatprep.subr.mxu0 0.0
    %5101 = vmatpush1.msra.mxu0 0.0
    %5102 = vmatprep.subr.mxu0 0.0
    %5103 = vmatpush1.msra.mxu0 %v259
    %5104 = vmatprep.subr.mxu0 0.0
    %5105 = vmatpush1.msra.mxu0 %v258
    %5106 = vmatprep.subr.mxu0 0.0
    %5107 = vmatpush1.msra.mxu0 %v257
    %5108 = vmatprep.subr.mxu0 0.0
    %5109 = vmatpush1.msra.mxu0 %v256
    %5110 = vmatprep.subr.mxu0 0.0
    %5111 = vmatpush2.msra.mxu0 0.0
    %5112 = vmatprep.subr.mxu0 0.0
    %5113 = vmatpush2.msra.mxu0 0.0
    %5114 = vmatprep.subr.mxu0 0.0
    %5115 = vmatpush2.msra.mxu0 0.0
    %5116 = vmatprep.subr.mxu0 0.0
    %5117 = vmatpush2.msra.mxu0 0.0
    %5118 = vmatprep.subr.mxu0 0.0
    %5119 = vmatpush2.msra.mxu0 0.0
    %5120 = vmatprep.subr.mxu0 0.0
    %5121 = vmatpush2.msra.mxu0 0.0
    %5122 = vmatprep.subr.mxu0 0.0
    %5123 = vmatpush2.msra.mxu0 0.0
    %5124 = vmatprep.subr.mxu0 0.0
    %5125 = vmatpush2.msra.mxu0 0.0
    %5126 = vmatprep.subr.mxu0 0.0
    %5127 = vmatpush2.msra.mxu0 0.0
    %5128 = vmatprep.subr.mxu0 0.0
    %5129 = vmatpush2.msra.mxu0 0.0
    %5130 = vmatprep.subr.mxu0 0.0
    %5131 = vmatpush2.msra.mxu0 0.0
    %5132 = vmatprep.subr.mxu0 0.0
    %5133 = vmatpush2.msra.mxu0 0.0
    %5134 = vmatprep.subr.mxu0 0.0
    %5135 = vmatpush2.msra.mxu0 0.0
    %5136 = vmatprep.subr.mxu0 0.0
    %5137 = vmatpush2.msra.mxu0 0.0
    %5138 = vmatprep.subr.mxu0 0.0
    %5139 = vmatpush2.msra.mxu0 0.0
    %5140 = vmatprep.subr.mxu0 0.0
    %5141 = vmatpush2.msra.mxu0 0.0
    %5142 = vmatprep.mubr.f32.mxu0 0.0
    %5143 = vmatmul.mubr.f32.gmra.mxu0 %v5076
    %v5144 = vpop.f32.mrf.mxu0
    %v5145 = vadd.f32 %v286, %v5144
    %v5146 = vpop.f32.mrf.mxu0
    %5147 = vdwg.mxu0
    %v5148 = vxor.u32 %v5145, 2147483648
    %v5149 = vmul.f32 %v5148, 1.442695
    %v5150 = vpow.pop %v5149
    %v5151 = vadd.f32 %v5150, 1.0
    %v5152 = vrcp.pop %v5151
    %v5153 = vmul.f32 1.0, %v5152
    %s5154 = scalar_lea.vmem %s18, 6
    %5155 = vst [vmem:[%s5154] sm:$0x3] %v5153
    %5156 = vmatprep.subr.mxu0 0.0
    %5157 = vmatpush1.msra.mxu0 0.0
    %5158 = vmatprep.subr.mxu0 0.0
    %5159 = vmatpush1.msra.mxu0 0.0
    %5160 = vmatprep.subr.mxu0 0.0
    %5161 = vmatpush1.msra.mxu0 0.0
    %5162 = vmatprep.subr.mxu0 0.0
    %5163 = vmatpush1.msra.mxu0 0.0
    %5164 = vmatprep.subr.mxu0 0.0
    %5165 = vmatpush1.msra.mxu0 0.0
    %5166 = vmatprep.subr.mxu0 0.0
    %5167 = vmatpush1.msra.mxu0 0.0
    %5168 = vmatprep.subr.mxu0 0.0
    %5169 = vmatpush1.msra.mxu0 0.0
    %5170 = vmatprep.subr.mxu0 0.0
    %5171 = vmatpush1.msra.mxu0 0.0
    %5172 = vmatprep.subr.mxu0 0.0
    %5173 = vmatpush1.msra.mxu0 0.0
    %5174 = vmatprep.subr.mxu0 0.0
    %5175 = vmatpush1.msra.mxu0 0.0
    %5176 = vmatprep.subr.mxu0 0.0
    %5177 = vmatpush1.msra.mxu0 0.0
    %5178 = vmatprep.subr.mxu0 0.0
    %5179 = vmatpush1.msra.mxu0 0.0
    %5180 = vmatprep.subr.mxu0 0.0
    %5181 = vmatpush1.msra.mxu0 %v247
    %5182 = vmatprep.subr.mxu0 0.0
    %5183 = vmatpush1.msra.mxu0 %v246
    %5184 = vmatprep.subr.mxu0 0.0
    %5185 = vmatpush1.msra.mxu0 %v245
    %5186 = vmatprep.subr.mxu0 0.0
    %5187 = vmatpush1.msra.mxu0 %v244
    %5188 = vmatprep.subr.mxu0 0.0
    %5189 = vmatpush2.msra.mxu0 0.0
    %5190 = vmatprep.subr.mxu0 0.0
    %5191 = vmatpush2.msra.mxu0 0.0
    %5192 = vmatprep.subr.mxu0 0.0
    %5193 = vmatpush2.msra.mxu0 0.0
    %5194 = vmatprep.subr.mxu0 0.0
    %5195 = vmatpush2.msra.mxu0 0.0
    %5196 = vmatprep.subr.mxu0 0.0
    %5197 = vmatpush2.msra.mxu0 0.0
    %5198 = vmatprep.subr.mxu0 0.0
    %5199 = vmatpush2.msra.mxu0 0.0
    %5200 = vmatprep.subr.mxu0 0.0
    %5201 = vmatpush2.msra.mxu0 0.0
    %5202 = vmatprep.subr.mxu0 0.0
    %5203 = vmatpush2.msra.mxu0 0.0
    %5204 = vmatprep.subr.mxu0 0.0
    %5205 = vmatpush2.msra.mxu0 0.0
    %5206 = vmatprep.subr.mxu0 0.0
    %5207 = vmatpush2.msra.mxu0 0.0
    %5208 = vmatprep.subr.mxu0 0.0
    %5209 = vmatpush2.msra.mxu0 0.0
    %5210 = vmatprep.subr.mxu0 0.0
    %5211 = vmatpush2.msra.mxu0 0.0
    %5212 = vmatprep.subr.mxu0 0.0
    %5213 = vmatpush2.msra.mxu0 0.0
    %5214 = vmatprep.subr.mxu0 0.0
    %5215 = vmatpush2.msra.mxu0 0.0
    %5216 = vmatprep.subr.mxu0 0.0
    %5217 = vmatpush2.msra.mxu0 0.0
    %5218 = vmatprep.subr.mxu0 0.0
    %5219 = vmatpush2.msra.mxu0 0.0
    %5220 = vmatprep.mubr.f32.mxu0 0.0
    %5221 = vmatmul.mubr.f32.gmra.mxu0 %v4905
    %v5222 = vpop.f32.mrf.mxu0
    %v5223 = vadd.f32 0.0, %v5222
    %v5224 = vpop.f32.mrf.mxu0
    %5225 = vdwg.mxu0
    %v5226 = vadd.f32 %v3754, %v5223
    %v5227 = vxor.u32 %v5226, 2147483648
    %v5228 = vmul.f32 %v5227, 1.442695
    %v5229 = vpow.pop %v5228
    %v5230 = vadd.f32 %v5229, 1.0
    %v5231 = vrcp.pop %v5230
    %v5232 = vmul.f32 1.0, %v5231
    %v5233 = vmul.f32 %v5232, 2.0
    %v5234 = vsub.f32 %v5233, 1.0
    %v5235 = vmul.f32 %v5232, %v4895
    %5237 = vrot.lane.b32.xlu0 %v5234, 64
    %v5238 = vpop.permute.xlu0 %5237
    %v5240 = vmul.f32 %v5232, %v5238
    %5242 = vrot.lane.b32.xlu0 %v5240, 32
    %v5243 = vpop.permute.xlu0 %5242
    %v5245 = vadd.f32 %v5235, %v5243
    %v5246 = vtanh.pop %v5245
    %5248 = vrot.lane.b32.xlu0 %v5246, 64
    %v5249 = vpop.permute.xlu0 %5248
    %v5251 = vmul.f32 %v5232, %v5249
    %5253 = vrot.lane.b32.xlu0 %v5251, 32
    %v5254 = vpop.permute.xlu0 %5253
    %v5255 = vsel %vm366, %v5254, 0
    %5257 = vmatprep.subr.mxu0 0.0
    %5258 = vmatpush1.msra.mxu0 0.0
    %5259 = vmatprep.subr.mxu0 0.0
    %5260 = vmatpush1.msra.mxu0 0.0
    %5261 = vmatprep.subr.mxu0 0.0
    %5262 = vmatpush1.msra.mxu0 0.0
    %5263 = vmatprep.subr.mxu0 0.0
    %5264 = vmatpush1.msra.mxu0 0.0
    %5265 = vmatprep.subr.mxu0 0.0
    %5266 = vmatpush1.msra.mxu0 0.0
    %5267 = vmatprep.subr.mxu0 0.0
    %5268 = vmatpush1.msra.mxu0 0.0
    %5269 = vmatprep.subr.mxu0 0.0
    %5270 = vmatpush1.msra.mxu0 0.0
    %5271 = vmatprep.subr.mxu0 0.0
    %5272 = vmatpush1.msra.mxu0 0.0
    %5273 = vmatprep.subr.mxu0 0.0
    %5274 = vmatpush1.msra.mxu0 0.0
    %5275 = vmatprep.subr.mxu0 0.0
    %5276 = vmatpush1.msra.mxu0 0.0
    %5277 = vmatprep.subr.mxu0 0.0
    %5278 = vmatpush1.msra.mxu0 0.0
    %5279 = vmatprep.subr.mxu0 0.0
    %5280 = vmatpush1.msra.mxu0 0.0
    %5281 = vmatprep.subr.mxu0 0.0
    %5282 = vmatpush1.msra.mxu0 %v251
    %5283 = vmatprep.subr.mxu0 0.0
    %5284 = vmatpush1.msra.mxu0 %v250
    %5285 = vmatprep.subr.mxu0 0.0
    %5286 = vmatpush1.msra.mxu0 %v249
    %5287 = vmatprep.subr.mxu0 0.0
    %5288 = vmatpush1.msra.mxu0 %v248
    %5289 = vmatprep.subr.mxu0 0.0
    %5290 = vmatpush2.msra.mxu0 0.0
    %5291 = vmatprep.subr.mxu0 0.0
    %5292 = vmatpush2.msra.mxu0 0.0
    %5293 = vmatprep.subr.mxu0 0.0
    %5294 = vmatpush2.msra.mxu0 0.0
    %5295 = vmatprep.subr.mxu0 0.0
    %5296 = vmatpush2.msra.mxu0 0.0
    %5297 = vmatprep.subr.mxu0 0.0
    %5298 = vmatpush2.msra.mxu0 0.0
    %5299 = vmatprep.subr.mxu0 0.0
    %5300 = vmatpush2.msra.mxu0 0.0
    %5301 = vmatprep.subr.mxu0 0.0
    %5302 = vmatpush2.msra.mxu0 0.0
    %5303 = vmatprep.subr.mxu0 0.0
    %5304 = vmatpush2.msra.mxu0 0.0
    %5305 = vmatprep.subr.mxu0 0.0
    %5306 = vmatpush2.msra.mxu0 0.0
    %5307 = vmatprep.subr.mxu0 0.0
    %5308 = vmatpush2.msra.mxu0 0.0
    %5309 = vmatprep.subr.mxu0 0.0
    %5310 = vmatpush2.msra.mxu0 0.0
    %5311 = vmatprep.subr.mxu0 0.0
    %5312 = vmatpush2.msra.mxu0 0.0
    %5313 = vmatprep.subr.mxu0 0.0
    %5314 = vmatpush2.msra.mxu0 0.0
    %5315 = vmatprep.subr.mxu0 0.0
    %5316 = vmatpush2.msra.mxu0 0.0
    %5317 = vmatprep.subr.mxu0 0.0
    %5318 = vmatpush2.msra.mxu0 0.0
    %5319 = vmatprep.subr.mxu0 0.0
    %5320 = vmatpush2.msra.mxu0 0.0
    %5321 = vmatprep.mubr.f32.mxu0 0.0
    %5322 = vmatmul.mubr.f32.gmra.mxu0 %v5255
    %v5323 = vpop.f32.mrf.mxu0
    %v5324 = vadd.f32 %v279, %v5323
    %v5325 = vpop.f32.mrf.mxu0
    %5326 = vdwg.mxu0
    %5327 = vmatprep.subr.mxu0 0.0
    %5328 = vmatpush1.msra.mxu0 0.0
    %5329 = vmatprep.subr.mxu0 0.0
    %5330 = vmatpush1.msra.mxu0 0.0
    %5331 = vmatprep.subr.mxu0 0.0
    %5332 = vmatpush1.msra.mxu0 0.0
    %5333 = vmatprep.subr.mxu0 0.0
    %5334 = vmatpush1.msra.mxu0 0.0
    %5335 = vmatprep.subr.mxu0 0.0
    %5336 = vmatpush1.msra.mxu0 0.0
    %5337 = vmatprep.subr.mxu0 0.0
    %5338 = vmatpush1.msra.mxu0 0.0
    %5339 = vmatprep.subr.mxu0 0.0
    %5340 = vmatpush1.msra.mxu0 0.0
    %5341 = vmatprep.subr.mxu0 0.0
    %5342 = vmatpush1.msra.mxu0 0.0
    %5343 = vmatprep.subr.mxu0 0.0
    %5344 = vmatpush1.msra.mxu0 0.0
    %5345 = vmatprep.subr.mxu0 0.0
    %5346 = vmatpush1.msra.mxu0 0.0
    %5347 = vmatprep.subr.mxu0 0.0
    %5348 = vmatpush1.msra.mxu0 0.0
    %5349 = vmatprep.subr.mxu0 0.0
    %5350 = vmatpush1.msra.mxu0 0.0
    %5351 = vmatprep.subr.mxu0 0.0
    %5352 = vmatpush1.msra.mxu0 %v255
    %5353 = vmatprep.subr.mxu0 0.0
    %5354 = vmatpush1.msra.mxu0 %v254
    %5355 = vmatprep.subr.mxu0 0.0
    %5356 = vmatpush1.msra.mxu0 %v253
    %5357 = vmatprep.subr.mxu0 0.0
    %5358 = vmatpush1.msra.mxu0 %v252
    %5359 = vmatprep.subr.mxu0 0.0
    %5360 = vmatpush2.msra.mxu0 0.0
    %5361 = vmatprep.subr.mxu0 0.0
    %5362 = vmatpush2.msra.mxu0 0.0
    %5363 = vmatprep.subr.mxu0 0.0
    %5364 = vmatpush2.msra.mxu0 0.0
    %5365 = vmatprep.subr.mxu0 0.0
    %5366 = vmatpush2.msra.mxu0 0.0
    %5367 = vmatprep.subr.mxu0 0.0
    %5368 = vmatpush2.msra.mxu0 0.0
    %5369 = vmatprep.subr.mxu0 0.0
    %5370 = vmatpush2.msra.mxu0 0.0
    %5371 = vmatprep.subr.mxu0 0.0
    %5372 = vmatpush2.msra.mxu0 0.0
    %5373 = vmatprep.subr.mxu0 0.0
    %5374 = vmatpush2.msra.mxu0 0.0
    %5375 = vmatprep.subr.mxu0 0.0
    %5376 = vmatpush2.msra.mxu0 0.0
    %5377 = vmatprep.subr.mxu0 0.0
    %5378 = vmatpush2.msra.mxu0 0.0
    %5379 = vmatprep.subr.mxu0 0.0
    %5380 = vmatpush2.msra.mxu0 0.0
    %5381 = vmatprep.subr.mxu0 0.0
    %5382 = vmatpush2.msra.mxu0 0.0
    %5383 = vmatprep.subr.mxu0 0.0
    %5384 = vmatpush2.msra.mxu0 0.0
    %5385 = vmatprep.subr.mxu0 0.0
    %5386 = vmatpush2.msra.mxu0 0.0
    %5387 = vmatprep.subr.mxu0 0.0
    %5388 = vmatpush2.msra.mxu0 0.0
    %5389 = vmatprep.subr.mxu0 0.0
    %5390 = vmatpush2.msra.mxu0 0.0
    %5391 = vmatprep.mubr.f32.mxu0 0.0
    %5392 = vmatmul.mubr.f32.gmra.mxu0 %v5076
    %v5393 = vpop.f32.mrf.mxu0
    %v5394 = vadd.f32 0.0, %v5393
    %v5395 = vpop.f32.mrf.mxu0
    %5396 = vdwg.mxu0
    %v5397 = vadd.f32 %v5324, %v5394
    %v5398 = vxor.u32 %v5397, 2147483648
    %v5399 = vmul.f32 %v5398, 1.442695
    %v5400 = vpow.pop %v5399
    %v5401 = vadd.f32 %v5400, 1.0
    %v5402 = vrcp.pop %v5401
    %v5403 = vmul.f32 1.0, %v5402
    %v5404 = vmul.f32 %v5403, 2.0
    %v5405 = vsub.f32 %v5404, 1.0
    %v5406 = vmul.f32 %v5403, %v5066
    %5408 = vrot.lane.b32.xlu0 %v5405, 64
    %v5409 = vpop.permute.xlu0 %5408
    %v5411 = vmul.f32 %v5403, %v5409
    %5413 = vrot.lane.b32.xlu0 %v5411, 32
    %v5414 = vpop.permute.xlu0 %5413
    %v5416 = vadd.f32 %v5406, %v5414
    %v5417 = vtanh.pop %v5416
    %5419 = vrot.lane.b32.xlu0 %v5417, 64
    %v5420 = vpop.permute.xlu0 %5419
    %v5422 = vmul.f32 %v5403, %v5420
    %5424 = vrot.lane.b32.xlu0 %v5422, 32
    %v5425 = vpop.permute.xlu0 %5424
    %v5426 = vsel %vm366, %v5425, 0
    %5428 = vmatprep.subr.mxu0 0.0
    %5429 = vmatpush1.msra.mxu0 0.0
    %5430 = vmatprep.subr.mxu0 0.0
    %5431 = vmatpush1.msra.mxu0 0.0
    %5432 = vmatprep.subr.mxu0 0.0
    %5433 = vmatpush1.msra.mxu0 0.0
    %5434 = vmatprep.subr.mxu0 0.0
    %5435 = vmatpush1.msra.mxu0 0.0
    %5436 = vmatprep.subr.mxu0 0.0
    %5437 = vmatpush1.msra.mxu0 0.0
    %5438 = vmatprep.subr.mxu0 0.0
    %5439 = vmatpush1.msra.mxu0 0.0
    %5440 = vmatprep.subr.mxu0 0.0
    %5441 = vmatpush1.msra.mxu0 0.0
    %5442 = vmatprep.subr.mxu0 0.0
    %5443 = vmatpush1.msra.mxu0 0.0
    %5444 = vmatprep.subr.mxu0 0.0
    %5445 = vmatpush1.msra.mxu0 0.0
    %5446 = vmatprep.subr.mxu0 0.0
    %5447 = vmatpush1.msra.mxu0 0.0
    %5448 = vmatprep.subr.mxu0 0.0
    %5449 = vmatpush1.msra.mxu0 0.0
    %5450 = vmatprep.subr.mxu0 0.0
    %5451 = vmatpush1.msra.mxu0 0.0
    %5452 = vmatprep.subr.mxu0 0.0
    %5453 = vmatpush1.msra.mxu0 %v259
    %5454 = vmatprep.subr.mxu0 0.0
    %5455 = vmatpush1.msra.mxu0 %v258
    %5456 = vmatprep.subr.mxu0 0.0
    %5457 = vmatpush1.msra.mxu0 %v257
    %5458 = vmatprep.subr.mxu0 0.0
    %5459 = vmatpush1.msra.mxu0 %v256
    %5460 = vmatprep.subr.mxu0 0.0
    %5461 = vmatpush2.msra.mxu0 0.0
    %5462 = vmatprep.subr.mxu0 0.0
    %5463 = vmatpush2.msra.mxu0 0.0
    %5464 = vmatprep.subr.mxu0 0.0
    %5465 = vmatpush2.msra.mxu0 0.0
    %5466 = vmatprep.subr.mxu0 0.0
    %5467 = vmatpush2.msra.mxu0 0.0
    %5468 = vmatprep.subr.mxu0 0.0
    %5469 = vmatpush2.msra.mxu0 0.0
    %5470 = vmatprep.subr.mxu0 0.0
    %5471 = vmatpush2.msra.mxu0 0.0
    %5472 = vmatprep.subr.mxu0 0.0
    %5473 = vmatpush2.msra.mxu0 0.0
    %5474 = vmatprep.subr.mxu0 0.0
    %5475 = vmatpush2.msra.mxu0 0.0
    %5476 = vmatprep.subr.mxu0 0.0
    %5477 = vmatpush2.msra.mxu0 0.0
    %5478 = vmatprep.subr.mxu0 0.0
    %5479 = vmatpush2.msra.mxu0 0.0
    %5480 = vmatprep.subr.mxu0 0.0
    %5481 = vmatpush2.msra.mxu0 0.0
    %5482 = vmatprep.subr.mxu0 0.0
    %5483 = vmatpush2.msra.mxu0 0.0
    %5484 = vmatprep.subr.mxu0 0.0
    %5485 = vmatpush2.msra.mxu0 0.0
    %5486 = vmatprep.subr.mxu0 0.0
    %5487 = vmatpush2.msra.mxu0 0.0
    %5488 = vmatprep.subr.mxu0 0.0
    %5489 = vmatpush2.msra.mxu0 0.0
    %5490 = vmatprep.subr.mxu0 0.0
    %5491 = vmatpush2.msra.mxu0 0.0
    %5492 = vmatprep.mubr.f32.mxu0 0.0
    %5493 = vmatmul.mubr.f32.gmra.mxu0 %v5426
    %v5494 = vpop.f32.mrf.mxu0
    %v5495 = vadd.f32 %v286, %v5494
    %v5496 = vpop.f32.mrf.mxu0
    %5497 = vdwg.mxu0
    %v5498 = vxor.u32 %v5495, 2147483648
    %v5499 = vmul.f32 %v5498, 1.442695
    %v5500 = vpow.pop %v5499
    %v5501 = vadd.f32 %v5500, 1.0
    %v5502 = vrcp.pop %v5501
    %v5503 = vmul.f32 1.0, %v5502
    %s5504 = scalar_lea.vmem %s18, 8
    %5505 = vst [vmem:[%s5504] sm:$0x3] %v5503
    %5506 = vmatprep.subr.mxu0 0.0
    %5507 = vmatpush1.msra.mxu0 0.0
    %5508 = vmatprep.subr.mxu0 0.0
    %5509 = vmatpush1.msra.mxu0 0.0
    %5510 = vmatprep.subr.mxu0 0.0
    %5511 = vmatpush1.msra.mxu0 0.0
    %5512 = vmatprep.subr.mxu0 0.0
    %5513 = vmatpush1.msra.mxu0 0.0
    %5514 = vmatprep.subr.mxu0 0.0
    %5515 = vmatpush1.msra.mxu0 0.0
    %5516 = vmatprep.subr.mxu0 0.0
    %5517 = vmatpush1.msra.mxu0 0.0
    %5518 = vmatprep.subr.mxu0 0.0
    %5519 = vmatpush1.msra.mxu0 0.0
    %5520 = vmatprep.subr.mxu0 0.0
    %5521 = vmatpush1.msra.mxu0 0.0
    %5522 = vmatprep.subr.mxu0 0.0
    %5523 = vmatpush1.msra.mxu0 0.0
    %5524 = vmatprep.subr.mxu0 0.0
    %5525 = vmatpush1.msra.mxu0 0.0
    %5526 = vmatprep.subr.mxu0 0.0
    %5527 = vmatpush1.msra.mxu0 0.0
    %5528 = vmatprep.subr.mxu0 0.0
    %5529 = vmatpush1.msra.mxu0 0.0
    %5530 = vmatprep.subr.mxu0 0.0
    %5531 = vmatpush1.msra.mxu0 %v247
    %5532 = vmatprep.subr.mxu0 0.0
    %5533 = vmatpush1.msra.mxu0 %v246
    %5534 = vmatprep.subr.mxu0 0.0
    %5535 = vmatpush1.msra.mxu0 %v245
    %5536 = vmatprep.subr.mxu0 0.0
    %5537 = vmatpush1.msra.mxu0 %v244
    %5538 = vmatprep.subr.mxu0 0.0
    %5539 = vmatpush2.msra.mxu0 0.0
    %5540 = vmatprep.subr.mxu0 0.0
    %5541 = vmatpush2.msra.mxu0 0.0
    %5542 = vmatprep.subr.mxu0 0.0
    %5543 = vmatpush2.msra.mxu0 0.0
    %5544 = vmatprep.subr.mxu0 0.0
    %5545 = vmatpush2.msra.mxu0 0.0
    %5546 = vmatprep.subr.mxu0 0.0
    %5547 = vmatpush2.msra.mxu0 0.0
    %5548 = vmatprep.subr.mxu0 0.0
    %5549 = vmatpush2.msra.mxu0 0.0
    %5550 = vmatprep.subr.mxu0 0.0
    %5551 = vmatpush2.msra.mxu0 0.0
    %5552 = vmatprep.subr.mxu0 0.0
    %5553 = vmatpush2.msra.mxu0 0.0
    %5554 = vmatprep.subr.mxu0 0.0
    %5555 = vmatpush2.msra.mxu0 0.0
    %5556 = vmatprep.subr.mxu0 0.0
    %5557 = vmatpush2.msra.mxu0 0.0
    %5558 = vmatprep.subr.mxu0 0.0
    %5559 = vmatpush2.msra.mxu0 0.0
    %5560 = vmatprep.subr.mxu0 0.0
    %5561 = vmatpush2.msra.mxu0 0.0
    %5562 = vmatprep.subr.mxu0 0.0
    %5563 = vmatpush2.msra.mxu0 0.0
    %5564 = vmatprep.subr.mxu0 0.0
    %5565 = vmatpush2.msra.mxu0 0.0
    %5566 = vmatprep.subr.mxu0 0.0
    %5567 = vmatpush2.msra.mxu0 0.0
    %5568 = vmatprep.subr.mxu0 0.0
    %5569 = vmatpush2.msra.mxu0 0.0
    %5570 = vmatprep.mubr.f32.mxu0 0.0
    %5571 = vmatmul.mubr.f32.gmra.mxu0 %v5255
    %v5572 = vpop.f32.mrf.mxu0
    %v5573 = vadd.f32 0.0, %v5572
    %v5574 = vpop.f32.mrf.mxu0
    %5575 = vdwg.mxu0
    %v5576 = vadd.f32 %v3754, %v5573
    %v5577 = vxor.u32 %v5576, 2147483648
    %v5578 = vmul.f32 %v5577, 1.442695
    %v5579 = vpow.pop %v5578
    %v5580 = vadd.f32 %v5579, 1.0
    %v5581 = vrcp.pop %v5580
    %v5582 = vmul.f32 1.0, %v5581
    %v5583 = vmul.f32 %v5582, 2.0
    %v5584 = vsub.f32 %v5583, 1.0
    %v5585 = vmul.f32 %v5582, %v5245
    %5587 = vrot.lane.b32.xlu0 %v5584, 64
    %v5588 = vpop.permute.xlu0 %5587
    %v5590 = vmul.f32 %v5582, %v5588
    %5592 = vrot.lane.b32.xlu0 %v5590, 32
    %v5593 = vpop.permute.xlu0 %5592
    %v5595 = vadd.f32 %v5585, %v5593
    %v5596 = vtanh.pop %v5595
    %5598 = vrot.lane.b32.xlu0 %v5596, 64
    %v5599 = vpop.permute.xlu0 %5598
    %v5601 = vmul.f32 %v5582, %v5599
    %5603 = vrot.lane.b32.xlu0 %v5601, 32
    %v5604 = vpop.permute.xlu0 %5603
    %v5605 = vsel %vm366, %v5604, 0
    %5607 = vmatprep.subr.mxu0 0.0
    %5608 = vmatpush1.msra.mxu0 0.0
    %5609 = vmatprep.subr.mxu0 0.0
    %5610 = vmatpush1.msra.mxu0 0.0
    %5611 = vmatprep.subr.mxu0 0.0
    %5612 = vmatpush1.msra.mxu0 0.0
    %5613 = vmatprep.subr.mxu0 0.0
    %5614 = vmatpush1.msra.mxu0 0.0
    %5615 = vmatprep.subr.mxu0 0.0
    %5616 = vmatpush1.msra.mxu0 0.0
    %5617 = vmatprep.subr.mxu0 0.0
    %5618 = vmatpush1.msra.mxu0 0.0
    %5619 = vmatprep.subr.mxu0 0.0
    %5620 = vmatpush1.msra.mxu0 0.0
    %5621 = vmatprep.subr.mxu0 0.0
    %5622 = vmatpush1.msra.mxu0 0.0
    %5623 = vmatprep.subr.mxu0 0.0
    %5624 = vmatpush1.msra.mxu0 0.0
    %5625 = vmatprep.subr.mxu0 0.0
    %5626 = vmatpush1.msra.mxu0 0.0
    %5627 = vmatprep.subr.mxu0 0.0
    %5628 = vmatpush1.msra.mxu0 0.0
    %5629 = vmatprep.subr.mxu0 0.0
    %5630 = vmatpush1.msra.mxu0 0.0
    %5631 = vmatprep.subr.mxu0 0.0
    %5632 = vmatpush1.msra.mxu0 %v251
    %5633 = vmatprep.subr.mxu0 0.0
    %5634 = vmatpush1.msra.mxu0 %v250
    %5635 = vmatprep.subr.mxu0 0.0
    %5636 = vmatpush1.msra.mxu0 %v249
    %5637 = vmatprep.subr.mxu0 0.0
    %5638 = vmatpush1.msra.mxu0 %v248
    %5639 = vmatprep.subr.mxu0 0.0
    %5640 = vmatpush2.msra.mxu0 0.0
    %5641 = vmatprep.subr.mxu0 0.0
    %5642 = vmatpush2.msra.mxu0 0.0
    %5643 = vmatprep.subr.mxu0 0.0
    %5644 = vmatpush2.msra.mxu0 0.0
    %5645 = vmatprep.subr.mxu0 0.0
    %5646 = vmatpush2.msra.mxu0 0.0
    %5647 = vmatprep.subr.mxu0 0.0
    %5648 = vmatpush2.msra.mxu0 0.0
    %5649 = vmatprep.subr.mxu0 0.0
    %5650 = vmatpush2.msra.mxu0 0.0
    %5651 = vmatprep.subr.mxu0 0.0
    %5652 = vmatpush2.msra.mxu0 0.0
    %5653 = vmatprep.subr.mxu0 0.0
    %5654 = vmatpush2.msra.mxu0 0.0
    %5655 = vmatprep.subr.mxu0 0.0
    %5656 = vmatpush2.msra.mxu0 0.0
    %5657 = vmatprep.subr.mxu0 0.0
    %5658 = vmatpush2.msra.mxu0 0.0
    %5659 = vmatprep.subr.mxu0 0.0
    %5660 = vmatpush2.msra.mxu0 0.0
    %5661 = vmatprep.subr.mxu0 0.0
    %5662 = vmatpush2.msra.mxu0 0.0
    %5663 = vmatprep.subr.mxu0 0.0
    %5664 = vmatpush2.msra.mxu0 0.0
    %5665 = vmatprep.subr.mxu0 0.0
    %5666 = vmatpush2.msra.mxu0 0.0
    %5667 = vmatprep.subr.mxu0 0.0
    %5668 = vmatpush2.msra.mxu0 0.0
    %5669 = vmatprep.subr.mxu0 0.0
    %5670 = vmatpush2.msra.mxu0 0.0
    %5671 = vmatprep.mubr.f32.mxu0 0.0
    %5672 = vmatmul.mubr.f32.gmra.mxu0 %v5605
    %v5673 = vpop.f32.mrf.mxu0
    %v5674 = vadd.f32 %v279, %v5673
    %v5675 = vpop.f32.mrf.mxu0
    %5676 = vdwg.mxu0
    %5677 = vmatprep.subr.mxu0 0.0
    %5678 = vmatpush1.msra.mxu0 0.0
    %5679 = vmatprep.subr.mxu0 0.0
    %5680 = vmatpush1.msra.mxu0 0.0
    %5681 = vmatprep.subr.mxu0 0.0
    %5682 = vmatpush1.msra.mxu0 0.0
    %5683 = vmatprep.subr.mxu0 0.0
    %5684 = vmatpush1.msra.mxu0 0.0
    %5685 = vmatprep.subr.mxu0 0.0
    %5686 = vmatpush1.msra.mxu0 0.0
    %5687 = vmatprep.subr.mxu0 0.0
    %5688 = vmatpush1.msra.mxu0 0.0
    %5689 = vmatprep.subr.mxu0 0.0
    %5690 = vmatpush1.msra.mxu0 0.0
    %5691 = vmatprep.subr.mxu0 0.0
    %5692 = vmatpush1.msra.mxu0 0.0
    %5693 = vmatprep.subr.mxu0 0.0
    %5694 = vmatpush1.msra.mxu0 0.0
    %5695 = vmatprep.subr.mxu0 0.0
    %5696 = vmatpush1.msra.mxu0 0.0
    %5697 = vmatprep.subr.mxu0 0.0
    %5698 = vmatpush1.msra.mxu0 0.0
    %5699 = vmatprep.subr.mxu0 0.0
    %5700 = vmatpush1.msra.mxu0 0.0
    %5701 = vmatprep.subr.mxu0 0.0
    %5702 = vmatpush1.msra.mxu0 %v255
    %5703 = vmatprep.subr.mxu0 0.0
    %5704 = vmatpush1.msra.mxu0 %v254
    %5705 = vmatprep.subr.mxu0 0.0
    %5706 = vmatpush1.msra.mxu0 %v253
    %5707 = vmatprep.subr.mxu0 0.0
    %5708 = vmatpush1.msra.mxu0 %v252
    %5709 = vmatprep.subr.mxu0 0.0
    %5710 = vmatpush2.msra.mxu0 0.0
    %5711 = vmatprep.subr.mxu0 0.0
    %5712 = vmatpush2.msra.mxu0 0.0
    %5713 = vmatprep.subr.mxu0 0.0
    %5714 = vmatpush2.msra.mxu0 0.0
    %5715 = vmatprep.subr.mxu0 0.0
    %5716 = vmatpush2.msra.mxu0 0.0
    %5717 = vmatprep.subr.mxu0 0.0
    %5718 = vmatpush2.msra.mxu0 0.0
    %5719 = vmatprep.subr.mxu0 0.0
    %5720 = vmatpush2.msra.mxu0 0.0
    %5721 = vmatprep.subr.mxu0 0.0
    %5722 = vmatpush2.msra.mxu0 0.0
    %5723 = vmatprep.subr.mxu0 0.0
    %5724 = vmatpush2.msra.mxu0 0.0
    %5725 = vmatprep.subr.mxu0 0.0
    %5726 = vmatpush2.msra.mxu0 0.0
    %5727 = vmatprep.subr.mxu0 0.0
    %5728 = vmatpush2.msra.mxu0 0.0
    %5729 = vmatprep.subr.mxu0 0.0
    %5730 = vmatpush2.msra.mxu0 0.0
    %5731 = vmatprep.subr.mxu0 0.0
    %5732 = vmatpush2.msra.mxu0 0.0
    %5733 = vmatprep.subr.mxu0 0.0
    %5734 = vmatpush2.msra.mxu0 0.0
    %5735 = vmatprep.subr.mxu0 0.0
    %5736 = vmatpush2.msra.mxu0 0.0
    %5737 = vmatprep.subr.mxu0 0.0
    %5738 = vmatpush2.msra.mxu0 0.0
    %5739 = vmatprep.subr.mxu0 0.0
    %5740 = vmatpush2.msra.mxu0 0.0
    %5741 = vmatprep.mubr.f32.mxu0 0.0
    %5742 = vmatmul.mubr.f32.gmra.mxu0 %v5426
    %v5743 = vpop.f32.mrf.mxu0
    %v5744 = vadd.f32 0.0, %v5743
    %v5745 = vpop.f32.mrf.mxu0
    %5746 = vdwg.mxu0
    %v5747 = vadd.f32 %v5674, %v5744
    %v5748 = vxor.u32 %v5747, 2147483648
    %v5749 = vmul.f32 %v5748, 1.442695
    %v5750 = vpow.pop %v5749
    %v5751 = vadd.f32 %v5750, 1.0
    %v5752 = vrcp.pop %v5751
    %v5753 = vmul.f32 1.0, %v5752
    %v5754 = vmul.f32 %v5753, 2.0
    %v5755 = vsub.f32 %v5754, 1.0
    %v5756 = vmul.f32 %v5753, %v5416
    %5758 = vrot.lane.b32.xlu0 %v5755, 64
    %v5759 = vpop.permute.xlu0 %5758
    %v5761 = vmul.f32 %v5753, %v5759
    %5763 = vrot.lane.b32.xlu0 %v5761, 32
    %v5764 = vpop.permute.xlu0 %5763
    %v5766 = vadd.f32 %v5756, %v5764
    %v5767 = vtanh.pop %v5766
    %5769 = vrot.lane.b32.xlu0 %v5767, 64
    %v5770 = vpop.permute.xlu0 %5769
    %v5772 = vmul.f32 %v5753, %v5770
    %5774 = vrot.lane.b32.xlu0 %v5772, 32
    %v5775 = vpop.permute.xlu0 %5774
    %v5776 = vsel %vm366, %v5775, 0
    %5778 = vmatprep.subr.mxu0 0.0
    %5779 = vmatpush1.msra.mxu0 0.0
    %5780 = vmatprep.subr.mxu0 0.0
    %5781 = vmatpush1.msra.mxu0 0.0
    %5782 = vmatprep.subr.mxu0 0.0
    %5783 = vmatpush1.msra.mxu0 0.0
    %5784 = vmatprep.subr.mxu0 0.0
    %5785 = vmatpush1.msra.mxu0 0.0
    %5786 = vmatprep.subr.mxu0 0.0
    %5787 = vmatpush1.msra.mxu0 0.0
    %5788 = vmatprep.subr.mxu0 0.0
    %5789 = vmatpush1.msra.mxu0 0.0
    %5790 = vmatprep.subr.mxu0 0.0
    %5791 = vmatpush1.msra.mxu0 0.0
    %5792 = vmatprep.subr.mxu0 0.0
    %5793 = vmatpush1.msra.mxu0 0.0
    %5794 = vmatprep.subr.mxu0 0.0
    %5795 = vmatpush1.msra.mxu0 0.0
    %5796 = vmatprep.subr.mxu0 0.0
    %5797 = vmatpush1.msra.mxu0 0.0
    %5798 = vmatprep.subr.mxu0 0.0
    %5799 = vmatpush1.msra.mxu0 0.0
    %5800 = vmatprep.subr.mxu0 0.0
    %5801 = vmatpush1.msra.mxu0 0.0
    %5802 = vmatprep.subr.mxu0 0.0
    %5803 = vmatpush1.msra.mxu0 %v259
    %5804 = vmatprep.subr.mxu0 0.0
    %5805 = vmatpush1.msra.mxu0 %v258
    %5806 = vmatprep.subr.mxu0 0.0
    %5807 = vmatpush1.msra.mxu0 %v257
    %5808 = vmatprep.subr.mxu0 0.0
    %5809 = vmatpush1.msra.mxu0 %v256
    %5810 = vmatprep.subr.mxu0 0.0
    %5811 = vmatpush2.msra.mxu0 0.0
    %5812 = vmatprep.subr.mxu0 0.0
    %5813 = vmatpush2.msra.mxu0 0.0
    %5814 = vmatprep.subr.mxu0 0.0
    %5815 = vmatpush2.msra.mxu0 0.0
    %5816 = vmatprep.subr.mxu0 0.0
    %5817 = vmatpush2.msra.mxu0 0.0
    %5818 = vmatprep.subr.mxu0 0.0
    %5819 = vmatpush2.msra.mxu0 0.0
    %5820 = vmatprep.subr.mxu0 0.0
    %5821 = vmatpush2.msra.mxu0 0.0
    %5822 = vmatprep.subr.mxu0 0.0
    %5823 = vmatpush2.msra.mxu0 0.0
    %5824 = vmatprep.subr.mxu0 0.0
    %5825 = vmatpush2.msra.mxu0 0.0
    %5826 = vmatprep.subr.mxu0 0.0
    %5827 = vmatpush2.msra.mxu0 0.0
    %5828 = vmatprep.subr.mxu0 0.0
    %5829 = vmatpush2.msra.mxu0 0.0
    %5830 = vmatprep.subr.mxu0 0.0
    %5831 = vmatpush2.msra.mxu0 0.0
    %5832 = vmatprep.subr.mxu0 0.0
    %5833 = vmatpush2.msra.mxu0 0.0
    %5834 = vmatprep.subr.mxu0 0.0
    %5835 = vmatpush2.msra.mxu0 0.0
    %5836 = vmatprep.subr.mxu0 0.0
    %5837 = vmatpush2.msra.mxu0 0.0
    %5838 = vmatprep.subr.mxu0 0.0
    %5839 = vmatpush2.msra.mxu0 0.0
    %5840 = vmatprep.subr.mxu0 0.0
    %5841 = vmatpush2.msra.mxu0 0.0
    %5842 = vmatprep.mubr.f32.mxu0 0.0
    %5843 = vmatmul.mubr.f32.gmra.mxu0 %v5776
    %v5844 = vpop.f32.mrf.mxu0
    %v5845 = vadd.f32 %v286, %v5844
    %v5846 = vpop.f32.mrf.mxu0
    %5847 = vdwg.mxu0
    %v5848 = vxor.u32 %v5845, 2147483648
    %v5849 = vmul.f32 %v5848, 1.442695
    %v5850 = vpow.pop %v5849
    %v5851 = vadd.f32 %v5850, 1.0
    %v5852 = vrcp.pop %v5851
    %v5853 = vmul.f32 1.0, %v5852
    %s5854 = scalar_lea.vmem %s18, 10
    %5855 = vst [vmem:[%s5854] sm:$0x3] %v5853
    %5856 = vmatprep.subr.mxu0 0.0
    %5857 = vmatpush1.msra.mxu0 0.0
    %5858 = vmatprep.subr.mxu0 0.0
    %5859 = vmatpush1.msra.mxu0 0.0
    %5860 = vmatprep.subr.mxu0 0.0
    %5861 = vmatpush1.msra.mxu0 0.0
    %5862 = vmatprep.subr.mxu0 0.0
    %5863 = vmatpush1.msra.mxu0 0.0
    %5864 = vmatprep.subr.mxu0 0.0
    %5865 = vmatpush1.msra.mxu0 0.0
    %5866 = vmatprep.subr.mxu0 0.0
    %5867 = vmatpush1.msra.mxu0 0.0
    %5868 = vmatprep.subr.mxu0 0.0
    %5869 = vmatpush1.msra.mxu0 0.0
    %5870 = vmatprep.subr.mxu0 0.0
    %5871 = vmatpush1.msra.mxu0 0.0
    %5872 = vmatprep.subr.mxu0 0.0
    %5873 = vmatpush1.msra.mxu0 0.0
    %5874 = vmatprep.subr.mxu0 0.0
    %5875 = vmatpush1.msra.mxu0 0.0
    %5876 = vmatprep.subr.mxu0 0.0
    %5877 = vmatpush1.msra.mxu0 0.0
    %5878 = vmatprep.subr.mxu0 0.0
    %5879 = vmatpush1.msra.mxu0 0.0
    %5880 = vmatprep.subr.mxu0 0.0
    %5881 = vmatpush1.msra.mxu0 %v247
    %5882 = vmatprep.subr.mxu0 0.0
    %5883 = vmatpush1.msra.mxu0 %v246
    %5884 = vmatprep.subr.mxu0 0.0
    %5885 = vmatpush1.msra.mxu0 %v245
    %5886 = vmatprep.subr.mxu0 0.0
    %5887 = vmatpush1.msra.mxu0 %v244
    %5888 = vmatprep.subr.mxu0 0.0
    %5889 = vmatpush2.msra.mxu0 0.0
    %5890 = vmatprep.subr.mxu0 0.0
    %5891 = vmatpush2.msra.mxu0 0.0
    %5892 = vmatprep.subr.mxu0 0.0
    %5893 = vmatpush2.msra.mxu0 0.0
    %5894 = vmatprep.subr.mxu0 0.0
    %5895 = vmatpush2.msra.mxu0 0.0
    %5896 = vmatprep.subr.mxu0 0.0
    %5897 = vmatpush2.msra.mxu0 0.0
    %5898 = vmatprep.subr.mxu0 0.0
    %5899 = vmatpush2.msra.mxu0 0.0
    %5900 = vmatprep.subr.mxu0 0.0
    %5901 = vmatpush2.msra.mxu0 0.0
    %5902 = vmatprep.subr.mxu0 0.0
    %5903 = vmatpush2.msra.mxu0 0.0
    %5904 = vmatprep.subr.mxu0 0.0
    %5905 = vmatpush2.msra.mxu0 0.0
    %5906 = vmatprep.subr.mxu0 0.0
    %5907 = vmatpush2.msra.mxu0 0.0
    %5908 = vmatprep.subr.mxu0 0.0
    %5909 = vmatpush2.msra.mxu0 0.0
    %5910 = vmatprep.subr.mxu0 0.0
    %5911 = vmatpush2.msra.mxu0 0.0
    %5912 = vmatprep.subr.mxu0 0.0
    %5913 = vmatpush2.msra.mxu0 0.0
    %5914 = vmatprep.subr.mxu0 0.0
    %5915 = vmatpush2.msra.mxu0 0.0
    %5916 = vmatprep.subr.mxu0 0.0
    %5917 = vmatpush2.msra.mxu0 0.0
    %5918 = vmatprep.subr.mxu0 0.0
    %5919 = vmatpush2.msra.mxu0 0.0
    %5920 = vmatprep.mubr.f32.mxu0 0.0
    %5921 = vmatmul.mubr.f32.gmra.mxu0 %v5605
    %v5922 = vpop.f32.mrf.mxu0
    %v5923 = vadd.f32 0.0, %v5922
    %v5924 = vpop.f32.mrf.mxu0
    %5925 = vdwg.mxu0
    %v5926 = vadd.f32 %v3754, %v5923
    %v5927 = vxor.u32 %v5926, 2147483648
    %v5928 = vmul.f32 %v5927, 1.442695
    %v5929 = vpow.pop %v5928
    %v5930 = vadd.f32 %v5929, 1.0
    %v5931 = vrcp.pop %v5930
    %v5932 = vmul.f32 1.0, %v5931
    %v5933 = vmul.f32 %v5932, 2.0
    %v5934 = vsub.f32 %v5933, 1.0
    %v5935 = vmul.f32 %v5932, %v5595
    %5937 = vrot.lane.b32.xlu0 %v5934, 64
    %v5938 = vpop.permute.xlu0 %5937
    %v5940 = vmul.f32 %v5932, %v5938
    %5942 = vrot.lane.b32.xlu0 %v5940, 32
    %v5943 = vpop.permute.xlu0 %5942
    %v5945 = vadd.f32 %v5935, %v5943
    %v5946 = vtanh.pop %v5945
    %5948 = vrot.lane.b32.xlu0 %v5946, 64
    %v5949 = vpop.permute.xlu0 %5948
    %v5951 = vmul.f32 %v5932, %v5949
    %5953 = vrot.lane.b32.xlu0 %v5951, 32
    %v5954 = vpop.permute.xlu0 %5953
    %v5955 = vsel %vm366, %v5954, 0
    %5957 = vmatprep.subr.mxu0 0.0
    %5958 = vmatpush1.msra.mxu0 0.0
    %5959 = vmatprep.subr.mxu0 0.0
    %5960 = vmatpush1.msra.mxu0 0.0
    %5961 = vmatprep.subr.mxu0 0.0
    %5962 = vmatpush1.msra.mxu0 0.0
    %5963 = vmatprep.subr.mxu0 0.0
    %5964 = vmatpush1.msra.mxu0 0.0
    %5965 = vmatprep.subr.mxu0 0.0
    %5966 = vmatpush1.msra.mxu0 0.0
    %5967 = vmatprep.subr.mxu0 0.0
    %5968 = vmatpush1.msra.mxu0 0.0
    %5969 = vmatprep.subr.mxu0 0.0
    %5970 = vmatpush1.msra.mxu0 0.0
    %5971 = vmatprep.subr.mxu0 0.0
    %5972 = vmatpush1.msra.mxu0 0.0
    %5973 = vmatprep.subr.mxu0 0.0
    %5974 = vmatpush1.msra.mxu0 0.0
    %5975 = vmatprep.subr.mxu0 0.0
    %5976 = vmatpush1.msra.mxu0 0.0
    %5977 = vmatprep.subr.mxu0 0.0
    %5978 = vmatpush1.msra.mxu0 0.0
    %5979 = vmatprep.subr.mxu0 0.0
    %5980 = vmatpush1.msra.mxu0 0.0
    %5981 = vmatprep.subr.mxu0 0.0
    %5982 = vmatpush1.msra.mxu0 %v251
    %5983 = vmatprep.subr.mxu0 0.0
    %5984 = vmatpush1.msra.mxu0 %v250
    %5985 = vmatprep.subr.mxu0 0.0
    %5986 = vmatpush1.msra.mxu0 %v249
    %5987 = vmatprep.subr.mxu0 0.0
    %5988 = vmatpush1.msra.mxu0 %v248
    %5989 = vmatprep.subr.mxu0 0.0
    %5990 = vmatpush2.msra.mxu0 0.0
    %5991 = vmatprep.subr.mxu0 0.0
    %5992 = vmatpush2.msra.mxu0 0.0
    %5993 = vmatprep.subr.mxu0 0.0
    %5994 = vmatpush2.msra.mxu0 0.0
    %5995 = vmatprep.subr.mxu0 0.0
    %5996 = vmatpush2.msra.mxu0 0.0
    %5997 = vmatprep.subr.mxu0 0.0
    %5998 = vmatpush2.msra.mxu0 0.0
    %5999 = vmatprep.subr.mxu0 0.0
    %6000 = vmatpush2.msra.mxu0 0.0
    %6001 = vmatprep.subr.mxu0 0.0
    %6002 = vmatpush2.msra.mxu0 0.0
    %6003 = vmatprep.subr.mxu0 0.0
    %6004 = vmatpush2.msra.mxu0 0.0
    %6005 = vmatprep.subr.mxu0 0.0
    %6006 = vmatpush2.msra.mxu0 0.0
    %6007 = vmatprep.subr.mxu0 0.0
    %6008 = vmatpush2.msra.mxu0 0.0
    %6009 = vmatprep.subr.mxu0 0.0
    %6010 = vmatpush2.msra.mxu0 0.0
    %6011 = vmatprep.subr.mxu0 0.0
    %6012 = vmatpush2.msra.mxu0 0.0
    %6013 = vmatprep.subr.mxu0 0.0
    %6014 = vmatpush2.msra.mxu0 0.0
    %6015 = vmatprep.subr.mxu0 0.0
    %6016 = vmatpush2.msra.mxu0 0.0
    %6017 = vmatprep.subr.mxu0 0.0
    %6018 = vmatpush2.msra.mxu0 0.0
    %6019 = vmatprep.subr.mxu0 0.0
    %6020 = vmatpush2.msra.mxu0 0.0
    %6021 = vmatprep.mubr.f32.mxu0 0.0
    %6022 = vmatmul.mubr.f32.gmra.mxu0 %v5955
    %v6023 = vpop.f32.mrf.mxu0
    %v6024 = vadd.f32 %v279, %v6023
    %v6025 = vpop.f32.mrf.mxu0
    %6026 = vdwg.mxu0
    %6027 = vmatprep.subr.mxu0 0.0
    %6028 = vmatpush1.msra.mxu0 0.0
    %6029 = vmatprep.subr.mxu0 0.0
    %6030 = vmatpush1.msra.mxu0 0.0
    %6031 = vmatprep.subr.mxu0 0.0
    %6032 = vmatpush1.msra.mxu0 0.0
    %6033 = vmatprep.subr.mxu0 0.0
    %6034 = vmatpush1.msra.mxu0 0.0
    %6035 = vmatprep.subr.mxu0 0.0
    %6036 = vmatpush1.msra.mxu0 0.0
    %6037 = vmatprep.subr.mxu0 0.0
    %6038 = vmatpush1.msra.mxu0 0.0
    %6039 = vmatprep.subr.mxu0 0.0
    %6040 = vmatpush1.msra.mxu0 0.0
    %6041 = vmatprep.subr.mxu0 0.0
    %6042 = vmatpush1.msra.mxu0 0.0
    %6043 = vmatprep.subr.mxu0 0.0
    %6044 = vmatpush1.msra.mxu0 0.0
    %6045 = vmatprep.subr.mxu0 0.0
    %6046 = vmatpush1.msra.mxu0 0.0
    %6047 = vmatprep.subr.mxu0 0.0
    %6048 = vmatpush1.msra.mxu0 0.0
    %6049 = vmatprep.subr.mxu0 0.0
    %6050 = vmatpush1.msra.mxu0 0.0
    %6051 = vmatprep.subr.mxu0 0.0
    %6052 = vmatpush1.msra.mxu0 %v255
    %6053 = vmatprep.subr.mxu0 0.0
    %6054 = vmatpush1.msra.mxu0 %v254
    %6055 = vmatprep.subr.mxu0 0.0
    %6056 = vmatpush1.msra.mxu0 %v253
    %6057 = vmatprep.subr.mxu0 0.0
    %6058 = vmatpush1.msra.mxu0 %v252
    %6059 = vmatprep.subr.mxu0 0.0
    %6060 = vmatpush2.msra.mxu0 0.0
    %6061 = vmatprep.subr.mxu0 0.0
    %6062 = vmatpush2.msra.mxu0 0.0
    %6063 = vmatprep.subr.mxu0 0.0
    %6064 = vmatpush2.msra.mxu0 0.0
    %6065 = vmatprep.subr.mxu0 0.0
    %6066 = vmatpush2.msra.mxu0 0.0
    %6067 = vmatprep.subr.mxu0 0.0
    %6068 = vmatpush2.msra.mxu0 0.0
    %6069 = vmatprep.subr.mxu0 0.0
    %6070 = vmatpush2.msra.mxu0 0.0
    %6071 = vmatprep.subr.mxu0 0.0
    %6072 = vmatpush2.msra.mxu0 0.0
    %6073 = vmatprep.subr.mxu0 0.0
    %6074 = vmatpush2.msra.mxu0 0.0
    %6075 = vmatprep.subr.mxu0 0.0
    %6076 = vmatpush2.msra.mxu0 0.0
    %6077 = vmatprep.subr.mxu0 0.0
    %6078 = vmatpush2.msra.mxu0 0.0
    %6079 = vmatprep.subr.mxu0 0.0
    %6080 = vmatpush2.msra.mxu0 0.0
    %6081 = vmatprep.subr.mxu0 0.0
    %6082 = vmatpush2.msra.mxu0 0.0
    %6083 = vmatprep.subr.mxu0 0.0
    %6084 = vmatpush2.msra.mxu0 0.0
    %6085 = vmatprep.subr.mxu0 0.0
    %6086 = vmatpush2.msra.mxu0 0.0
    %6087 = vmatprep.subr.mxu0 0.0
    %6088 = vmatpush2.msra.mxu0 0.0
    %6089 = vmatprep.subr.mxu0 0.0
    %6090 = vmatpush2.msra.mxu0 0.0
    %6091 = vmatprep.mubr.f32.mxu0 0.0
    %6092 = vmatmul.mubr.f32.gmra.mxu0 %v5776
    %v6093 = vpop.f32.mrf.mxu0
    %v6094 = vadd.f32 0.0, %v6093
    %v6095 = vpop.f32.mrf.mxu0
    %6096 = vdwg.mxu0
    %v6097 = vadd.f32 %v6024, %v6094
    %v6098 = vxor.u32 %v6097, 2147483648
    %v6099 = vmul.f32 %v6098, 1.442695
    %v6100 = vpow.pop %v6099
    %v6101 = vadd.f32 %v6100, 1.0
    %v6102 = vrcp.pop %v6101
    %v6103 = vmul.f32 1.0, %v6102
    %v6104 = vmul.f32 %v6103, 2.0
    %v6105 = vsub.f32 %v6104, 1.0
    %v6106 = vmul.f32 %v6103, %v5766
    %6108 = vrot.lane.b32.xlu0 %v6105, 64
    %v6109 = vpop.permute.xlu0 %6108
    %v6111 = vmul.f32 %v6103, %v6109
    %6113 = vrot.lane.b32.xlu0 %v6111, 32
    %v6114 = vpop.permute.xlu0 %6113
    %v6116 = vadd.f32 %v6106, %v6114
    %v6117 = vtanh.pop %v6116
    %6119 = vrot.lane.b32.xlu0 %v6117, 64
    %v6120 = vpop.permute.xlu0 %6119
    %v6122 = vmul.f32 %v6103, %v6120
    %6124 = vrot.lane.b32.xlu0 %v6122, 32
    %v6125 = vpop.permute.xlu0 %6124
    %v6126 = vsel %vm366, %v6125, 0
    %6128 = vmatprep.subr.mxu0 0.0
    %6129 = vmatpush1.msra.mxu0 0.0
    %6130 = vmatprep.subr.mxu0 0.0
    %6131 = vmatpush1.msra.mxu0 0.0
    %6132 = vmatprep.subr.mxu0 0.0
    %6133 = vmatpush1.msra.mxu0 0.0
    %6134 = vmatprep.subr.mxu0 0.0
    %6135 = vmatpush1.msra.mxu0 0.0
    %6136 = vmatprep.subr.mxu0 0.0
    %6137 = vmatpush1.msra.mxu0 0.0
    %6138 = vmatprep.subr.mxu0 0.0
    %6139 = vmatpush1.msra.mxu0 0.0
    %6140 = vmatprep.subr.mxu0 0.0
    %6141 = vmatpush1.msra.mxu0 0.0
    %6142 = vmatprep.subr.mxu0 0.0
    %6143 = vmatpush1.msra.mxu0 0.0
    %6144 = vmatprep.subr.mxu0 0.0
    %6145 = vmatpush1.msra.mxu0 0.0
    %6146 = vmatprep.subr.mxu0 0.0
    %6147 = vmatpush1.msra.mxu0 0.0
    %6148 = vmatprep.subr.mxu0 0.0
    %6149 = vmatpush1.msra.mxu0 0.0
    %6150 = vmatprep.subr.mxu0 0.0
    %6151 = vmatpush1.msra.mxu0 0.0
    %6152 = vmatprep.subr.mxu0 0.0
    %6153 = vmatpush1.msra.mxu0 %v259
    %6154 = vmatprep.subr.mxu0 0.0
    %6155 = vmatpush1.msra.mxu0 %v258
    %6156 = vmatprep.subr.mxu0 0.0
    %6157 = vmatpush1.msra.mxu0 %v257
    %6158 = vmatprep.subr.mxu0 0.0
    %6159 = vmatpush1.msra.mxu0 %v256
    %6160 = vmatprep.subr.mxu0 0.0
    %6161 = vmatpush2.msra.mxu0 0.0
    %6162 = vmatprep.subr.mxu0 0.0
    %6163 = vmatpush2.msra.mxu0 0.0
    %6164 = vmatprep.subr.mxu0 0.0
    %6165 = vmatpush2.msra.mxu0 0.0
    %6166 = vmatprep.subr.mxu0 0.0
    %6167 = vmatpush2.msra.mxu0 0.0
    %6168 = vmatprep.subr.mxu0 0.0
    %6169 = vmatpush2.msra.mxu0 0.0
    %6170 = vmatprep.subr.mxu0 0.0
    %6171 = vmatpush2.msra.mxu0 0.0
    %6172 = vmatprep.subr.mxu0 0.0
    %6173 = vmatpush2.msra.mxu0 0.0
    %6174 = vmatprep.subr.mxu0 0.0
    %6175 = vmatpush2.msra.mxu0 0.0
    %6176 = vmatprep.subr.mxu0 0.0
    %6177 = vmatpush2.msra.mxu0 0.0
    %6178 = vmatprep.subr.mxu0 0.0
    %6179 = vmatpush2.msra.mxu0 0.0
    %6180 = vmatprep.subr.mxu0 0.0
    %6181 = vmatpush2.msra.mxu0 0.0
    %6182 = vmatprep.subr.mxu0 0.0
    %6183 = vmatpush2.msra.mxu0 0.0
    %6184 = vmatprep.subr.mxu0 0.0
    %6185 = vmatpush2.msra.mxu0 0.0
    %6186 = vmatprep.subr.mxu0 0.0
    %6187 = vmatpush2.msra.mxu0 0.0
    %6188 = vmatprep.subr.mxu0 0.0
    %6189 = vmatpush2.msra.mxu0 0.0
    %6190 = vmatprep.subr.mxu0 0.0
    %6191 = vmatpush2.msra.mxu0 0.0
    %6192 = vmatprep.mubr.f32.mxu0 0.0
    %6193 = vmatmul.mubr.f32.gmra.mxu0 %v6126
    %v6194 = vpop.f32.mrf.mxu0
    %v6195 = vadd.f32 %v286, %v6194
    %v6196 = vpop.f32.mrf.mxu0
    %6197 = vdwg.mxu0
    %v6198 = vxor.u32 %v6195, 2147483648
    %v6199 = vmul.f32 %v6198, 1.442695
    %v6200 = vpow.pop %v6199
    %v6201 = vadd.f32 %v6200, 1.0
    %v6202 = vrcp.pop %v6201
    %v6203 = vmul.f32 1.0, %v6202
    %s6204 = scalar_lea.vmem %s18, 12
    %6205 = vst [vmem:[%s6204] sm:$0x3] %v6203
    %6206 = vmatprep.subr.mxu0 0.0
    %6207 = vmatpush1.msra.mxu0 0.0
    %6208 = vmatprep.subr.mxu0 0.0
    %6209 = vmatpush1.msra.mxu0 0.0
    %6210 = vmatprep.subr.mxu0 0.0
    %6211 = vmatpush1.msra.mxu0 0.0
    %6212 = vmatprep.subr.mxu0 0.0
    %6213 = vmatpush1.msra.mxu0 0.0
    %6214 = vmatprep.subr.mxu0 0.0
    %6215 = vmatpush1.msra.mxu0 0.0
    %6216 = vmatprep.subr.mxu0 0.0
    %6217 = vmatpush1.msra.mxu0 0.0
    %6218 = vmatprep.subr.mxu0 0.0
    %6219 = vmatpush1.msra.mxu0 0.0
    %6220 = vmatprep.subr.mxu0 0.0
    %6221 = vmatpush1.msra.mxu0 0.0
    %6222 = vmatprep.subr.mxu0 0.0
    %6223 = vmatpush1.msra.mxu0 0.0
    %6224 = vmatprep.subr.mxu0 0.0
    %6225 = vmatpush1.msra.mxu0 0.0
    %6226 = vmatprep.subr.mxu0 0.0
    %6227 = vmatpush1.msra.mxu0 0.0
    %6228 = vmatprep.subr.mxu0 0.0
    %6229 = vmatpush1.msra.mxu0 0.0
    %6230 = vmatprep.subr.mxu0 0.0
    %6231 = vmatpush1.msra.mxu0 %v247
    %6232 = vmatprep.subr.mxu0 0.0
    %6233 = vmatpush1.msra.mxu0 %v246
    %6234 = vmatprep.subr.mxu0 0.0
    %6235 = vmatpush1.msra.mxu0 %v245
    %6236 = vmatprep.subr.mxu0 0.0
    %6237 = vmatpush1.msra.mxu0 %v244
    %6238 = vmatprep.subr.mxu0 0.0
    %6239 = vmatpush2.msra.mxu0 0.0
    %6240 = vmatprep.subr.mxu0 0.0
    %6241 = vmatpush2.msra.mxu0 0.0
    %6242 = vmatprep.subr.mxu0 0.0
    %6243 = vmatpush2.msra.mxu0 0.0
    %6244 = vmatprep.subr.mxu0 0.0
    %6245 = vmatpush2.msra.mxu0 0.0
    %6246 = vmatprep.subr.mxu0 0.0
    %6247 = vmatpush2.msra.mxu0 0.0
    %6248 = vmatprep.subr.mxu0 0.0
    %6249 = vmatpush2.msra.mxu0 0.0
    %6250 = vmatprep.subr.mxu0 0.0
    %6251 = vmatpush2.msra.mxu0 0.0
    %6252 = vmatprep.subr.mxu0 0.0
    %6253 = vmatpush2.msra.mxu0 0.0
    %6254 = vmatprep.subr.mxu0 0.0
    %6255 = vmatpush2.msra.mxu0 0.0
    %6256 = vmatprep.subr.mxu0 0.0
    %6257 = vmatpush2.msra.mxu0 0.0
    %6258 = vmatprep.subr.mxu0 0.0
    %6259 = vmatpush2.msra.mxu0 0.0
    %6260 = vmatprep.subr.mxu0 0.0
    %6261 = vmatpush2.msra.mxu0 0.0
    %6262 = vmatprep.subr.mxu0 0.0
    %6263 = vmatpush2.msra.mxu0 0.0
    %6264 = vmatprep.subr.mxu0 0.0
    %6265 = vmatpush2.msra.mxu0 0.0
    %6266 = vmatprep.subr.mxu0 0.0
    %6267 = vmatpush2.msra.mxu0 0.0
    %6268 = vmatprep.subr.mxu0 0.0
    %6269 = vmatpush2.msra.mxu0 0.0
    %6270 = vmatprep.mubr.f32.mxu0 0.0
    %6271 = vmatmul.mubr.f32.gmra.mxu0 %v5955
    %v6272 = vpop.f32.mrf.mxu0
    %v6273 = vadd.f32 0.0, %v6272
    %v6274 = vpop.f32.mrf.mxu0
    %6275 = vdwg.mxu0
    %v6276 = vadd.f32 %v3754, %v6273
    %v6277 = vxor.u32 %v6276, 2147483648
    %v6278 = vmul.f32 %v6277, 1.442695
    %v6279 = vpow.pop %v6278
    %v6280 = vadd.f32 %v6279, 1.0
    %v6281 = vrcp.pop %v6280
    %v6282 = vmul.f32 1.0, %v6281
    %v6283 = vmul.f32 %v6282, 2.0
    %v6284 = vsub.f32 %v6283, 1.0
    %v6285 = vmul.f32 %v6282, %v5945
    %6287 = vrot.lane.b32.xlu0 %v6284, 64
    %v6288 = vpop.permute.xlu0 %6287
    %v6290 = vmul.f32 %v6282, %v6288
    %6292 = vrot.lane.b32.xlu0 %v6290, 32
    %v6293 = vpop.permute.xlu0 %6292
    %v6295 = vadd.f32 %v6285, %v6293
    %v6296 = vtanh.pop %v6295
    %6298 = vrot.lane.b32.xlu0 %v6296, 64
    %v6299 = vpop.permute.xlu0 %6298
    %v6301 = vmul.f32 %v6282, %v6299
    %6303 = vrot.lane.b32.xlu0 %v6301, 32
    %v6304 = vpop.permute.xlu0 %6303
    %v6305 = vsel %vm366, %v6304, 0
    %6307 = vmatprep.subr.mxu0 0.0
    %6308 = vmatpush1.msra.mxu0 0.0
    %6309 = vmatprep.subr.mxu0 0.0
    %6310 = vmatpush1.msra.mxu0 0.0
    %6311 = vmatprep.subr.mxu0 0.0
    %6312 = vmatpush1.msra.mxu0 0.0
    %6313 = vmatprep.subr.mxu0 0.0
    %6314 = vmatpush1.msra.mxu0 0.0
    %6315 = vmatprep.subr.mxu0 0.0
    %6316 = vmatpush1.msra.mxu0 0.0
    %6317 = vmatprep.subr.mxu0 0.0
    %6318 = vmatpush1.msra.mxu0 0.0
    %6319 = vmatprep.subr.mxu0 0.0
    %6320 = vmatpush1.msra.mxu0 0.0
    %6321 = vmatprep.subr.mxu0 0.0
    %6322 = vmatpush1.msra.mxu0 0.0
    %6323 = vmatprep.subr.mxu0 0.0
    %6324 = vmatpush1.msra.mxu0 0.0
    %6325 = vmatprep.subr.mxu0 0.0
    %6326 = vmatpush1.msra.mxu0 0.0
    %6327 = vmatprep.subr.mxu0 0.0
    %6328 = vmatpush1.msra.mxu0 0.0
    %6329 = vmatprep.subr.mxu0 0.0
    %6330 = vmatpush1.msra.mxu0 0.0
    %6331 = vmatprep.subr.mxu0 0.0
    %6332 = vmatpush1.msra.mxu0 %v251
    %6333 = vmatprep.subr.mxu0 0.0
    %6334 = vmatpush1.msra.mxu0 %v250
    %6335 = vmatprep.subr.mxu0 0.0
    %6336 = vmatpush1.msra.mxu0 %v249
    %6337 = vmatprep.subr.mxu0 0.0
    %6338 = vmatpush1.msra.mxu0 %v248
    %6339 = vmatprep.subr.mxu0 0.0
    %6340 = vmatpush2.msra.mxu0 0.0
    %6341 = vmatprep.subr.mxu0 0.0
    %6342 = vmatpush2.msra.mxu0 0.0
    %6343 = vmatprep.subr.mxu0 0.0
    %6344 = vmatpush2.msra.mxu0 0.0
    %6345 = vmatprep.subr.mxu0 0.0
    %6346 = vmatpush2.msra.mxu0 0.0
    %6347 = vmatprep.subr.mxu0 0.0
    %6348 = vmatpush2.msra.mxu0 0.0
    %6349 = vmatprep.subr.mxu0 0.0
    %6350 = vmatpush2.msra.mxu0 0.0
    %6351 = vmatprep.subr.mxu0 0.0
    %6352 = vmatpush2.msra.mxu0 0.0
    %6353 = vmatprep.subr.mxu0 0.0
    %6354 = vmatpush2.msra.mxu0 0.0
    %6355 = vmatprep.subr.mxu0 0.0
    %6356 = vmatpush2.msra.mxu0 0.0
    %6357 = vmatprep.subr.mxu0 0.0
    %6358 = vmatpush2.msra.mxu0 0.0
    %6359 = vmatprep.subr.mxu0 0.0
    %6360 = vmatpush2.msra.mxu0 0.0
    %6361 = vmatprep.subr.mxu0 0.0
    %6362 = vmatpush2.msra.mxu0 0.0
    %6363 = vmatprep.subr.mxu0 0.0
    %6364 = vmatpush2.msra.mxu0 0.0
    %6365 = vmatprep.subr.mxu0 0.0
    %6366 = vmatpush2.msra.mxu0 0.0
    %6367 = vmatprep.subr.mxu0 0.0
    %6368 = vmatpush2.msra.mxu0 0.0
    %6369 = vmatprep.subr.mxu0 0.0
    %6370 = vmatpush2.msra.mxu0 0.0
    %6371 = vmatprep.mubr.f32.mxu0 0.0
    %6372 = vmatmul.mubr.f32.gmra.mxu0 %v6305
    %v6373 = vpop.f32.mrf.mxu0
    %v6374 = vadd.f32 %v279, %v6373
    %v6375 = vpop.f32.mrf.mxu0
    %6376 = vdwg.mxu0
    %6377 = vmatprep.subr.mxu0 0.0
    %6378 = vmatpush1.msra.mxu0 0.0
    %6379 = vmatprep.subr.mxu0 0.0
    %6380 = vmatpush1.msra.mxu0 0.0
    %6381 = vmatprep.subr.mxu0 0.0
    %6382 = vmatpush1.msra.mxu0 0.0
    %6383 = vmatprep.subr.mxu0 0.0
    %6384 = vmatpush1.msra.mxu0 0.0
    %6385 = vmatprep.subr.mxu0 0.0
    %6386 = vmatpush1.msra.mxu0 0.0
    %6387 = vmatprep.subr.mxu0 0.0
    %6388 = vmatpush1.msra.mxu0 0.0
    %6389 = vmatprep.subr.mxu0 0.0
    %6390 = vmatpush1.msra.mxu0 0.0
    %6391 = vmatprep.subr.mxu0 0.0
    %6392 = vmatpush1.msra.mxu0 0.0
    %6393 = vmatprep.subr.mxu0 0.0
    %6394 = vmatpush1.msra.mxu0 0.0
    %6395 = vmatprep.subr.mxu0 0.0
    %6396 = vmatpush1.msra.mxu0 0.0
    %6397 = vmatprep.subr.mxu0 0.0
    %6398 = vmatpush1.msra.mxu0 0.0
    %6399 = vmatprep.subr.mxu0 0.0
    %6400 = vmatpush1.msra.mxu0 0.0
    %6401 = vmatprep.subr.mxu0 0.0
    %6402 = vmatpush1.msra.mxu0 %v255
    %6403 = vmatprep.subr.mxu0 0.0
    %6404 = vmatpush1.msra.mxu0 %v254
    %6405 = vmatprep.subr.mxu0 0.0
    %6406 = vmatpush1.msra.mxu0 %v253
    %6407 = vmatprep.subr.mxu0 0.0
    %6408 = vmatpush1.msra.mxu0 %v252
    %6409 = vmatprep.subr.mxu0 0.0
    %6410 = vmatpush2.msra.mxu0 0.0
    %6411 = vmatprep.subr.mxu0 0.0
    %6412 = vmatpush2.msra.mxu0 0.0
    %6413 = vmatprep.subr.mxu0 0.0
    %6414 = vmatpush2.msra.mxu0 0.0
    %6415 = vmatprep.subr.mxu0 0.0
    %6416 = vmatpush2.msra.mxu0 0.0
    %6417 = vmatprep.subr.mxu0 0.0
    %6418 = vmatpush2.msra.mxu0 0.0
    %6419 = vmatprep.subr.mxu0 0.0
    %6420 = vmatpush2.msra.mxu0 0.0
    %6421 = vmatprep.subr.mxu0 0.0
    %6422 = vmatpush2.msra.mxu0 0.0
    %6423 = vmatprep.subr.mxu0 0.0
    %6424 = vmatpush2.msra.mxu0 0.0
    %6425 = vmatprep.subr.mxu0 0.0
    %6426 = vmatpush2.msra.mxu0 0.0
    %6427 = vmatprep.subr.mxu0 0.0
    %6428 = vmatpush2.msra.mxu0 0.0
    %6429 = vmatprep.subr.mxu0 0.0
    %6430 = vmatpush2.msra.mxu0 0.0
    %6431 = vmatprep.subr.mxu0 0.0
    %6432 = vmatpush2.msra.mxu0 0.0
    %6433 = vmatprep.subr.mxu0 0.0
    %6434 = vmatpush2.msra.mxu0 0.0
    %6435 = vmatprep.subr.mxu0 0.0
    %6436 = vmatpush2.msra.mxu0 0.0
    %6437 = vmatprep.subr.mxu0 0.0
    %6438 = vmatpush2.msra.mxu0 0.0
    %6439 = vmatprep.subr.mxu0 0.0
    %6440 = vmatpush2.msra.mxu0 0.0
    %6441 = vmatprep.mubr.f32.mxu0 0.0
    %6442 = vmatmul.mubr.f32.gmra.mxu0 %v6126
    %v6443 = vpop.f32.mrf.mxu0
    %v6444 = vadd.f32 0.0, %v6443
    %v6445 = vpop.f32.mrf.mxu0
    %6446 = vdwg.mxu0
    %v6447 = vadd.f32 %v6374, %v6444
    %v6448 = vxor.u32 %v6447, 2147483648
    %v6449 = vmul.f32 %v6448, 1.442695
    %v6450 = vpow.pop %v6449
    %v6451 = vadd.f32 %v6450, 1.0
    %v6452 = vrcp.pop %v6451
    %v6453 = vmul.f32 1.0, %v6452
    %v6454 = vmul.f32 %v6453, 2.0
    %v6455 = vsub.f32 %v6454, 1.0
    %v6456 = vmul.f32 %v6453, %v6116
    %6458 = vrot.lane.b32.xlu0 %v6455, 64
    %v6459 = vpop.permute.xlu0 %6458
    %v6461 = vmul.f32 %v6453, %v6459
    %6463 = vrot.lane.b32.xlu0 %v6461, 32
    %v6464 = vpop.permute.xlu0 %6463
    %v6466 = vadd.f32 %v6456, %v6464
    %v6467 = vtanh.pop %v6466
    %6469 = vrot.lane.b32.xlu0 %v6467, 64
    %v6470 = vpop.permute.xlu0 %6469
    %v6472 = vmul.f32 %v6453, %v6470
    %6474 = vrot.lane.b32.xlu0 %v6472, 32
    %v6475 = vpop.permute.xlu0 %6474
    %v6476 = vsel %vm366, %v6475, 0
    %6478 = vmatprep.subr.mxu0 0.0
    %6479 = vmatpush1.msra.mxu0 0.0
    %6480 = vmatprep.subr.mxu0 0.0
    %6481 = vmatpush1.msra.mxu0 0.0
    %6482 = vmatprep.subr.mxu0 0.0
    %6483 = vmatpush1.msra.mxu0 0.0
    %6484 = vmatprep.subr.mxu0 0.0
    %6485 = vmatpush1.msra.mxu0 0.0
    %6486 = vmatprep.subr.mxu0 0.0
    %6487 = vmatpush1.msra.mxu0 0.0
    %6488 = vmatprep.subr.mxu0 0.0
    %6489 = vmatpush1.msra.mxu0 0.0
    %6490 = vmatprep.subr.mxu0 0.0
    %6491 = vmatpush1.msra.mxu0 0.0
    %6492 = vmatprep.subr.mxu0 0.0
    %6493 = vmatpush1.msra.mxu0 0.0
    %6494 = vmatprep.subr.mxu0 0.0
    %6495 = vmatpush1.msra.mxu0 0.0
    %6496 = vmatprep.subr.mxu0 0.0
    %6497 = vmatpush1.msra.mxu0 0.0
    %6498 = vmatprep.subr.mxu0 0.0
    %6499 = vmatpush1.msra.mxu0 0.0
    %6500 = vmatprep.subr.mxu0 0.0
    %6501 = vmatpush1.msra.mxu0 0.0
    %6502 = vmatprep.subr.mxu0 0.0
    %6503 = vmatpush1.msra.mxu0 %v259
    %6504 = vmatprep.subr.mxu0 0.0
    %6505 = vmatpush1.msra.mxu0 %v258
    %6506 = vmatprep.subr.mxu0 0.0
    %6507 = vmatpush1.msra.mxu0 %v257
    %6508 = vmatprep.subr.mxu0 0.0
    %6509 = vmatpush1.msra.mxu0 %v256
    %6510 = vmatprep.subr.mxu0 0.0
    %6511 = vmatpush2.msra.mxu0 0.0
    %6512 = vmatprep.subr.mxu0 0.0
    %6513 = vmatpush2.msra.mxu0 0.0
    %6514 = vmatprep.subr.mxu0 0.0
    %6515 = vmatpush2.msra.mxu0 0.0
    %6516 = vmatprep.subr.mxu0 0.0
    %6517 = vmatpush2.msra.mxu0 0.0
    %6518 = vmatprep.subr.mxu0 0.0
    %6519 = vmatpush2.msra.mxu0 0.0
    %6520 = vmatprep.subr.mxu0 0.0
    %6521 = vmatpush2.msra.mxu0 0.0
    %6522 = vmatprep.subr.mxu0 0.0
    %6523 = vmatpush2.msra.mxu0 0.0
    %6524 = vmatprep.subr.mxu0 0.0
    %6525 = vmatpush2.msra.mxu0 0.0
    %6526 = vmatprep.subr.mxu0 0.0
    %6527 = vmatpush2.msra.mxu0 0.0
    %6528 = vmatprep.subr.mxu0 0.0
    %6529 = vmatpush2.msra.mxu0 0.0
    %6530 = vmatprep.subr.mxu0 0.0
    %6531 = vmatpush2.msra.mxu0 0.0
    %6532 = vmatprep.subr.mxu0 0.0
    %6533 = vmatpush2.msra.mxu0 0.0
    %6534 = vmatprep.subr.mxu0 0.0
    %6535 = vmatpush2.msra.mxu0 0.0
    %6536 = vmatprep.subr.mxu0 0.0
    %6537 = vmatpush2.msra.mxu0 0.0
    %6538 = vmatprep.subr.mxu0 0.0
    %6539 = vmatpush2.msra.mxu0 0.0
    %6540 = vmatprep.subr.mxu0 0.0
    %6541 = vmatpush2.msra.mxu0 0.0
    %6542 = vmatprep.mubr.f32.mxu0 0.0
    %6543 = vmatmul.mubr.f32.gmra.mxu0 %v6476
    %v6544 = vpop.f32.mrf.mxu0
    %v6545 = vadd.f32 %v286, %v6544
    %v6546 = vpop.f32.mrf.mxu0
    %6547 = vdwg.mxu0
    %v6548 = vxor.u32 %v6545, 2147483648
    %v6549 = vmul.f32 %v6548, 1.442695
    %v6550 = vpow.pop %v6549
    %v6551 = vadd.f32 %v6550, 1.0
    %v6552 = vrcp.pop %v6551
    %v6553 = vmul.f32 1.0, %v6552
    %s6554 = scalar_lea.vmem %s18, 14
    %6555 = vst [vmem:[%s6554] sm:$0x3] %v6553
    // Predicated region
    $region122: #{vae_lstm_forward.1} parent=1 // pred_check
      _
    $region123: #{vae_lstm_forward.1} parent=1 // pred_check_branch
      %6557 = sbr.rel (0) target = $region125
    $region124: #{vae_lstm_forward.1} parent=1 // pred_region
      _
    $region125: #{vae_lstm_forward.1} parent=1 // pred_fallthru
      _
    // Predicated region
    $region126: #{vae_lstm_forward.1} parent=1 // pred_check
      _
    $region127: #{vae_lstm_forward.1} parent=1 // pred_check_branch
      %6559 = sbr.rel (0) target = $region129
    $region128: #{vae_lstm_forward.1} parent=1 // pred_region
      _
    $region129: #{vae_lstm_forward.1} parent=1 // pred_fallthru
      _
    // Predicated region
    $region130: #{vae_lstm_forward.1} parent=1 // pred_check
      _
    $region131: #{vae_lstm_forward.1} parent=1 // pred_check_branch
      %6561 = sbr.rel (0) target = $region133
    $region132: #{vae_lstm_forward.1} parent=1 // pred_region
      _
    $region133: #{vae_lstm_forward.1} parent=1 // pred_fallthru
      _
    // Predicated region
    $region134: #{vae_lstm_forward.1} parent=1 // pred_check
      _
    $region135: #{vae_lstm_forward.1} parent=1 // pred_check_branch
      %6563 = sbr.rel (0) target = $region137
    $region136: #{vae_lstm_forward.1} parent=1 // pred_region
      _
    $region137: #{vae_lstm_forward.1} parent=1 // pred_fallthru
      _
    %6564 = vsyncpa [#allocation3], 1
    %6565 = vsyncpa [#allocation5], 1
    %6566 = vsyncpa [#allocation8], 1
    %6567 = vsyncpa [#allocation11], 1
    %6568 = vsyncpa [#allocation14], 1
    %6569 = vsyncpa [#allocation17], 1
    %6570 = vsyncpa [#allocation20], 1

</llo_original>
